<compile_context>
chip_gen: v6e
topology: v6e:2x2x1
jax: 0.10.0
libtpu: 0.0.40
codegen_flags: <defaults>
</compile_context>

<pallas_src>
import functools

import jax
import jax.numpy as jnp
from jax import lax
from jax.experimental import pallas as pl
from jax.experimental.pallas import tpu as pltpu

_LANE_PAD = 128  # zero halo on the flat spatial axis; > max |dy*W + dx|, lane-aligned


def _srcnn_kernel(x_ref, row_ref, col_ref,
                  w1_ref, b1_ref, w2_ref, b2_ref, w3_ref, b3_ref,
                  o_ref, p1_ref, p3_ref, *, H, W):
    HW = H * W
    f32 = jnp.float32
    rowi = row_ref[...]        # (1, HW) int32: h coordinate of each flat index
    coli = col_ref[...]        # (1, HW) int32: w coordinate of each flat index

    def build_patches(src, K, out_ref):
        """im2col: src (C, HW) -> out_ref[(K*K*C, HW)] for a zero-padded 'same' conv."""
        C = src.shape[0]
        kpad = (K - 1) // 2
        z = jnp.zeros((C, _LANE_PAD), f32)
        padded = jnp.concatenate([z, src, z], axis=1)        # lane-aligned concat
        r = 0
        for ky in range(K):
            dy = ky - kpad
            for kx in range(K):
                dx = kx - kpad
                s = dy * W + dx
                # Flat shift: at valid positions hw + s == (h+dy)*W + (w+dx).
                shifted = padded[:, _LANE_PAD + s:_LANE_PAD + s + HW]   # (C, HW)
                valid = ((rowi + dy >= 0) & (rowi + dy < H) &
                         (coli + dx >= 0) & (coli + dx < W))
                out_ref[r:r + C, :] = shifted * valid.astype(f32)
                r += C

    x = x_ref[0].astype(f32)                                 # (Cin, HW), lane-dense

    # conv1: 9x9, 2 -> 64, ReLU  (single MXU matmul)
    build_patches(x, 9, p1_ref)
    a1 = jnp.dot(w1_ref[...], p1_ref[...], preferred_element_type=f32)
    a1 = jnp.maximum(a1 + b1_ref[...], 0.0)                  # (64, HW)

    # conv2: 1x1, 64 -> 32, ReLU  (plain matmul, no im2col needed)
    a2 = jnp.dot(w2_ref[...], a1, preferred_element_type=f32)
    a2 = jnp.maximum(a2 + b2_ref[...], 0.0)                  # (32, HW)

    # conv3: 5x5, 32 -> 2  (single MXU matmul)
    build_patches(a2, 5, p3_ref)
    y = jnp.dot(w3_ref[...], p3_ref[...], preferred_element_type=f32) + b3_ref[...]

    o_ref[0] = y.astype(o_ref.dtype)                         # (Cout, HW), lane-dense


def srcnn_forward(x_nchw, params):
    N, Cin, H, W = x_nchw.shape
    HW = H * W
    C1, C2, Cout = 64, 32, 2
    K1, K3 = 9, 5

    # Weights pre-arranged for (Cout, K*K*Cin) x (K*K*Cin, HW) matmuls.
    w1t = params["w1"].reshape(K1 * K1 * Cin, C1).T          # (64, 162)
    w2t = params["w2"].reshape(C1, C2).T                     # (32, 64)
    w3t = params["w3"].reshape(K3 * K3 * C2, Cout).T         # (2, 800)
    b1 = params["b1"].reshape(C1, 1)
    b2 = params["b2"].reshape(C2, 1)
    b3 = params["b3"].reshape(Cout, 1)

    # Flat NCHW view (free): channels on sublanes, H*W on lanes.
    x_flat = x_nchw.reshape(N, Cin, HW)

    # (h, w) coordinate of every flat spatial index; reused for all boundary masks.
    hw = jnp.arange(HW, dtype=jnp.int32)
    rowi = (hw // W).reshape(1, HW)
    coli = (hw % W).reshape(1, HW)

    kernel = functools.partial(_srcnn_kernel, H=H, W=W)
    full = lambda shape: pl.BlockSpec(shape, lambda n, _s=shape: (0,) * len(_s))

    out_flat = pl.pallas_call(
        kernel,
        out_shape=jax.ShapeDtypeStruct((N, Cout, HW), x_nchw.dtype),
        grid=(N,),
        in_specs=[
            pl.BlockSpec((1, Cin, HW), lambda n: (n, 0, 0)),
            full((1, HW)), full((1, HW)),
            full((C1, K1 * K1 * Cin)), full((C1, 1)),
            full((C2, C1)), full((C2, 1)),
            full((Cout, K3 * K3 * C2)), full((Cout, 1)),
        ],
        out_specs=pl.BlockSpec((1, Cout, HW), lambda n: (n, 0, 0)),
        scratch_shapes=[
            pltpu.VMEM((K1 * K1 * Cin, HW), jnp.float32),    # conv1 im2col matrix
            pltpu.VMEM((K3 * K3 * C2, HW), jnp.float32),     # conv3 im2col matrix
        ],
        compiler_params=pltpu.CompilerParams(
            dimension_semantics=("parallel",)),
    )(x_flat, rowi, coli, w1t, b1, w2t, b2, w3t, b3)

    return out_flat.reshape(N, Cout, H, W)


def init_params(key):
    """Deterministic PyTorch-default-style (uniform +-1/sqrt(fan_in)) init, HWIO."""
    def conv_init(k, K, Cin, Cout):
        kw, kb = jax.random.split(k)
        bound = 1.0 / (Cin * K * K) ** 0.5
        w = jax.random.uniform(kw, (K, K, Cin, Cout), jnp.float32, -bound, bound)
        b = jax.random.uniform(kb, (Cout,), jnp.float32, -bound, bound)
        return w, b

    k1, k2, k3 = jax.random.split(key, 3)
    w1, b1 = conv_init(k1, 9, 2, 64)
    w2, b2 = conv_init(k2, 1, 64, 32)
    w3, b3 = conv_init(k3, 5, 32, 2)
    return dict(w1=w1, b1=b1, w2=w2, b2=b2, w3=w3, b3=b3)


def _conv_ref(x, w_hwio, b, relu):
    pad = (w_hwio.shape[0] - 1) // 2
    y = lax.conv_general_dilated(
        x, w_hwio, (1, 1), [(pad, pad), (pad, pad)],
        dimension_numbers=("NCHW", "HWIO", "NCHW"))
    y = y + b.reshape(1, -1, 1, 1)
    return jnp.maximum(y, 0.0) if relu else y


def srcnn_ref(x_nchw, params):
    x = _conv_ref(x_nchw, params["w1"], params["b1"], True)
    x = _conv_ref(x, params["w2"], params["b2"], True)
    x = _conv_ref(x, params["w3"], params["b3"], False)
    return x


if __name__ == "__main__":
    key = jax.random.PRNGKey(0)
    kx, kp = jax.random.split(key)

    # SRCNN takes 2-channel input (conv1 in_channels=2): NCHW = (2, 2, 16, 16)
    x = jax.random.normal(kx, (2, 2, 16, 16), jnp.float32)
    params = init_params(kp)

    out = jax.block_until_ready(jax.jit(srcnn_forward)(x, params))
    assert out.shape == (2, 2, 16, 16), out.shape

    ref = jax.block_until_ready(srcnn_ref(x, params))
    if not jnp.allclose(out, ref, rtol=1e-4, atol=1e-4):
        err = float(jnp.max(jnp.abs(out - ref)))
        raise AssertionError(f"Pallas SRCNN mismatch vs XLA conv reference (max err {err})")

    print("KERNEL_OK")
</pallas_src>

<mosaic_0001>
module attributes {stable_mosaic.version = 11 : i64} {
  func.func @_srcnn_kernel(%arg0: i32, %arg1: memref<1x2x256xf32, #tpu.memory_space<vmem>>, %arg2: memref<1x256xi32, #tpu.memory_space<vmem>>, %arg3: memref<1x256xi32, #tpu.memory_space<vmem>>, %arg4: memref<64x162xf32, #tpu.memory_space<vmem>>, %arg5: memref<64x1xf32, #tpu.memory_space<vmem>>, %arg6: memref<32x64xf32, #tpu.memory_space<vmem>>, %arg7: memref<32x1xf32, #tpu.memory_space<vmem>>, %arg8: memref<2x800xf32, #tpu.memory_space<vmem>>, %arg9: memref<2x1xf32, #tpu.memory_space<vmem>>, %arg10: memref<1x2x256xf32, #tpu.memory_space<vmem>>, %arg11: memref<162x256xf32, #tpu.memory_space<vmem>>, %arg12: memref<800x256xf32, #tpu.memory_space<vmem>>) attributes {dimension_semantics = [#tpu.dimension_semantics<parallel>], iteration_bounds = array<i64: 2>, scalar_prefetch = 0 : i64, scratch_operands = 2 : i64, tpu.core_type = #tpu.core_type<tc>, window_params = [{transform_indices = @transform_0, window_bounds = array<i64: 1, 2, 256>}, {pipeline_mode = #tpu.pipeline_mode<synchronous>, transform_indices = @transform_1, window_bounds = array<i64: 1, 256>}, {pipeline_mode = #tpu.pipeline_mode<synchronous>, transform_indices = @transform_2, window_bounds = array<i64: 1, 256>}, {pipeline_mode = #tpu.pipeline_mode<synchronous>, transform_indices = @transform_3, window_bounds = array<i64: 64, 162>}, {pipeline_mode = #tpu.pipeline_mode<synchronous>, transform_indices = @transform_4, window_bounds = array<i64: 64, 1>}, {pipeline_mode = #tpu.pipeline_mode<synchronous>, transform_indices = @transform_5, window_bounds = array<i64: 32, 64>}, {pipeline_mode = #tpu.pipeline_mode<synchronous>, transform_indices = @transform_6, window_bounds = array<i64: 32, 1>}, {pipeline_mode = #tpu.pipeline_mode<synchronous>, transform_indices = @transform_7, window_bounds = array<i64: 2, 800>}, {pipeline_mode = #tpu.pipeline_mode<synchronous>, transform_indices = @transform_8, window_bounds = array<i64: 2, 1>}, {transform_indices = @transform_9, window_bounds = array<i64: 1, 2, 256>}]} {
    %c0 = arith.constant 0 : index
    %c0_0 = arith.constant 0 : index
    %0 = vector.load %arg2[%c0, %c0_0] : memref<1x256xi32, #tpu.memory_space<vmem>>, vector<1x256xi32>
    %c0_1 = arith.constant 0 : index
    %c0_2 = arith.constant 0 : index
    %1 = vector.load %arg3[%c0_1, %c0_2] : memref<1x256xi32, #tpu.memory_space<vmem>>, vector<1x256xi32>
    %c0_3 = arith.constant 0 : index
    %c0_4 = arith.constant 0 : index
    %c0_5 = arith.constant 0 : index
    %2 = vector.load %arg1[%c0_3, %c0_4, %c0_5] : memref<1x2x256xf32, #tpu.memory_space<vmem>>, vector<1x2x256xf32>
    %3 = vector.shape_cast %2 : vector<1x2x256xf32> to vector<2x256xf32>
    %cst = arith.constant 0.000000e+00 : f32
    %4 = vector.broadcast %cst : f32 to vector<2x128xf32>
    %5 = tpu.concatenate %4, %3, %4 in 1 : vector<2x128xf32>, vector<2x256xf32>, vector<2x128xf32> -> vector<2x512xf32>
    %6 = vector.extract_strided_slice %5 {offsets = [0, 60], sizes = [2, 256], strides = [1, 1]} : vector<2x512xf32> to vector<2x256xf32>
    %c-4_i32 = arith.constant -4 : i32
    %7 = vector.broadcast %c-4_i32 : i32 to vector<1x256xi32>
    %8 = arith.addi %0, %7 : vector<1x256xi32>
    %c0_i32 = arith.constant 0 : i32
    %9 = vector.broadcast %c0_i32 : i32 to vector<1x256xi32>
    %10 = arith.cmpi sge, %8, %9 : vector<1x256xi32>
    %c-4_i32_6 = arith.constant -4 : i32
    %11 = vector.broadcast %c-4_i32_6 : i32 to vector<1x256xi32>
    %12 = arith.addi %0, %11 : vector<1x256xi32>
    %c16_i32 = arith.constant 16 : i32
    %13 = vector.broadcast %c16_i32 : i32 to vector<1x256xi32>
    %14 = arith.cmpi slt, %12, %13 : vector<1x256xi32>
    %15 = arith.andi %10, %14 : vector<1x256xi1>
    %c-4_i32_7 = arith.constant -4 : i32
    %16 = vector.broadcast %c-4_i32_7 : i32 to vector<1x256xi32>
    %17 = arith.addi %1, %16 : vector<1x256xi32>
    %c0_i32_8 = arith.constant 0 : i32
    %18 = vector.broadcast %c0_i32_8 : i32 to vector<1x256xi32>
    %19 = arith.cmpi sge, %17, %18 : vector<1x256xi32>
    %20 = arith.andi %15, %19 : vector<1x256xi1>
    %c-4_i32_9 = arith.constant -4 : i32
    %21 = vector.broadcast %c-4_i32_9 : i32 to vector<1x256xi32>
    %22 = arith.addi %1, %21 : vector<1x256xi32>
    %c16_i32_10 = arith.constant 16 : i32
    %23 = vector.broadcast %c16_i32_10 : i32 to vector<1x256xi32>
    %24 = arith.cmpi slt, %22, %23 : vector<1x256xi32>
    %25 = arith.andi %20, %24 : vector<1x256xi1>
    %26 = arith.extui %25 : vector<1x256xi1> to vector<1x256xi32>
    %27 = arith.sitofp %26 : vector<1x256xi32> to vector<1x256xf32>
    %28 = vector.broadcast %27 : vector<1x256xf32> to vector<2x256xf32>
    %29 = arith.mulf %6, %28 : vector<2x256xf32>
    %c0_11 = arith.constant 0 : index
    %c0_12 = arith.constant 0 : index
    %30 = vector.load %arg11[%c0_11, %c0_12] : memref<162x256xf32, #tpu.memory_space<vmem>>, vector<2x256xf32>
    tpu.vector_store %arg11[%c0_11, %c0_12], %29 {strides = array<i32>} : memref<162x256xf32, #tpu.memory_space<vmem>>, vector<2x256xf32>,
    %31 = vector.extract_strided_slice %5 {offsets = [0, 61], sizes = [2, 256], strides = [1, 1]} : vector<2x512xf32> to vector<2x256xf32>
    %c-4_i32_13 = arith.constant -4 : i32
    %32 = vector.broadcast %c-4_i32_13 : i32 to vector<1x256xi32>
    %33 = arith.addi %0, %32 : vector<1x256xi32>
    %c0_i32_14 = arith.constant 0 : i32
    %34 = vector.broadcast %c0_i32_14 : i32 to vector<1x256xi32>
    %35 = arith.cmpi sge, %33, %34 : vector<1x256xi32>
    %c-4_i32_15 = arith.constant -4 : i32
    %36 = vector.broadcast %c-4_i32_15 : i32 to vector<1x256xi32>
    %37 = arith.addi %0, %36 : vector<1x256xi32>
    %c16_i32_16 = arith.constant 16 : i32
    %38 = vector.broadcast %c16_i32_16 : i32 to vector<1x256xi32>
    %39 = arith.cmpi slt, %37, %38 : vector<1x256xi32>
    %40 = arith.andi %35, %39 : vector<1x256xi1>
    %c-3_i32 = arith.constant -3 : i32
    %41 = vector.broadcast %c-3_i32 : i32 to vector<1x256xi32>
    %42 = arith.addi %1, %41 : vector<1x256xi32>
    %c0_i32_17 = arith.constant 0 : i32
    %43 = vector.broadcast %c0_i32_17 : i32 to vector<1x256xi32>
    %44 = arith.cmpi sge, %42, %43 : vector<1x256xi32>
    %45 = arith.andi %40, %44 : vector<1x256xi1>
    %c-3_i32_18 = arith.constant -3 : i32
    %46 = vector.broadcast %c-3_i32_18 : i32 to vector<1x256xi32>
    %47 = arith.addi %1, %46 : vector<1x256xi32>
    %c16_i32_19 = arith.constant 16 : i32
    %48 = vector.broadcast %c16_i32_19 : i32 to vector<1x256xi32>
    %49 = arith.cmpi slt, %47, %48 : vector<1x256xi32>
    %50 = arith.andi %45, %49 : vector<1x256xi1>
    %51 = arith.extui %50 : vector<1x256xi1> to vector<1x256xi32>
    %52 = arith.sitofp %51 : vector<1x256xi32> to vector<1x256xf32>
    %53 = vector.broadcast %52 : vector<1x256xf32> to vector<2x256xf32>
    %54 = arith.mulf %31, %53 : vector<2x256xf32>
    %c2 = arith.constant 2 : index
    %c0_20 = arith.constant 0 : index
    %55 = vector.load %arg11[%c2, %c0_20] : memref<162x256xf32, #tpu.memory_space<vmem>>, vector<2x256xf32>
    tpu.vector_store %arg11[%c2, %c0_20], %54 {strides = array<i32>} : memref<162x256xf32, #tpu.memory_space<vmem>>, vector<2x256xf32>,
    %56 = vector.extract_strided_slice %5 {offsets = [0, 62], sizes = [2, 256], strides = [1, 1]} : vector<2x512xf32> to vector<2x256xf32>
    %c-4_i32_21 = arith.constant -4 : i32
    %57 = vector.broadcast %c-4_i32_21 : i32 to vector<1x256xi32>
    %58 = arith.addi %0, %57 : vector<1x256xi32>
    %c0_i32_22 = arith.constant 0 : i32
    %59 = vector.broadcast %c0_i32_22 : i32 to vector<1x256xi32>
    %60 = arith.cmpi sge, %58, %59 : vector<1x256xi32>
    %c-4_i32_23 = arith.constant -4 : i32
    %61 = vector.broadcast %c-4_i32_23 : i32 to vector<1x256xi32>
    %62 = arith.addi %0, %61 : vector<1x256xi32>
    %c16_i32_24 = arith.constant 16 : i32
    %63 = vector.broadcast %c16_i32_24 : i32 to vector<1x256xi32>
    %64 = arith.cmpi slt, %62, %63 : vector<1x256xi32>
    %65 = arith.andi %60, %64 : vector<1x256xi1>
    %c-2_i32 = arith.constant -2 : i32
    %66 = vector.broadcast %c-2_i32 : i32 to vector<1x256xi32>
    %67 = arith.addi %1, %66 : vector<1x256xi32>
    %c0_i32_25 = arith.constant 0 : i32
    %68 = vector.broadcast %c0_i32_25 : i32 to vector<1x256xi32>
    %69 = arith.cmpi sge, %67, %68 : vector<1x256xi32>
    %70 = arith.andi %65, %69 : vector<1x256xi1>
    %c-2_i32_26 = arith.constant -2 : i32
    %71 = vector.broadcast %c-2_i32_26 : i32 to vector<1x256xi32>
    %72 = arith.addi %1, %71 : vector<1x256xi32>
    %c16_i32_27 = arith.constant 16 : i32
    %73 = vector.broadcast %c16_i32_27 : i32 to vector<1x256xi32>
    %74 = arith.cmpi slt, %72, %73 : vector<1x256xi32>
    %75 = arith.andi %70, %74 : vector<1x256xi1>
    %76 = arith.extui %75 : vector<1x256xi1> to vector<1x256xi32>
    %77 = arith.sitofp %76 : vector<1x256xi32> to vector<1x256xf32>
    %78 = vector.broadcast %77 : vector<1x256xf32> to vector<2x256xf32>
    %79 = arith.mulf %56, %78 : vector<2x256xf32>
    %c4 = arith.constant 4 : index
    %c0_28 = arith.constant 0 : index
    %80 = vector.load %arg11[%c4, %c0_28] : memref<162x256xf32, #tpu.memory_space<vmem>>, vector<2x256xf32>
    tpu.vector_store %arg11[%c4, %c0_28], %79 {strides = array<i32>} : memref<162x256xf32, #tpu.memory_space<vmem>>, vector<2x256xf32>,
    %81 = vector.extract_strided_slice %5 {offsets = [0, 63], sizes = [2, 256], strides = [1, 1]} : vector<2x512xf32> to vector<2x256xf32>
    %c-4_i32_29 = arith.constant -4 : i32
    %82 = vector.broadcast %c-4_i32_29 : i32 to vector<1x256xi32>
    %83 = arith.addi %0, %82 : vector<1x256xi32>
    %c0_i32_30 = arith.constant 0 : i32
    %84 = vector.broadcast %c0_i32_30 : i32 to vector<1x256xi32>
    %85 = arith.cmpi sge, %83, %84 : vector<1x256xi32>
    %c-4_i32_31 = arith.constant -4 : i32
    %86 = vector.broadcast %c-4_i32_31 : i32 to vector<1x256xi32>
    %87 = arith.addi %0, %86 : vector<1x256xi32>
    %c16_i32_32 = arith.constant 16 : i32
    %88 = vector.broadcast %c16_i32_32 : i32 to vector<1x256xi32>
    %89 = arith.cmpi slt, %87, %88 : vector<1x256xi32>
    %90 = arith.andi %85, %89 : vector<1x256xi1>
    %c-1_i32 = arith.constant -1 : i32
    %91 = vector.broadcast %c-1_i32 : i32 to vector<1x256xi32>
    %92 = arith.addi %1, %91 : vector<1x256xi32>
    %c0_i32_33 = arith.constant 0 : i32
    %93 = vector.broadcast %c0_i32_33 : i32 to vector<1x256xi32>
    %94 = arith.cmpi sge, %92, %93 : vector<1x256xi32>
    %95 = arith.andi %90, %94 : vector<1x256xi1>
    %c-1_i32_34 = arith.constant -1 : i32
    %96 = vector.broadcast %c-1_i32_34 : i32 to vector<1x256xi32>
    %97 = arith.addi %1, %96 : vector<1x256xi32>
    %c16_i32_35 = arith.constant 16 : i32
    %98 = vector.broadcast %c16_i32_35 : i32 to vector<1x256xi32>
    %99 = arith.cmpi slt, %97, %98 : vector<1x256xi32>
    %100 = arith.andi %95, %99 : vector<1x256xi1>
    %101 = arith.extui %100 : vector<1x256xi1> to vector<1x256xi32>
    %102 = arith.sitofp %101 : vector<1x256xi32> to vector<1x256xf32>
    %103 = vector.broadcast %102 : vector<1x256xf32> to vector<2x256xf32>
    %104 = arith.mulf %81, %103 : vector<2x256xf32>
    %c6 = arith.constant 6 : index
    %c0_36 = arith.constant 0 : index
    %105 = vector.load %arg11[%c6, %c0_36] : memref<162x256xf32, #tpu.memory_space<vmem>>, vector<2x256xf32>
    tpu.vector_store %arg11[%c6, %c0_36], %104 {strides = array<i32>} : memref<162x256xf32, #tpu.memory_space<vmem>>, vector<2x256xf32>,
    %106 = vector.extract_strided_slice %5 {offsets = [0, 64], sizes = [2, 256], strides = [1, 1]} : vector<2x512xf32> to vector<2x256xf32>
    %c-4_i32_37 = arith.constant -4 : i32
    %107 = vector.broadcast %c-4_i32_37 : i32 to vector<1x256xi32>
    %108 = arith.addi %0, %107 : vector<1x256xi32>
    %c0_i32_38 = arith.constant 0 : i32
    %109 = vector.broadcast %c0_i32_38 : i32 to vector<1x256xi32>
    %110 = arith.cmpi sge, %108, %109 : vector<1x256xi32>
    %c-4_i32_39 = arith.constant -4 : i32
    %111 = vector.broadcast %c-4_i32_39 : i32 to vector<1x256xi32>
    %112 = arith.addi %0, %111 : vector<1x256xi32>
    %c16_i32_40 = arith.constant 16 : i32
    %113 = vector.broadcast %c16_i32_40 : i32 to vector<1x256xi32>
    %114 = arith.cmpi slt, %112, %113 : vector<1x256xi32>
    %115 = arith.andi %110, %114 : vector<1x256xi1>
    %c0_i32_41 = arith.constant 0 : i32
    %116 = vector.broadcast %c0_i32_41 : i32 to vector<1x256xi32>
    %117 = arith.addi %1, %116 : vector<1x256xi32>
    %c0_i32_42 = arith.constant 0 : i32
    %118 = vector.broadcast %c0_i32_42 : i32 to vector<1x256xi32>
    %119 = arith.cmpi sge, %117, %118 : vector<1x256xi32>
    %120 = arith.andi %115, %119 : vector<1x256xi1>
    %c0_i32_43 = arith.constant 0 : i32
    %121 = vector.broadcast %c0_i32_43 : i32 to vector<1x256xi32>
    %122 = arith.addi %1, %121 : vector<1x256xi32>
    %c16_i32_44 = arith.constant 16 : i32
    %123 = vector.broadcast %c16_i32_44 : i32 to vector<1x256xi32>
    %124 = arith.cmpi slt, %122, %123 : vector<1x256xi32>
    %125 = arith.andi %120, %124 : vector<1x256xi1>
    %126 = arith.extui %125 : vector<1x256xi1> to vector<1x256xi32>
    %127 = arith.sitofp %126 : vector<1x256xi32> to vector<1x256xf32>
    %128 = vector.broadcast %127 : vector<1x256xf32> to vector<2x256xf32>
    %129 = arith.mulf %106, %128 : vector<2x256xf32>
    %c8 = arith.constant 8 : index
    %c0_45 = arith.constant 0 : index
    %130 = vector.load %arg11[%c8, %c0_45] : memref<162x256xf32, #tpu.memory_space<vmem>>, vector<2x256xf32>
    tpu.vector_store %arg11[%c8, %c0_45], %129 {strides = array<i32>} : memref<162x256xf32, #tpu.memory_space<vmem>>, vector<2x256xf32>,
    %131 = vector.extract_strided_slice %5 {offsets = [0, 65], sizes = [2, 256], strides = [1, 1]} : vector<2x512xf32> to vector<2x256xf32>
    %c-4_i32_46 = arith.constant -4 : i32
    %132 = vector.broadcast %c-4_i32_46 : i32 to vector<1x256xi32>
    %133 = arith.addi %0, %132 : vector<1x256xi32>
    %c0_i32_47 = arith.constant 0 : i32
    %134 = vector.broadcast %c0_i32_47 : i32 to vector<1x256xi32>
    %135 = arith.cmpi sge, %133, %134 : vector<1x256xi32>
    %c-4_i32_48 = arith.constant -4 : i32
    %136 = vector.broadcast %c-4_i32_48 : i32 to vector<1x256xi32>
    %137 = arith.addi %0, %136 : vector<1x256xi32>
    %c16_i32_49 = arith.constant 16 : i32
    %138 = vector.broadcast %c16_i32_49 : i32 to vector<1x256xi32>
    %139 = arith.cmpi slt, %137, %138 : vector<1x256xi32>
    %140 = arith.andi %135, %139 : vector<1x256xi1>
    %c1_i32 = arith.constant 1 : i32
    %141 = vector.broadcast %c1_i32 : i32 to vector<1x256xi32>
    %142 = arith.addi %1, %141 : vector<1x256xi32>
    %c0_i32_50 = arith.constant 0 : i32
    %143 = vector.broadcast %c0_i32_50 : i32 to vector<1x256xi32>
    %144 = arith.cmpi sge, %142, %143 : vector<1x256xi32>
    %145 = arith.andi %140, %144 : vector<1x256xi1>
    %c1_i32_51 = arith.constant 1 : i32
    %146 = vector.broadcast %c1_i32_51 : i32 to vector<1x256xi32>
    %147 = arith.addi %1, %146 : vector<1x256xi32>
    %c16_i32_52 = arith.constant 16 : i32
    %148 = vector.broadcast %c16_i32_52 : i32 to vector<1x256xi32>
    %149 = arith.cmpi slt, %147, %148 : vector<1x256xi32>
    %150 = arith.andi %145, %149 : vector<1x256xi1>
    %151 = arith.extui %150 : vector<1x256xi1> to vector<1x256xi32>
    %152 = arith.sitofp %151 : vector<1x256xi32> to vector<1x256xf32>
    %153 = vector.broadcast %152 : vector<1x256xf32> to vector<2x256xf32>
    %154 = arith.mulf %131, %153 : vector<2x256xf32>
    %c10 = arith.constant 10 : index
    %c0_53 = arith.constant 0 : index
    %155 = vector.load %arg11[%c10, %c0_53] : memref<162x256xf32, #tpu.memory_space<vmem>>, vector<2x256xf32>
    tpu.vector_store %arg11[%c10, %c0_53], %154 {strides = array<i32>} : memref<162x256xf32, #tpu.memory_space<vmem>>, vector<2x256xf32>,
    %156 = vector.extract_strided_slice %5 {offsets = [0, 66], sizes = [2, 256], strides = [1, 1]} : vector<2x512xf32> to vector<2x256xf32>
    %c-4_i32_54 = arith.constant -4 : i32
    %157 = vector.broadcast %c-4_i32_54 : i32 to vector<1x256xi32>
    %158 = arith.addi %0, %157 : vector<1x256xi32>
    %c0_i32_55 = arith.constant 0 : i32
    %159 = vector.broadcast %c0_i32_55 : i32 to vector<1x256xi32>
    %160 = arith.cmpi sge, %158, %159 : vector<1x256xi32>
    %c-4_i32_56 = arith.constant -4 : i32
    %161 = vector.broadcast %c-4_i32_56 : i32 to vector<1x256xi32>
    %162 = arith.addi %0, %161 : vector<1x256xi32>
    %c16_i32_57 = arith.constant 16 : i32
    %163 = vector.broadcast %c16_i32_57 : i32 to vector<1x256xi32>
    %164 = arith.cmpi slt, %162, %163 : vector<1x256xi32>
    %165 = arith.andi %160, %164 : vector<1x256xi1>
    %c2_i32 = arith.constant 2 : i32
    %166 = vector.broadcast %c2_i32 : i32 to vector<1x256xi32>
    %167 = arith.addi %1, %166 : vector<1x256xi32>
    %c0_i32_58 = arith.constant 0 : i32
    %168 = vector.broadcast %c0_i32_58 : i32 to vector<1x256xi32>
    %169 = arith.cmpi sge, %167, %168 : vector<1x256xi32>
    %170 = arith.andi %165, %169 : vector<1x256xi1>
    %c2_i32_59 = arith.constant 2 : i32
    %171 = vector.broadcast %c2_i32_59 : i32 to vector<1x256xi32>
    %172 = arith.addi %1, %171 : vector<1x256xi32>
    %c16_i32_60 = arith.constant 16 : i32
    %173 = vector.broadcast %c16_i32_60 : i32 to vector<1x256xi32>
    %174 = arith.cmpi slt, %172, %173 : vector<1x256xi32>
    %175 = arith.andi %170, %174 : vector<1x256xi1>
    %176 = arith.extui %175 : vector<1x256xi1> to vector<1x256xi32>
    %177 = arith.sitofp %176 : vector<1x256xi32> to vector<1x256xf32>
    %178 = vector.broadcast %177 : vector<1x256xf32> to vector<2x256xf32>
    %179 = arith.mulf %156, %178 : vector<2x256xf32>
    %c12 = arith.constant 12 : index
    %c0_61 = arith.constant 0 : index
    %180 = vector.load %arg11[%c12, %c0_61] : memref<162x256xf32, #tpu.memory_space<vmem>>, vector<2x256xf32>
    tpu.vector_store %arg11[%c12, %c0_61], %179 {strides = array<i32>} : memref<162x256xf32, #tpu.memory_space<vmem>>, vector<2x256xf32>,
    %181 = vector.extract_strided_slice %5 {offsets = [0, 67], sizes = [2, 256], strides = [1, 1]} : vector<2x512xf32> to vector<2x256xf32>
    %c-4_i32_62 = arith.constant -4 : i32
    %182 = vector.broadcast %c-4_i32_62 : i32 to vector<1x256xi32>
    %183 = arith.addi %0, %182 : vector<1x256xi32>
    %c0_i32_63 = arith.constant 0 : i32
    %184 = vector.broadcast %c0_i32_63 : i32 to vector<1x256xi32>
    %185 = arith.cmpi sge, %183, %184 : vector<1x256xi32>
    %c-4_i32_64 = arith.constant -4 : i32
    %186 = vector.broadcast %c-4_i32_64 : i32 to vector<1x256xi32>
    %187 = arith.addi %0, %186 : vector<1x256xi32>
    %c16_i32_65 = arith.constant 16 : i32
    %188 = vector.broadcast %c16_i32_65 : i32 to vector<1x256xi32>
    %189 = arith.cmpi slt, %187, %188 : vector<1x256xi32>
    %190 = arith.andi %185, %189 : vector<1x256xi1>
    %c3_i32 = arith.constant 3 : i32
    %191 = vector.broadcast %c3_i32 : i32 to vector<1x256xi32>
    %192 = arith.addi %1, %191 : vector<1x256xi32>
    %c0_i32_66 = arith.constant 0 : i32
    %193 = vector.broadcast %c0_i32_66 : i32 to vector<1x256xi32>
    %194 = arith.cmpi sge, %192, %193 : vector<1x256xi32>
    %195 = arith.andi %190, %194 : vector<1x256xi1>
    %c3_i32_67 = arith.constant 3 : i32
    %196 = vector.broadcast %c3_i32_67 : i32 to vector<1x256xi32>
    %197 = arith.addi %1, %196 : vector<1x256xi32>
    %c16_i32_68 = arith.constant 16 : i32
    %198 = vector.broadcast %c16_i32_68 : i32 to vector<1x256xi32>
    %199 = arith.cmpi slt, %197, %198 : vector<1x256xi32>
    %200 = arith.andi %195, %199 : vector<1x256xi1>
    %201 = arith.extui %200 : vector<1x256xi1> to vector<1x256xi32>
    %202 = arith.sitofp %201 : vector<1x256xi32> to vector<1x256xf32>
    %203 = vector.broadcast %202 : vector<1x256xf32> to vector<2x256xf32>
    %204 = arith.mulf %181, %203 : vector<2x256xf32>
    %c14 = arith.constant 14 : index
    %c0_69 = arith.constant 0 : index
    %205 = vector.load %arg11[%c14, %c0_69] : memref<162x256xf32, #tpu.memory_space<vmem>>, vector<2x256xf32>
    tpu.vector_store %arg11[%c14, %c0_69], %204 {strides = array<i32>} : memref<162x256xf32, #tpu.memory_space<vmem>>, vector<2x256xf32>,
    %206 = vector.extract_strided_slice %5 {offsets = [0, 68], sizes = [2, 256], strides = [1, 1]} : vector<2x512xf32> to vector<2x256xf32>
    %c-4_i32_70 = arith.constant -4 : i32
    %207 = vector.broadcast %c-4_i32_70 : i32 to vector<1x256xi32>
    %208 = arith.addi %0, %207 : vector<1x256xi32>
    %c0_i32_71 = arith.constant 0 : i32
    %209 = vector.broadcast %c0_i32_71 : i32 to vector<1x256xi32>
    %210 = arith.cmpi sge, %208, %209 : vector<1x256xi32>
    %c-4_i32_72 = arith.constant -4 : i32
    %211 = vector.broadcast %c-4_i32_72 : i32 to vector<1x256xi32>
    %212 = arith.addi %0, %211 : vector<1x256xi32>
    %c16_i32_73 = arith.constant 16 : i32
    %213 = vector.broadcast %c16_i32_73 : i32 to vector<1x256xi32>
    %214 = arith.cmpi slt, %212, %213 : vector<1x256xi32>
    %215 = arith.andi %210, %214 : vector<1x256xi1>
    %c4_i32 = arith.constant 4 : i32
    %216 = vector.broadcast %c4_i32 : i32 to vector<1x256xi32>
    %217 = arith.addi %1, %216 : vector<1x256xi32>
    %c0_i32_74 = arith.constant 0 : i32
    %218 = vector.broadcast %c0_i32_74 : i32 to vector<1x256xi32>
    %219 = arith.cmpi sge, %217, %218 : vector<1x256xi32>
    %220 = arith.andi %215, %219 : vector<1x256xi1>
    %c4_i32_75 = arith.constant 4 : i32
    %221 = vector.broadcast %c4_i32_75 : i32 to vector<1x256xi32>
    %222 = arith.addi %1, %221 : vector<1x256xi32>
    %c16_i32_76 = arith.constant 16 : i32
    %223 = vector.broadcast %c16_i32_76 : i32 to vector<1x256xi32>
    %224 = arith.cmpi slt, %222, %223 : vector<1x256xi32>
    %225 = arith.andi %220, %224 : vector<1x256xi1>
    %226 = arith.extui %225 : vector<1x256xi1> to vector<1x256xi32>
    %227 = arith.sitofp %226 : vector<1x256xi32> to vector<1x256xf32>
    %228 = vector.broadcast %227 : vector<1x256xf32> to vector<2x256xf32>
    %229 = arith.mulf %206, %228 : vector<2x256xf32>
    %c16 = arith.constant 16 : index
    %c0_77 = arith.constant 0 : index
    %230 = vector.load %arg11[%c16, %c0_77] : memref<162x256xf32, #tpu.memory_space<vmem>>, vector<2x256xf32>
    tpu.vector_store %arg11[%c16, %c0_77], %229 {strides = array<i32>} : memref<162x256xf32, #tpu.memory_space<vmem>>, vector<2x256xf32>,
    %231 = vector.extract_strided_slice %5 {offsets = [0, 76], sizes = [2, 256], strides = [1, 1]} : vector<2x512xf32> to vector<2x256xf32>
    %c-3_i32_78 = arith.constant -3 : i32
    %232 = vector.broadcast %c-3_i32_78 : i32 to vector<1x256xi32>
    %233 = arith.addi %0, %232 : vector<1x256xi32>
    %c0_i32_79 = arith.constant 0 : i32
    %234 = vector.broadcast %c0_i32_79 : i32 to vector<1x256xi32>
    %235 = arith.cmpi sge, %233, %234 : vector<1x256xi32>
    %c-3_i32_80 = arith.constant -3 : i32
    %236 = vector.broadcast %c-3_i32_80 : i32 to vector<1x256xi32>
    %237 = arith.addi %0, %236 : vector<1x256xi32>
    %c16_i32_81 = arith.constant 16 : i32
    %238 = vector.broadcast %c16_i32_81 : i32 to vector<1x256xi32>
    %239 = arith.cmpi slt, %237, %238 : vector<1x256xi32>
    %240 = arith.andi %235, %239 : vector<1x256xi1>
    %c-4_i32_82 = arith.constant -4 : i32
    %241 = vector.broadcast %c-4_i32_82 : i32 to vector<1x256xi32>
    %242 = arith.addi %1, %241 : vector<1x256xi32>
    %c0_i32_83 = arith.constant 0 : i32
    %243 = vector.broadcast %c0_i32_83 : i32 to vector<1x256xi32>
    %244 = arith.cmpi sge, %242, %243 : vector<1x256xi32>
    %245 = arith.andi %240, %244 : vector<1x256xi1>
    %c-4_i32_84 = arith.constant -4 : i32
    %246 = vector.broadcast %c-4_i32_84 : i32 to vector<1x256xi32>
    %247 = arith.addi %1, %246 : vector<1x256xi32>
    %c16_i32_85 = arith.constant 16 : i32
    %248 = vector.broadcast %c16_i32_85 : i32 to vector<1x256xi32>
    %249 = arith.cmpi slt, %247, %248 : vector<1x256xi32>
    %250 = arith.andi %245, %249 : vector<1x256xi1>
    %251 = arith.extui %250 : vector<1x256xi1> to vector<1x256xi32>
    %252 = arith.sitofp %251 : vector<1x256xi32> to vector<1x256xf32>
    %253 = vector.broadcast %252 : vector<1x256xf32> to vector<2x256xf32>
    %254 = arith.mulf %231, %253 : vector<2x256xf32>
    %c18 = arith.constant 18 : index
    %c0_86 = arith.constant 0 : index
    %255 = vector.load %arg11[%c18, %c0_86] : memref<162x256xf32, #tpu.memory_space<vmem>>, vector<2x256xf32>
    tpu.vector_store %arg11[%c18, %c0_86], %254 {strides = array<i32>} : memref<162x256xf32, #tpu.memory_space<vmem>>, vector<2x256xf32>,
    %256 = vector.extract_strided_slice %5 {offsets = [0, 77], sizes = [2, 256], strides = [1, 1]} : vector<2x512xf32> to vector<2x256xf32>
    %c-3_i32_87 = arith.constant -3 : i32
    %257 = vector.broadcast %c-3_i32_87 : i32 to vector<1x256xi32>
    %258 = arith.addi %0, %257 : vector<1x256xi32>
    %c0_i32_88 = arith.constant 0 : i32
    %259 = vector.broadcast %c0_i32_88 : i32 to vector<1x256xi32>
    %260 = arith.cmpi sge, %258, %259 : vector<1x256xi32>
    %c-3_i32_89 = arith.constant -3 : i32
    %261 = vector.broadcast %c-3_i32_89 : i32 to vector<1x256xi32>
    %262 = arith.addi %0, %261 : vector<1x256xi32>
    %c16_i32_90 = arith.constant 16 : i32
    %263 = vector.broadcast %c16_i32_90 : i32 to vector<1x256xi32>
    %264 = arith.cmpi slt, %262, %263 : vector<1x256xi32>
    %265 = arith.andi %260, %264 : vector<1x256xi1>
    %c-3_i32_91 = arith.constant -3 : i32
    %266 = vector.broadcast %c-3_i32_91 : i32 to vector<1x256xi32>
    %267 = arith.addi %1, %266 : vector<1x256xi32>
    %c0_i32_92 = arith.constant 0 : i32
    %268 = vector.broadcast %c0_i32_92 : i32 to vector<1x256xi32>
    %269 = arith.cmpi sge, %267, %268 : vector<1x256xi32>
    %270 = arith.andi %265, %269 : vector<1x256xi1>
    %c-3_i32_93 = arith.constant -3 : i32
    %271 = vector.broadcast %c-3_i32_93 : i32 to vector<1x256xi32>
    %272 = arith.addi %1, %271 : vector<1x256xi32>
    %c16_i32_94 = arith.constant 16 : i32
    %273 = vector.broadcast %c16_i32_94 : i32 to vector<1x256xi32>
    %274 = arith.cmpi slt, %272, %273 : vector<1x256xi32>
    %275 = arith.andi %270, %274 : vector<1x256xi1>
    %276 = arith.extui %275 : vector<1x256xi1> to vector<1x256xi32>
    %277 = arith.sitofp %276 : vector<1x256xi32> to vector<1x256xf32>
    %278 = vector.broadcast %277 : vector<1x256xf32> to vector<2x256xf32>
    %279 = arith.mulf %256, %278 : vector<2x256xf32>
    %c20 = arith.constant 20 : index
    %c0_95 = arith.constant 0 : index
    %280 = vector.load %arg11[%c20, %c0_95] : memref<162x256xf32, #tpu.memory_space<vmem>>, vector<2x256xf32>
    tpu.vector_store %arg11[%c20, %c0_95], %279 {strides = array<i32>} : memref<162x256xf32, #tpu.memory_space<vmem>>, vector<2x256xf32>,
    %281 = vector.extract_strided_slice %5 {offsets = [0, 78], sizes = [2, 256], strides = [1, 1]} : vector<2x512xf32> to vector<2x256xf32>
    %c-3_i32_96 = arith.constant -3 : i32
    %282 = vector.broadcast %c-3_i32_96 : i32 to vector<1x256xi32>
    %283 = arith.addi %0, %282 : vector<1x256xi32>
    %c0_i32_97 = arith.constant 0 : i32
    %284 = vector.broadcast %c0_i32_97 : i32 to vector<1x256xi32>
    %285 = arith.cmpi sge, %283, %284 : vector<1x256xi32>
    %c-3_i32_98 = arith.constant -3 : i32
    %286 = vector.broadcast %c-3_i32_98 : i32 to vector<1x256xi32>
    %287 = arith.addi %0, %286 : vector<1x256xi32>
    %c16_i32_99 = arith.constant 16 : i32
    %288 = vector.broadcast %c16_i32_99 : i32 to vector<1x256xi32>
    %289 = arith.cmpi slt, %287, %288 : vector<1x256xi32>
    %290 = arith.andi %285, %289 : vector<1x256xi1>
    %c-2_i32_100 = arith.constant -2 : i32
    %291 = vector.broadcast %c-2_i32_100 : i32 to vector<1x256xi32>
    %292 = arith.addi %1, %291 : vector<1x256xi32>
    %c0_i32_101 = arith.constant 0 : i32
    %293 = vector.broadcast %c0_i32_101 : i32 to vector<1x256xi32>
    %294 = arith.cmpi sge, %292, %293 : vector<1x256xi32>
    %295 = arith.andi %290, %294 : vector<1x256xi1>
    %c-2_i32_102 = arith.constant -2 : i32
    %296 = vector.broadcast %c-2_i32_102 : i32 to vector<1x256xi32>
    %297 = arith.addi %1, %296 : vector<1x256xi32>
    %c16_i32_103 = arith.constant 16 : i32
    %298 = vector.broadcast %c16_i32_103 : i32 to vector<1x256xi32>
    %299 = arith.cmpi slt, %297, %298 : vector<1x256xi32>
    %300 = arith.andi %295, %299 : vector<1x256xi1>
    %301 = arith.extui %300 : vector<1x256xi1> to vector<1x256xi32>
    %302 = arith.sitofp %301 : vector<1x256xi32> to vector<1x256xf32>
    %303 = vector.broadcast %302 : vector<1x256xf32> to vector<2x256xf32>
    %304 = arith.mulf %281, %303 : vector<2x256xf32>
    %c22 = arith.constant 22 : index
    %c0_104 = arith.constant 0 : index
    %305 = vector.load %arg11[%c22, %c0_104] : memref<162x256xf32, #tpu.memory_space<vmem>>, vector<2x256xf32>
    tpu.vector_store %arg11[%c22, %c0_104], %304 {strides = array<i32>} : memref<162x256xf32, #tpu.memory_space<vmem>>, vector<2x256xf32>,
    %306 = vector.extract_strided_slice %5 {offsets = [0, 79], sizes = [2, 256], strides = [1, 1]} : vector<2x512xf32> to vector<2x256xf32>
    %c-3_i32_105 = arith.constant -3 : i32
    %307 = vector.broadcast %c-3_i32_105 : i32 to vector<1x256xi32>
    %308 = arith.addi %0, %307 : vector<1x256xi32>
    %c0_i32_106 = arith.constant 0 : i32
    %309 = vector.broadcast %c0_i32_106 : i32 to vector<1x256xi32>
    %310 = arith.cmpi sge, %308, %309 : vector<1x256xi32>
    %c-3_i32_107 = arith.constant -3 : i32
    %311 = vector.broadcast %c-3_i32_107 : i32 to vector<1x256xi32>
    %312 = arith.addi %0, %311 : vector<1x256xi32>
    %c16_i32_108 = arith.constant 16 : i32
    %313 = vector.broadcast %c16_i32_108 : i32 to vector<1x256xi32>
    %314 = arith.cmpi slt, %312, %313 : vector<1x256xi32>
    %315 = arith.andi %310, %314 : vector<1x256xi1>
    %c-1_i32_109 = arith.constant -1 : i32
    %316 = vector.broadcast %c-1_i32_109 : i32 to vector<1x256xi32>
    %317 = arith.addi %1, %316 : vector<1x256xi32>
    %c0_i32_110 = arith.constant 0 : i32
    %318 = vector.broadcast %c0_i32_110 : i32 to vector<1x256xi32>
    %319 = arith.cmpi sge, %317, %318 : vector<1x256xi32>
    %320 = arith.andi %315, %319 : vector<1x256xi1>
    %c-1_i32_111 = arith.constant -1 : i32
    %321 = vector.broadcast %c-1_i32_111 : i32 to vector<1x256xi32>
    %322 = arith.addi %1, %321 : vector<1x256xi32>
    %c16_i32_112 = arith.constant 16 : i32
    %323 = vector.broadcast %c16_i32_112 : i32 to vector<1x256xi32>
    %324 = arith.cmpi slt, %322, %323 : vector<1x256xi32>
    %325 = arith.andi %320, %324 : vector<1x256xi1>
    %326 = arith.extui %325 : vector<1x256xi1> to vector<1x256xi32>
    %327 = arith.sitofp %326 : vector<1x256xi32> to vector<1x256xf32>
    %328 = vector.broadcast %327 : vector<1x256xf32> to vector<2x256xf32>
    %329 = arith.mulf %306, %328 : vector<2x256xf32>
    %c24 = arith.constant 24 : index
    %c0_113 = arith.constant 0 : index
    %330 = vector.load %arg11[%c24, %c0_113] : memref<162x256xf32, #tpu.memory_space<vmem>>, vector<2x256xf32>
    tpu.vector_store %arg11[%c24, %c0_113], %329 {strides = array<i32>} : memref<162x256xf32, #tpu.memory_space<vmem>>, vector<2x256xf32>,
    %331 = vector.extract_strided_slice %5 {offsets = [0, 80], sizes = [2, 256], strides = [1, 1]} : vector<2x512xf32> to vector<2x256xf32>
    %c-3_i32_114 = arith.constant -3 : i32
    %332 = vector.broadcast %c-3_i32_114 : i32 to vector<1x256xi32>
    %333 = arith.addi %0, %332 : vector<1x256xi32>
    %c0_i32_115 = arith.constant 0 : i32
    %334 = vector.broadcast %c0_i32_115 : i32 to vector<1x256xi32>
    %335 = arith.cmpi sge, %333, %334 : vector<1x256xi32>
    %c-3_i32_116 = arith.constant -3 : i32
    %336 = vector.broadcast %c-3_i32_116 : i32 to vector<1x256xi32>
    %337 = arith.addi %0, %336 : vector<1x256xi32>
    %c16_i32_117 = arith.constant 16 : i32
    %338 = vector.broadcast %c16_i32_117 : i32 to vector<1x256xi32>
    %339 = arith.cmpi slt, %337, %338 : vector<1x256xi32>
    %340 = arith.andi %335, %339 : vector<1x256xi1>
    %c0_i32_118 = arith.constant 0 : i32
    %341 = vector.broadcast %c0_i32_118 : i32 to vector<1x256xi32>
    %342 = arith.addi %1, %341 : vector<1x256xi32>
    %c0_i32_119 = arith.constant 0 : i32
    %343 = vector.broadcast %c0_i32_119 : i32 to vector<1x256xi32>
    %344 = arith.cmpi sge, %342, %343 : vector<1x256xi32>
    %345 = arith.andi %340, %344 : vector<1x256xi1>
    %c0_i32_120 = arith.constant 0 : i32
    %346 = vector.broadcast %c0_i32_120 : i32 to vector<1x256xi32>
    %347 = arith.addi %1, %346 : vector<1x256xi32>
    %c16_i32_121 = arith.constant 16 : i32
    %348 = vector.broadcast %c16_i32_121 : i32 to vector<1x256xi32>
    %349 = arith.cmpi slt, %347, %348 : vector<1x256xi32>
    %350 = arith.andi %345, %349 : vector<1x256xi1>
    %351 = arith.extui %350 : vector<1x256xi1> to vector<1x256xi32>
    %352 = arith.sitofp %351 : vector<1x256xi32> to vector<1x256xf32>
    %353 = vector.broadcast %352 : vector<1x256xf32> to vector<2x256xf32>
    %354 = arith.mulf %331, %353 : vector<2x256xf32>
    %c26 = arith.constant 26 : index
    %c0_122 = arith.constant 0 : index
    %355 = vector.load %arg11[%c26, %c0_122] : memref<162x256xf32, #tpu.memory_space<vmem>>, vector<2x256xf32>
    tpu.vector_store %arg11[%c26, %c0_122], %354 {strides = array<i32>} : memref<162x256xf32, #tpu.memory_space<vmem>>, vector<2x256xf32>,
    %356 = vector.extract_strided_slice %5 {offsets = [0, 81], sizes = [2, 256], strides = [1, 1]} : vector<2x512xf32> to vector<2x256xf32>
    %c-3_i32_123 = arith.constant -3 : i32
    %357 = vector.broadcast %c-3_i32_123 : i32 to vector<1x256xi32>
    %358 = arith.addi %0, %357 : vector<1x256xi32>
    %c0_i32_124 = arith.constant 0 : i32
    %359 = vector.broadcast %c0_i32_124 : i32 to vector<1x256xi32>
    %360 = arith.cmpi sge, %358, %359 : vector<1x256xi32>
    %c-3_i32_125 = arith.constant -3 : i32
    %361 = vector.broadcast %c-3_i32_125 : i32 to vector<1x256xi32>
    %362 = arith.addi %0, %361 : vector<1x256xi32>
    %c16_i32_126 = arith.constant 16 : i32
    %363 = vector.broadcast %c16_i32_126 : i32 to vector<1x256xi32>
    %364 = arith.cmpi slt, %362, %363 : vector<1x256xi32>
    %365 = arith.andi %360, %364 : vector<1x256xi1>
    %c1_i32_127 = arith.constant 1 : i32
    %366 = vector.broadcast %c1_i32_127 : i32 to vector<1x256xi32>
    %367 = arith.addi %1, %366 : vector<1x256xi32>
    %c0_i32_128 = arith.constant 0 : i32
    %368 = vector.broadcast %c0_i32_128 : i32 to vector<1x256xi32>
    %369 = arith.cmpi sge, %367, %368 : vector<1x256xi32>
    %370 = arith.andi %365, %369 : vector<1x256xi1>
    %c1_i32_129 = arith.constant 1 : i32
    %371 = vector.broadcast %c1_i32_129 : i32 to vector<1x256xi32>
    %372 = arith.addi %1, %371 : vector<1x256xi32>
    %c16_i32_130 = arith.constant 16 : i32
    %373 = vector.broadcast %c16_i32_130 : i32 to vector<1x256xi32>
    %374 = arith.cmpi slt, %372, %373 : vector<1x256xi32>
    %375 = arith.andi %370, %374 : vector<1x256xi1>
    %376 = arith.extui %375 : vector<1x256xi1> to vector<1x256xi32>
    %377 = arith.sitofp %376 : vector<1x256xi32> to vector<1x256xf32>
    %378 = vector.broadcast %377 : vector<1x256xf32> to vector<2x256xf32>
    %379 = arith.mulf %356, %378 : vector<2x256xf32>
    %c28 = arith.constant 28 : index
    %c0_131 = arith.constant 0 : index
    %380 = vector.load %arg11[%c28, %c0_131] : memref<162x256xf32, #tpu.memory_space<vmem>>, vector<2x256xf32>
    tpu.vector_store %arg11[%c28, %c0_131], %379 {strides = array<i32>} : memref<162x256xf32, #tpu.memory_space<vmem>>, vector<2x256xf32>,
    %381 = vector.extract_strided_slice %5 {offsets = [0, 82], sizes = [2, 256], strides = [1, 1]} : vector<2x512xf32> to vector<2x256xf32>
    %c-3_i32_132 = arith.constant -3 : i32
    %382 = vector.broadcast %c-3_i32_132 : i32 to vector<1x256xi32>
    %383 = arith.addi %0, %382 : vector<1x256xi32>
    %c0_i32_133 = arith.constant 0 : i32
    %384 = vector.broadcast %c0_i32_133 : i32 to vector<1x256xi32>
    %385 = arith.cmpi sge, %383, %384 : vector<1x256xi32>
    %c-3_i32_134 = arith.constant -3 : i32
    %386 = vector.broadcast %c-3_i32_134 : i32 to vector<1x256xi32>
    %387 = arith.addi %0, %386 : vector<1x256xi32>
    %c16_i32_135 = arith.constant 16 : i32
    %388 = vector.broadcast %c16_i32_135 : i32 to vector<1x256xi32>
    %389 = arith.cmpi slt, %387, %388 : vector<1x256xi32>
    %390 = arith.andi %385, %389 : vector<1x256xi1>
    %c2_i32_136 = arith.constant 2 : i32
    %391 = vector.broadcast %c2_i32_136 : i32 to vector<1x256xi32>
    %392 = arith.addi %1, %391 : vector<1x256xi32>
    %c0_i32_137 = arith.constant 0 : i32
    %393 = vector.broadcast %c0_i32_137 : i32 to vector<1x256xi32>
    %394 = arith.cmpi sge, %392, %393 : vector<1x256xi32>
    %395 = arith.andi %390, %394 : vector<1x256xi1>
    %c2_i32_138 = arith.constant 2 : i32
    %396 = vector.broadcast %c2_i32_138 : i32 to vector<1x256xi32>
    %397 = arith.addi %1, %396 : vector<1x256xi32>
    %c16_i32_139 = arith.constant 16 : i32
    %398 = vector.broadcast %c16_i32_139 : i32 to vector<1x256xi32>
    %399 = arith.cmpi slt, %397, %398 : vector<1x256xi32>
    %400 = arith.andi %395, %399 : vector<1x256xi1>
    %401 = arith.extui %400 : vector<1x256xi1> to vector<1x256xi32>
    %402 = arith.sitofp %401 : vector<1x256xi32> to vector<1x256xf32>
    %403 = vector.broadcast %402 : vector<1x256xf32> to vector<2x256xf32>
    %404 = arith.mulf %381, %403 : vector<2x256xf32>
    %c30 = arith.constant 30 : index
    %c0_140 = arith.constant 0 : index
    %405 = vector.load %arg11[%c30, %c0_140] : memref<162x256xf32, #tpu.memory_space<vmem>>, vector<2x256xf32>
    tpu.vector_store %arg11[%c30, %c0_140], %404 {strides = array<i32>} : memref<162x256xf32, #tpu.memory_space<vmem>>, vector<2x256xf32>,
    %406 = vector.extract_strided_slice %5 {offsets = [0, 83], sizes = [2, 256], strides = [1, 1]} : vector<2x512xf32> to vector<2x256xf32>
    %c-3_i32_141 = arith.constant -3 : i32
    %407 = vector.broadcast %c-3_i32_141 : i32 to vector<1x256xi32>
    %408 = arith.addi %0, %407 : vector<1x256xi32>
    %c0_i32_142 = arith.constant 0 : i32
    %409 = vector.broadcast %c0_i32_142 : i32 to vector<1x256xi32>
    %410 = arith.cmpi sge, %408, %409 : vector<1x256xi32>
    %c-3_i32_143 = arith.constant -3 : i32
    %411 = vector.broadcast %c-3_i32_143 : i32 to vector<1x256xi32>
    %412 = arith.addi %0, %411 : vector<1x256xi32>
    %c16_i32_144 = arith.constant 16 : i32
    %413 = vector.broadcast %c16_i32_144 : i32 to vector<1x256xi32>
    %414 = arith.cmpi slt, %412, %413 : vector<1x256xi32>
    %415 = arith.andi %410, %414 : vector<1x256xi1>
    %c3_i32_145 = arith.constant 3 : i32
    %416 = vector.broadcast %c3_i32_145 : i32 to vector<1x256xi32>
    %417 = arith.addi %1, %416 : vector<1x256xi32>
    %c0_i32_146 = arith.constant 0 : i32
    %418 = vector.broadcast %c0_i32_146 : i32 to vector<1x256xi32>
    %419 = arith.cmpi sge, %417, %418 : vector<1x256xi32>
    %420 = arith.andi %415, %419 : vector<1x256xi1>
    %c3_i32_147 = arith.constant 3 : i32
    %421 = vector.broadcast %c3_i32_147 : i32 to vector<1x256xi32>
    %422 = arith.addi %1, %421 : vector<1x256xi32>
    %c16_i32_148 = arith.constant 16 : i32
    %423 = vector.broadcast %c16_i32_148 : i32 to vector<1x256xi32>
    %424 = arith.cmpi slt, %422, %423 : vector<1x256xi32>
    %425 = arith.andi %420, %424 : vector<1x256xi1>
    %426 = arith.extui %425 : vector<1x256xi1> to vector<1x256xi32>
    %427 = arith.sitofp %426 : vector<1x256xi32> to vector<1x256xf32>
    %428 = vector.broadcast %427 : vector<1x256xf32> to vector<2x256xf32>
    %429 = arith.mulf %406, %428 : vector<2x256xf32>
    %c32 = arith.constant 32 : index
    %c0_149 = arith.constant 0 : index
    %430 = vector.load %arg11[%c32, %c0_149] : memref<162x256xf32, #tpu.memory_space<vmem>>, vector<2x256xf32>
    tpu.vector_store %arg11[%c32, %c0_149], %429 {strides = array<i32>} : memref<162x256xf32, #tpu.memory_space<vmem>>, vector<2x256xf32>,
    %431 = vector.extract_strided_slice %5 {offsets = [0, 84], sizes = [2, 256], strides = [1, 1]} : vector<2x512xf32> to vector<2x256xf32>
    %c-3_i32_150 = arith.constant -3 : i32
    %432 = vector.broadcast %c-3_i32_150 : i32 to vector<1x256xi32>
    %433 = arith.addi %0, %432 : vector<1x256xi32>
    %c0_i32_151 = arith.constant 0 : i32
    %434 = vector.broadcast %c0_i32_151 : i32 to vector<1x256xi32>
    %435 = arith.cmpi sge, %433, %434 : vector<1x256xi32>
    %c-3_i32_152 = arith.constant -3 : i32
    %436 = vector.broadcast %c-3_i32_152 : i32 to vector<1x256xi32>
    %437 = arith.addi %0, %436 : vector<1x256xi32>
    %c16_i32_153 = arith.constant 16 : i32
    %438 = vector.broadcast %c16_i32_153 : i32 to vector<1x256xi32>
    %439 = arith.cmpi slt, %437, %438 : vector<1x256xi32>
    %440 = arith.andi %435, %439 : vector<1x256xi1>
    %c4_i32_154 = arith.constant 4 : i32
    %441 = vector.broadcast %c4_i32_154 : i32 to vector<1x256xi32>
    %442 = arith.addi %1, %441 : vector<1x256xi32>
    %c0_i32_155 = arith.constant 0 : i32
    %443 = vector.broadcast %c0_i32_155 : i32 to vector<1x256xi32>
    %444 = arith.cmpi sge, %442, %443 : vector<1x256xi32>
    %445 = arith.andi %440, %444 : vector<1x256xi1>
    %c4_i32_156 = arith.constant 4 : i32
    %446 = vector.broadcast %c4_i32_156 : i32 to vector<1x256xi32>
    %447 = arith.addi %1, %446 : vector<1x256xi32>
    %c16_i32_157 = arith.constant 16 : i32
    %448 = vector.broadcast %c16_i32_157 : i32 to vector<1x256xi32>
    %449 = arith.cmpi slt, %447, %448 : vector<1x256xi32>
    %450 = arith.andi %445, %449 : vector<1x256xi1>
    %451 = arith.extui %450 : vector<1x256xi1> to vector<1x256xi32>
    %452 = arith.sitofp %451 : vector<1x256xi32> to vector<1x256xf32>
    %453 = vector.broadcast %452 : vector<1x256xf32> to vector<2x256xf32>
    %454 = arith.mulf %431, %453 : vector<2x256xf32>
    %c34 = arith.constant 34 : index
    %c0_158 = arith.constant 0 : index
    %455 = vector.load %arg11[%c34, %c0_158] : memref<162x256xf32, #tpu.memory_space<vmem>>, vector<2x256xf32>
    tpu.vector_store %arg11[%c34, %c0_158], %454 {strides = array<i32>} : memref<162x256xf32, #tpu.memory_space<vmem>>, vector<2x256xf32>,
    %456 = vector.extract_strided_slice %5 {offsets = [0, 92], sizes = [2, 256], strides = [1, 1]} : vector<2x512xf32> to vector<2x256xf32>
    %c-2_i32_159 = arith.constant -2 : i32
    %457 = vector.broadcast %c-2_i32_159 : i32 to vector<1x256xi32>
    %458 = arith.addi %0, %457 : vector<1x256xi32>
    %c0_i32_160 = arith.constant 0 : i32
    %459 = vector.broadcast %c0_i32_160 : i32 to vector<1x256xi32>
    %460 = arith.cmpi sge, %458, %459 : vector<1x256xi32>
    %c-2_i32_161 = arith.constant -2 : i32
    %461 = vector.broadcast %c-2_i32_161 : i32 to vector<1x256xi32>
    %462 = arith.addi %0, %461 : vector<1x256xi32>
    %c16_i32_162 = arith.constant 16 : i32
    %463 = vector.broadcast %c16_i32_162 : i32 to vector<1x256xi32>
    %464 = arith.cmpi slt, %462, %463 : vector<1x256xi32>
    %465 = arith.andi %460, %464 : vector<1x256xi1>
    %c-4_i32_163 = arith.constant -4 : i32
    %466 = vector.broadcast %c-4_i32_163 : i32 to vector<1x256xi32>
    %467 = arith.addi %1, %466 : vector<1x256xi32>
    %c0_i32_164 = arith.constant 0 : i32
    %468 = vector.broadcast %c0_i32_164 : i32 to vector<1x256xi32>
    %469 = arith.cmpi sge, %467, %468 : vector<1x256xi32>
    %470 = arith.andi %465, %469 : vector<1x256xi1>
    %c-4_i32_165 = arith.constant -4 : i32
    %471 = vector.broadcast %c-4_i32_165 : i32 to vector<1x256xi32>
    %472 = arith.addi %1, %471 : vector<1x256xi32>
    %c16_i32_166 = arith.constant 16 : i32
    %473 = vector.broadcast %c16_i32_166 : i32 to vector<1x256xi32>
    %474 = arith.cmpi slt, %472, %473 : vector<1x256xi32>
    %475 = arith.andi %470, %474 : vector<1x256xi1>
    %476 = arith.extui %475 : vector<1x256xi1> to vector<1x256xi32>
    %477 = arith.sitofp %476 : vector<1x256xi32> to vector<1x256xf32>
    %478 = vector.broadcast %477 : vector<1x256xf32> to vector<2x256xf32>
    %479 = arith.mulf %456, %478 : vector<2x256xf32>
    %c36 = arith.constant 36 : index
    %c0_167 = arith.constant 0 : index
    %480 = vector.load %arg11[%c36, %c0_167] : memref<162x256xf32, #tpu.memory_space<vmem>>, vector<2x256xf32>
    tpu.vector_store %arg11[%c36, %c0_167], %479 {strides = array<i32>} : memref<162x256xf32, #tpu.memory_space<vmem>>, vector<2x256xf32>,
    %481 = vector.extract_strided_slice %5 {offsets = [0, 93], sizes = [2, 256], strides = [1, 1]} : vector<2x512xf32> to vector<2x256xf32>
    %c-2_i32_168 = arith.constant -2 : i32
    %482 = vector.broadcast %c-2_i32_168 : i32 to vector<1x256xi32>
    %483 = arith.addi %0, %482 : vector<1x256xi32>
    %c0_i32_169 = arith.constant 0 : i32
    %484 = vector.broadcast %c0_i32_169 : i32 to vector<1x256xi32>
    %485 = arith.cmpi sge, %483, %484 : vector<1x256xi32>
    %c-2_i32_170 = arith.constant -2 : i32
    %486 = vector.broadcast %c-2_i32_170 : i32 to vector<1x256xi32>
    %487 = arith.addi %0, %486 : vector<1x256xi32>
    %c16_i32_171 = arith.constant 16 : i32
    %488 = vector.broadcast %c16_i32_171 : i32 to vector<1x256xi32>
    %489 = arith.cmpi slt, %487, %488 : vector<1x256xi32>
    %490 = arith.andi %485, %489 : vector<1x256xi1>
    %c-3_i32_172 = arith.constant -3 : i32
    %491 = vector.broadcast %c-3_i32_172 : i32 to vector<1x256xi32>
    %492 = arith.addi %1, %491 : vector<1x256xi32>
    %c0_i32_173 = arith.constant 0 : i32
    %493 = vector.broadcast %c0_i32_173 : i32 to vector<1x256xi32>
    %494 = arith.cmpi sge, %492, %493 : vector<1x256xi32>
    %495 = arith.andi %490, %494 : vector<1x256xi1>
    %c-3_i32_174 = arith.constant -3 : i32
    %496 = vector.broadcast %c-3_i32_174 : i32 to vector<1x256xi32>
    %497 = arith.addi %1, %496 : vector<1x256xi32>
    %c16_i32_175 = arith.constant 16 : i32
    %498 = vector.broadcast %c16_i32_175 : i32 to vector<1x256xi32>
    %499 = arith.cmpi slt, %497, %498 : vector<1x256xi32>
    %500 = arith.andi %495, %499 : vector<1x256xi1>
    %501 = arith.extui %500 : vector<1x256xi1> to vector<1x256xi32>
    %502 = arith.sitofp %501 : vector<1x256xi32> to vector<1x256xf32>
    %503 = vector.broadcast %502 : vector<1x256xf32> to vector<2x256xf32>
    %504 = arith.mulf %481, %503 : vector<2x256xf32>
    %c38 = arith.constant 38 : index
    %c0_176 = arith.constant 0 : index
    %505 = vector.load %arg11[%c38, %c0_176] : memref<162x256xf32, #tpu.memory_space<vmem>>, vector<2x256xf32>
    tpu.vector_store %arg11[%c38, %c0_176], %504 {strides = array<i32>} : memref<162x256xf32, #tpu.memory_space<vmem>>, vector<2x256xf32>,
    %506 = vector.extract_strided_slice %5 {offsets = [0, 94], sizes = [2, 256], strides = [1, 1]} : vector<2x512xf32> to vector<2x256xf32>
    %c-2_i32_177 = arith.constant -2 : i32
    %507 = vector.broadcast %c-2_i32_177 : i32 to vector<1x256xi32>
    %508 = arith.addi %0, %507 : vector<1x256xi32>
    %c0_i32_178 = arith.constant 0 : i32
    %509 = vector.broadcast %c0_i32_178 : i32 to vector<1x256xi32>
    %510 = arith.cmpi sge, %508, %509 : vector<1x256xi32>
    %c-2_i32_179 = arith.constant -2 : i32
    %511 = vector.broadcast %c-2_i32_179 : i32 to vector<1x256xi32>
    %512 = arith.addi %0, %511 : vector<1x256xi32>
    %c16_i32_180 = arith.constant 16 : i32
    %513 = vector.broadcast %c16_i32_180 : i32 to vector<1x256xi32>
    %514 = arith.cmpi slt, %512, %513 : vector<1x256xi32>
    %515 = arith.andi %510, %514 : vector<1x256xi1>
    %c-2_i32_181 = arith.constant -2 : i32
    %516 = vector.broadcast %c-2_i32_181 : i32 to vector<1x256xi32>
    %517 = arith.addi %1, %516 : vector<1x256xi32>
    %c0_i32_182 = arith.constant 0 : i32
    %518 = vector.broadcast %c0_i32_182 : i32 to vector<1x256xi32>
    %519 = arith.cmpi sge, %517, %518 : vector<1x256xi32>
    %520 = arith.andi %515, %519 : vector<1x256xi1>
    %c-2_i32_183 = arith.constant -2 : i32
    %521 = vector.broadcast %c-2_i32_183 : i32 to vector<1x256xi32>
    %522 = arith.addi %1, %521 : vector<1x256xi32>
    %c16_i32_184 = arith.constant 16 : i32
    %523 = vector.broadcast %c16_i32_184 : i32 to vector<1x256xi32>
    %524 = arith.cmpi slt, %522, %523 : vector<1x256xi32>
    %525 = arith.andi %520, %524 : vector<1x256xi1>
    %526 = arith.extui %525 : vector<1x256xi1> to vector<1x256xi32>
    %527 = arith.sitofp %526 : vector<1x256xi32> to vector<1x256xf32>
    %528 = vector.broadcast %527 : vector<1x256xf32> to vector<2x256xf32>
    %529 = arith.mulf %506, %528 : vector<2x256xf32>
    %c40 = arith.constant 40 : index
    %c0_185 = arith.constant 0 : index
    %530 = vector.load %arg11[%c40, %c0_185] : memref<162x256xf32, #tpu.memory_space<vmem>>, vector<2x256xf32>
    tpu.vector_store %arg11[%c40, %c0_185], %529 {strides = array<i32>} : memref<162x256xf32, #tpu.memory_space<vmem>>, vector<2x256xf32>,
    %531 = vector.extract_strided_slice %5 {offsets = [0, 95], sizes = [2, 256], strides = [1, 1]} : vector<2x512xf32> to vector<2x256xf32>
    %c-2_i32_186 = arith.constant -2 : i32
    %532 = vector.broadcast %c-2_i32_186 : i32 to vector<1x256xi32>
    %533 = arith.addi %0, %532 : vector<1x256xi32>
    %c0_i32_187 = arith.constant 0 : i32
    %534 = vector.broadcast %c0_i32_187 : i32 to vector<1x256xi32>
    %535 = arith.cmpi sge, %533, %534 : vector<1x256xi32>
    %c-2_i32_188 = arith.constant -2 : i32
    %536 = vector.broadcast %c-2_i32_188 : i32 to vector<1x256xi32>
    %537 = arith.addi %0, %536 : vector<1x256xi32>
    %c16_i32_189 = arith.constant 16 : i32
    %538 = vector.broadcast %c16_i32_189 : i32 to vector<1x256xi32>
    %539 = arith.cmpi slt, %537, %538 : vector<1x256xi32>
    %540 = arith.andi %535, %539 : vector<1x256xi1>
    %c-1_i32_190 = arith.constant -1 : i32
    %541 = vector.broadcast %c-1_i32_190 : i32 to vector<1x256xi32>
    %542 = arith.addi %1, %541 : vector<1x256xi32>
    %c0_i32_191 = arith.constant 0 : i32
    %543 = vector.broadcast %c0_i32_191 : i32 to vector<1x256xi32>
    %544 = arith.cmpi sge, %542, %543 : vector<1x256xi32>
    %545 = arith.andi %540, %544 : vector<1x256xi1>
    %c-1_i32_192 = arith.constant -1 : i32
    %546 = vector.broadcast %c-1_i32_192 : i32 to vector<1x256xi32>
    %547 = arith.addi %1, %546 : vector<1x256xi32>
    %c16_i32_193 = arith.constant 16 : i32
    %548 = vector.broadcast %c16_i32_193 : i32 to vector<1x256xi32>
    %549 = arith.cmpi slt, %547, %548 : vector<1x256xi32>
    %550 = arith.andi %545, %549 : vector<1x256xi1>
    %551 = arith.extui %550 : vector<1x256xi1> to vector<1x256xi32>
    %552 = arith.sitofp %551 : vector<1x256xi32> to vector<1x256xf32>
    %553 = vector.broadcast %552 : vector<1x256xf32> to vector<2x256xf32>
    %554 = arith.mulf %531, %553 : vector<2x256xf32>
    %c42 = arith.constant 42 : index
    %c0_194 = arith.constant 0 : index
    %555 = vector.load %arg11[%c42, %c0_194] : memref<162x256xf32, #tpu.memory_space<vmem>>, vector<2x256xf32>
    tpu.vector_store %arg11[%c42, %c0_194], %554 {strides = array<i32>} : memref<162x256xf32, #tpu.memory_space<vmem>>, vector<2x256xf32>,
    %556 = vector.extract_strided_slice %5 {offsets = [0, 96], sizes = [2, 256], strides = [1, 1]} : vector<2x512xf32> to vector<2x256xf32>
    %c-2_i32_195 = arith.constant -2 : i32
    %557 = vector.broadcast %c-2_i32_195 : i32 to vector<1x256xi32>
    %558 = arith.addi %0, %557 : vector<1x256xi32>
    %c0_i32_196 = arith.constant 0 : i32
    %559 = vector.broadcast %c0_i32_196 : i32 to vector<1x256xi32>
    %560 = arith.cmpi sge, %558, %559 : vector<1x256xi32>
    %c-2_i32_197 = arith.constant -2 : i32
    %561 = vector.broadcast %c-2_i32_197 : i32 to vector<1x256xi32>
    %562 = arith.addi %0, %561 : vector<1x256xi32>
    %c16_i32_198 = arith.constant 16 : i32
    %563 = vector.broadcast %c16_i32_198 : i32 to vector<1x256xi32>
    %564 = arith.cmpi slt, %562, %563 : vector<1x256xi32>
    %565 = arith.andi %560, %564 : vector<1x256xi1>
    %c0_i32_199 = arith.constant 0 : i32
    %566 = vector.broadcast %c0_i32_199 : i32 to vector<1x256xi32>
    %567 = arith.addi %1, %566 : vector<1x256xi32>
    %c0_i32_200 = arith.constant 0 : i32
    %568 = vector.broadcast %c0_i32_200 : i32 to vector<1x256xi32>
    %569 = arith.cmpi sge, %567, %568 : vector<1x256xi32>
    %570 = arith.andi %565, %569 : vector<1x256xi1>
    %c0_i32_201 = arith.constant 0 : i32
    %571 = vector.broadcast %c0_i32_201 : i32 to vector<1x256xi32>
    %572 = arith.addi %1, %571 : vector<1x256xi32>
    %c16_i32_202 = arith.constant 16 : i32
    %573 = vector.broadcast %c16_i32_202 : i32 to vector<1x256xi32>
    %574 = arith.cmpi slt, %572, %573 : vector<1x256xi32>
    %575 = arith.andi %570, %574 : vector<1x256xi1>
    %576 = arith.extui %575 : vector<1x256xi1> to vector<1x256xi32>
    %577 = arith.sitofp %576 : vector<1x256xi32> to vector<1x256xf32>
    %578 = vector.broadcast %577 : vector<1x256xf32> to vector<2x256xf32>
    %579 = arith.mulf %556, %578 : vector<2x256xf32>
    %c44 = arith.constant 44 : index
    %c0_203 = arith.constant 0 : index
    %580 = vector.load %arg11[%c44, %c0_203] : memref<162x256xf32, #tpu.memory_space<vmem>>, vector<2x256xf32>
    tpu.vector_store %arg11[%c44, %c0_203], %579 {strides = array<i32>} : memref<162x256xf32, #tpu.memory_space<vmem>>, vector<2x256xf32>,
    %581 = vector.extract_strided_slice %5 {offsets = [0, 97], sizes = [2, 256], strides = [1, 1]} : vector<2x512xf32> to vector<2x256xf32>
    %c-2_i32_204 = arith.constant -2 : i32
    %582 = vector.broadcast %c-2_i32_204 : i32 to vector<1x256xi32>
    %583 = arith.addi %0, %582 : vector<1x256xi32>
    %c0_i32_205 = arith.constant 0 : i32
    %584 = vector.broadcast %c0_i32_205 : i32 to vector<1x256xi32>
    %585 = arith.cmpi sge, %583, %584 : vector<1x256xi32>
    %c-2_i32_206 = arith.constant -2 : i32
    %586 = vector.broadcast %c-2_i32_206 : i32 to vector<1x256xi32>
    %587 = arith.addi %0, %586 : vector<1x256xi32>
    %c16_i32_207 = arith.constant 16 : i32
    %588 = vector.broadcast %c16_i32_207 : i32 to vector<1x256xi32>
    %589 = arith.cmpi slt, %587, %588 : vector<1x256xi32>
    %590 = arith.andi %585, %589 : vector<1x256xi1>
    %c1_i32_208 = arith.constant 1 : i32
    %591 = vector.broadcast %c1_i32_208 : i32 to vector<1x256xi32>
    %592 = arith.addi %1, %591 : vector<1x256xi32>
    %c0_i32_209 = arith.constant 0 : i32
    %593 = vector.broadcast %c0_i32_209 : i32 to vector<1x256xi32>
    %594 = arith.cmpi sge, %592, %593 : vector<1x256xi32>
    %595 = arith.andi %590, %594 : vector<1x256xi1>
    %c1_i32_210 = arith.constant 1 : i32
    %596 = vector.broadcast %c1_i32_210 : i32 to vector<1x256xi32>
    %597 = arith.addi %1, %596 : vector<1x256xi32>
    %c16_i32_211 = arith.constant 16 : i32
    %598 = vector.broadcast %c16_i32_211 : i32 to vector<1x256xi32>
    %599 = arith.cmpi slt, %597, %598 : vector<1x256xi32>
    %600 = arith.andi %595, %599 : vector<1x256xi1>
    %601 = arith.extui %600 : vector<1x256xi1> to vector<1x256xi32>
    %602 = arith.sitofp %601 : vector<1x256xi32> to vector<1x256xf32>
    %603 = vector.broadcast %602 : vector<1x256xf32> to vector<2x256xf32>
    %604 = arith.mulf %581, %603 : vector<2x256xf32>
    %c46 = arith.constant 46 : index
    %c0_212 = arith.constant 0 : index
    %605 = vector.load %arg11[%c46, %c0_212] : memref<162x256xf32, #tpu.memory_space<vmem>>, vector<2x256xf32>
    tpu.vector_store %arg11[%c46, %c0_212], %604 {strides = array<i32>} : memref<162x256xf32, #tpu.memory_space<vmem>>, vector<2x256xf32>,
    %606 = vector.extract_strided_slice %5 {offsets = [0, 98], sizes = [2, 256], strides = [1, 1]} : vector<2x512xf32> to vector<2x256xf32>
    %c-2_i32_213 = arith.constant -2 : i32
    %607 = vector.broadcast %c-2_i32_213 : i32 to vector<1x256xi32>
    %608 = arith.addi %0, %607 : vector<1x256xi32>
    %c0_i32_214 = arith.constant 0 : i32
    %609 = vector.broadcast %c0_i32_214 : i32 to vector<1x256xi32>
    %610 = arith.cmpi sge, %608, %609 : vector<1x256xi32>
    %c-2_i32_215 = arith.constant -2 : i32
    %611 = vector.broadcast %c-2_i32_215 : i32 to vector<1x256xi32>
    %612 = arith.addi %0, %611 : vector<1x256xi32>
    %c16_i32_216 = arith.constant 16 : i32
    %613 = vector.broadcast %c16_i32_216 : i32 to vector<1x256xi32>
    %614 = arith.cmpi slt, %612, %613 : vector<1x256xi32>
    %615 = arith.andi %610, %614 : vector<1x256xi1>
    %c2_i32_217 = arith.constant 2 : i32
    %616 = vector.broadcast %c2_i32_217 : i32 to vector<1x256xi32>
    %617 = arith.addi %1, %616 : vector<1x256xi32>
    %c0_i32_218 = arith.constant 0 : i32
    %618 = vector.broadcast %c0_i32_218 : i32 to vector<1x256xi32>
    %619 = arith.cmpi sge, %617, %618 : vector<1x256xi32>
    %620 = arith.andi %615, %619 : vector<1x256xi1>
    %c2_i32_219 = arith.constant 2 : i32
    %621 = vector.broadcast %c2_i32_219 : i32 to vector<1x256xi32>
    %622 = arith.addi %1, %621 : vector<1x256xi32>
    %c16_i32_220 = arith.constant 16 : i32
    %623 = vector.broadcast %c16_i32_220 : i32 to vector<1x256xi32>
    %624 = arith.cmpi slt, %622, %623 : vector<1x256xi32>
    %625 = arith.andi %620, %624 : vector<1x256xi1>
    %626 = arith.extui %625 : vector<1x256xi1> to vector<1x256xi32>
    %627 = arith.sitofp %626 : vector<1x256xi32> to vector<1x256xf32>
    %628 = vector.broadcast %627 : vector<1x256xf32> to vector<2x256xf32>
    %629 = arith.mulf %606, %628 : vector<2x256xf32>
    %c48 = arith.constant 48 : index
    %c0_221 = arith.constant 0 : index
    %630 = vector.load %arg11[%c48, %c0_221] : memref<162x256xf32, #tpu.memory_space<vmem>>, vector<2x256xf32>
    tpu.vector_store %arg11[%c48, %c0_221], %629 {strides = array<i32>} : memref<162x256xf32, #tpu.memory_space<vmem>>, vector<2x256xf32>,
    %631 = vector.extract_strided_slice %5 {offsets = [0, 99], sizes = [2, 256], strides = [1, 1]} : vector<2x512xf32> to vector<2x256xf32>
    %c-2_i32_222 = arith.constant -2 : i32
    %632 = vector.broadcast %c-2_i32_222 : i32 to vector<1x256xi32>
    %633 = arith.addi %0, %632 : vector<1x256xi32>
    %c0_i32_223 = arith.constant 0 : i32
    %634 = vector.broadcast %c0_i32_223 : i32 to vector<1x256xi32>
    %635 = arith.cmpi sge, %633, %634 : vector<1x256xi32>
    %c-2_i32_224 = arith.constant -2 : i32
    %636 = vector.broadcast %c-2_i32_224 : i32 to vector<1x256xi32>
    %637 = arith.addi %0, %636 : vector<1x256xi32>
    %c16_i32_225 = arith.constant 16 : i32
    %638 = vector.broadcast %c16_i32_225 : i32 to vector<1x256xi32>
    %639 = arith.cmpi slt, %637, %638 : vector<1x256xi32>
    %640 = arith.andi %635, %639 : vector<1x256xi1>
    %c3_i32_226 = arith.constant 3 : i32
    %641 = vector.broadcast %c3_i32_226 : i32 to vector<1x256xi32>
    %642 = arith.addi %1, %641 : vector<1x256xi32>
    %c0_i32_227 = arith.constant 0 : i32
    %643 = vector.broadcast %c0_i32_227 : i32 to vector<1x256xi32>
    %644 = arith.cmpi sge, %642, %643 : vector<1x256xi32>
    %645 = arith.andi %640, %644 : vector<1x256xi1>
    %c3_i32_228 = arith.constant 3 : i32
    %646 = vector.broadcast %c3_i32_228 : i32 to vector<1x256xi32>
    %647 = arith.addi %1, %646 : vector<1x256xi32>
    %c16_i32_229 = arith.constant 16 : i32
    %648 = vector.broadcast %c16_i32_229 : i32 to vector<1x256xi32>
    %649 = arith.cmpi slt, %647, %648 : vector<1x256xi32>
    %650 = arith.andi %645, %649 : vector<1x256xi1>
    %651 = arith.extui %650 : vector<1x256xi1> to vector<1x256xi32>
    %652 = arith.sitofp %651 : vector<1x256xi32> to vector<1x256xf32>
    %653 = vector.broadcast %652 : vector<1x256xf32> to vector<2x256xf32>
    %654 = arith.mulf %631, %653 : vector<2x256xf32>
    %c50 = arith.constant 50 : index
    %c0_230 = arith.constant 0 : index
    %655 = vector.load %arg11[%c50, %c0_230] : memref<162x256xf32, #tpu.memory_space<vmem>>, vector<2x256xf32>
    tpu.vector_store %arg11[%c50, %c0_230], %654 {strides = array<i32>} : memref<162x256xf32, #tpu.memory_space<vmem>>, vector<2x256xf32>,
    %656 = vector.extract_strided_slice %5 {offsets = [0, 100], sizes = [2, 256], strides = [1, 1]} : vector<2x512xf32> to vector<2x256xf32>
    %c-2_i32_231 = arith.constant -2 : i32
    %657 = vector.broadcast %c-2_i32_231 : i32 to vector<1x256xi32>
    %658 = arith.addi %0, %657 : vector<1x256xi32>
    %c0_i32_232 = arith.constant 0 : i32
    %659 = vector.broadcast %c0_i32_232 : i32 to vector<1x256xi32>
    %660 = arith.cmpi sge, %658, %659 : vector<1x256xi32>
    %c-2_i32_233 = arith.constant -2 : i32
    %661 = vector.broadcast %c-2_i32_233 : i32 to vector<1x256xi32>
    %662 = arith.addi %0, %661 : vector<1x256xi32>
    %c16_i32_234 = arith.constant 16 : i32
    %663 = vector.broadcast %c16_i32_234 : i32 to vector<1x256xi32>
    %664 = arith.cmpi slt, %662, %663 : vector<1x256xi32>
    %665 = arith.andi %660, %664 : vector<1x256xi1>
    %c4_i32_235 = arith.constant 4 : i32
    %666 = vector.broadcast %c4_i32_235 : i32 to vector<1x256xi32>
    %667 = arith.addi %1, %666 : vector<1x256xi32>
    %c0_i32_236 = arith.constant 0 : i32
    %668 = vector.broadcast %c0_i32_236 : i32 to vector<1x256xi32>
    %669 = arith.cmpi sge, %667, %668 : vector<1x256xi32>
    %670 = arith.andi %665, %669 : vector<1x256xi1>
    %c4_i32_237 = arith.constant 4 : i32
    %671 = vector.broadcast %c4_i32_237 : i32 to vector<1x256xi32>
    %672 = arith.addi %1, %671 : vector<1x256xi32>
    %c16_i32_238 = arith.constant 16 : i32
    %673 = vector.broadcast %c16_i32_238 : i32 to vector<1x256xi32>
    %674 = arith.cmpi slt, %672, %673 : vector<1x256xi32>
    %675 = arith.andi %670, %674 : vector<1x256xi1>
    %676 = arith.extui %675 : vector<1x256xi1> to vector<1x256xi32>
    %677 = arith.sitofp %676 : vector<1x256xi32> to vector<1x256xf32>
    %678 = vector.broadcast %677 : vector<1x256xf32> to vector<2x256xf32>
    %679 = arith.mulf %656, %678 : vector<2x256xf32>
    %c52 = arith.constant 52 : index
    %c0_239 = arith.constant 0 : index
    %680 = vector.load %arg11[%c52, %c0_239] : memref<162x256xf32, #tpu.memory_space<vmem>>, vector<2x256xf32>
    tpu.vector_store %arg11[%c52, %c0_239], %679 {strides = array<i32>} : memref<162x256xf32, #tpu.memory_space<vmem>>, vector<2x256xf32>,
    %681 = vector.extract_strided_slice %5 {offsets = [0, 108], sizes = [2, 256], strides = [1, 1]} : vector<2x512xf32> to vector<2x256xf32>
    %c-1_i32_240 = arith.constant -1 : i32
    %682 = vector.broadcast %c-1_i32_240 : i32 to vector<1x256xi32>
    %683 = arith.addi %0, %682 : vector<1x256xi32>
    %c0_i32_241 = arith.constant 0 : i32
    %684 = vector.broadcast %c0_i32_241 : i32 to vector<1x256xi32>
    %685 = arith.cmpi sge, %683, %684 : vector<1x256xi32>
    %c-1_i32_242 = arith.constant -1 : i32
    %686 = vector.broadcast %c-1_i32_242 : i32 to vector<1x256xi32>
    %687 = arith.addi %0, %686 : vector<1x256xi32>
    %c16_i32_243 = arith.constant 16 : i32
    %688 = vector.broadcast %c16_i32_243 : i32 to vector<1x256xi32>
    %689 = arith.cmpi slt, %687, %688 : vector<1x256xi32>
    %690 = arith.andi %685, %689 : vector<1x256xi1>
    %c-4_i32_244 = arith.constant -4 : i32
    %691 = vector.broadcast %c-4_i32_244 : i32 to vector<1x256xi32>
    %692 = arith.addi %1, %691 : vector<1x256xi32>
    %c0_i32_245 = arith.constant 0 : i32
    %693 = vector.broadcast %c0_i32_245 : i32 to vector<1x256xi32>
    %694 = arith.cmpi sge, %692, %693 : vector<1x256xi32>
    %695 = arith.andi %690, %694 : vector<1x256xi1>
    %c-4_i32_246 = arith.constant -4 : i32
    %696 = vector.broadcast %c-4_i32_246 : i32 to vector<1x256xi32>
    %697 = arith.addi %1, %696 : vector<1x256xi32>
    %c16_i32_247 = arith.constant 16 : i32
    %698 = vector.broadcast %c16_i32_247 : i32 to vector<1x256xi32>
    %699 = arith.cmpi slt, %697, %698 : vector<1x256xi32>
    %700 = arith.andi %695, %699 : vector<1x256xi1>
    %701 = arith.extui %700 : vector<1x256xi1> to vector<1x256xi32>
    %702 = arith.sitofp %701 : vector<1x256xi32> to vector<1x256xf32>
    %703 = vector.broadcast %702 : vector<1x256xf32> to vector<2x256xf32>
    %704 = arith.mulf %681, %703 : vector<2x256xf32>
    %c54 = arith.constant 54 : index
    %c0_248 = arith.constant 0 : index
    %705 = vector.load %arg11[%c54, %c0_248] : memref<162x256xf32, #tpu.memory_space<vmem>>, vector<2x256xf32>
    tpu.vector_store %arg11[%c54, %c0_248], %704 {strides = array<i32>} : memref<162x256xf32, #tpu.memory_space<vmem>>, vector<2x256xf32>,
    %706 = vector.extract_strided_slice %5 {offsets = [0, 109], sizes = [2, 256], strides = [1, 1]} : vector<2x512xf32> to vector<2x256xf32>
    %c-1_i32_249 = arith.constant -1 : i32
    %707 = vector.broadcast %c-1_i32_249 : i32 to vector<1x256xi32>
    %708 = arith.addi %0, %707 : vector<1x256xi32>
    %c0_i32_250 = arith.constant 0 : i32
    %709 = vector.broadcast %c0_i32_250 : i32 to vector<1x256xi32>
    %710 = arith.cmpi sge, %708, %709 : vector<1x256xi32>
    %c-1_i32_251 = arith.constant -1 : i32
    %711 = vector.broadcast %c-1_i32_251 : i32 to vector<1x256xi32>
    %712 = arith.addi %0, %711 : vector<1x256xi32>
    %c16_i32_252 = arith.constant 16 : i32
    %713 = vector.broadcast %c16_i32_252 : i32 to vector<1x256xi32>
    %714 = arith.cmpi slt, %712, %713 : vector<1x256xi32>
    %715 = arith.andi %710, %714 : vector<1x256xi1>
    %c-3_i32_253 = arith.constant -3 : i32
    %716 = vector.broadcast %c-3_i32_253 : i32 to vector<1x256xi32>
    %717 = arith.addi %1, %716 : vector<1x256xi32>
    %c0_i32_254 = arith.constant 0 : i32
    %718 = vector.broadcast %c0_i32_254 : i32 to vector<1x256xi32>
    %719 = arith.cmpi sge, %717, %718 : vector<1x256xi32>
    %720 = arith.andi %715, %719 : vector<1x256xi1>
    %c-3_i32_255 = arith.constant -3 : i32
    %721 = vector.broadcast %c-3_i32_255 : i32 to vector<1x256xi32>
    %722 = arith.addi %1, %721 : vector<1x256xi32>
    %c16_i32_256 = arith.constant 16 : i32
    %723 = vector.broadcast %c16_i32_256 : i32 to vector<1x256xi32>
    %724 = arith.cmpi slt, %722, %723 : vector<1x256xi32>
    %725 = arith.andi %720, %724 : vector<1x256xi1>
    %726 = arith.extui %725 : vector<1x256xi1> to vector<1x256xi32>
    %727 = arith.sitofp %726 : vector<1x256xi32> to vector<1x256xf32>
    %728 = vector.broadcast %727 : vector<1x256xf32> to vector<2x256xf32>
    %729 = arith.mulf %706, %728 : vector<2x256xf32>
    %c56 = arith.constant 56 : index
    %c0_257 = arith.constant 0 : index
    %730 = vector.load %arg11[%c56, %c0_257] : memref<162x256xf32, #tpu.memory_space<vmem>>, vector<2x256xf32>
    tpu.vector_store %arg11[%c56, %c0_257], %729 {strides = array<i32>} : memref<162x256xf32, #tpu.memory_space<vmem>>, vector<2x256xf32>,
    %731 = vector.extract_strided_slice %5 {offsets = [0, 110], sizes = [2, 256], strides = [1, 1]} : vector<2x512xf32> to vector<2x256xf32>
    %c-1_i32_258 = arith.constant -1 : i32
    %732 = vector.broadcast %c-1_i32_258 : i32 to vector<1x256xi32>
    %733 = arith.addi %0, %732 : vector<1x256xi32>
    %c0_i32_259 = arith.constant 0 : i32
    %734 = vector.broadcast %c0_i32_259 : i32 to vector<1x256xi32>
    %735 = arith.cmpi sge, %733, %734 : vector<1x256xi32>
    %c-1_i32_260 = arith.constant -1 : i32
    %736 = vector.broadcast %c-1_i32_260 : i32 to vector<1x256xi32>
    %737 = arith.addi %0, %736 : vector<1x256xi32>
    %c16_i32_261 = arith.constant 16 : i32
    %738 = vector.broadcast %c16_i32_261 : i32 to vector<1x256xi32>
    %739 = arith.cmpi slt, %737, %738 : vector<1x256xi32>
    %740 = arith.andi %735, %739 : vector<1x256xi1>
    %c-2_i32_262 = arith.constant -2 : i32
    %741 = vector.broadcast %c-2_i32_262 : i32 to vector<1x256xi32>
    %742 = arith.addi %1, %741 : vector<1x256xi32>
    %c0_i32_263 = arith.constant 0 : i32
    %743 = vector.broadcast %c0_i32_263 : i32 to vector<1x256xi32>
    %744 = arith.cmpi sge, %742, %743 : vector<1x256xi32>
    %745 = arith.andi %740, %744 : vector<1x256xi1>
    %c-2_i32_264 = arith.constant -2 : i32
    %746 = vector.broadcast %c-2_i32_264 : i32 to vector<1x256xi32>
    %747 = arith.addi %1, %746 : vector<1x256xi32>
    %c16_i32_265 = arith.constant 16 : i32
    %748 = vector.broadcast %c16_i32_265 : i32 to vector<1x256xi32>
    %749 = arith.cmpi slt, %747, %748 : vector<1x256xi32>
    %750 = arith.andi %745, %749 : vector<1x256xi1>
    %751 = arith.extui %750 : vector<1x256xi1> to vector<1x256xi32>
    %752 = arith.sitofp %751 : vector<1x256xi32> to vector<1x256xf32>
    %753 = vector.broadcast %752 : vector<1x256xf32> to vector<2x256xf32>
    %754 = arith.mulf %731, %753 : vector<2x256xf32>
    %c58 = arith.constant 58 : index
    %c0_266 = arith.constant 0 : index
    %755 = vector.load %arg11[%c58, %c0_266] : memref<162x256xf32, #tpu.memory_space<vmem>>, vector<2x256xf32>
    tpu.vector_store %arg11[%c58, %c0_266], %754 {strides = array<i32>} : memref<162x256xf32, #tpu.memory_space<vmem>>, vector<2x256xf32>,
    %756 = vector.extract_strided_slice %5 {offsets = [0, 111], sizes = [2, 256], strides = [1, 1]} : vector<2x512xf32> to vector<2x256xf32>
    %c-1_i32_267 = arith.constant -1 : i32
    %757 = vector.broadcast %c-1_i32_267 : i32 to vector<1x256xi32>
    %758 = arith.addi %0, %757 : vector<1x256xi32>
    %c0_i32_268 = arith.constant 0 : i32
    %759 = vector.broadcast %c0_i32_268 : i32 to vector<1x256xi32>
    %760 = arith.cmpi sge, %758, %759 : vector<1x256xi32>
    %c-1_i32_269 = arith.constant -1 : i32
    %761 = vector.broadcast %c-1_i32_269 : i32 to vector<1x256xi32>
    %762 = arith.addi %0, %761 : vector<1x256xi32>
    %c16_i32_270 = arith.constant 16 : i32
    %763 = vector.broadcast %c16_i32_270 : i32 to vector<1x256xi32>
    %764 = arith.cmpi slt, %762, %763 : vector<1x256xi32>
    %765 = arith.andi %760, %764 : vector<1x256xi1>
    %c-1_i32_271 = arith.constant -1 : i32
    %766 = vector.broadcast %c-1_i32_271 : i32 to vector<1x256xi32>
    %767 = arith.addi %1, %766 : vector<1x256xi32>
    %c0_i32_272 = arith.constant 0 : i32
    %768 = vector.broadcast %c0_i32_272 : i32 to vector<1x256xi32>
    %769 = arith.cmpi sge, %767, %768 : vector<1x256xi32>
    %770 = arith.andi %765, %769 : vector<1x256xi1>
    %c-1_i32_273 = arith.constant -1 : i32
    %771 = vector.broadcast %c-1_i32_273 : i32 to vector<1x256xi32>
    %772 = arith.addi %1, %771 : vector<1x256xi32>
    %c16_i32_274 = arith.constant 16 : i32
    %773 = vector.broadcast %c16_i32_274 : i32 to vector<1x256xi32>
    %774 = arith.cmpi slt, %772, %773 : vector<1x256xi32>
    %775 = arith.andi %770, %774 : vector<1x256xi1>
    %776 = arith.extui %775 : vector<1x256xi1> to vector<1x256xi32>
    %777 = arith.sitofp %776 : vector<1x256xi32> to vector<1x256xf32>
    %778 = vector.broadcast %777 : vector<1x256xf32> to vector<2x256xf32>
    %779 = arith.mulf %756, %778 : vector<2x256xf32>
    %c60 = arith.constant 60 : index
    %c0_275 = arith.constant 0 : index
    %780 = vector.load %arg11[%c60, %c0_275] : memref<162x256xf32, #tpu.memory_space<vmem>>, vector<2x256xf32>
    tpu.vector_store %arg11[%c60, %c0_275], %779 {strides = array<i32>} : memref<162x256xf32, #tpu.memory_space<vmem>>, vector<2x256xf32>,
    %781 = vector.extract_strided_slice %5 {offsets = [0, 112], sizes = [2, 256], strides = [1, 1]} : vector<2x512xf32> to vector<2x256xf32>
    %c-1_i32_276 = arith.constant -1 : i32
    %782 = vector.broadcast %c-1_i32_276 : i32 to vector<1x256xi32>
    %783 = arith.addi %0, %782 : vector<1x256xi32>
    %c0_i32_277 = arith.constant 0 : i32
    %784 = vector.broadcast %c0_i32_277 : i32 to vector<1x256xi32>
    %785 = arith.cmpi sge, %783, %784 : vector<1x256xi32>
    %c-1_i32_278 = arith.constant -1 : i32
    %786 = vector.broadcast %c-1_i32_278 : i32 to vector<1x256xi32>
    %787 = arith.addi %0, %786 : vector<1x256xi32>
    %c16_i32_279 = arith.constant 16 : i32
    %788 = vector.broadcast %c16_i32_279 : i32 to vector<1x256xi32>
    %789 = arith.cmpi slt, %787, %788 : vector<1x256xi32>
    %790 = arith.andi %785, %789 : vector<1x256xi1>
    %c0_i32_280 = arith.constant 0 : i32
    %791 = vector.broadcast %c0_i32_280 : i32 to vector<1x256xi32>
    %792 = arith.addi %1, %791 : vector<1x256xi32>
    %c0_i32_281 = arith.constant 0 : i32
    %793 = vector.broadcast %c0_i32_281 : i32 to vector<1x256xi32>
    %794 = arith.cmpi sge, %792, %793 : vector<1x256xi32>
    %795 = arith.andi %790, %794 : vector<1x256xi1>
    %c0_i32_282 = arith.constant 0 : i32
    %796 = vector.broadcast %c0_i32_282 : i32 to vector<1x256xi32>
    %797 = arith.addi %1, %796 : vector<1x256xi32>
    %c16_i32_283 = arith.constant 16 : i32
    %798 = vector.broadcast %c16_i32_283 : i32 to vector<1x256xi32>
    %799 = arith.cmpi slt, %797, %798 : vector<1x256xi32>
    %800 = arith.andi %795, %799 : vector<1x256xi1>
    %801 = arith.extui %800 : vector<1x256xi1> to vector<1x256xi32>
    %802 = arith.sitofp %801 : vector<1x256xi32> to vector<1x256xf32>
    %803 = vector.broadcast %802 : vector<1x256xf32> to vector<2x256xf32>
    %804 = arith.mulf %781, %803 : vector<2x256xf32>
    %c62 = arith.constant 62 : index
    %c0_284 = arith.constant 0 : index
    %805 = vector.load %arg11[%c62, %c0_284] : memref<162x256xf32, #tpu.memory_space<vmem>>, vector<2x256xf32>
    tpu.vector_store %arg11[%c62, %c0_284], %804 {strides = array<i32>} : memref<162x256xf32, #tpu.memory_space<vmem>>, vector<2x256xf32>,
    %806 = vector.extract_strided_slice %5 {offsets = [0, 113], sizes = [2, 256], strides = [1, 1]} : vector<2x512xf32> to vector<2x256xf32>
    %c-1_i32_285 = arith.constant -1 : i32
    %807 = vector.broadcast %c-1_i32_285 : i32 to vector<1x256xi32>
    %808 = arith.addi %0, %807 : vector<1x256xi32>
    %c0_i32_286 = arith.constant 0 : i32
    %809 = vector.broadcast %c0_i32_286 : i32 to vector<1x256xi32>
    %810 = arith.cmpi sge, %808, %809 : vector<1x256xi32>
    %c-1_i32_287 = arith.constant -1 : i32
    %811 = vector.broadcast %c-1_i32_287 : i32 to vector<1x256xi32>
    %812 = arith.addi %0, %811 : vector<1x256xi32>
    %c16_i32_288 = arith.constant 16 : i32
    %813 = vector.broadcast %c16_i32_288 : i32 to vector<1x256xi32>
    %814 = arith.cmpi slt, %812, %813 : vector<1x256xi32>
    %815 = arith.andi %810, %814 : vector<1x256xi1>
    %c1_i32_289 = arith.constant 1 : i32
    %816 = vector.broadcast %c1_i32_289 : i32 to vector<1x256xi32>
    %817 = arith.addi %1, %816 : vector<1x256xi32>
    %c0_i32_290 = arith.constant 0 : i32
    %818 = vector.broadcast %c0_i32_290 : i32 to vector<1x256xi32>
    %819 = arith.cmpi sge, %817, %818 : vector<1x256xi32>
    %820 = arith.andi %815, %819 : vector<1x256xi1>
    %c1_i32_291 = arith.constant 1 : i32
    %821 = vector.broadcast %c1_i32_291 : i32 to vector<1x256xi32>
    %822 = arith.addi %1, %821 : vector<1x256xi32>
    %c16_i32_292 = arith.constant 16 : i32
    %823 = vector.broadcast %c16_i32_292 : i32 to vector<1x256xi32>
    %824 = arith.cmpi slt, %822, %823 : vector<1x256xi32>
    %825 = arith.andi %820, %824 : vector<1x256xi1>
    %826 = arith.extui %825 : vector<1x256xi1> to vector<1x256xi32>
    %827 = arith.sitofp %826 : vector<1x256xi32> to vector<1x256xf32>
    %828 = vector.broadcast %827 : vector<1x256xf32> to vector<2x256xf32>
    %829 = arith.mulf %806, %828 : vector<2x256xf32>
    %c64 = arith.constant 64 : index
    %c0_293 = arith.constant 0 : index
    %830 = vector.load %arg11[%c64, %c0_293] : memref<162x256xf32, #tpu.memory_space<vmem>>, vector<2x256xf32>
    tpu.vector_store %arg11[%c64, %c0_293], %829 {strides = array<i32>} : memref<162x256xf32, #tpu.memory_space<vmem>>, vector<2x256xf32>,
    %831 = vector.extract_strided_slice %5 {offsets = [0, 114], sizes = [2, 256], strides = [1, 1]} : vector<2x512xf32> to vector<2x256xf32>
    %c-1_i32_294 = arith.constant -1 : i32
    %832 = vector.broadcast %c-1_i32_294 : i32 to vector<1x256xi32>
    %833 = arith.addi %0, %832 : vector<1x256xi32>
    %c0_i32_295 = arith.constant 0 : i32
    %834 = vector.broadcast %c0_i32_295 : i32 to vector<1x256xi32>
    %835 = arith.cmpi sge, %833, %834 : vector<1x256xi32>
    %c-1_i32_296 = arith.constant -1 : i32
    %836 = vector.broadcast %c-1_i32_296 : i32 to vector<1x256xi32>
    %837 = arith.addi %0, %836 : vector<1x256xi32>
    %c16_i32_297 = arith.constant 16 : i32
    %838 = vector.broadcast %c16_i32_297 : i32 to vector<1x256xi32>
    %839 = arith.cmpi slt, %837, %838 : vector<1x256xi32>
    %840 = arith.andi %835, %839 : vector<1x256xi1>
    %c2_i32_298 = arith.constant 2 : i32
    %841 = vector.broadcast %c2_i32_298 : i32 to vector<1x256xi32>
    %842 = arith.addi %1, %841 : vector<1x256xi32>
    %c0_i32_299 = arith.constant 0 : i32
    %843 = vector.broadcast %c0_i32_299 : i32 to vector<1x256xi32>
    %844 = arith.cmpi sge, %842, %843 : vector<1x256xi32>
    %845 = arith.andi %840, %844 : vector<1x256xi1>
    %c2_i32_300 = arith.constant 2 : i32
    %846 = vector.broadcast %c2_i32_300 : i32 to vector<1x256xi32>
    %847 = arith.addi %1, %846 : vector<1x256xi32>
    %c16_i32_301 = arith.constant 16 : i32
    %848 = vector.broadcast %c16_i32_301 : i32 to vector<1x256xi32>
    %849 = arith.cmpi slt, %847, %848 : vector<1x256xi32>
    %850 = arith.andi %845, %849 : vector<1x256xi1>
    %851 = arith.extui %850 : vector<1x256xi1> to vector<1x256xi32>
    %852 = arith.sitofp %851 : vector<1x256xi32> to vector<1x256xf32>
    %853 = vector.broadcast %852 : vector<1x256xf32> to vector<2x256xf32>
    %854 = arith.mulf %831, %853 : vector<2x256xf32>
    %c66 = arith.constant 66 : index
    %c0_302 = arith.constant 0 : index
    %855 = vector.load %arg11[%c66, %c0_302] : memref<162x256xf32, #tpu.memory_space<vmem>>, vector<2x256xf32>
    tpu.vector_store %arg11[%c66, %c0_302], %854 {strides = array<i32>} : memref<162x256xf32, #tpu.memory_space<vmem>>, vector<2x256xf32>,
    %856 = vector.extract_strided_slice %5 {offsets = [0, 115], sizes = [2, 256], strides = [1, 1]} : vector<2x512xf32> to vector<2x256xf32>
    %c-1_i32_303 = arith.constant -1 : i32
    %857 = vector.broadcast %c-1_i32_303 : i32 to vector<1x256xi32>
    %858 = arith.addi %0, %857 : vector<1x256xi32>
    %c0_i32_304 = arith.constant 0 : i32
    %859 = vector.broadcast %c0_i32_304 : i32 to vector<1x256xi32>
    %860 = arith.cmpi sge, %858, %859 : vector<1x256xi32>
    %c-1_i32_305 = arith.constant -1 : i32
    %861 = vector.broadcast %c-1_i32_305 : i32 to vector<1x256xi32>
    %862 = arith.addi %0, %861 : vector<1x256xi32>
    %c16_i32_306 = arith.constant 16 : i32
    %863 = vector.broadcast %c16_i32_306 : i32 to vector<1x256xi32>
    %864 = arith.cmpi slt, %862, %863 : vector<1x256xi32>
    %865 = arith.andi %860, %864 : vector<1x256xi1>
    %c3_i32_307 = arith.constant 3 : i32
    %866 = vector.broadcast %c3_i32_307 : i32 to vector<1x256xi32>
    %867 = arith.addi %1, %866 : vector<1x256xi32>
    %c0_i32_308 = arith.constant 0 : i32
    %868 = vector.broadcast %c0_i32_308 : i32 to vector<1x256xi32>
    %869 = arith.cmpi sge, %867, %868 : vector<1x256xi32>
    %870 = arith.andi %865, %869 : vector<1x256xi1>
    %c3_i32_309 = arith.constant 3 : i32
    %871 = vector.broadcast %c3_i32_309 : i32 to vector<1x256xi32>
    %872 = arith.addi %1, %871 : vector<1x256xi32>
    %c16_i32_310 = arith.constant 16 : i32
    %873 = vector.broadcast %c16_i32_310 : i32 to vector<1x256xi32>
    %874 = arith.cmpi slt, %872, %873 : vector<1x256xi32>
    %875 = arith.andi %870, %874 : vector<1x256xi1>
    %876 = arith.extui %875 : vector<1x256xi1> to vector<1x256xi32>
    %877 = arith.sitofp %876 : vector<1x256xi32> to vector<1x256xf32>
    %878 = vector.broadcast %877 : vector<1x256xf32> to vector<2x256xf32>
    %879 = arith.mulf %856, %878 : vector<2x256xf32>
    %c68 = arith.constant 68 : index
    %c0_311 = arith.constant 0 : index
    %880 = vector.load %arg11[%c68, %c0_311] : memref<162x256xf32, #tpu.memory_space<vmem>>, vector<2x256xf32>
    tpu.vector_store %arg11[%c68, %c0_311], %879 {strides = array<i32>} : memref<162x256xf32, #tpu.memory_space<vmem>>, vector<2x256xf32>,
    %881 = vector.extract_strided_slice %5 {offsets = [0, 116], sizes = [2, 256], strides = [1, 1]} : vector<2x512xf32> to vector<2x256xf32>
    %c-1_i32_312 = arith.constant -1 : i32
    %882 = vector.broadcast %c-1_i32_312 : i32 to vector<1x256xi32>
    %883 = arith.addi %0, %882 : vector<1x256xi32>
    %c0_i32_313 = arith.constant 0 : i32
    %884 = vector.broadcast %c0_i32_313 : i32 to vector<1x256xi32>
    %885 = arith.cmpi sge, %883, %884 : vector<1x256xi32>
    %c-1_i32_314 = arith.constant -1 : i32
    %886 = vector.broadcast %c-1_i32_314 : i32 to vector<1x256xi32>
    %887 = arith.addi %0, %886 : vector<1x256xi32>
    %c16_i32_315 = arith.constant 16 : i32
    %888 = vector.broadcast %c16_i32_315 : i32 to vector<1x256xi32>
    %889 = arith.cmpi slt, %887, %888 : vector<1x256xi32>
    %890 = arith.andi %885, %889 : vector<1x256xi1>
    %c4_i32_316 = arith.constant 4 : i32
    %891 = vector.broadcast %c4_i32_316 : i32 to vector<1x256xi32>
    %892 = arith.addi %1, %891 : vector<1x256xi32>
    %c0_i32_317 = arith.constant 0 : i32
    %893 = vector.broadcast %c0_i32_317 : i32 to vector<1x256xi32>
    %894 = arith.cmpi sge, %892, %893 : vector<1x256xi32>
    %895 = arith.andi %890, %894 : vector<1x256xi1>
    %c4_i32_318 = arith.constant 4 : i32
    %896 = vector.broadcast %c4_i32_318 : i32 to vector<1x256xi32>
    %897 = arith.addi %1, %896 : vector<1x256xi32>
    %c16_i32_319 = arith.constant 16 : i32
    %898 = vector.broadcast %c16_i32_319 : i32 to vector<1x256xi32>
    %899 = arith.cmpi slt, %897, %898 : vector<1x256xi32>
    %900 = arith.andi %895, %899 : vector<1x256xi1>
    %901 = arith.extui %900 : vector<1x256xi1> to vector<1x256xi32>
    %902 = arith.sitofp %901 : vector<1x256xi32> to vector<1x256xf32>
    %903 = vector.broadcast %902 : vector<1x256xf32> to vector<2x256xf32>
    %904 = arith.mulf %881, %903 : vector<2x256xf32>
    %c70 = arith.constant 70 : index
    %c0_320 = arith.constant 0 : index
    %905 = vector.load %arg11[%c70, %c0_320] : memref<162x256xf32, #tpu.memory_space<vmem>>, vector<2x256xf32>
    tpu.vector_store %arg11[%c70, %c0_320], %904 {strides = array<i32>} : memref<162x256xf32, #tpu.memory_space<vmem>>, vector<2x256xf32>,
    %906 = vector.extract_strided_slice %5 {offsets = [0, 124], sizes = [2, 256], strides = [1, 1]} : vector<2x512xf32> to vector<2x256xf32>
    %c0_i32_321 = arith.constant 0 : i32
    %907 = vector.broadcast %c0_i32_321 : i32 to vector<1x256xi32>
    %908 = arith.addi %0, %907 : vector<1x256xi32>
    %c0_i32_322 = arith.constant 0 : i32
    %909 = vector.broadcast %c0_i32_322 : i32 to vector<1x256xi32>
    %910 = arith.cmpi sge, %908, %909 : vector<1x256xi32>
    %c0_i32_323 = arith.constant 0 : i32
    %911 = vector.broadcast %c0_i32_323 : i32 to vector<1x256xi32>
    %912 = arith.addi %0, %911 : vector<1x256xi32>
    %c16_i32_324 = arith.constant 16 : i32
    %913 = vector.broadcast %c16_i32_324 : i32 to vector<1x256xi32>
    %914 = arith.cmpi slt, %912, %913 : vector<1x256xi32>
    %915 = arith.andi %910, %914 : vector<1x256xi1>
    %c-4_i32_325 = arith.constant -4 : i32
    %916 = vector.broadcast %c-4_i32_325 : i32 to vector<1x256xi32>
    %917 = arith.addi %1, %916 : vector<1x256xi32>
    %c0_i32_326 = arith.constant 0 : i32
    %918 = vector.broadcast %c0_i32_326 : i32 to vector<1x256xi32>
    %919 = arith.cmpi sge, %917, %918 : vector<1x256xi32>
    %920 = arith.andi %915, %919 : vector<1x256xi1>
    %c-4_i32_327 = arith.constant -4 : i32
    %921 = vector.broadcast %c-4_i32_327 : i32 to vector<1x256xi32>
    %922 = arith.addi %1, %921 : vector<1x256xi32>
    %c16_i32_328 = arith.constant 16 : i32
    %923 = vector.broadcast %c16_i32_328 : i32 to vector<1x256xi32>
    %924 = arith.cmpi slt, %922, %923 : vector<1x256xi32>
    %925 = arith.andi %920, %924 : vector<1x256xi1>
    %926 = arith.extui %925 : vector<1x256xi1> to vector<1x256xi32>
    %927 = arith.sitofp %926 : vector<1x256xi32> to vector<1x256xf32>
    %928 = vector.broadcast %927 : vector<1x256xf32> to vector<2x256xf32>
    %929 = arith.mulf %906, %928 : vector<2x256xf32>
    %c72 = arith.constant 72 : index
    %c0_329 = arith.constant 0 : index
    %930 = vector.load %arg11[%c72, %c0_329] : memref<162x256xf32, #tpu.memory_space<vmem>>, vector<2x256xf32>
    tpu.vector_store %arg11[%c72, %c0_329], %929 {strides = array<i32>} : memref<162x256xf32, #tpu.memory_space<vmem>>, vector<2x256xf32>,
    %931 = vector.extract_strided_slice %5 {offsets = [0, 125], sizes = [2, 256], strides = [1, 1]} : vector<2x512xf32> to vector<2x256xf32>
    %c0_i32_330 = arith.constant 0 : i32
    %932 = vector.broadcast %c0_i32_330 : i32 to vector<1x256xi32>
    %933 = arith.addi %0, %932 : vector<1x256xi32>
    %c0_i32_331 = arith.constant 0 : i32
    %934 = vector.broadcast %c0_i32_331 : i32 to vector<1x256xi32>
    %935 = arith.cmpi sge, %933, %934 : vector<1x256xi32>
    %c0_i32_332 = arith.constant 0 : i32
    %936 = vector.broadcast %c0_i32_332 : i32 to vector<1x256xi32>
    %937 = arith.addi %0, %936 : vector<1x256xi32>
    %c16_i32_333 = arith.constant 16 : i32
    %938 = vector.broadcast %c16_i32_333 : i32 to vector<1x256xi32>
    %939 = arith.cmpi slt, %937, %938 : vector<1x256xi32>
    %940 = arith.andi %935, %939 : vector<1x256xi1>
    %c-3_i32_334 = arith.constant -3 : i32
    %941 = vector.broadcast %c-3_i32_334 : i32 to vector<1x256xi32>
    %942 = arith.addi %1, %941 : vector<1x256xi32>
    %c0_i32_335 = arith.constant 0 : i32
    %943 = vector.broadcast %c0_i32_335 : i32 to vector<1x256xi32>
    %944 = arith.cmpi sge, %942, %943 : vector<1x256xi32>
    %945 = arith.andi %940, %944 : vector<1x256xi1>
    %c-3_i32_336 = arith.constant -3 : i32
    %946 = vector.broadcast %c-3_i32_336 : i32 to vector<1x256xi32>
    %947 = arith.addi %1, %946 : vector<1x256xi32>
    %c16_i32_337 = arith.constant 16 : i32
    %948 = vector.broadcast %c16_i32_337 : i32 to vector<1x256xi32>
    %949 = arith.cmpi slt, %947, %948 : vector<1x256xi32>
    %950 = arith.andi %945, %949 : vector<1x256xi1>
    %951 = arith.extui %950 : vector<1x256xi1> to vector<1x256xi32>
    %952 = arith.sitofp %951 : vector<1x256xi32> to vector<1x256xf32>
    %953 = vector.broadcast %952 : vector<1x256xf32> to vector<2x256xf32>
    %954 = arith.mulf %931, %953 : vector<2x256xf32>
    %c74 = arith.constant 74 : index
    %c0_338 = arith.constant 0 : index
    %955 = vector.load %arg11[%c74, %c0_338] : memref<162x256xf32, #tpu.memory_space<vmem>>, vector<2x256xf32>
    tpu.vector_store %arg11[%c74, %c0_338], %954 {strides = array<i32>} : memref<162x256xf32, #tpu.memory_space<vmem>>, vector<2x256xf32>,
    %956 = vector.extract_strided_slice %5 {offsets = [0, 126], sizes = [2, 256], strides = [1, 1]} : vector<2x512xf32> to vector<2x256xf32>
    %c0_i32_339 = arith.constant 0 : i32
    %957 = vector.broadcast %c0_i32_339 : i32 to vector<1x256xi32>
    %958 = arith.addi %0, %957 : vector<1x256xi32>
    %c0_i32_340 = arith.constant 0 : i32
    %959 = vector.broadcast %c0_i32_340 : i32 to vector<1x256xi32>
    %960 = arith.cmpi sge, %958, %959 : vector<1x256xi32>
    %c0_i32_341 = arith.constant 0 : i32
    %961 = vector.broadcast %c0_i32_341 : i32 to vector<1x256xi32>
    %962 = arith.addi %0, %961 : vector<1x256xi32>
    %c16_i32_342 = arith.constant 16 : i32
    %963 = vector.broadcast %c16_i32_342 : i32 to vector<1x256xi32>
    %964 = arith.cmpi slt, %962, %963 : vector<1x256xi32>
    %965 = arith.andi %960, %964 : vector<1x256xi1>
    %c-2_i32_343 = arith.constant -2 : i32
    %966 = vector.broadcast %c-2_i32_343 : i32 to vector<1x256xi32>
    %967 = arith.addi %1, %966 : vector<1x256xi32>
    %c0_i32_344 = arith.constant 0 : i32
    %968 = vector.broadcast %c0_i32_344 : i32 to vector<1x256xi32>
    %969 = arith.cmpi sge, %967, %968 : vector<1x256xi32>
    %970 = arith.andi %965, %969 : vector<1x256xi1>
    %c-2_i32_345 = arith.constant -2 : i32
    %971 = vector.broadcast %c-2_i32_345 : i32 to vector<1x256xi32>
    %972 = arith.addi %1, %971 : vector<1x256xi32>
    %c16_i32_346 = arith.constant 16 : i32
    %973 = vector.broadcast %c16_i32_346 : i32 to vector<1x256xi32>
    %974 = arith.cmpi slt, %972, %973 : vector<1x256xi32>
    %975 = arith.andi %970, %974 : vector<1x256xi1>
    %976 = arith.extui %975 : vector<1x256xi1> to vector<1x256xi32>
    %977 = arith.sitofp %976 : vector<1x256xi32> to vector<1x256xf32>
    %978 = vector.broadcast %977 : vector<1x256xf32> to vector<2x256xf32>
    %979 = arith.mulf %956, %978 : vector<2x256xf32>
    %c76 = arith.constant 76 : index
    %c0_347 = arith.constant 0 : index
    %980 = vector.load %arg11[%c76, %c0_347] : memref<162x256xf32, #tpu.memory_space<vmem>>, vector<2x256xf32>
    tpu.vector_store %arg11[%c76, %c0_347], %979 {strides = array<i32>} : memref<162x256xf32, #tpu.memory_space<vmem>>, vector<2x256xf32>,
    %981 = vector.extract_strided_slice %5 {offsets = [0, 127], sizes = [2, 256], strides = [1, 1]} : vector<2x512xf32> to vector<2x256xf32>
    %c0_i32_348 = arith.constant 0 : i32
    %982 = vector.broadcast %c0_i32_348 : i32 to vector<1x256xi32>
    %983 = arith.addi %0, %982 : vector<1x256xi32>
    %c0_i32_349 = arith.constant 0 : i32
    %984 = vector.broadcast %c0_i32_349 : i32 to vector<1x256xi32>
    %985 = arith.cmpi sge, %983, %984 : vector<1x256xi32>
    %c0_i32_350 = arith.constant 0 : i32
    %986 = vector.broadcast %c0_i32_350 : i32 to vector<1x256xi32>
    %987 = arith.addi %0, %986 : vector<1x256xi32>
    %c16_i32_351 = arith.constant 16 : i32
    %988 = vector.broadcast %c16_i32_351 : i32 to vector<1x256xi32>
    %989 = arith.cmpi slt, %987, %988 : vector<1x256xi32>
    %990 = arith.andi %985, %989 : vector<1x256xi1>
    %c-1_i32_352 = arith.constant -1 : i32
    %991 = vector.broadcast %c-1_i32_352 : i32 to vector<1x256xi32>
    %992 = arith.addi %1, %991 : vector<1x256xi32>
    %c0_i32_353 = arith.constant 0 : i32
    %993 = vector.broadcast %c0_i32_353 : i32 to vector<1x256xi32>
    %994 = arith.cmpi sge, %992, %993 : vector<1x256xi32>
    %995 = arith.andi %990, %994 : vector<1x256xi1>
    %c-1_i32_354 = arith.constant -1 : i32
    %996 = vector.broadcast %c-1_i32_354 : i32 to vector<1x256xi32>
    %997 = arith.addi %1, %996 : vector<1x256xi32>
    %c16_i32_355 = arith.constant 16 : i32
    %998 = vector.broadcast %c16_i32_355 : i32 to vector<1x256xi32>
    %999 = arith.cmpi slt, %997, %998 : vector<1x256xi32>
    %1000 = arith.andi %995, %999 : vector<1x256xi1>
    %1001 = arith.extui %1000 : vector<1x256xi1> to vector<1x256xi32>
    %1002 = arith.sitofp %1001 : vector<1x256xi32> to vector<1x256xf32>
    %1003 = vector.broadcast %1002 : vector<1x256xf32> to vector<2x256xf32>
    %1004 = arith.mulf %981, %1003 : vector<2x256xf32>
    %c78 = arith.constant 78 : index
    %c0_356 = arith.constant 0 : index
    %1005 = vector.load %arg11[%c78, %c0_356] : memref<162x256xf32, #tpu.memory_space<vmem>>, vector<2x256xf32>
    tpu.vector_store %arg11[%c78, %c0_356], %1004 {strides = array<i32>} : memref<162x256xf32, #tpu.memory_space<vmem>>, vector<2x256xf32>,
    %1006 = vector.extract_strided_slice %5 {offsets = [0, 128], sizes = [2, 256], strides = [1, 1]} : vector<2x512xf32> to vector<2x256xf32>
    %c0_i32_357 = arith.constant 0 : i32
    %1007 = vector.broadcast %c0_i32_357 : i32 to vector<1x256xi32>
    %1008 = arith.addi %0, %1007 : vector<1x256xi32>
    %c0_i32_358 = arith.constant 0 : i32
    %1009 = vector.broadcast %c0_i32_358 : i32 to vector<1x256xi32>
    %1010 = arith.cmpi sge, %1008, %1009 : vector<1x256xi32>
    %c0_i32_359 = arith.constant 0 : i32
    %1011 = vector.broadcast %c0_i32_359 : i32 to vector<1x256xi32>
    %1012 = arith.addi %0, %1011 : vector<1x256xi32>
    %c16_i32_360 = arith.constant 16 : i32
    %1013 = vector.broadcast %c16_i32_360 : i32 to vector<1x256xi32>
    %1014 = arith.cmpi slt, %1012, %1013 : vector<1x256xi32>
    %1015 = arith.andi %1010, %1014 : vector<1x256xi1>
    %c0_i32_361 = arith.constant 0 : i32
    %1016 = vector.broadcast %c0_i32_361 : i32 to vector<1x256xi32>
    %1017 = arith.addi %1, %1016 : vector<1x256xi32>
    %c0_i32_362 = arith.constant 0 : i32
    %1018 = vector.broadcast %c0_i32_362 : i32 to vector<1x256xi32>
    %1019 = arith.cmpi sge, %1017, %1018 : vector<1x256xi32>
    %1020 = arith.andi %1015, %1019 : vector<1x256xi1>
    %c0_i32_363 = arith.constant 0 : i32
    %1021 = vector.broadcast %c0_i32_363 : i32 to vector<1x256xi32>
    %1022 = arith.addi %1, %1021 : vector<1x256xi32>
    %c16_i32_364 = arith.constant 16 : i32
    %1023 = vector.broadcast %c16_i32_364 : i32 to vector<1x256xi32>
    %1024 = arith.cmpi slt, %1022, %1023 : vector<1x256xi32>
    %1025 = arith.andi %1020, %1024 : vector<1x256xi1>
    %1026 = arith.extui %1025 : vector<1x256xi1> to vector<1x256xi32>
    %1027 = arith.sitofp %1026 : vector<1x256xi32> to vector<1x256xf32>
    %1028 = vector.broadcast %1027 : vector<1x256xf32> to vector<2x256xf32>
    %1029 = arith.mulf %1006, %1028 : vector<2x256xf32>
    %c80 = arith.constant 80 : index
    %c0_365 = arith.constant 0 : index
    %1030 = vector.load %arg11[%c80, %c0_365] : memref<162x256xf32, #tpu.memory_space<vmem>>, vector<2x256xf32>
    tpu.vector_store %arg11[%c80, %c0_365], %1029 {strides = array<i32>} : memref<162x256xf32, #tpu.memory_space<vmem>>, vector<2x256xf32>,
    %1031 = vector.extract_strided_slice %5 {offsets = [0, 129], sizes = [2, 256], strides = [1, 1]} : vector<2x512xf32> to vector<2x256xf32>
    %c0_i32_366 = arith.constant 0 : i32
    %1032 = vector.broadcast %c0_i32_366 : i32 to vector<1x256xi32>
    %1033 = arith.addi %0, %1032 : vector<1x256xi32>
    %c0_i32_367 = arith.constant 0 : i32
    %1034 = vector.broadcast %c0_i32_367 : i32 to vector<1x256xi32>
    %1035 = arith.cmpi sge, %1033, %1034 : vector<1x256xi32>
    %c0_i32_368 = arith.constant 0 : i32
    %1036 = vector.broadcast %c0_i32_368 : i32 to vector<1x256xi32>
    %1037 = arith.addi %0, %1036 : vector<1x256xi32>
    %c16_i32_369 = arith.constant 16 : i32
    %1038 = vector.broadcast %c16_i32_369 : i32 to vector<1x256xi32>
    %1039 = arith.cmpi slt, %1037, %1038 : vector<1x256xi32>
    %1040 = arith.andi %1035, %1039 : vector<1x256xi1>
    %c1_i32_370 = arith.constant 1 : i32
    %1041 = vector.broadcast %c1_i32_370 : i32 to vector<1x256xi32>
    %1042 = arith.addi %1, %1041 : vector<1x256xi32>
    %c0_i32_371 = arith.constant 0 : i32
    %1043 = vector.broadcast %c0_i32_371 : i32 to vector<1x256xi32>
    %1044 = arith.cmpi sge, %1042, %1043 : vector<1x256xi32>
    %1045 = arith.andi %1040, %1044 : vector<1x256xi1>
    %c1_i32_372 = arith.constant 1 : i32
    %1046 = vector.broadcast %c1_i32_372 : i32 to vector<1x256xi32>
    %1047 = arith.addi %1, %1046 : vector<1x256xi32>
    %c16_i32_373 = arith.constant 16 : i32
    %1048 = vector.broadcast %c16_i32_373 : i32 to vector<1x256xi32>
    %1049 = arith.cmpi slt, %1047, %1048 : vector<1x256xi32>
    %1050 = arith.andi %1045, %1049 : vector<1x256xi1>
    %1051 = arith.extui %1050 : vector<1x256xi1> to vector<1x256xi32>
    %1052 = arith.sitofp %1051 : vector<1x256xi32> to vector<1x256xf32>
    %1053 = vector.broadcast %1052 : vector<1x256xf32> to vector<2x256xf32>
    %1054 = arith.mulf %1031, %1053 : vector<2x256xf32>
    %c82 = arith.constant 82 : index
    %c0_374 = arith.constant 0 : index
    %1055 = vector.load %arg11[%c82, %c0_374] : memref<162x256xf32, #tpu.memory_space<vmem>>, vector<2x256xf32>
    tpu.vector_store %arg11[%c82, %c0_374], %1054 {strides = array<i32>} : memref<162x256xf32, #tpu.memory_space<vmem>>, vector<2x256xf32>,
    %1056 = vector.extract_strided_slice %5 {offsets = [0, 130], sizes = [2, 256], strides = [1, 1]} : vector<2x512xf32> to vector<2x256xf32>
    %c0_i32_375 = arith.constant 0 : i32
    %1057 = vector.broadcast %c0_i32_375 : i32 to vector<1x256xi32>
    %1058 = arith.addi %0, %1057 : vector<1x256xi32>
    %c0_i32_376 = arith.constant 0 : i32
    %1059 = vector.broadcast %c0_i32_376 : i32 to vector<1x256xi32>
    %1060 = arith.cmpi sge, %1058, %1059 : vector<1x256xi32>
    %c0_i32_377 = arith.constant 0 : i32
    %1061 = vector.broadcast %c0_i32_377 : i32 to vector<1x256xi32>
    %1062 = arith.addi %0, %1061 : vector<1x256xi32>
    %c16_i32_378 = arith.constant 16 : i32
    %1063 = vector.broadcast %c16_i32_378 : i32 to vector<1x256xi32>
    %1064 = arith.cmpi slt, %1062, %1063 : vector<1x256xi32>
    %1065 = arith.andi %1060, %1064 : vector<1x256xi1>
    %c2_i32_379 = arith.constant 2 : i32
    %1066 = vector.broadcast %c2_i32_379 : i32 to vector<1x256xi32>
    %1067 = arith.addi %1, %1066 : vector<1x256xi32>
    %c0_i32_380 = arith.constant 0 : i32
    %1068 = vector.broadcast %c0_i32_380 : i32 to vector<1x256xi32>
    %1069 = arith.cmpi sge, %1067, %1068 : vector<1x256xi32>
    %1070 = arith.andi %1065, %1069 : vector<1x256xi1>
    %c2_i32_381 = arith.constant 2 : i32
    %1071 = vector.broadcast %c2_i32_381 : i32 to vector<1x256xi32>
    %1072 = arith.addi %1, %1071 : vector<1x256xi32>
    %c16_i32_382 = arith.constant 16 : i32
    %1073 = vector.broadcast %c16_i32_382 : i32 to vector<1x256xi32>
    %1074 = arith.cmpi slt, %1072, %1073 : vector<1x256xi32>
    %1075 = arith.andi %1070, %1074 : vector<1x256xi1>
    %1076 = arith.extui %1075 : vector<1x256xi1> to vector<1x256xi32>
    %1077 = arith.sitofp %1076 : vector<1x256xi32> to vector<1x256xf32>
    %1078 = vector.broadcast %1077 : vector<1x256xf32> to vector<2x256xf32>
    %1079 = arith.mulf %1056, %1078 : vector<2x256xf32>
    %c84 = arith.constant 84 : index
    %c0_383 = arith.constant 0 : index
    %1080 = vector.load %arg11[%c84, %c0_383] : memref<162x256xf32, #tpu.memory_space<vmem>>, vector<2x256xf32>
    tpu.vector_store %arg11[%c84, %c0_383], %1079 {strides = array<i32>} : memref<162x256xf32, #tpu.memory_space<vmem>>, vector<2x256xf32>,
    %1081 = vector.extract_strided_slice %5 {offsets = [0, 131], sizes = [2, 256], strides = [1, 1]} : vector<2x512xf32> to vector<2x256xf32>
    %c0_i32_384 = arith.constant 0 : i32
    %1082 = vector.broadcast %c0_i32_384 : i32 to vector<1x256xi32>
    %1083 = arith.addi %0, %1082 : vector<1x256xi32>
    %c0_i32_385 = arith.constant 0 : i32
    %1084 = vector.broadcast %c0_i32_385 : i32 to vector<1x256xi32>
    %1085 = arith.cmpi sge, %1083, %1084 : vector<1x256xi32>
    %c0_i32_386 = arith.constant 0 : i32
    %1086 = vector.broadcast %c0_i32_386 : i32 to vector<1x256xi32>
    %1087 = arith.addi %0, %1086 : vector<1x256xi32>
    %c16_i32_387 = arith.constant 16 : i32
    %1088 = vector.broadcast %c16_i32_387 : i32 to vector<1x256xi32>
    %1089 = arith.cmpi slt, %1087, %1088 : vector<1x256xi32>
    %1090 = arith.andi %1085, %1089 : vector<1x256xi1>
    %c3_i32_388 = arith.constant 3 : i32
    %1091 = vector.broadcast %c3_i32_388 : i32 to vector<1x256xi32>
    %1092 = arith.addi %1, %1091 : vector<1x256xi32>
    %c0_i32_389 = arith.constant 0 : i32
    %1093 = vector.broadcast %c0_i32_389 : i32 to vector<1x256xi32>
    %1094 = arith.cmpi sge, %1092, %1093 : vector<1x256xi32>
    %1095 = arith.andi %1090, %1094 : vector<1x256xi1>
    %c3_i32_390 = arith.constant 3 : i32
    %1096 = vector.broadcast %c3_i32_390 : i32 to vector<1x256xi32>
    %1097 = arith.addi %1, %1096 : vector<1x256xi32>
    %c16_i32_391 = arith.constant 16 : i32
    %1098 = vector.broadcast %c16_i32_391 : i32 to vector<1x256xi32>
    %1099 = arith.cmpi slt, %1097, %1098 : vector<1x256xi32>
    %1100 = arith.andi %1095, %1099 : vector<1x256xi1>
    %1101 = arith.extui %1100 : vector<1x256xi1> to vector<1x256xi32>
    %1102 = arith.sitofp %1101 : vector<1x256xi32> to vector<1x256xf32>
    %1103 = vector.broadcast %1102 : vector<1x256xf32> to vector<2x256xf32>
    %1104 = arith.mulf %1081, %1103 : vector<2x256xf32>
    %c86 = arith.constant 86 : index
    %c0_392 = arith.constant 0 : index
    %1105 = vector.load %arg11[%c86, %c0_392] : memref<162x256xf32, #tpu.memory_space<vmem>>, vector<2x256xf32>
    tpu.vector_store %arg11[%c86, %c0_392], %1104 {strides = array<i32>} : memref<162x256xf32, #tpu.memory_space<vmem>>, vector<2x256xf32>,
    %1106 = vector.extract_strided_slice %5 {offsets = [0, 132], sizes = [2, 256], strides = [1, 1]} : vector<2x512xf32> to vector<2x256xf32>
    %c0_i32_393 = arith.constant 0 : i32
    %1107 = vector.broadcast %c0_i32_393 : i32 to vector<1x256xi32>
    %1108 = arith.addi %0, %1107 : vector<1x256xi32>
    %c0_i32_394 = arith.constant 0 : i32
    %1109 = vector.broadcast %c0_i32_394 : i32 to vector<1x256xi32>
    %1110 = arith.cmpi sge, %1108, %1109 : vector<1x256xi32>
    %c0_i32_395 = arith.constant 0 : i32
    %1111 = vector.broadcast %c0_i32_395 : i32 to vector<1x256xi32>
    %1112 = arith.addi %0, %1111 : vector<1x256xi32>
    %c16_i32_396 = arith.constant 16 : i32
    %1113 = vector.broadcast %c16_i32_396 : i32 to vector<1x256xi32>
    %1114 = arith.cmpi slt, %1112, %1113 : vector<1x256xi32>
    %1115 = arith.andi %1110, %1114 : vector<1x256xi1>
    %c4_i32_397 = arith.constant 4 : i32
    %1116 = vector.broadcast %c4_i32_397 : i32 to vector<1x256xi32>
    %1117 = arith.addi %1, %1116 : vector<1x256xi32>
    %c0_i32_398 = arith.constant 0 : i32
    %1118 = vector.broadcast %c0_i32_398 : i32 to vector<1x256xi32>
    %1119 = arith.cmpi sge, %1117, %1118 : vector<1x256xi32>
    %1120 = arith.andi %1115, %1119 : vector<1x256xi1>
    %c4_i32_399 = arith.constant 4 : i32
    %1121 = vector.broadcast %c4_i32_399 : i32 to vector<1x256xi32>
    %1122 = arith.addi %1, %1121 : vector<1x256xi32>
    %c16_i32_400 = arith.constant 16 : i32
    %1123 = vector.broadcast %c16_i32_400 : i32 to vector<1x256xi32>
    %1124 = arith.cmpi slt, %1122, %1123 : vector<1x256xi32>
    %1125 = arith.andi %1120, %1124 : vector<1x256xi1>
    %1126 = arith.extui %1125 : vector<1x256xi1> to vector<1x256xi32>
    %1127 = arith.sitofp %1126 : vector<1x256xi32> to vector<1x256xf32>
    %1128 = vector.broadcast %1127 : vector<1x256xf32> to vector<2x256xf32>
    %1129 = arith.mulf %1106, %1128 : vector<2x256xf32>
    %c88 = arith.constant 88 : index
    %c0_401 = arith.constant 0 : index
    %1130 = vector.load %arg11[%c88, %c0_401] : memref<162x256xf32, #tpu.memory_space<vmem>>, vector<2x256xf32>
    tpu.vector_store %arg11[%c88, %c0_401], %1129 {strides = array<i32>} : memref<162x256xf32, #tpu.memory_space<vmem>>, vector<2x256xf32>,
    %1131 = vector.extract_strided_slice %5 {offsets = [0, 140], sizes = [2, 256], strides = [1, 1]} : vector<2x512xf32> to vector<2x256xf32>
    %c1_i32_402 = arith.constant 1 : i32
    %1132 = vector.broadcast %c1_i32_402 : i32 to vector<1x256xi32>
    %1133 = arith.addi %0, %1132 : vector<1x256xi32>
    %c0_i32_403 = arith.constant 0 : i32
    %1134 = vector.broadcast %c0_i32_403 : i32 to vector<1x256xi32>
    %1135 = arith.cmpi sge, %1133, %1134 : vector<1x256xi32>
    %c1_i32_404 = arith.constant 1 : i32
    %1136 = vector.broadcast %c1_i32_404 : i32 to vector<1x256xi32>
    %1137 = arith.addi %0, %1136 : vector<1x256xi32>
    %c16_i32_405 = arith.constant 16 : i32
    %1138 = vector.broadcast %c16_i32_405 : i32 to vector<1x256xi32>
    %1139 = arith.cmpi slt, %1137, %1138 : vector<1x256xi32>
    %1140 = arith.andi %1135, %1139 : vector<1x256xi1>
    %c-4_i32_406 = arith.constant -4 : i32
    %1141 = vector.broadcast %c-4_i32_406 : i32 to vector<1x256xi32>
    %1142 = arith.addi %1, %1141 : vector<1x256xi32>
    %c0_i32_407 = arith.constant 0 : i32
    %1143 = vector.broadcast %c0_i32_407 : i32 to vector<1x256xi32>
    %1144 = arith.cmpi sge, %1142, %1143 : vector<1x256xi32>
    %1145 = arith.andi %1140, %1144 : vector<1x256xi1>
    %c-4_i32_408 = arith.constant -4 : i32
    %1146 = vector.broadcast %c-4_i32_408 : i32 to vector<1x256xi32>
    %1147 = arith.addi %1, %1146 : vector<1x256xi32>
    %c16_i32_409 = arith.constant 16 : i32
    %1148 = vector.broadcast %c16_i32_409 : i32 to vector<1x256xi32>
    %1149 = arith.cmpi slt, %1147, %1148 : vector<1x256xi32>
    %1150 = arith.andi %1145, %1149 : vector<1x256xi1>
    %1151 = arith.extui %1150 : vector<1x256xi1> to vector<1x256xi32>
    %1152 = arith.sitofp %1151 : vector<1x256xi32> to vector<1x256xf32>
    %1153 = vector.broadcast %1152 : vector<1x256xf32> to vector<2x256xf32>
    %1154 = arith.mulf %1131, %1153 : vector<2x256xf32>
    %c90 = arith.constant 90 : index
    %c0_410 = arith.constant 0 : index
    %1155 = vector.load %arg11[%c90, %c0_410] : memref<162x256xf32, #tpu.memory_space<vmem>>, vector<2x256xf32>
    tpu.vector_store %arg11[%c90, %c0_410], %1154 {strides = array<i32>} : memref<162x256xf32, #tpu.memory_space<vmem>>, vector<2x256xf32>,
    %1156 = vector.extract_strided_slice %5 {offsets = [0, 141], sizes = [2, 256], strides = [1, 1]} : vector<2x512xf32> to vector<2x256xf32>
    %c1_i32_411 = arith.constant 1 : i32
    %1157 = vector.broadcast %c1_i32_411 : i32 to vector<1x256xi32>
    %1158 = arith.addi %0, %1157 : vector<1x256xi32>
    %c0_i32_412 = arith.constant 0 : i32
    %1159 = vector.broadcast %c0_i32_412 : i32 to vector<1x256xi32>
    %1160 = arith.cmpi sge, %1158, %1159 : vector<1x256xi32>
    %c1_i32_413 = arith.constant 1 : i32
    %1161 = vector.broadcast %c1_i32_413 : i32 to vector<1x256xi32>
    %1162 = arith.addi %0, %1161 : vector<1x256xi32>
    %c16_i32_414 = arith.constant 16 : i32
    %1163 = vector.broadcast %c16_i32_414 : i32 to vector<1x256xi32>
    %1164 = arith.cmpi slt, %1162, %1163 : vector<1x256xi32>
    %1165 = arith.andi %1160, %1164 : vector<1x256xi1>
    %c-3_i32_415 = arith.constant -3 : i32
    %1166 = vector.broadcast %c-3_i32_415 : i32 to vector<1x256xi32>
    %1167 = arith.addi %1, %1166 : vector<1x256xi32>
    %c0_i32_416 = arith.constant 0 : i32
    %1168 = vector.broadcast %c0_i32_416 : i32 to vector<1x256xi32>
    %1169 = arith.cmpi sge, %1167, %1168 : vector<1x256xi32>
    %1170 = arith.andi %1165, %1169 : vector<1x256xi1>
    %c-3_i32_417 = arith.constant -3 : i32
    %1171 = vector.broadcast %c-3_i32_417 : i32 to vector<1x256xi32>
    %1172 = arith.addi %1, %1171 : vector<1x256xi32>
    %c16_i32_418 = arith.constant 16 : i32
    %1173 = vector.broadcast %c16_i32_418 : i32 to vector<1x256xi32>
    %1174 = arith.cmpi slt, %1172, %1173 : vector<1x256xi32>
    %1175 = arith.andi %1170, %1174 : vector<1x256xi1>
    %1176 = arith.extui %1175 : vector<1x256xi1> to vector<1x256xi32>
    %1177 = arith.sitofp %1176 : vector<1x256xi32> to vector<1x256xf32>
    %1178 = vector.broadcast %1177 : vector<1x256xf32> to vector<2x256xf32>
    %1179 = arith.mulf %1156, %1178 : vector<2x256xf32>
    %c92 = arith.constant 92 : index
    %c0_419 = arith.constant 0 : index
    %1180 = vector.load %arg11[%c92, %c0_419] : memref<162x256xf32, #tpu.memory_space<vmem>>, vector<2x256xf32>
    tpu.vector_store %arg11[%c92, %c0_419], %1179 {strides = array<i32>} : memref<162x256xf32, #tpu.memory_space<vmem>>, vector<2x256xf32>,
    %1181 = vector.extract_strided_slice %5 {offsets = [0, 142], sizes = [2, 256], strides = [1, 1]} : vector<2x512xf32> to vector<2x256xf32>
    %c1_i32_420 = arith.constant 1 : i32
    %1182 = vector.broadcast %c1_i32_420 : i32 to vector<1x256xi32>
    %1183 = arith.addi %0, %1182 : vector<1x256xi32>
    %c0_i32_421 = arith.constant 0 : i32
    %1184 = vector.broadcast %c0_i32_421 : i32 to vector<1x256xi32>
    %1185 = arith.cmpi sge, %1183, %1184 : vector<1x256xi32>
    %c1_i32_422 = arith.constant 1 : i32
    %1186 = vector.broadcast %c1_i32_422 : i32 to vector<1x256xi32>
    %1187 = arith.addi %0, %1186 : vector<1x256xi32>
    %c16_i32_423 = arith.constant 16 : i32
    %1188 = vector.broadcast %c16_i32_423 : i32 to vector<1x256xi32>
    %1189 = arith.cmpi slt, %1187, %1188 : vector<1x256xi32>
    %1190 = arith.andi %1185, %1189 : vector<1x256xi1>
    %c-2_i32_424 = arith.constant -2 : i32
    %1191 = vector.broadcast %c-2_i32_424 : i32 to vector<1x256xi32>
    %1192 = arith.addi %1, %1191 : vector<1x256xi32>
    %c0_i32_425 = arith.constant 0 : i32
    %1193 = vector.broadcast %c0_i32_425 : i32 to vector<1x256xi32>
    %1194 = arith.cmpi sge, %1192, %1193 : vector<1x256xi32>
    %1195 = arith.andi %1190, %1194 : vector<1x256xi1>
    %c-2_i32_426 = arith.constant -2 : i32
    %1196 = vector.broadcast %c-2_i32_426 : i32 to vector<1x256xi32>
    %1197 = arith.addi %1, %1196 : vector<1x256xi32>
    %c16_i32_427 = arith.constant 16 : i32
    %1198 = vector.broadcast %c16_i32_427 : i32 to vector<1x256xi32>
    %1199 = arith.cmpi slt, %1197, %1198 : vector<1x256xi32>
    %1200 = arith.andi %1195, %1199 : vector<1x256xi1>
    %1201 = arith.extui %1200 : vector<1x256xi1> to vector<1x256xi32>
    %1202 = arith.sitofp %1201 : vector<1x256xi32> to vector<1x256xf32>
    %1203 = vector.broadcast %1202 : vector<1x256xf32> to vector<2x256xf32>
    %1204 = arith.mulf %1181, %1203 : vector<2x256xf32>
    %c94 = arith.constant 94 : index
    %c0_428 = arith.constant 0 : index
    %1205 = vector.load %arg11[%c94, %c0_428] : memref<162x256xf32, #tpu.memory_space<vmem>>, vector<2x256xf32>
    tpu.vector_store %arg11[%c94, %c0_428], %1204 {strides = array<i32>} : memref<162x256xf32, #tpu.memory_space<vmem>>, vector<2x256xf32>,
    %1206 = vector.extract_strided_slice %5 {offsets = [0, 143], sizes = [2, 256], strides = [1, 1]} : vector<2x512xf32> to vector<2x256xf32>
    %c1_i32_429 = arith.constant 1 : i32
    %1207 = vector.broadcast %c1_i32_429 : i32 to vector<1x256xi32>
    %1208 = arith.addi %0, %1207 : vector<1x256xi32>
    %c0_i32_430 = arith.constant 0 : i32
    %1209 = vector.broadcast %c0_i32_430 : i32 to vector<1x256xi32>
    %1210 = arith.cmpi sge, %1208, %1209 : vector<1x256xi32>
    %c1_i32_431 = arith.constant 1 : i32
    %1211 = vector.broadcast %c1_i32_431 : i32 to vector<1x256xi32>
    %1212 = arith.addi %0, %1211 : vector<1x256xi32>
    %c16_i32_432 = arith.constant 16 : i32
    %1213 = vector.broadcast %c16_i32_432 : i32 to vector<1x256xi32>
    %1214 = arith.cmpi slt, %1212, %1213 : vector<1x256xi32>
    %1215 = arith.andi %1210, %1214 : vector<1x256xi1>
    %c-1_i32_433 = arith.constant -1 : i32
    %1216 = vector.broadcast %c-1_i32_433 : i32 to vector<1x256xi32>
    %1217 = arith.addi %1, %1216 : vector<1x256xi32>
    %c0_i32_434 = arith.constant 0 : i32
    %1218 = vector.broadcast %c0_i32_434 : i32 to vector<1x256xi32>
    %1219 = arith.cmpi sge, %1217, %1218 : vector<1x256xi32>
    %1220 = arith.andi %1215, %1219 : vector<1x256xi1>
    %c-1_i32_435 = arith.constant -1 : i32
    %1221 = vector.broadcast %c-1_i32_435 : i32 to vector<1x256xi32>
    %1222 = arith.addi %1, %1221 : vector<1x256xi32>
    %c16_i32_436 = arith.constant 16 : i32
    %1223 = vector.broadcast %c16_i32_436 : i32 to vector<1x256xi32>
    %1224 = arith.cmpi slt, %1222, %1223 : vector<1x256xi32>
    %1225 = arith.andi %1220, %1224 : vector<1x256xi1>
    %1226 = arith.extui %1225 : vector<1x256xi1> to vector<1x256xi32>
    %1227 = arith.sitofp %1226 : vector<1x256xi32> to vector<1x256xf32>
    %1228 = vector.broadcast %1227 : vector<1x256xf32> to vector<2x256xf32>
    %1229 = arith.mulf %1206, %1228 : vector<2x256xf32>
    %c96 = arith.constant 96 : index
    %c0_437 = arith.constant 0 : index
    %1230 = vector.load %arg11[%c96, %c0_437] : memref<162x256xf32, #tpu.memory_space<vmem>>, vector<2x256xf32>
    tpu.vector_store %arg11[%c96, %c0_437], %1229 {strides = array<i32>} : memref<162x256xf32, #tpu.memory_space<vmem>>, vector<2x256xf32>,
    %1231 = vector.extract_strided_slice %5 {offsets = [0, 144], sizes = [2, 256], strides = [1, 1]} : vector<2x512xf32> to vector<2x256xf32>
    %c1_i32_438 = arith.constant 1 : i32
    %1232 = vector.broadcast %c1_i32_438 : i32 to vector<1x256xi32>
    %1233 = arith.addi %0, %1232 : vector<1x256xi32>
    %c0_i32_439 = arith.constant 0 : i32
    %1234 = vector.broadcast %c0_i32_439 : i32 to vector<1x256xi32>
    %1235 = arith.cmpi sge, %1233, %1234 : vector<1x256xi32>
    %c1_i32_440 = arith.constant 1 : i32
    %1236 = vector.broadcast %c1_i32_440 : i32 to vector<1x256xi32>
    %1237 = arith.addi %0, %1236 : vector<1x256xi32>
    %c16_i32_441 = arith.constant 16 : i32
    %1238 = vector.broadcast %c16_i32_441 : i32 to vector<1x256xi32>
    %1239 = arith.cmpi slt, %1237, %1238 : vector<1x256xi32>
    %1240 = arith.andi %1235, %1239 : vector<1x256xi1>
    %c0_i32_442 = arith.constant 0 : i32
    %1241 = vector.broadcast %c0_i32_442 : i32 to vector<1x256xi32>
    %1242 = arith.addi %1, %1241 : vector<1x256xi32>
    %c0_i32_443 = arith.constant 0 : i32
    %1243 = vector.broadcast %c0_i32_443 : i32 to vector<1x256xi32>
    %1244 = arith.cmpi sge, %1242, %1243 : vector<1x256xi32>
    %1245 = arith.andi %1240, %1244 : vector<1x256xi1>
    %c0_i32_444 = arith.constant 0 : i32
    %1246 = vector.broadcast %c0_i32_444 : i32 to vector<1x256xi32>
    %1247 = arith.addi %1, %1246 : vector<1x256xi32>
    %c16_i32_445 = arith.constant 16 : i32
    %1248 = vector.broadcast %c16_i32_445 : i32 to vector<1x256xi32>
    %1249 = arith.cmpi slt, %1247, %1248 : vector<1x256xi32>
    %1250 = arith.andi %1245, %1249 : vector<1x256xi1>
    %1251 = arith.extui %1250 : vector<1x256xi1> to vector<1x256xi32>
    %1252 = arith.sitofp %1251 : vector<1x256xi32> to vector<1x256xf32>
    %1253 = vector.broadcast %1252 : vector<1x256xf32> to vector<2x256xf32>
    %1254 = arith.mulf %1231, %1253 : vector<2x256xf32>
    %c98 = arith.constant 98 : index
    %c0_446 = arith.constant 0 : index
    %1255 = vector.load %arg11[%c98, %c0_446] : memref<162x256xf32, #tpu.memory_space<vmem>>, vector<2x256xf32>
    tpu.vector_store %arg11[%c98, %c0_446], %1254 {strides = array<i32>} : memref<162x256xf32, #tpu.memory_space<vmem>>, vector<2x256xf32>,
    %1256 = vector.extract_strided_slice %5 {offsets = [0, 145], sizes = [2, 256], strides = [1, 1]} : vector<2x512xf32> to vector<2x256xf32>
    %c1_i32_447 = arith.constant 1 : i32
    %1257 = vector.broadcast %c1_i32_447 : i32 to vector<1x256xi32>
    %1258 = arith.addi %0, %1257 : vector<1x256xi32>
    %c0_i32_448 = arith.constant 0 : i32
    %1259 = vector.broadcast %c0_i32_448 : i32 to vector<1x256xi32>
    %1260 = arith.cmpi sge, %1258, %1259 : vector<1x256xi32>
    %c1_i32_449 = arith.constant 1 : i32
    %1261 = vector.broadcast %c1_i32_449 : i32 to vector<1x256xi32>
    %1262 = arith.addi %0, %1261 : vector<1x256xi32>
    %c16_i32_450 = arith.constant 16 : i32
    %1263 = vector.broadcast %c16_i32_450 : i32 to vector<1x256xi32>
    %1264 = arith.cmpi slt, %1262, %1263 : vector<1x256xi32>
    %1265 = arith.andi %1260, %1264 : vector<1x256xi1>
    %c1_i32_451 = arith.constant 1 : i32
    %1266 = vector.broadcast %c1_i32_451 : i32 to vector<1x256xi32>
    %1267 = arith.addi %1, %1266 : vector<1x256xi32>
    %c0_i32_452 = arith.constant 0 : i32
    %1268 = vector.broadcast %c0_i32_452 : i32 to vector<1x256xi32>
    %1269 = arith.cmpi sge, %1267, %1268 : vector<1x256xi32>
    %1270 = arith.andi %1265, %1269 : vector<1x256xi1>
    %c1_i32_453 = arith.constant 1 : i32
    %1271 = vector.broadcast %c1_i32_453 : i32 to vector<1x256xi32>
    %1272 = arith.addi %1, %1271 : vector<1x256xi32>
    %c16_i32_454 = arith.constant 16 : i32
    %1273 = vector.broadcast %c16_i32_454 : i32 to vector<1x256xi32>
    %1274 = arith.cmpi slt, %1272, %1273 : vector<1x256xi32>
    %1275 = arith.andi %1270, %1274 : vector<1x256xi1>
    %1276 = arith.extui %1275 : vector<1x256xi1> to vector<1x256xi32>
    %1277 = arith.sitofp %1276 : vector<1x256xi32> to vector<1x256xf32>
    %1278 = vector.broadcast %1277 : vector<1x256xf32> to vector<2x256xf32>
    %1279 = arith.mulf %1256, %1278 : vector<2x256xf32>
    %c100 = arith.constant 100 : index
    %c0_455 = arith.constant 0 : index
    %1280 = vector.load %arg11[%c100, %c0_455] : memref<162x256xf32, #tpu.memory_space<vmem>>, vector<2x256xf32>
    tpu.vector_store %arg11[%c100, %c0_455], %1279 {strides = array<i32>} : memref<162x256xf32, #tpu.memory_space<vmem>>, vector<2x256xf32>,
    %1281 = vector.extract_strided_slice %5 {offsets = [0, 146], sizes = [2, 256], strides = [1, 1]} : vector<2x512xf32> to vector<2x256xf32>
    %c1_i32_456 = arith.constant 1 : i32
    %1282 = vector.broadcast %c1_i32_456 : i32 to vector<1x256xi32>
    %1283 = arith.addi %0, %1282 : vector<1x256xi32>
    %c0_i32_457 = arith.constant 0 : i32
    %1284 = vector.broadcast %c0_i32_457 : i32 to vector<1x256xi32>
    %1285 = arith.cmpi sge, %1283, %1284 : vector<1x256xi32>
    %c1_i32_458 = arith.constant 1 : i32
    %1286 = vector.broadcast %c1_i32_458 : i32 to vector<1x256xi32>
    %1287 = arith.addi %0, %1286 : vector<1x256xi32>
    %c16_i32_459 = arith.constant 16 : i32
    %1288 = vector.broadcast %c16_i32_459 : i32 to vector<1x256xi32>
    %1289 = arith.cmpi slt, %1287, %1288 : vector<1x256xi32>
    %1290 = arith.andi %1285, %1289 : vector<1x256xi1>
    %c2_i32_460 = arith.constant 2 : i32
    %1291 = vector.broadcast %c2_i32_460 : i32 to vector<1x256xi32>
    %1292 = arith.addi %1, %1291 : vector<1x256xi32>
    %c0_i32_461 = arith.constant 0 : i32
    %1293 = vector.broadcast %c0_i32_461 : i32 to vector<1x256xi32>
    %1294 = arith.cmpi sge, %1292, %1293 : vector<1x256xi32>
    %1295 = arith.andi %1290, %1294 : vector<1x256xi1>
    %c2_i32_462 = arith.constant 2 : i32
    %1296 = vector.broadcast %c2_i32_462 : i32 to vector<1x256xi32>
    %1297 = arith.addi %1, %1296 : vector<1x256xi32>
    %c16_i32_463 = arith.constant 16 : i32
    %1298 = vector.broadcast %c16_i32_463 : i32 to vector<1x256xi32>
    %1299 = arith.cmpi slt, %1297, %1298 : vector<1x256xi32>
    %1300 = arith.andi %1295, %1299 : vector<1x256xi1>
    %1301 = arith.extui %1300 : vector<1x256xi1> to vector<1x256xi32>
    %1302 = arith.sitofp %1301 : vector<1x256xi32> to vector<1x256xf32>
    %1303 = vector.broadcast %1302 : vector<1x256xf32> to vector<2x256xf32>
    %1304 = arith.mulf %1281, %1303 : vector<2x256xf32>
    %c102 = arith.constant 102 : index
    %c0_464 = arith.constant 0 : index
    %1305 = vector.load %arg11[%c102, %c0_464] : memref<162x256xf32, #tpu.memory_space<vmem>>, vector<2x256xf32>
    tpu.vector_store %arg11[%c102, %c0_464], %1304 {strides = array<i32>} : memref<162x256xf32, #tpu.memory_space<vmem>>, vector<2x256xf32>,
    %1306 = vector.extract_strided_slice %5 {offsets = [0, 147], sizes = [2, 256], strides = [1, 1]} : vector<2x512xf32> to vector<2x256xf32>
    %c1_i32_465 = arith.constant 1 : i32
    %1307 = vector.broadcast %c1_i32_465 : i32 to vector<1x256xi32>
    %1308 = arith.addi %0, %1307 : vector<1x256xi32>
    %c0_i32_466 = arith.constant 0 : i32
    %1309 = vector.broadcast %c0_i32_466 : i32 to vector<1x256xi32>
    %1310 = arith.cmpi sge, %1308, %1309 : vector<1x256xi32>
    %c1_i32_467 = arith.constant 1 : i32
    %1311 = vector.broadcast %c1_i32_467 : i32 to vector<1x256xi32>
    %1312 = arith.addi %0, %1311 : vector<1x256xi32>
    %c16_i32_468 = arith.constant 16 : i32
    %1313 = vector.broadcast %c16_i32_468 : i32 to vector<1x256xi32>
    %1314 = arith.cmpi slt, %1312, %1313 : vector<1x256xi32>
    %1315 = arith.andi %1310, %1314 : vector<1x256xi1>
    %c3_i32_469 = arith.constant 3 : i32
    %1316 = vector.broadcast %c3_i32_469 : i32 to vector<1x256xi32>
    %1317 = arith.addi %1, %1316 : vector<1x256xi32>
    %c0_i32_470 = arith.constant 0 : i32
    %1318 = vector.broadcast %c0_i32_470 : i32 to vector<1x256xi32>
    %1319 = arith.cmpi sge, %1317, %1318 : vector<1x256xi32>
    %1320 = arith.andi %1315, %1319 : vector<1x256xi1>
    %c3_i32_471 = arith.constant 3 : i32
    %1321 = vector.broadcast %c3_i32_471 : i32 to vector<1x256xi32>
    %1322 = arith.addi %1, %1321 : vector<1x256xi32>
    %c16_i32_472 = arith.constant 16 : i32
    %1323 = vector.broadcast %c16_i32_472 : i32 to vector<1x256xi32>
    %1324 = arith.cmpi slt, %1322, %1323 : vector<1x256xi32>
    %1325 = arith.andi %1320, %1324 : vector<1x256xi1>
    %1326 = arith.extui %1325 : vector<1x256xi1> to vector<1x256xi32>
    %1327 = arith.sitofp %1326 : vector<1x256xi32> to vector<1x256xf32>
    %1328 = vector.broadcast %1327 : vector<1x256xf32> to vector<2x256xf32>
    %1329 = arith.mulf %1306, %1328 : vector<2x256xf32>
    %c104 = arith.constant 104 : index
    %c0_473 = arith.constant 0 : index
    %1330 = vector.load %arg11[%c104, %c0_473] : memref<162x256xf32, #tpu.memory_space<vmem>>, vector<2x256xf32>
    tpu.vector_store %arg11[%c104, %c0_473], %1329 {strides = array<i32>} : memref<162x256xf32, #tpu.memory_space<vmem>>, vector<2x256xf32>,
    %1331 = vector.extract_strided_slice %5 {offsets = [0, 148], sizes = [2, 256], strides = [1, 1]} : vector<2x512xf32> to vector<2x256xf32>
    %c1_i32_474 = arith.constant 1 : i32
    %1332 = vector.broadcast %c1_i32_474 : i32 to vector<1x256xi32>
    %1333 = arith.addi %0, %1332 : vector<1x256xi32>
    %c0_i32_475 = arith.constant 0 : i32
    %1334 = vector.broadcast %c0_i32_475 : i32 to vector<1x256xi32>
    %1335 = arith.cmpi sge, %1333, %1334 : vector<1x256xi32>
    %c1_i32_476 = arith.constant 1 : i32
    %1336 = vector.broadcast %c1_i32_476 : i32 to vector<1x256xi32>
    %1337 = arith.addi %0, %1336 : vector<1x256xi32>
    %c16_i32_477 = arith.constant 16 : i32
    %1338 = vector.broadcast %c16_i32_477 : i32 to vector<1x256xi32>
    %1339 = arith.cmpi slt, %1337, %1338 : vector<1x256xi32>
    %1340 = arith.andi %1335, %1339 : vector<1x256xi1>
    %c4_i32_478 = arith.constant 4 : i32
    %1341 = vector.broadcast %c4_i32_478 : i32 to vector<1x256xi32>
    %1342 = arith.addi %1, %1341 : vector<1x256xi32>
    %c0_i32_479 = arith.constant 0 : i32
    %1343 = vector.broadcast %c0_i32_479 : i32 to vector<1x256xi32>
    %1344 = arith.cmpi sge, %1342, %1343 : vector<1x256xi32>
    %1345 = arith.andi %1340, %1344 : vector<1x256xi1>
    %c4_i32_480 = arith.constant 4 : i32
    %1346 = vector.broadcast %c4_i32_480 : i32 to vector<1x256xi32>
    %1347 = arith.addi %1, %1346 : vector<1x256xi32>
    %c16_i32_481 = arith.constant 16 : i32
    %1348 = vector.broadcast %c16_i32_481 : i32 to vector<1x256xi32>
    %1349 = arith.cmpi slt, %1347, %1348 : vector<1x256xi32>
    %1350 = arith.andi %1345, %1349 : vector<1x256xi1>
    %1351 = arith.extui %1350 : vector<1x256xi1> to vector<1x256xi32>
    %1352 = arith.sitofp %1351 : vector<1x256xi32> to vector<1x256xf32>
    %1353 = vector.broadcast %1352 : vector<1x256xf32> to vector<2x256xf32>
    %1354 = arith.mulf %1331, %1353 : vector<2x256xf32>
    %c106 = arith.constant 106 : index
    %c0_482 = arith.constant 0 : index
    %1355 = vector.load %arg11[%c106, %c0_482] : memref<162x256xf32, #tpu.memory_space<vmem>>, vector<2x256xf32>
    tpu.vector_store %arg11[%c106, %c0_482], %1354 {strides = array<i32>} : memref<162x256xf32, #tpu.memory_space<vmem>>, vector<2x256xf32>,
    %1356 = vector.extract_strided_slice %5 {offsets = [0, 156], sizes = [2, 256], strides = [1, 1]} : vector<2x512xf32> to vector<2x256xf32>
    %c2_i32_483 = arith.constant 2 : i32
    %1357 = vector.broadcast %c2_i32_483 : i32 to vector<1x256xi32>
    %1358 = arith.addi %0, %1357 : vector<1x256xi32>
    %c0_i32_484 = arith.constant 0 : i32
    %1359 = vector.broadcast %c0_i32_484 : i32 to vector<1x256xi32>
    %1360 = arith.cmpi sge, %1358, %1359 : vector<1x256xi32>
    %c2_i32_485 = arith.constant 2 : i32
    %1361 = vector.broadcast %c2_i32_485 : i32 to vector<1x256xi32>
    %1362 = arith.addi %0, %1361 : vector<1x256xi32>
    %c16_i32_486 = arith.constant 16 : i32
    %1363 = vector.broadcast %c16_i32_486 : i32 to vector<1x256xi32>
    %1364 = arith.cmpi slt, %1362, %1363 : vector<1x256xi32>
    %1365 = arith.andi %1360, %1364 : vector<1x256xi1>
    %c-4_i32_487 = arith.constant -4 : i32
    %1366 = vector.broadcast %c-4_i32_487 : i32 to vector<1x256xi32>
    %1367 = arith.addi %1, %1366 : vector<1x256xi32>
    %c0_i32_488 = arith.constant 0 : i32
    %1368 = vector.broadcast %c0_i32_488 : i32 to vector<1x256xi32>
    %1369 = arith.cmpi sge, %1367, %1368 : vector<1x256xi32>
    %1370 = arith.andi %1365, %1369 : vector<1x256xi1>
    %c-4_i32_489 = arith.constant -4 : i32
    %1371 = vector.broadcast %c-4_i32_489 : i32 to vector<1x256xi32>
    %1372 = arith.addi %1, %1371 : vector<1x256xi32>
    %c16_i32_490 = arith.constant 16 : i32
    %1373 = vector.broadcast %c16_i32_490 : i32 to vector<1x256xi32>
    %1374 = arith.cmpi slt, %1372, %1373 : vector<1x256xi32>
    %1375 = arith.andi %1370, %1374 : vector<1x256xi1>
    %1376 = arith.extui %1375 : vector<1x256xi1> to vector<1x256xi32>
    %1377 = arith.sitofp %1376 : vector<1x256xi32> to vector<1x256xf32>
    %1378 = vector.broadcast %1377 : vector<1x256xf32> to vector<2x256xf32>
    %1379 = arith.mulf %1356, %1378 : vector<2x256xf32>
    %c108 = arith.constant 108 : index
    %c0_491 = arith.constant 0 : index
    %1380 = vector.load %arg11[%c108, %c0_491] : memref<162x256xf32, #tpu.memory_space<vmem>>, vector<2x256xf32>
    tpu.vector_store %arg11[%c108, %c0_491], %1379 {strides = array<i32>} : memref<162x256xf32, #tpu.memory_space<vmem>>, vector<2x256xf32>,
    %1381 = vector.extract_strided_slice %5 {offsets = [0, 157], sizes = [2, 256], strides = [1, 1]} : vector<2x512xf32> to vector<2x256xf32>
    %c2_i32_492 = arith.constant 2 : i32
    %1382 = vector.broadcast %c2_i32_492 : i32 to vector<1x256xi32>
    %1383 = arith.addi %0, %1382 : vector<1x256xi32>
    %c0_i32_493 = arith.constant 0 : i32
    %1384 = vector.broadcast %c0_i32_493 : i32 to vector<1x256xi32>
    %1385 = arith.cmpi sge, %1383, %1384 : vector<1x256xi32>
    %c2_i32_494 = arith.constant 2 : i32
    %1386 = vector.broadcast %c2_i32_494 : i32 to vector<1x256xi32>
    %1387 = arith.addi %0, %1386 : vector<1x256xi32>
    %c16_i32_495 = arith.constant 16 : i32
    %1388 = vector.broadcast %c16_i32_495 : i32 to vector<1x256xi32>
    %1389 = arith.cmpi slt, %1387, %1388 : vector<1x256xi32>
    %1390 = arith.andi %1385, %1389 : vector<1x256xi1>
    %c-3_i32_496 = arith.constant -3 : i32
    %1391 = vector.broadcast %c-3_i32_496 : i32 to vector<1x256xi32>
    %1392 = arith.addi %1, %1391 : vector<1x256xi32>
    %c0_i32_497 = arith.constant 0 : i32
    %1393 = vector.broadcast %c0_i32_497 : i32 to vector<1x256xi32>
    %1394 = arith.cmpi sge, %1392, %1393 : vector<1x256xi32>
    %1395 = arith.andi %1390, %1394 : vector<1x256xi1>
    %c-3_i32_498 = arith.constant -3 : i32
    %1396 = vector.broadcast %c-3_i32_498 : i32 to vector<1x256xi32>
    %1397 = arith.addi %1, %1396 : vector<1x256xi32>
    %c16_i32_499 = arith.constant 16 : i32
    %1398 = vector.broadcast %c16_i32_499 : i32 to vector<1x256xi32>
    %1399 = arith.cmpi slt, %1397, %1398 : vector<1x256xi32>
    %1400 = arith.andi %1395, %1399 : vector<1x256xi1>
    %1401 = arith.extui %1400 : vector<1x256xi1> to vector<1x256xi32>
    %1402 = arith.sitofp %1401 : vector<1x256xi32> to vector<1x256xf32>
    %1403 = vector.broadcast %1402 : vector<1x256xf32> to vector<2x256xf32>
    %1404 = arith.mulf %1381, %1403 : vector<2x256xf32>
    %c110 = arith.constant 110 : index
    %c0_500 = arith.constant 0 : index
    %1405 = vector.load %arg11[%c110, %c0_500] : memref<162x256xf32, #tpu.memory_space<vmem>>, vector<2x256xf32>
    tpu.vector_store %arg11[%c110, %c0_500], %1404 {strides = array<i32>} : memref<162x256xf32, #tpu.memory_space<vmem>>, vector<2x256xf32>,
    %1406 = vector.extract_strided_slice %5 {offsets = [0, 158], sizes = [2, 256], strides = [1, 1]} : vector<2x512xf32> to vector<2x256xf32>
    %c2_i32_501 = arith.constant 2 : i32
    %1407 = vector.broadcast %c2_i32_501 : i32 to vector<1x256xi32>
    %1408 = arith.addi %0, %1407 : vector<1x256xi32>
    %c0_i32_502 = arith.constant 0 : i32
    %1409 = vector.broadcast %c0_i32_502 : i32 to vector<1x256xi32>
    %1410 = arith.cmpi sge, %1408, %1409 : vector<1x256xi32>
    %c2_i32_503 = arith.constant 2 : i32
    %1411 = vector.broadcast %c2_i32_503 : i32 to vector<1x256xi32>
    %1412 = arith.addi %0, %1411 : vector<1x256xi32>
    %c16_i32_504 = arith.constant 16 : i32
    %1413 = vector.broadcast %c16_i32_504 : i32 to vector<1x256xi32>
    %1414 = arith.cmpi slt, %1412, %1413 : vector<1x256xi32>
    %1415 = arith.andi %1410, %1414 : vector<1x256xi1>
    %c-2_i32_505 = arith.constant -2 : i32
    %1416 = vector.broadcast %c-2_i32_505 : i32 to vector<1x256xi32>
    %1417 = arith.addi %1, %1416 : vector<1x256xi32>
    %c0_i32_506 = arith.constant 0 : i32
    %1418 = vector.broadcast %c0_i32_506 : i32 to vector<1x256xi32>
    %1419 = arith.cmpi sge, %1417, %1418 : vector<1x256xi32>
    %1420 = arith.andi %1415, %1419 : vector<1x256xi1>
    %c-2_i32_507 = arith.constant -2 : i32
    %1421 = vector.broadcast %c-2_i32_507 : i32 to vector<1x256xi32>
    %1422 = arith.addi %1, %1421 : vector<1x256xi32>
    %c16_i32_508 = arith.constant 16 : i32
    %1423 = vector.broadcast %c16_i32_508 : i32 to vector<1x256xi32>
    %1424 = arith.cmpi slt, %1422, %1423 : vector<1x256xi32>
    %1425 = arith.andi %1420, %1424 : vector<1x256xi1>
    %1426 = arith.extui %1425 : vector<1x256xi1> to vector<1x256xi32>
    %1427 = arith.sitofp %1426 : vector<1x256xi32> to vector<1x256xf32>
    %1428 = vector.broadcast %1427 : vector<1x256xf32> to vector<2x256xf32>
    %1429 = arith.mulf %1406, %1428 : vector<2x256xf32>
    %c112 = arith.constant 112 : index
    %c0_509 = arith.constant 0 : index
    %1430 = vector.load %arg11[%c112, %c0_509] : memref<162x256xf32, #tpu.memory_space<vmem>>, vector<2x256xf32>
    tpu.vector_store %arg11[%c112, %c0_509], %1429 {strides = array<i32>} : memref<162x256xf32, #tpu.memory_space<vmem>>, vector<2x256xf32>,
    %1431 = vector.extract_strided_slice %5 {offsets = [0, 159], sizes = [2, 256], strides = [1, 1]} : vector<2x512xf32> to vector<2x256xf32>
    %c2_i32_510 = arith.constant 2 : i32
    %1432 = vector.broadcast %c2_i32_510 : i32 to vector<1x256xi32>
    %1433 = arith.addi %0, %1432 : vector<1x256xi32>
    %c0_i32_511 = arith.constant 0 : i32
    %1434 = vector.broadcast %c0_i32_511 : i32 to vector<1x256xi32>
    %1435 = arith.cmpi sge, %1433, %1434 : vector<1x256xi32>
    %c2_i32_512 = arith.constant 2 : i32
    %1436 = vector.broadcast %c2_i32_512 : i32 to vector<1x256xi32>
    %1437 = arith.addi %0, %1436 : vector<1x256xi32>
    %c16_i32_513 = arith.constant 16 : i32
    %1438 = vector.broadcast %c16_i32_513 : i32 to vector<1x256xi32>
    %1439 = arith.cmpi slt, %1437, %1438 : vector<1x256xi32>
    %1440 = arith.andi %1435, %1439 : vector<1x256xi1>
    %c-1_i32_514 = arith.constant -1 : i32
    %1441 = vector.broadcast %c-1_i32_514 : i32 to vector<1x256xi32>
    %1442 = arith.addi %1, %1441 : vector<1x256xi32>
    %c0_i32_515 = arith.constant 0 : i32
    %1443 = vector.broadcast %c0_i32_515 : i32 to vector<1x256xi32>
    %1444 = arith.cmpi sge, %1442, %1443 : vector<1x256xi32>
    %1445 = arith.andi %1440, %1444 : vector<1x256xi1>
    %c-1_i32_516 = arith.constant -1 : i32
    %1446 = vector.broadcast %c-1_i32_516 : i32 to vector<1x256xi32>
    %1447 = arith.addi %1, %1446 : vector<1x256xi32>
    %c16_i32_517 = arith.constant 16 : i32
    %1448 = vector.broadcast %c16_i32_517 : i32 to vector<1x256xi32>
    %1449 = arith.cmpi slt, %1447, %1448 : vector<1x256xi32>
    %1450 = arith.andi %1445, %1449 : vector<1x256xi1>
    %1451 = arith.extui %1450 : vector<1x256xi1> to vector<1x256xi32>
    %1452 = arith.sitofp %1451 : vector<1x256xi32> to vector<1x256xf32>
    %1453 = vector.broadcast %1452 : vector<1x256xf32> to vector<2x256xf32>
    %1454 = arith.mulf %1431, %1453 : vector<2x256xf32>
    %c114 = arith.constant 114 : index
    %c0_518 = arith.constant 0 : index
    %1455 = vector.load %arg11[%c114, %c0_518] : memref<162x256xf32, #tpu.memory_space<vmem>>, vector<2x256xf32>
    tpu.vector_store %arg11[%c114, %c0_518], %1454 {strides = array<i32>} : memref<162x256xf32, #tpu.memory_space<vmem>>, vector<2x256xf32>,
    %1456 = vector.extract_strided_slice %5 {offsets = [0, 160], sizes = [2, 256], strides = [1, 1]} : vector<2x512xf32> to vector<2x256xf32>
    %c2_i32_519 = arith.constant 2 : i32
    %1457 = vector.broadcast %c2_i32_519 : i32 to vector<1x256xi32>
    %1458 = arith.addi %0, %1457 : vector<1x256xi32>
    %c0_i32_520 = arith.constant 0 : i32
    %1459 = vector.broadcast %c0_i32_520 : i32 to vector<1x256xi32>
    %1460 = arith.cmpi sge, %1458, %1459 : vector<1x256xi32>
    %c2_i32_521 = arith.constant 2 : i32
    %1461 = vector.broadcast %c2_i32_521 : i32 to vector<1x256xi32>
    %1462 = arith.addi %0, %1461 : vector<1x256xi32>
    %c16_i32_522 = arith.constant 16 : i32
    %1463 = vector.broadcast %c16_i32_522 : i32 to vector<1x256xi32>
    %1464 = arith.cmpi slt, %1462, %1463 : vector<1x256xi32>
    %1465 = arith.andi %1460, %1464 : vector<1x256xi1>
    %c0_i32_523 = arith.constant 0 : i32
    %1466 = vector.broadcast %c0_i32_523 : i32 to vector<1x256xi32>
    %1467 = arith.addi %1, %1466 : vector<1x256xi32>
    %c0_i32_524 = arith.constant 0 : i32
    %1468 = vector.broadcast %c0_i32_524 : i32 to vector<1x256xi32>
    %1469 = arith.cmpi sge, %1467, %1468 : vector<1x256xi32>
    %1470 = arith.andi %1465, %1469 : vector<1x256xi1>
    %c0_i32_525 = arith.constant 0 : i32
    %1471 = vector.broadcast %c0_i32_525 : i32 to vector<1x256xi32>
    %1472 = arith.addi %1, %1471 : vector<1x256xi32>
    %c16_i32_526 = arith.constant 16 : i32
    %1473 = vector.broadcast %c16_i32_526 : i32 to vector<1x256xi32>
    %1474 = arith.cmpi slt, %1472, %1473 : vector<1x256xi32>
    %1475 = arith.andi %1470, %1474 : vector<1x256xi1>
    %1476 = arith.extui %1475 : vector<1x256xi1> to vector<1x256xi32>
    %1477 = arith.sitofp %1476 : vector<1x256xi32> to vector<1x256xf32>
    %1478 = vector.broadcast %1477 : vector<1x256xf32> to vector<2x256xf32>
    %1479 = arith.mulf %1456, %1478 : vector<2x256xf32>
    %c116 = arith.constant 116 : index
    %c0_527 = arith.constant 0 : index
    %1480 = vector.load %arg11[%c116, %c0_527] : memref<162x256xf32, #tpu.memory_space<vmem>>, vector<2x256xf32>
    tpu.vector_store %arg11[%c116, %c0_527], %1479 {strides = array<i32>} : memref<162x256xf32, #tpu.memory_space<vmem>>, vector<2x256xf32>,
    %1481 = vector.extract_strided_slice %5 {offsets = [0, 161], sizes = [2, 256], strides = [1, 1]} : vector<2x512xf32> to vector<2x256xf32>
    %c2_i32_528 = arith.constant 2 : i32
    %1482 = vector.broadcast %c2_i32_528 : i32 to vector<1x256xi32>
    %1483 = arith.addi %0, %1482 : vector<1x256xi32>
    %c0_i32_529 = arith.constant 0 : i32
    %1484 = vector.broadcast %c0_i32_529 : i32 to vector<1x256xi32>
    %1485 = arith.cmpi sge, %1483, %1484 : vector<1x256xi32>
    %c2_i32_530 = arith.constant 2 : i32
    %1486 = vector.broadcast %c2_i32_530 : i32 to vector<1x256xi32>
    %1487 = arith.addi %0, %1486 : vector<1x256xi32>
    %c16_i32_531 = arith.constant 16 : i32
    %1488 = vector.broadcast %c16_i32_531 : i32 to vector<1x256xi32>
    %1489 = arith.cmpi slt, %1487, %1488 : vector<1x256xi32>
    %1490 = arith.andi %1485, %1489 : vector<1x256xi1>
    %c1_i32_532 = arith.constant 1 : i32
    %1491 = vector.broadcast %c1_i32_532 : i32 to vector<1x256xi32>
    %1492 = arith.addi %1, %1491 : vector<1x256xi32>
    %c0_i32_533 = arith.constant 0 : i32
    %1493 = vector.broadcast %c0_i32_533 : i32 to vector<1x256xi32>
    %1494 = arith.cmpi sge, %1492, %1493 : vector<1x256xi32>
    %1495 = arith.andi %1490, %1494 : vector<1x256xi1>
    %c1_i32_534 = arith.constant 1 : i32
    %1496 = vector.broadcast %c1_i32_534 : i32 to vector<1x256xi32>
    %1497 = arith.addi %1, %1496 : vector<1x256xi32>
    %c16_i32_535 = arith.constant 16 : i32
    %1498 = vector.broadcast %c16_i32_535 : i32 to vector<1x256xi32>
    %1499 = arith.cmpi slt, %1497, %1498 : vector<1x256xi32>
    %1500 = arith.andi %1495, %1499 : vector<1x256xi1>
    %1501 = arith.extui %1500 : vector<1x256xi1> to vector<1x256xi32>
    %1502 = arith.sitofp %1501 : vector<1x256xi32> to vector<1x256xf32>
    %1503 = vector.broadcast %1502 : vector<1x256xf32> to vector<2x256xf32>
    %1504 = arith.mulf %1481, %1503 : vector<2x256xf32>
    %c118 = arith.constant 118 : index
    %c0_536 = arith.constant 0 : index
    %1505 = vector.load %arg11[%c118, %c0_536] : memref<162x256xf32, #tpu.memory_space<vmem>>, vector<2x256xf32>
    tpu.vector_store %arg11[%c118, %c0_536], %1504 {strides = array<i32>} : memref<162x256xf32, #tpu.memory_space<vmem>>, vector<2x256xf32>,
    %1506 = vector.extract_strided_slice %5 {offsets = [0, 162], sizes = [2, 256], strides = [1, 1]} : vector<2x512xf32> to vector<2x256xf32>
    %c2_i32_537 = arith.constant 2 : i32
    %1507 = vector.broadcast %c2_i32_537 : i32 to vector<1x256xi32>
    %1508 = arith.addi %0, %1507 : vector<1x256xi32>
    %c0_i32_538 = arith.constant 0 : i32
    %1509 = vector.broadcast %c0_i32_538 : i32 to vector<1x256xi32>
    %1510 = arith.cmpi sge, %1508, %1509 : vector<1x256xi32>
    %c2_i32_539 = arith.constant 2 : i32
    %1511 = vector.broadcast %c2_i32_539 : i32 to vector<1x256xi32>
    %1512 = arith.addi %0, %1511 : vector<1x256xi32>
    %c16_i32_540 = arith.constant 16 : i32
    %1513 = vector.broadcast %c16_i32_540 : i32 to vector<1x256xi32>
    %1514 = arith.cmpi slt, %1512, %1513 : vector<1x256xi32>
    %1515 = arith.andi %1510, %1514 : vector<1x256xi1>
    %c2_i32_541 = arith.constant 2 : i32
    %1516 = vector.broadcast %c2_i32_541 : i32 to vector<1x256xi32>
    %1517 = arith.addi %1, %1516 : vector<1x256xi32>
    %c0_i32_542 = arith.constant 0 : i32
    %1518 = vector.broadcast %c0_i32_542 : i32 to vector<1x256xi32>
    %1519 = arith.cmpi sge, %1517, %1518 : vector<1x256xi32>
    %1520 = arith.andi %1515, %1519 : vector<1x256xi1>
    %c2_i32_543 = arith.constant 2 : i32
    %1521 = vector.broadcast %c2_i32_543 : i32 to vector<1x256xi32>
    %1522 = arith.addi %1, %1521 : vector<1x256xi32>
    %c16_i32_544 = arith.constant 16 : i32
    %1523 = vector.broadcast %c16_i32_544 : i32 to vector<1x256xi32>
    %1524 = arith.cmpi slt, %1522, %1523 : vector<1x256xi32>
    %1525 = arith.andi %1520, %1524 : vector<1x256xi1>
    %1526 = arith.extui %1525 : vector<1x256xi1> to vector<1x256xi32>
    %1527 = arith.sitofp %1526 : vector<1x256xi32> to vector<1x256xf32>
    %1528 = vector.broadcast %1527 : vector<1x256xf32> to vector<2x256xf32>
    %1529 = arith.mulf %1506, %1528 : vector<2x256xf32>
    %c120 = arith.constant 120 : index
    %c0_545 = arith.constant 0 : index
    %1530 = vector.load %arg11[%c120, %c0_545] : memref<162x256xf32, #tpu.memory_space<vmem>>, vector<2x256xf32>
    tpu.vector_store %arg11[%c120, %c0_545], %1529 {strides = array<i32>} : memref<162x256xf32, #tpu.memory_space<vmem>>, vector<2x256xf32>,
    %1531 = vector.extract_strided_slice %5 {offsets = [0, 163], sizes = [2, 256], strides = [1, 1]} : vector<2x512xf32> to vector<2x256xf32>
    %c2_i32_546 = arith.constant 2 : i32
    %1532 = vector.broadcast %c2_i32_546 : i32 to vector<1x256xi32>
    %1533 = arith.addi %0, %1532 : vector<1x256xi32>
    %c0_i32_547 = arith.constant 0 : i32
    %1534 = vector.broadcast %c0_i32_547 : i32 to vector<1x256xi32>
    %1535 = arith.cmpi sge, %1533, %1534 : vector<1x256xi32>
    %c2_i32_548 = arith.constant 2 : i32
    %1536 = vector.broadcast %c2_i32_548 : i32 to vector<1x256xi32>
    %1537 = arith.addi %0, %1536 : vector<1x256xi32>
    %c16_i32_549 = arith.constant 16 : i32
    %1538 = vector.broadcast %c16_i32_549 : i32 to vector<1x256xi32>
    %1539 = arith.cmpi slt, %1537, %1538 : vector<1x256xi32>
    %1540 = arith.andi %1535, %1539 : vector<1x256xi1>
    %c3_i32_550 = arith.constant 3 : i32
    %1541 = vector.broadcast %c3_i32_550 : i32 to vector<1x256xi32>
    %1542 = arith.addi %1, %1541 : vector<1x256xi32>
    %c0_i32_551 = arith.constant 0 : i32
    %1543 = vector.broadcast %c0_i32_551 : i32 to vector<1x256xi32>
    %1544 = arith.cmpi sge, %1542, %1543 : vector<1x256xi32>
    %1545 = arith.andi %1540, %1544 : vector<1x256xi1>
    %c3_i32_552 = arith.constant 3 : i32
    %1546 = vector.broadcast %c3_i32_552 : i32 to vector<1x256xi32>
    %1547 = arith.addi %1, %1546 : vector<1x256xi32>
    %c16_i32_553 = arith.constant 16 : i32
    %1548 = vector.broadcast %c16_i32_553 : i32 to vector<1x256xi32>
    %1549 = arith.cmpi slt, %1547, %1548 : vector<1x256xi32>
    %1550 = arith.andi %1545, %1549 : vector<1x256xi1>
    %1551 = arith.extui %1550 : vector<1x256xi1> to vector<1x256xi32>
    %1552 = arith.sitofp %1551 : vector<1x256xi32> to vector<1x256xf32>
    %1553 = vector.broadcast %1552 : vector<1x256xf32> to vector<2x256xf32>
    %1554 = arith.mulf %1531, %1553 : vector<2x256xf32>
    %c122 = arith.constant 122 : index
    %c0_554 = arith.constant 0 : index
    %1555 = vector.load %arg11[%c122, %c0_554] : memref<162x256xf32, #tpu.memory_space<vmem>>, vector<2x256xf32>
    tpu.vector_store %arg11[%c122, %c0_554], %1554 {strides = array<i32>} : memref<162x256xf32, #tpu.memory_space<vmem>>, vector<2x256xf32>,
    %1556 = vector.extract_strided_slice %5 {offsets = [0, 164], sizes = [2, 256], strides = [1, 1]} : vector<2x512xf32> to vector<2x256xf32>
    %c2_i32_555 = arith.constant 2 : i32
    %1557 = vector.broadcast %c2_i32_555 : i32 to vector<1x256xi32>
    %1558 = arith.addi %0, %1557 : vector<1x256xi32>
    %c0_i32_556 = arith.constant 0 : i32
    %1559 = vector.broadcast %c0_i32_556 : i32 to vector<1x256xi32>
    %1560 = arith.cmpi sge, %1558, %1559 : vector<1x256xi32>
    %c2_i32_557 = arith.constant 2 : i32
    %1561 = vector.broadcast %c2_i32_557 : i32 to vector<1x256xi32>
    %1562 = arith.addi %0, %1561 : vector<1x256xi32>
    %c16_i32_558 = arith.constant 16 : i32
    %1563 = vector.broadcast %c16_i32_558 : i32 to vector<1x256xi32>
    %1564 = arith.cmpi slt, %1562, %1563 : vector<1x256xi32>
    %1565 = arith.andi %1560, %1564 : vector<1x256xi1>
    %c4_i32_559 = arith.constant 4 : i32
    %1566 = vector.broadcast %c4_i32_559 : i32 to vector<1x256xi32>
    %1567 = arith.addi %1, %1566 : vector<1x256xi32>
    %c0_i32_560 = arith.constant 0 : i32
    %1568 = vector.broadcast %c0_i32_560 : i32 to vector<1x256xi32>
    %1569 = arith.cmpi sge, %1567, %1568 : vector<1x256xi32>
    %1570 = arith.andi %1565, %1569 : vector<1x256xi1>
    %c4_i32_561 = arith.constant 4 : i32
    %1571 = vector.broadcast %c4_i32_561 : i32 to vector<1x256xi32>
    %1572 = arith.addi %1, %1571 : vector<1x256xi32>
    %c16_i32_562 = arith.constant 16 : i32
    %1573 = vector.broadcast %c16_i32_562 : i32 to vector<1x256xi32>
    %1574 = arith.cmpi slt, %1572, %1573 : vector<1x256xi32>
    %1575 = arith.andi %1570, %1574 : vector<1x256xi1>
    %1576 = arith.extui %1575 : vector<1x256xi1> to vector<1x256xi32>
    %1577 = arith.sitofp %1576 : vector<1x256xi32> to vector<1x256xf32>
    %1578 = vector.broadcast %1577 : vector<1x256xf32> to vector<2x256xf32>
    %1579 = arith.mulf %1556, %1578 : vector<2x256xf32>
    %c124 = arith.constant 124 : index
    %c0_563 = arith.constant 0 : index
    %1580 = vector.load %arg11[%c124, %c0_563] : memref<162x256xf32, #tpu.memory_space<vmem>>, vector<2x256xf32>
    tpu.vector_store %arg11[%c124, %c0_563], %1579 {strides = array<i32>} : memref<162x256xf32, #tpu.memory_space<vmem>>, vector<2x256xf32>,
    %1581 = vector.extract_strided_slice %5 {offsets = [0, 172], sizes = [2, 256], strides = [1, 1]} : vector<2x512xf32> to vector<2x256xf32>
    %c3_i32_564 = arith.constant 3 : i32
    %1582 = vector.broadcast %c3_i32_564 : i32 to vector<1x256xi32>
    %1583 = arith.addi %0, %1582 : vector<1x256xi32>
    %c0_i32_565 = arith.constant 0 : i32
    %1584 = vector.broadcast %c0_i32_565 : i32 to vector<1x256xi32>
    %1585 = arith.cmpi sge, %1583, %1584 : vector<1x256xi32>
    %c3_i32_566 = arith.constant 3 : i32
    %1586 = vector.broadcast %c3_i32_566 : i32 to vector<1x256xi32>
    %1587 = arith.addi %0, %1586 : vector<1x256xi32>
    %c16_i32_567 = arith.constant 16 : i32
    %1588 = vector.broadcast %c16_i32_567 : i32 to vector<1x256xi32>
    %1589 = arith.cmpi slt, %1587, %1588 : vector<1x256xi32>
    %1590 = arith.andi %1585, %1589 : vector<1x256xi1>
    %c-4_i32_568 = arith.constant -4 : i32
    %1591 = vector.broadcast %c-4_i32_568 : i32 to vector<1x256xi32>
    %1592 = arith.addi %1, %1591 : vector<1x256xi32>
    %c0_i32_569 = arith.constant 0 : i32
    %1593 = vector.broadcast %c0_i32_569 : i32 to vector<1x256xi32>
    %1594 = arith.cmpi sge, %1592, %1593 : vector<1x256xi32>
    %1595 = arith.andi %1590, %1594 : vector<1x256xi1>
    %c-4_i32_570 = arith.constant -4 : i32
    %1596 = vector.broadcast %c-4_i32_570 : i32 to vector<1x256xi32>
    %1597 = arith.addi %1, %1596 : vector<1x256xi32>
    %c16_i32_571 = arith.constant 16 : i32
    %1598 = vector.broadcast %c16_i32_571 : i32 to vector<1x256xi32>
    %1599 = arith.cmpi slt, %1597, %1598 : vector<1x256xi32>
    %1600 = arith.andi %1595, %1599 : vector<1x256xi1>
    %1601 = arith.extui %1600 : vector<1x256xi1> to vector<1x256xi32>
    %1602 = arith.sitofp %1601 : vector<1x256xi32> to vector<1x256xf32>
    %1603 = vector.broadcast %1602 : vector<1x256xf32> to vector<2x256xf32>
    %1604 = arith.mulf %1581, %1603 : vector<2x256xf32>
    %c126 = arith.constant 126 : index
    %c0_572 = arith.constant 0 : index
    %1605 = vector.load %arg11[%c126, %c0_572] : memref<162x256xf32, #tpu.memory_space<vmem>>, vector<2x256xf32>
    tpu.vector_store %arg11[%c126, %c0_572], %1604 {strides = array<i32>} : memref<162x256xf32, #tpu.memory_space<vmem>>, vector<2x256xf32>,
    %1606 = vector.extract_strided_slice %5 {offsets = [0, 173], sizes = [2, 256], strides = [1, 1]} : vector<2x512xf32> to vector<2x256xf32>
    %c3_i32_573 = arith.constant 3 : i32
    %1607 = vector.broadcast %c3_i32_573 : i32 to vector<1x256xi32>
    %1608 = arith.addi %0, %1607 : vector<1x256xi32>
    %c0_i32_574 = arith.constant 0 : i32
    %1609 = vector.broadcast %c0_i32_574 : i32 to vector<1x256xi32>
    %1610 = arith.cmpi sge, %1608, %1609 : vector<1x256xi32>
    %c3_i32_575 = arith.constant 3 : i32
    %1611 = vector.broadcast %c3_i32_575 : i32 to vector<1x256xi32>
    %1612 = arith.addi %0, %1611 : vector<1x256xi32>
    %c16_i32_576 = arith.constant 16 : i32
    %1613 = vector.broadcast %c16_i32_576 : i32 to vector<1x256xi32>
    %1614 = arith.cmpi slt, %1612, %1613 : vector<1x256xi32>
    %1615 = arith.andi %1610, %1614 : vector<1x256xi1>
    %c-3_i32_577 = arith.constant -3 : i32
    %1616 = vector.broadcast %c-3_i32_577 : i32 to vector<1x256xi32>
    %1617 = arith.addi %1, %1616 : vector<1x256xi32>
    %c0_i32_578 = arith.constant 0 : i32
    %1618 = vector.broadcast %c0_i32_578 : i32 to vector<1x256xi32>
    %1619 = arith.cmpi sge, %1617, %1618 : vector<1x256xi32>
    %1620 = arith.andi %1615, %1619 : vector<1x256xi1>
    %c-3_i32_579 = arith.constant -3 : i32
    %1621 = vector.broadcast %c-3_i32_579 : i32 to vector<1x256xi32>
    %1622 = arith.addi %1, %1621 : vector<1x256xi32>
    %c16_i32_580 = arith.constant 16 : i32
    %1623 = vector.broadcast %c16_i32_580 : i32 to vector<1x256xi32>
    %1624 = arith.cmpi slt, %1622, %1623 : vector<1x256xi32>
    %1625 = arith.andi %1620, %1624 : vector<1x256xi1>
    %1626 = arith.extui %1625 : vector<1x256xi1> to vector<1x256xi32>
    %1627 = arith.sitofp %1626 : vector<1x256xi32> to vector<1x256xf32>
    %1628 = vector.broadcast %1627 : vector<1x256xf32> to vector<2x256xf32>
    %1629 = arith.mulf %1606, %1628 : vector<2x256xf32>
    %c128 = arith.constant 128 : index
    %c0_581 = arith.constant 0 : index
    %1630 = vector.load %arg11[%c128, %c0_581] : memref<162x256xf32, #tpu.memory_space<vmem>>, vector<2x256xf32>
    tpu.vector_store %arg11[%c128, %c0_581], %1629 {strides = array<i32>} : memref<162x256xf32, #tpu.memory_space<vmem>>, vector<2x256xf32>,
    %1631 = vector.extract_strided_slice %5 {offsets = [0, 174], sizes = [2, 256], strides = [1, 1]} : vector<2x512xf32> to vector<2x256xf32>
    %c3_i32_582 = arith.constant 3 : i32
    %1632 = vector.broadcast %c3_i32_582 : i32 to vector<1x256xi32>
    %1633 = arith.addi %0, %1632 : vector<1x256xi32>
    %c0_i32_583 = arith.constant 0 : i32
    %1634 = vector.broadcast %c0_i32_583 : i32 to vector<1x256xi32>
    %1635 = arith.cmpi sge, %1633, %1634 : vector<1x256xi32>
    %c3_i32_584 = arith.constant 3 : i32
    %1636 = vector.broadcast %c3_i32_584 : i32 to vector<1x256xi32>
    %1637 = arith.addi %0, %1636 : vector<1x256xi32>
    %c16_i32_585 = arith.constant 16 : i32
    %1638 = vector.broadcast %c16_i32_585 : i32 to vector<1x256xi32>
    %1639 = arith.cmpi slt, %1637, %1638 : vector<1x256xi32>
    %1640 = arith.andi %1635, %1639 : vector<1x256xi1>
    %c-2_i32_586 = arith.constant -2 : i32
    %1641 = vector.broadcast %c-2_i32_586 : i32 to vector<1x256xi32>
    %1642 = arith.addi %1, %1641 : vector<1x256xi32>
    %c0_i32_587 = arith.constant 0 : i32
    %1643 = vector.broadcast %c0_i32_587 : i32 to vector<1x256xi32>
    %1644 = arith.cmpi sge, %1642, %1643 : vector<1x256xi32>
    %1645 = arith.andi %1640, %1644 : vector<1x256xi1>
    %c-2_i32_588 = arith.constant -2 : i32
    %1646 = vector.broadcast %c-2_i32_588 : i32 to vector<1x256xi32>
    %1647 = arith.addi %1, %1646 : vector<1x256xi32>
    %c16_i32_589 = arith.constant 16 : i32
    %1648 = vector.broadcast %c16_i32_589 : i32 to vector<1x256xi32>
    %1649 = arith.cmpi slt, %1647, %1648 : vector<1x256xi32>
    %1650 = arith.andi %1645, %1649 : vector<1x256xi1>
    %1651 = arith.extui %1650 : vector<1x256xi1> to vector<1x256xi32>
    %1652 = arith.sitofp %1651 : vector<1x256xi32> to vector<1x256xf32>
    %1653 = vector.broadcast %1652 : vector<1x256xf32> to vector<2x256xf32>
    %1654 = arith.mulf %1631, %1653 : vector<2x256xf32>
    %c130 = arith.constant 130 : index
    %c0_590 = arith.constant 0 : index
    %1655 = vector.load %arg11[%c130, %c0_590] : memref<162x256xf32, #tpu.memory_space<vmem>>, vector<2x256xf32>
    tpu.vector_store %arg11[%c130, %c0_590], %1654 {strides = array<i32>} : memref<162x256xf32, #tpu.memory_space<vmem>>, vector<2x256xf32>,
    %1656 = vector.extract_strided_slice %5 {offsets = [0, 175], sizes = [2, 256], strides = [1, 1]} : vector<2x512xf32> to vector<2x256xf32>
    %c3_i32_591 = arith.constant 3 : i32
    %1657 = vector.broadcast %c3_i32_591 : i32 to vector<1x256xi32>
    %1658 = arith.addi %0, %1657 : vector<1x256xi32>
    %c0_i32_592 = arith.constant 0 : i32
    %1659 = vector.broadcast %c0_i32_592 : i32 to vector<1x256xi32>
    %1660 = arith.cmpi sge, %1658, %1659 : vector<1x256xi32>
    %c3_i32_593 = arith.constant 3 : i32
    %1661 = vector.broadcast %c3_i32_593 : i32 to vector<1x256xi32>
    %1662 = arith.addi %0, %1661 : vector<1x256xi32>
    %c16_i32_594 = arith.constant 16 : i32
    %1663 = vector.broadcast %c16_i32_594 : i32 to vector<1x256xi32>
    %1664 = arith.cmpi slt, %1662, %1663 : vector<1x256xi32>
    %1665 = arith.andi %1660, %1664 : vector<1x256xi1>
    %c-1_i32_595 = arith.constant -1 : i32
    %1666 = vector.broadcast %c-1_i32_595 : i32 to vector<1x256xi32>
    %1667 = arith.addi %1, %1666 : vector<1x256xi32>
    %c0_i32_596 = arith.constant 0 : i32
    %1668 = vector.broadcast %c0_i32_596 : i32 to vector<1x256xi32>
    %1669 = arith.cmpi sge, %1667, %1668 : vector<1x256xi32>
    %1670 = arith.andi %1665, %1669 : vector<1x256xi1>
    %c-1_i32_597 = arith.constant -1 : i32
    %1671 = vector.broadcast %c-1_i32_597 : i32 to vector<1x256xi32>
    %1672 = arith.addi %1, %1671 : vector<1x256xi32>
    %c16_i32_598 = arith.constant 16 : i32
    %1673 = vector.broadcast %c16_i32_598 : i32 to vector<1x256xi32>
    %1674 = arith.cmpi slt, %1672, %1673 : vector<1x256xi32>
    %1675 = arith.andi %1670, %1674 : vector<1x256xi1>
    %1676 = arith.extui %1675 : vector<1x256xi1> to vector<1x256xi32>
    %1677 = arith.sitofp %1676 : vector<1x256xi32> to vector<1x256xf32>
    %1678 = vector.broadcast %1677 : vector<1x256xf32> to vector<2x256xf32>
    %1679 = arith.mulf %1656, %1678 : vector<2x256xf32>
    %c132 = arith.constant 132 : index
    %c0_599 = arith.constant 0 : index
    %1680 = vector.load %arg11[%c132, %c0_599] : memref<162x256xf32, #tpu.memory_space<vmem>>, vector<2x256xf32>
    tpu.vector_store %arg11[%c132, %c0_599], %1679 {strides = array<i32>} : memref<162x256xf32, #tpu.memory_space<vmem>>, vector<2x256xf32>,
    %1681 = vector.extract_strided_slice %5 {offsets = [0, 176], sizes = [2, 256], strides = [1, 1]} : vector<2x512xf32> to vector<2x256xf32>
    %c3_i32_600 = arith.constant 3 : i32
    %1682 = vector.broadcast %c3_i32_600 : i32 to vector<1x256xi32>
    %1683 = arith.addi %0, %1682 : vector<1x256xi32>
    %c0_i32_601 = arith.constant 0 : i32
    %1684 = vector.broadcast %c0_i32_601 : i32 to vector<1x256xi32>
    %1685 = arith.cmpi sge, %1683, %1684 : vector<1x256xi32>
    %c3_i32_602 = arith.constant 3 : i32
    %1686 = vector.broadcast %c3_i32_602 : i32 to vector<1x256xi32>
    %1687 = arith.addi %0, %1686 : vector<1x256xi32>
    %c16_i32_603 = arith.constant 16 : i32
    %1688 = vector.broadcast %c16_i32_603 : i32 to vector<1x256xi32>
    %1689 = arith.cmpi slt, %1687, %1688 : vector<1x256xi32>
    %1690 = arith.andi %1685, %1689 : vector<1x256xi1>
    %c0_i32_604 = arith.constant 0 : i32
    %1691 = vector.broadcast %c0_i32_604 : i32 to vector<1x256xi32>
    %1692 = arith.addi %1, %1691 : vector<1x256xi32>
    %c0_i32_605 = arith.constant 0 : i32
    %1693 = vector.broadcast %c0_i32_605 : i32 to vector<1x256xi32>
    %1694 = arith.cmpi sge, %1692, %1693 : vector<1x256xi32>
    %1695 = arith.andi %1690, %1694 : vector<1x256xi1>
    %c0_i32_606 = arith.constant 0 : i32
    %1696 = vector.broadcast %c0_i32_606 : i32 to vector<1x256xi32>
    %1697 = arith.addi %1, %1696 : vector<1x256xi32>
    %c16_i32_607 = arith.constant 16 : i32
    %1698 = vector.broadcast %c16_i32_607 : i32 to vector<1x256xi32>
    %1699 = arith.cmpi slt, %1697, %1698 : vector<1x256xi32>
    %1700 = arith.andi %1695, %1699 : vector<1x256xi1>
    %1701 = arith.extui %1700 : vector<1x256xi1> to vector<1x256xi32>
    %1702 = arith.sitofp %1701 : vector<1x256xi32> to vector<1x256xf32>
    %1703 = vector.broadcast %1702 : vector<1x256xf32> to vector<2x256xf32>
    %1704 = arith.mulf %1681, %1703 : vector<2x256xf32>
    %c134 = arith.constant 134 : index
    %c0_608 = arith.constant 0 : index
    %1705 = vector.load %arg11[%c134, %c0_608] : memref<162x256xf32, #tpu.memory_space<vmem>>, vector<2x256xf32>
    tpu.vector_store %arg11[%c134, %c0_608], %1704 {strides = array<i32>} : memref<162x256xf32, #tpu.memory_space<vmem>>, vector<2x256xf32>,
    %1706 = vector.extract_strided_slice %5 {offsets = [0, 177], sizes = [2, 256], strides = [1, 1]} : vector<2x512xf32> to vector<2x256xf32>
    %c3_i32_609 = arith.constant 3 : i32
    %1707 = vector.broadcast %c3_i32_609 : i32 to vector<1x256xi32>
    %1708 = arith.addi %0, %1707 : vector<1x256xi32>
    %c0_i32_610 = arith.constant 0 : i32
    %1709 = vector.broadcast %c0_i32_610 : i32 to vector<1x256xi32>
    %1710 = arith.cmpi sge, %1708, %1709 : vector<1x256xi32>
    %c3_i32_611 = arith.constant 3 : i32
    %1711 = vector.broadcast %c3_i32_611 : i32 to vector<1x256xi32>
    %1712 = arith.addi %0, %1711 : vector<1x256xi32>
    %c16_i32_612 = arith.constant 16 : i32
    %1713 = vector.broadcast %c16_i32_612 : i32 to vector<1x256xi32>
    %1714 = arith.cmpi slt, %1712, %1713 : vector<1x256xi32>
    %1715 = arith.andi %1710, %1714 : vector<1x256xi1>
    %c1_i32_613 = arith.constant 1 : i32
    %1716 = vector.broadcast %c1_i32_613 : i32 to vector<1x256xi32>
    %1717 = arith.addi %1, %1716 : vector<1x256xi32>
    %c0_i32_614 = arith.constant 0 : i32
    %1718 = vector.broadcast %c0_i32_614 : i32 to vector<1x256xi32>
    %1719 = arith.cmpi sge, %1717, %1718 : vector<1x256xi32>
    %1720 = arith.andi %1715, %1719 : vector<1x256xi1>
    %c1_i32_615 = arith.constant 1 : i32
    %1721 = vector.broadcast %c1_i32_615 : i32 to vector<1x256xi32>
    %1722 = arith.addi %1, %1721 : vector<1x256xi32>
    %c16_i32_616 = arith.constant 16 : i32
    %1723 = vector.broadcast %c16_i32_616 : i32 to vector<1x256xi32>
    %1724 = arith.cmpi slt, %1722, %1723 : vector<1x256xi32>
    %1725 = arith.andi %1720, %1724 : vector<1x256xi1>
    %1726 = arith.extui %1725 : vector<1x256xi1> to vector<1x256xi32>
    %1727 = arith.sitofp %1726 : vector<1x256xi32> to vector<1x256xf32>
    %1728 = vector.broadcast %1727 : vector<1x256xf32> to vector<2x256xf32>
    %1729 = arith.mulf %1706, %1728 : vector<2x256xf32>
    %c136 = arith.constant 136 : index
    %c0_617 = arith.constant 0 : index
    %1730 = vector.load %arg11[%c136, %c0_617] : memref<162x256xf32, #tpu.memory_space<vmem>>, vector<2x256xf32>
    tpu.vector_store %arg11[%c136, %c0_617], %1729 {strides = array<i32>} : memref<162x256xf32, #tpu.memory_space<vmem>>, vector<2x256xf32>,
    %1731 = vector.extract_strided_slice %5 {offsets = [0, 178], sizes = [2, 256], strides = [1, 1]} : vector<2x512xf32> to vector<2x256xf32>
    %c3_i32_618 = arith.constant 3 : i32
    %1732 = vector.broadcast %c3_i32_618 : i32 to vector<1x256xi32>
    %1733 = arith.addi %0, %1732 : vector<1x256xi32>
    %c0_i32_619 = arith.constant 0 : i32
    %1734 = vector.broadcast %c0_i32_619 : i32 to vector<1x256xi32>
    %1735 = arith.cmpi sge, %1733, %1734 : vector<1x256xi32>
    %c3_i32_620 = arith.constant 3 : i32
    %1736 = vector.broadcast %c3_i32_620 : i32 to vector<1x256xi32>
    %1737 = arith.addi %0, %1736 : vector<1x256xi32>
    %c16_i32_621 = arith.constant 16 : i32
    %1738 = vector.broadcast %c16_i32_621 : i32 to vector<1x256xi32>
    %1739 = arith.cmpi slt, %1737, %1738 : vector<1x256xi32>
    %1740 = arith.andi %1735, %1739 : vector<1x256xi1>
    %c2_i32_622 = arith.constant 2 : i32
    %1741 = vector.broadcast %c2_i32_622 : i32 to vector<1x256xi32>
    %1742 = arith.addi %1, %1741 : vector<1x256xi32>
    %c0_i32_623 = arith.constant 0 : i32
    %1743 = vector.broadcast %c0_i32_623 : i32 to vector<1x256xi32>
    %1744 = arith.cmpi sge, %1742, %1743 : vector<1x256xi32>
    %1745 = arith.andi %1740, %1744 : vector<1x256xi1>
    %c2_i32_624 = arith.constant 2 : i32
    %1746 = vector.broadcast %c2_i32_624 : i32 to vector<1x256xi32>
    %1747 = arith.addi %1, %1746 : vector<1x256xi32>
    %c16_i32_625 = arith.constant 16 : i32
    %1748 = vector.broadcast %c16_i32_625 : i32 to vector<1x256xi32>
    %1749 = arith.cmpi slt, %1747, %1748 : vector<1x256xi32>
    %1750 = arith.andi %1745, %1749 : vector<1x256xi1>
    %1751 = arith.extui %1750 : vector<1x256xi1> to vector<1x256xi32>
    %1752 = arith.sitofp %1751 : vector<1x256xi32> to vector<1x256xf32>
    %1753 = vector.broadcast %1752 : vector<1x256xf32> to vector<2x256xf32>
    %1754 = arith.mulf %1731, %1753 : vector<2x256xf32>
    %c138 = arith.constant 138 : index
    %c0_626 = arith.constant 0 : index
    %1755 = vector.load %arg11[%c138, %c0_626] : memref<162x256xf32, #tpu.memory_space<vmem>>, vector<2x256xf32>
    tpu.vector_store %arg11[%c138, %c0_626], %1754 {strides = array<i32>} : memref<162x256xf32, #tpu.memory_space<vmem>>, vector<2x256xf32>,
    %1756 = vector.extract_strided_slice %5 {offsets = [0, 179], sizes = [2, 256], strides = [1, 1]} : vector<2x512xf32> to vector<2x256xf32>
    %c3_i32_627 = arith.constant 3 : i32
    %1757 = vector.broadcast %c3_i32_627 : i32 to vector<1x256xi32>
    %1758 = arith.addi %0, %1757 : vector<1x256xi32>
    %c0_i32_628 = arith.constant 0 : i32
    %1759 = vector.broadcast %c0_i32_628 : i32 to vector<1x256xi32>
    %1760 = arith.cmpi sge, %1758, %1759 : vector<1x256xi32>
    %c3_i32_629 = arith.constant 3 : i32
    %1761 = vector.broadcast %c3_i32_629 : i32 to vector<1x256xi32>
    %1762 = arith.addi %0, %1761 : vector<1x256xi32>
    %c16_i32_630 = arith.constant 16 : i32
    %1763 = vector.broadcast %c16_i32_630 : i32 to vector<1x256xi32>
    %1764 = arith.cmpi slt, %1762, %1763 : vector<1x256xi32>
    %1765 = arith.andi %1760, %1764 : vector<1x256xi1>
    %c3_i32_631 = arith.constant 3 : i32
    %1766 = vector.broadcast %c3_i32_631 : i32 to vector<1x256xi32>
    %1767 = arith.addi %1, %1766 : vector<1x256xi32>
    %c0_i32_632 = arith.constant 0 : i32
    %1768 = vector.broadcast %c0_i32_632 : i32 to vector<1x256xi32>
    %1769 = arith.cmpi sge, %1767, %1768 : vector<1x256xi32>
    %1770 = arith.andi %1765, %1769 : vector<1x256xi1>
    %c3_i32_633 = arith.constant 3 : i32
    %1771 = vector.broadcast %c3_i32_633 : i32 to vector<1x256xi32>
    %1772 = arith.addi %1, %1771 : vector<1x256xi32>
    %c16_i32_634 = arith.constant 16 : i32
    %1773 = vector.broadcast %c16_i32_634 : i32 to vector<1x256xi32>
    %1774 = arith.cmpi slt, %1772, %1773 : vector<1x256xi32>
    %1775 = arith.andi %1770, %1774 : vector<1x256xi1>
    %1776 = arith.extui %1775 : vector<1x256xi1> to vector<1x256xi32>
    %1777 = arith.sitofp %1776 : vector<1x256xi32> to vector<1x256xf32>
    %1778 = vector.broadcast %1777 : vector<1x256xf32> to vector<2x256xf32>
    %1779 = arith.mulf %1756, %1778 : vector<2x256xf32>
    %c140 = arith.constant 140 : index
    %c0_635 = arith.constant 0 : index
    %1780 = vector.load %arg11[%c140, %c0_635] : memref<162x256xf32, #tpu.memory_space<vmem>>, vector<2x256xf32>
    tpu.vector_store %arg11[%c140, %c0_635], %1779 {strides = array<i32>} : memref<162x256xf32, #tpu.memory_space<vmem>>, vector<2x256xf32>,
    %1781 = vector.extract_strided_slice %5 {offsets = [0, 180], sizes = [2, 256], strides = [1, 1]} : vector<2x512xf32> to vector<2x256xf32>
    %c3_i32_636 = arith.constant 3 : i32
    %1782 = vector.broadcast %c3_i32_636 : i32 to vector<1x256xi32>
    %1783 = arith.addi %0, %1782 : vector<1x256xi32>
    %c0_i32_637 = arith.constant 0 : i32
    %1784 = vector.broadcast %c0_i32_637 : i32 to vector<1x256xi32>
    %1785 = arith.cmpi sge, %1783, %1784 : vector<1x256xi32>
    %c3_i32_638 = arith.constant 3 : i32
    %1786 = vector.broadcast %c3_i32_638 : i32 to vector<1x256xi32>
    %1787 = arith.addi %0, %1786 : vector<1x256xi32>
    %c16_i32_639 = arith.constant 16 : i32
    %1788 = vector.broadcast %c16_i32_639 : i32 to vector<1x256xi32>
    %1789 = arith.cmpi slt, %1787, %1788 : vector<1x256xi32>
    %1790 = arith.andi %1785, %1789 : vector<1x256xi1>
    %c4_i32_640 = arith.constant 4 : i32
    %1791 = vector.broadcast %c4_i32_640 : i32 to vector<1x256xi32>
    %1792 = arith.addi %1, %1791 : vector<1x256xi32>
    %c0_i32_641 = arith.constant 0 : i32
    %1793 = vector.broadcast %c0_i32_641 : i32 to vector<1x256xi32>
    %1794 = arith.cmpi sge, %1792, %1793 : vector<1x256xi32>
    %1795 = arith.andi %1790, %1794 : vector<1x256xi1>
    %c4_i32_642 = arith.constant 4 : i32
    %1796 = vector.broadcast %c4_i32_642 : i32 to vector<1x256xi32>
    %1797 = arith.addi %1, %1796 : vector<1x256xi32>
    %c16_i32_643 = arith.constant 16 : i32
    %1798 = vector.broadcast %c16_i32_643 : i32 to vector<1x256xi32>
    %1799 = arith.cmpi slt, %1797, %1798 : vector<1x256xi32>
    %1800 = arith.andi %1795, %1799 : vector<1x256xi1>
    %1801 = arith.extui %1800 : vector<1x256xi1> to vector<1x256xi32>
    %1802 = arith.sitofp %1801 : vector<1x256xi32> to vector<1x256xf32>
    %1803 = vector.broadcast %1802 : vector<1x256xf32> to vector<2x256xf32>
    %1804 = arith.mulf %1781, %1803 : vector<2x256xf32>
    %c142 = arith.constant 142 : index
    %c0_644 = arith.constant 0 : index
    %1805 = vector.load %arg11[%c142, %c0_644] : memref<162x256xf32, #tpu.memory_space<vmem>>, vector<2x256xf32>
    tpu.vector_store %arg11[%c142, %c0_644], %1804 {strides = array<i32>} : memref<162x256xf32, #tpu.memory_space<vmem>>, vector<2x256xf32>,
    %1806 = vector.extract_strided_slice %5 {offsets = [0, 188], sizes = [2, 256], strides = [1, 1]} : vector<2x512xf32> to vector<2x256xf32>
    %c4_i32_645 = arith.constant 4 : i32
    %1807 = vector.broadcast %c4_i32_645 : i32 to vector<1x256xi32>
    %1808 = arith.addi %0, %1807 : vector<1x256xi32>
    %c0_i32_646 = arith.constant 0 : i32
    %1809 = vector.broadcast %c0_i32_646 : i32 to vector<1x256xi32>
    %1810 = arith.cmpi sge, %1808, %1809 : vector<1x256xi32>
    %c4_i32_647 = arith.constant 4 : i32
    %1811 = vector.broadcast %c4_i32_647 : i32 to vector<1x256xi32>
    %1812 = arith.addi %0, %1811 : vector<1x256xi32>
    %c16_i32_648 = arith.constant 16 : i32
    %1813 = vector.broadcast %c16_i32_648 : i32 to vector<1x256xi32>
    %1814 = arith.cmpi slt, %1812, %1813 : vector<1x256xi32>
    %1815 = arith.andi %1810, %1814 : vector<1x256xi1>
    %c-4_i32_649 = arith.constant -4 : i32
    %1816 = vector.broadcast %c-4_i32_649 : i32 to vector<1x256xi32>
    %1817 = arith.addi %1, %1816 : vector<1x256xi32>
    %c0_i32_650 = arith.constant 0 : i32
    %1818 = vector.broadcast %c0_i32_650 : i32 to vector<1x256xi32>
    %1819 = arith.cmpi sge, %1817, %1818 : vector<1x256xi32>
    %1820 = arith.andi %1815, %1819 : vector<1x256xi1>
    %c-4_i32_651 = arith.constant -4 : i32
    %1821 = vector.broadcast %c-4_i32_651 : i32 to vector<1x256xi32>
    %1822 = arith.addi %1, %1821 : vector<1x256xi32>
    %c16_i32_652 = arith.constant 16 : i32
    %1823 = vector.broadcast %c16_i32_652 : i32 to vector<1x256xi32>
    %1824 = arith.cmpi slt, %1822, %1823 : vector<1x256xi32>
    %1825 = arith.andi %1820, %1824 : vector<1x256xi1>
    %1826 = arith.extui %1825 : vector<1x256xi1> to vector<1x256xi32>
    %1827 = arith.sitofp %1826 : vector<1x256xi32> to vector<1x256xf32>
    %1828 = vector.broadcast %1827 : vector<1x256xf32> to vector<2x256xf32>
    %1829 = arith.mulf %1806, %1828 : vector<2x256xf32>
    %c144 = arith.constant 144 : index
    %c0_653 = arith.constant 0 : index
    %1830 = vector.load %arg11[%c144, %c0_653] : memref<162x256xf32, #tpu.memory_space<vmem>>, vector<2x256xf32>
    tpu.vector_store %arg11[%c144, %c0_653], %1829 {strides = array<i32>} : memref<162x256xf32, #tpu.memory_space<vmem>>, vector<2x256xf32>,
    %1831 = vector.extract_strided_slice %5 {offsets = [0, 189], sizes = [2, 256], strides = [1, 1]} : vector<2x512xf32> to vector<2x256xf32>
    %c4_i32_654 = arith.constant 4 : i32
    %1832 = vector.broadcast %c4_i32_654 : i32 to vector<1x256xi32>
    %1833 = arith.addi %0, %1832 : vector<1x256xi32>
    %c0_i32_655 = arith.constant 0 : i32
    %1834 = vector.broadcast %c0_i32_655 : i32 to vector<1x256xi32>
    %1835 = arith.cmpi sge, %1833, %1834 : vector<1x256xi32>
    %c4_i32_656 = arith.constant 4 : i32
    %1836 = vector.broadcast %c4_i32_656 : i32 to vector<1x256xi32>
    %1837 = arith.addi %0, %1836 : vector<1x256xi32>
    %c16_i32_657 = arith.constant 16 : i32
    %1838 = vector.broadcast %c16_i32_657 : i32 to vector<1x256xi32>
    %1839 = arith.cmpi slt, %1837, %1838 : vector<1x256xi32>
    %1840 = arith.andi %1835, %1839 : vector<1x256xi1>
    %c-3_i32_658 = arith.constant -3 : i32
    %1841 = vector.broadcast %c-3_i32_658 : i32 to vector<1x256xi32>
    %1842 = arith.addi %1, %1841 : vector<1x256xi32>
    %c0_i32_659 = arith.constant 0 : i32
    %1843 = vector.broadcast %c0_i32_659 : i32 to vector<1x256xi32>
    %1844 = arith.cmpi sge, %1842, %1843 : vector<1x256xi32>
    %1845 = arith.andi %1840, %1844 : vector<1x256xi1>
    %c-3_i32_660 = arith.constant -3 : i32
    %1846 = vector.broadcast %c-3_i32_660 : i32 to vector<1x256xi32>
    %1847 = arith.addi %1, %1846 : vector<1x256xi32>
    %c16_i32_661 = arith.constant 16 : i32
    %1848 = vector.broadcast %c16_i32_661 : i32 to vector<1x256xi32>
    %1849 = arith.cmpi slt, %1847, %1848 : vector<1x256xi32>
    %1850 = arith.andi %1845, %1849 : vector<1x256xi1>
    %1851 = arith.extui %1850 : vector<1x256xi1> to vector<1x256xi32>
    %1852 = arith.sitofp %1851 : vector<1x256xi32> to vector<1x256xf32>
    %1853 = vector.broadcast %1852 : vector<1x256xf32> to vector<2x256xf32>
    %1854 = arith.mulf %1831, %1853 : vector<2x256xf32>
    %c146 = arith.constant 146 : index
    %c0_662 = arith.constant 0 : index
    %1855 = vector.load %arg11[%c146, %c0_662] : memref<162x256xf32, #tpu.memory_space<vmem>>, vector<2x256xf32>
    tpu.vector_store %arg11[%c146, %c0_662], %1854 {strides = array<i32>} : memref<162x256xf32, #tpu.memory_space<vmem>>, vector<2x256xf32>,
    %1856 = vector.extract_strided_slice %5 {offsets = [0, 190], sizes = [2, 256], strides = [1, 1]} : vector<2x512xf32> to vector<2x256xf32>
    %c4_i32_663 = arith.constant 4 : i32
    %1857 = vector.broadcast %c4_i32_663 : i32 to vector<1x256xi32>
    %1858 = arith.addi %0, %1857 : vector<1x256xi32>
    %c0_i32_664 = arith.constant 0 : i32
    %1859 = vector.broadcast %c0_i32_664 : i32 to vector<1x256xi32>
    %1860 = arith.cmpi sge, %1858, %1859 : vector<1x256xi32>
    %c4_i32_665 = arith.constant 4 : i32
    %1861 = vector.broadcast %c4_i32_665 : i32 to vector<1x256xi32>
    %1862 = arith.addi %0, %1861 : vector<1x256xi32>
    %c16_i32_666 = arith.constant 16 : i32
    %1863 = vector.broadcast %c16_i32_666 : i32 to vector<1x256xi32>
    %1864 = arith.cmpi slt, %1862, %1863 : vector<1x256xi32>
    %1865 = arith.andi %1860, %1864 : vector<1x256xi1>
    %c-2_i32_667 = arith.constant -2 : i32
    %1866 = vector.broadcast %c-2_i32_667 : i32 to vector<1x256xi32>
    %1867 = arith.addi %1, %1866 : vector<1x256xi32>
    %c0_i32_668 = arith.constant 0 : i32
    %1868 = vector.broadcast %c0_i32_668 : i32 to vector<1x256xi32>
    %1869 = arith.cmpi sge, %1867, %1868 : vector<1x256xi32>
    %1870 = arith.andi %1865, %1869 : vector<1x256xi1>
    %c-2_i32_669 = arith.constant -2 : i32
    %1871 = vector.broadcast %c-2_i32_669 : i32 to vector<1x256xi32>
    %1872 = arith.addi %1, %1871 : vector<1x256xi32>
    %c16_i32_670 = arith.constant 16 : i32
    %1873 = vector.broadcast %c16_i32_670 : i32 to vector<1x256xi32>
    %1874 = arith.cmpi slt, %1872, %1873 : vector<1x256xi32>
    %1875 = arith.andi %1870, %1874 : vector<1x256xi1>
    %1876 = arith.extui %1875 : vector<1x256xi1> to vector<1x256xi32>
    %1877 = arith.sitofp %1876 : vector<1x256xi32> to vector<1x256xf32>
    %1878 = vector.broadcast %1877 : vector<1x256xf32> to vector<2x256xf32>
    %1879 = arith.mulf %1856, %1878 : vector<2x256xf32>
    %c148 = arith.constant 148 : index
    %c0_671 = arith.constant 0 : index
    %1880 = vector.load %arg11[%c148, %c0_671] : memref<162x256xf32, #tpu.memory_space<vmem>>, vector<2x256xf32>
    tpu.vector_store %arg11[%c148, %c0_671], %1879 {strides = array<i32>} : memref<162x256xf32, #tpu.memory_space<vmem>>, vector<2x256xf32>,
    %1881 = vector.extract_strided_slice %5 {offsets = [0, 191], sizes = [2, 256], strides = [1, 1]} : vector<2x512xf32> to vector<2x256xf32>
    %c4_i32_672 = arith.constant 4 : i32
    %1882 = vector.broadcast %c4_i32_672 : i32 to vector<1x256xi32>
    %1883 = arith.addi %0, %1882 : vector<1x256xi32>
    %c0_i32_673 = arith.constant 0 : i32
    %1884 = vector.broadcast %c0_i32_673 : i32 to vector<1x256xi32>
    %1885 = arith.cmpi sge, %1883, %1884 : vector<1x256xi32>
    %c4_i32_674 = arith.constant 4 : i32
    %1886 = vector.broadcast %c4_i32_674 : i32 to vector<1x256xi32>
    %1887 = arith.addi %0, %1886 : vector<1x256xi32>
    %c16_i32_675 = arith.constant 16 : i32
    %1888 = vector.broadcast %c16_i32_675 : i32 to vector<1x256xi32>
    %1889 = arith.cmpi slt, %1887, %1888 : vector<1x256xi32>
    %1890 = arith.andi %1885, %1889 : vector<1x256xi1>
    %c-1_i32_676 = arith.constant -1 : i32
    %1891 = vector.broadcast %c-1_i32_676 : i32 to vector<1x256xi32>
    %1892 = arith.addi %1, %1891 : vector<1x256xi32>
    %c0_i32_677 = arith.constant 0 : i32
    %1893 = vector.broadcast %c0_i32_677 : i32 to vector<1x256xi32>
    %1894 = arith.cmpi sge, %1892, %1893 : vector<1x256xi32>
    %1895 = arith.andi %1890, %1894 : vector<1x256xi1>
    %c-1_i32_678 = arith.constant -1 : i32
    %1896 = vector.broadcast %c-1_i32_678 : i32 to vector<1x256xi32>
    %1897 = arith.addi %1, %1896 : vector<1x256xi32>
    %c16_i32_679 = arith.constant 16 : i32
    %1898 = vector.broadcast %c16_i32_679 : i32 to vector<1x256xi32>
    %1899 = arith.cmpi slt, %1897, %1898 : vector<1x256xi32>
    %1900 = arith.andi %1895, %1899 : vector<1x256xi1>
    %1901 = arith.extui %1900 : vector<1x256xi1> to vector<1x256xi32>
    %1902 = arith.sitofp %1901 : vector<1x256xi32> to vector<1x256xf32>
    %1903 = vector.broadcast %1902 : vector<1x256xf32> to vector<2x256xf32>
    %1904 = arith.mulf %1881, %1903 : vector<2x256xf32>
    %c150 = arith.constant 150 : index
    %c0_680 = arith.constant 0 : index
    %1905 = vector.load %arg11[%c150, %c0_680] : memref<162x256xf32, #tpu.memory_space<vmem>>, vector<2x256xf32>
    tpu.vector_store %arg11[%c150, %c0_680], %1904 {strides = array<i32>} : memref<162x256xf32, #tpu.memory_space<vmem>>, vector<2x256xf32>,
    %1906 = vector.extract_strided_slice %5 {offsets = [0, 192], sizes = [2, 256], strides = [1, 1]} : vector<2x512xf32> to vector<2x256xf32>
    %c4_i32_681 = arith.constant 4 : i32
    %1907 = vector.broadcast %c4_i32_681 : i32 to vector<1x256xi32>
    %1908 = arith.addi %0, %1907 : vector<1x256xi32>
    %c0_i32_682 = arith.constant 0 : i32
    %1909 = vector.broadcast %c0_i32_682 : i32 to vector<1x256xi32>
    %1910 = arith.cmpi sge, %1908, %1909 : vector<1x256xi32>
    %c4_i32_683 = arith.constant 4 : i32
    %1911 = vector.broadcast %c4_i32_683 : i32 to vector<1x256xi32>
    %1912 = arith.addi %0, %1911 : vector<1x256xi32>
    %c16_i32_684 = arith.constant 16 : i32
    %1913 = vector.broadcast %c16_i32_684 : i32 to vector<1x256xi32>
    %1914 = arith.cmpi slt, %1912, %1913 : vector<1x256xi32>
    %1915 = arith.andi %1910, %1914 : vector<1x256xi1>
    %c0_i32_685 = arith.constant 0 : i32
    %1916 = vector.broadcast %c0_i32_685 : i32 to vector<1x256xi32>
    %1917 = arith.addi %1, %1916 : vector<1x256xi32>
    %c0_i32_686 = arith.constant 0 : i32
    %1918 = vector.broadcast %c0_i32_686 : i32 to vector<1x256xi32>
    %1919 = arith.cmpi sge, %1917, %1918 : vector<1x256xi32>
    %1920 = arith.andi %1915, %1919 : vector<1x256xi1>
    %c0_i32_687 = arith.constant 0 : i32
    %1921 = vector.broadcast %c0_i32_687 : i32 to vector<1x256xi32>
    %1922 = arith.addi %1, %1921 : vector<1x256xi32>
    %c16_i32_688 = arith.constant 16 : i32
    %1923 = vector.broadcast %c16_i32_688 : i32 to vector<1x256xi32>
    %1924 = arith.cmpi slt, %1922, %1923 : vector<1x256xi32>
    %1925 = arith.andi %1920, %1924 : vector<1x256xi1>
    %1926 = arith.extui %1925 : vector<1x256xi1> to vector<1x256xi32>
    %1927 = arith.sitofp %1926 : vector<1x256xi32> to vector<1x256xf32>
    %1928 = vector.broadcast %1927 : vector<1x256xf32> to vector<2x256xf32>
    %1929 = arith.mulf %1906, %1928 : vector<2x256xf32>
    %c152 = arith.constant 152 : index
    %c0_689 = arith.constant 0 : index
    %1930 = vector.load %arg11[%c152, %c0_689] : memref<162x256xf32, #tpu.memory_space<vmem>>, vector<2x256xf32>
    tpu.vector_store %arg11[%c152, %c0_689], %1929 {strides = array<i32>} : memref<162x256xf32, #tpu.memory_space<vmem>>, vector<2x256xf32>,
    %1931 = vector.extract_strided_slice %5 {offsets = [0, 193], sizes = [2, 256], strides = [1, 1]} : vector<2x512xf32> to vector<2x256xf32>
    %c4_i32_690 = arith.constant 4 : i32
    %1932 = vector.broadcast %c4_i32_690 : i32 to vector<1x256xi32>
    %1933 = arith.addi %0, %1932 : vector<1x256xi32>
    %c0_i32_691 = arith.constant 0 : i32
    %1934 = vector.broadcast %c0_i32_691 : i32 to vector<1x256xi32>
    %1935 = arith.cmpi sge, %1933, %1934 : vector<1x256xi32>
    %c4_i32_692 = arith.constant 4 : i32
    %1936 = vector.broadcast %c4_i32_692 : i32 to vector<1x256xi32>
    %1937 = arith.addi %0, %1936 : vector<1x256xi32>
    %c16_i32_693 = arith.constant 16 : i32
    %1938 = vector.broadcast %c16_i32_693 : i32 to vector<1x256xi32>
    %1939 = arith.cmpi slt, %1937, %1938 : vector<1x256xi32>
    %1940 = arith.andi %1935, %1939 : vector<1x256xi1>
    %c1_i32_694 = arith.constant 1 : i32
    %1941 = vector.broadcast %c1_i32_694 : i32 to vector<1x256xi32>
    %1942 = arith.addi %1, %1941 : vector<1x256xi32>
    %c0_i32_695 = arith.constant 0 : i32
    %1943 = vector.broadcast %c0_i32_695 : i32 to vector<1x256xi32>
    %1944 = arith.cmpi sge, %1942, %1943 : vector<1x256xi32>
    %1945 = arith.andi %1940, %1944 : vector<1x256xi1>
    %c1_i32_696 = arith.constant 1 : i32
    %1946 = vector.broadcast %c1_i32_696 : i32 to vector<1x256xi32>
    %1947 = arith.addi %1, %1946 : vector<1x256xi32>
    %c16_i32_697 = arith.constant 16 : i32
    %1948 = vector.broadcast %c16_i32_697 : i32 to vector<1x256xi32>
    %1949 = arith.cmpi slt, %1947, %1948 : vector<1x256xi32>
    %1950 = arith.andi %1945, %1949 : vector<1x256xi1>
    %1951 = arith.extui %1950 : vector<1x256xi1> to vector<1x256xi32>
    %1952 = arith.sitofp %1951 : vector<1x256xi32> to vector<1x256xf32>
    %1953 = vector.broadcast %1952 : vector<1x256xf32> to vector<2x256xf32>
    %1954 = arith.mulf %1931, %1953 : vector<2x256xf32>
    %c154 = arith.constant 154 : index
    %c0_698 = arith.constant 0 : index
    %1955 = vector.load %arg11[%c154, %c0_698] : memref<162x256xf32, #tpu.memory_space<vmem>>, vector<2x256xf32>
    tpu.vector_store %arg11[%c154, %c0_698], %1954 {strides = array<i32>} : memref<162x256xf32, #tpu.memory_space<vmem>>, vector<2x256xf32>,
    %1956 = vector.extract_strided_slice %5 {offsets = [0, 194], sizes = [2, 256], strides = [1, 1]} : vector<2x512xf32> to vector<2x256xf32>
    %c4_i32_699 = arith.constant 4 : i32
    %1957 = vector.broadcast %c4_i32_699 : i32 to vector<1x256xi32>
    %1958 = arith.addi %0, %1957 : vector<1x256xi32>
    %c0_i32_700 = arith.constant 0 : i32
    %1959 = vector.broadcast %c0_i32_700 : i32 to vector<1x256xi32>
    %1960 = arith.cmpi sge, %1958, %1959 : vector<1x256xi32>
    %c4_i32_701 = arith.constant 4 : i32
    %1961 = vector.broadcast %c4_i32_701 : i32 to vector<1x256xi32>
    %1962 = arith.addi %0, %1961 : vector<1x256xi32>
    %c16_i32_702 = arith.constant 16 : i32
    %1963 = vector.broadcast %c16_i32_702 : i32 to vector<1x256xi32>
    %1964 = arith.cmpi slt, %1962, %1963 : vector<1x256xi32>
    %1965 = arith.andi %1960, %1964 : vector<1x256xi1>
    %c2_i32_703 = arith.constant 2 : i32
    %1966 = vector.broadcast %c2_i32_703 : i32 to vector<1x256xi32>
    %1967 = arith.addi %1, %1966 : vector<1x256xi32>
    %c0_i32_704 = arith.constant 0 : i32
    %1968 = vector.broadcast %c0_i32_704 : i32 to vector<1x256xi32>
    %1969 = arith.cmpi sge, %1967, %1968 : vector<1x256xi32>
    %1970 = arith.andi %1965, %1969 : vector<1x256xi1>
    %c2_i32_705 = arith.constant 2 : i32
    %1971 = vector.broadcast %c2_i32_705 : i32 to vector<1x256xi32>
    %1972 = arith.addi %1, %1971 : vector<1x256xi32>
    %c16_i32_706 = arith.constant 16 : i32
    %1973 = vector.broadcast %c16_i32_706 : i32 to vector<1x256xi32>
    %1974 = arith.cmpi slt, %1972, %1973 : vector<1x256xi32>
    %1975 = arith.andi %1970, %1974 : vector<1x256xi1>
    %1976 = arith.extui %1975 : vector<1x256xi1> to vector<1x256xi32>
    %1977 = arith.sitofp %1976 : vector<1x256xi32> to vector<1x256xf32>
    %1978 = vector.broadcast %1977 : vector<1x256xf32> to vector<2x256xf32>
    %1979 = arith.mulf %1956, %1978 : vector<2x256xf32>
    %c156 = arith.constant 156 : index
    %c0_707 = arith.constant 0 : index
    %1980 = vector.load %arg11[%c156, %c0_707] : memref<162x256xf32, #tpu.memory_space<vmem>>, vector<2x256xf32>
    tpu.vector_store %arg11[%c156, %c0_707], %1979 {strides = array<i32>} : memref<162x256xf32, #tpu.memory_space<vmem>>, vector<2x256xf32>,
    %1981 = vector.extract_strided_slice %5 {offsets = [0, 195], sizes = [2, 256], strides = [1, 1]} : vector<2x512xf32> to vector<2x256xf32>
    %c4_i32_708 = arith.constant 4 : i32
    %1982 = vector.broadcast %c4_i32_708 : i32 to vector<1x256xi32>
    %1983 = arith.addi %0, %1982 : vector<1x256xi32>
    %c0_i32_709 = arith.constant 0 : i32
    %1984 = vector.broadcast %c0_i32_709 : i32 to vector<1x256xi32>
    %1985 = arith.cmpi sge, %1983, %1984 : vector<1x256xi32>
    %c4_i32_710 = arith.constant 4 : i32
    %1986 = vector.broadcast %c4_i32_710 : i32 to vector<1x256xi32>
    %1987 = arith.addi %0, %1986 : vector<1x256xi32>
    %c16_i32_711 = arith.constant 16 : i32
    %1988 = vector.broadcast %c16_i32_711 : i32 to vector<1x256xi32>
    %1989 = arith.cmpi slt, %1987, %1988 : vector<1x256xi32>
    %1990 = arith.andi %1985, %1989 : vector<1x256xi1>
    %c3_i32_712 = arith.constant 3 : i32
    %1991 = vector.broadcast %c3_i32_712 : i32 to vector<1x256xi32>
    %1992 = arith.addi %1, %1991 : vector<1x256xi32>
    %c0_i32_713 = arith.constant 0 : i32
    %1993 = vector.broadcast %c0_i32_713 : i32 to vector<1x256xi32>
    %1994 = arith.cmpi sge, %1992, %1993 : vector<1x256xi32>
    %1995 = arith.andi %1990, %1994 : vector<1x256xi1>
    %c3_i32_714 = arith.constant 3 : i32
    %1996 = vector.broadcast %c3_i32_714 : i32 to vector<1x256xi32>
    %1997 = arith.addi %1, %1996 : vector<1x256xi32>
    %c16_i32_715 = arith.constant 16 : i32
    %1998 = vector.broadcast %c16_i32_715 : i32 to vector<1x256xi32>
    %1999 = arith.cmpi slt, %1997, %1998 : vector<1x256xi32>
    %2000 = arith.andi %1995, %1999 : vector<1x256xi1>
    %2001 = arith.extui %2000 : vector<1x256xi1> to vector<1x256xi32>
    %2002 = arith.sitofp %2001 : vector<1x256xi32> to vector<1x256xf32>
    %2003 = vector.broadcast %2002 : vector<1x256xf32> to vector<2x256xf32>
    %2004 = arith.mulf %1981, %2003 : vector<2x256xf32>
    %c158 = arith.constant 158 : index
    %c0_716 = arith.constant 0 : index
    %2005 = vector.load %arg11[%c158, %c0_716] : memref<162x256xf32, #tpu.memory_space<vmem>>, vector<2x256xf32>
    tpu.vector_store %arg11[%c158, %c0_716], %2004 {strides = array<i32>} : memref<162x256xf32, #tpu.memory_space<vmem>>, vector<2x256xf32>,
    %2006 = vector.extract_strided_slice %5 {offsets = [0, 196], sizes = [2, 256], strides = [1, 1]} : vector<2x512xf32> to vector<2x256xf32>
    %c4_i32_717 = arith.constant 4 : i32
    %2007 = vector.broadcast %c4_i32_717 : i32 to vector<1x256xi32>
    %2008 = arith.addi %0, %2007 : vector<1x256xi32>
    %c0_i32_718 = arith.constant 0 : i32
    %2009 = vector.broadcast %c0_i32_718 : i32 to vector<1x256xi32>
    %2010 = arith.cmpi sge, %2008, %2009 : vector<1x256xi32>
    %c4_i32_719 = arith.constant 4 : i32
    %2011 = vector.broadcast %c4_i32_719 : i32 to vector<1x256xi32>
    %2012 = arith.addi %0, %2011 : vector<1x256xi32>
    %c16_i32_720 = arith.constant 16 : i32
    %2013 = vector.broadcast %c16_i32_720 : i32 to vector<1x256xi32>
    %2014 = arith.cmpi slt, %2012, %2013 : vector<1x256xi32>
    %2015 = arith.andi %2010, %2014 : vector<1x256xi1>
    %c4_i32_721 = arith.constant 4 : i32
    %2016 = vector.broadcast %c4_i32_721 : i32 to vector<1x256xi32>
    %2017 = arith.addi %1, %2016 : vector<1x256xi32>
    %c0_i32_722 = arith.constant 0 : i32
    %2018 = vector.broadcast %c0_i32_722 : i32 to vector<1x256xi32>
    %2019 = arith.cmpi sge, %2017, %2018 : vector<1x256xi32>
    %2020 = arith.andi %2015, %2019 : vector<1x256xi1>
    %c4_i32_723 = arith.constant 4 : i32
    %2021 = vector.broadcast %c4_i32_723 : i32 to vector<1x256xi32>
    %2022 = arith.addi %1, %2021 : vector<1x256xi32>
    %c16_i32_724 = arith.constant 16 : i32
    %2023 = vector.broadcast %c16_i32_724 : i32 to vector<1x256xi32>
    %2024 = arith.cmpi slt, %2022, %2023 : vector<1x256xi32>
    %2025 = arith.andi %2020, %2024 : vector<1x256xi1>
    %2026 = arith.extui %2025 : vector<1x256xi1> to vector<1x256xi32>
    %2027 = arith.sitofp %2026 : vector<1x256xi32> to vector<1x256xf32>
    %2028 = vector.broadcast %2027 : vector<1x256xf32> to vector<2x256xf32>
    %2029 = arith.mulf %2006, %2028 : vector<2x256xf32>
    %c160 = arith.constant 160 : index
    %c0_725 = arith.constant 0 : index
    %2030 = vector.load %arg11[%c160, %c0_725] : memref<162x256xf32, #tpu.memory_space<vmem>>, vector<2x256xf32>
    tpu.vector_store %arg11[%c160, %c0_725], %2029 {strides = array<i32>} : memref<162x256xf32, #tpu.memory_space<vmem>>, vector<2x256xf32>,
    %c0_726 = arith.constant 0 : index
    %c0_727 = arith.constant 0 : index
    %2031 = vector.load %arg4[%c0_726, %c0_727] : memref<64x162xf32, #tpu.memory_space<vmem>>, vector<64x162xf32>
    %c0_728 = arith.constant 0 : index
    %c0_729 = arith.constant 0 : index
    %2032 = vector.load %arg11[%c0_728, %c0_729] : memref<162x256xf32, #tpu.memory_space<vmem>>, vector<162x256xf32>
    %cst_730 = arith.constant dense<0.000000e+00> : vector<64x256xf32>
    %2033 = tpu.matmul %2031, %2032, %cst_730 {dimension_numbers = #tpu.dot_dimension_numbers<[1], [0], [0], [1], [0, 0, 1, 1], [], []>} : vector<64x162xf32>, vector<162x256xf32>, vector<64x256xf32> -> vector<64x256xf32>
    %c0_731 = arith.constant 0 : index
    %c0_732 = arith.constant 0 : index
    %2034 = vector.load %arg5[%c0_731, %c0_732] : memref<64x1xf32, #tpu.memory_space<vmem>>, vector<64x1xf32>
    %2035 = vector.broadcast %2034 : vector<64x1xf32> to vector<64x256xf32>
    %2036 = arith.addf %2033, %2035 : vector<64x256xf32>
    %cst_733 = arith.constant 0.000000e+00 : f32
    %2037 = vector.broadcast %cst_733 : f32 to vector<64x256xf32>
    %2038 = arith.maximumf %2036, %2037 : vector<64x256xf32>
    %c0_734 = arith.constant 0 : index
    %c0_735 = arith.constant 0 : index
    %2039 = vector.load %arg6[%c0_734, %c0_735] : memref<32x64xf32, #tpu.memory_space<vmem>>, vector<32x64xf32>
    %cst_736 = arith.constant dense<0.000000e+00> : vector<32x256xf32>
    %2040 = tpu.matmul %2039, %2038, %cst_736 {dimension_numbers = #tpu.dot_dimension_numbers<[1], [0], [0], [1], [0, 0, 1, 1], [], []>} : vector<32x64xf32>, vector<64x256xf32>, vector<32x256xf32> -> vector<32x256xf32>
    %c0_737 = arith.constant 0 : index
    %c0_738 = arith.constant 0 : index
    %2041 = vector.load %arg7[%c0_737, %c0_738] : memref<32x1xf32, #tpu.memory_space<vmem>>, vector<32x1xf32>
    %2042 = vector.broadcast %2041 : vector<32x1xf32> to vector<32x256xf32>
    %2043 = arith.addf %2040, %2042 : vector<32x256xf32>
    %cst_739 = arith.constant 0.000000e+00 : f32
    %2044 = vector.broadcast %cst_739 : f32 to vector<32x256xf32>
    %2045 = arith.maximumf %2043, %2044 : vector<32x256xf32>
    %cst_740 = arith.constant 0.000000e+00 : f32
    %2046 = vector.broadcast %cst_740 : f32 to vector<32x128xf32>
    %2047 = tpu.concatenate %2046, %2045, %2046 in 1 : vector<32x128xf32>, vector<32x256xf32>, vector<32x128xf32> -> vector<32x512xf32>
    %2048 = vector.extract_strided_slice %2047 {offsets = [0, 94], sizes = [32, 256], strides = [1, 1]} : vector<32x512xf32> to vector<32x256xf32>
    %c-2_i32_741 = arith.constant -2 : i32
    %2049 = vector.broadcast %c-2_i32_741 : i32 to vector<1x256xi32>
    %2050 = arith.addi %0, %2049 : vector<1x256xi32>
    %c0_i32_742 = arith.constant 0 : i32
    %2051 = vector.broadcast %c0_i32_742 : i32 to vector<1x256xi32>
    %2052 = arith.cmpi sge, %2050, %2051 : vector<1x256xi32>
    %c-2_i32_743 = arith.constant -2 : i32
    %2053 = vector.broadcast %c-2_i32_743 : i32 to vector<1x256xi32>
    %2054 = arith.addi %0, %2053 : vector<1x256xi32>
    %c16_i32_744 = arith.constant 16 : i32
    %2055 = vector.broadcast %c16_i32_744 : i32 to vector<1x256xi32>
    %2056 = arith.cmpi slt, %2054, %2055 : vector<1x256xi32>
    %2057 = arith.andi %2052, %2056 : vector<1x256xi1>
    %c-2_i32_745 = arith.constant -2 : i32
    %2058 = vector.broadcast %c-2_i32_745 : i32 to vector<1x256xi32>
    %2059 = arith.addi %1, %2058 : vector<1x256xi32>
    %c0_i32_746 = arith.constant 0 : i32
    %2060 = vector.broadcast %c0_i32_746 : i32 to vector<1x256xi32>
    %2061 = arith.cmpi sge, %2059, %2060 : vector<1x256xi32>
    %2062 = arith.andi %2057, %2061 : vector<1x256xi1>
    %c-2_i32_747 = arith.constant -2 : i32
    %2063 = vector.broadcast %c-2_i32_747 : i32 to vector<1x256xi32>
    %2064 = arith.addi %1, %2063 : vector<1x256xi32>
    %c16_i32_748 = arith.constant 16 : i32
    %2065 = vector.broadcast %c16_i32_748 : i32 to vector<1x256xi32>
    %2066 = arith.cmpi slt, %2064, %2065 : vector<1x256xi32>
    %2067 = arith.andi %2062, %2066 : vector<1x256xi1>
    %2068 = arith.extui %2067 : vector<1x256xi1> to vector<1x256xi32>
    %2069 = arith.sitofp %2068 : vector<1x256xi32> to vector<1x256xf32>
    %2070 = vector.broadcast %2069 : vector<1x256xf32> to vector<32x256xf32>
    %2071 = arith.mulf %2048, %2070 : vector<32x256xf32>
    %c0_749 = arith.constant 0 : index
    %c0_750 = arith.constant 0 : index
    %2072 = vector.load %arg12[%c0_749, %c0_750] : memref<800x256xf32, #tpu.memory_space<vmem>>, vector<32x256xf32>
    tpu.vector_store %arg12[%c0_749, %c0_750], %2071 {strides = array<i32>} : memref<800x256xf32, #tpu.memory_space<vmem>>, vector<32x256xf32>,
    %2073 = vector.extract_strided_slice %2047 {offsets = [0, 95], sizes = [32, 256], strides = [1, 1]} : vector<32x512xf32> to vector<32x256xf32>
    %c-2_i32_751 = arith.constant -2 : i32
    %2074 = vector.broadcast %c-2_i32_751 : i32 to vector<1x256xi32>
    %2075 = arith.addi %0, %2074 : vector<1x256xi32>
    %c0_i32_752 = arith.constant 0 : i32
    %2076 = vector.broadcast %c0_i32_752 : i32 to vector<1x256xi32>
    %2077 = arith.cmpi sge, %2075, %2076 : vector<1x256xi32>
    %c-2_i32_753 = arith.constant -2 : i32
    %2078 = vector.broadcast %c-2_i32_753 : i32 to vector<1x256xi32>
    %2079 = arith.addi %0, %2078 : vector<1x256xi32>
    %c16_i32_754 = arith.constant 16 : i32
    %2080 = vector.broadcast %c16_i32_754 : i32 to vector<1x256xi32>
    %2081 = arith.cmpi slt, %2079, %2080 : vector<1x256xi32>
    %2082 = arith.andi %2077, %2081 : vector<1x256xi1>
    %c-1_i32_755 = arith.constant -1 : i32
    %2083 = vector.broadcast %c-1_i32_755 : i32 to vector<1x256xi32>
    %2084 = arith.addi %1, %2083 : vector<1x256xi32>
    %c0_i32_756 = arith.constant 0 : i32
    %2085 = vector.broadcast %c0_i32_756 : i32 to vector<1x256xi32>
    %2086 = arith.cmpi sge, %2084, %2085 : vector<1x256xi32>
    %2087 = arith.andi %2082, %2086 : vector<1x256xi1>
    %c-1_i32_757 = arith.constant -1 : i32
    %2088 = vector.broadcast %c-1_i32_757 : i32 to vector<1x256xi32>
    %2089 = arith.addi %1, %2088 : vector<1x256xi32>
    %c16_i32_758 = arith.constant 16 : i32
    %2090 = vector.broadcast %c16_i32_758 : i32 to vector<1x256xi32>
    %2091 = arith.cmpi slt, %2089, %2090 : vector<1x256xi32>
    %2092 = arith.andi %2087, %2091 : vector<1x256xi1>
    %2093 = arith.extui %2092 : vector<1x256xi1> to vector<1x256xi32>
    %2094 = arith.sitofp %2093 : vector<1x256xi32> to vector<1x256xf32>
    %2095 = vector.broadcast %2094 : vector<1x256xf32> to vector<32x256xf32>
    %2096 = arith.mulf %2073, %2095 : vector<32x256xf32>
    %c32_759 = arith.constant 32 : index
    %c0_760 = arith.constant 0 : index
    %2097 = vector.load %arg12[%c32_759, %c0_760] : memref<800x256xf32, #tpu.memory_space<vmem>>, vector<32x256xf32>
    tpu.vector_store %arg12[%c32_759, %c0_760], %2096 {strides = array<i32>} : memref<800x256xf32, #tpu.memory_space<vmem>>, vector<32x256xf32>,
    %2098 = vector.extract_strided_slice %2047 {offsets = [0, 96], sizes = [32, 256], strides = [1, 1]} : vector<32x512xf32> to vector<32x256xf32>
    %c-2_i32_761 = arith.constant -2 : i32
    %2099 = vector.broadcast %c-2_i32_761 : i32 to vector<1x256xi32>
    %2100 = arith.addi %0, %2099 : vector<1x256xi32>
    %c0_i32_762 = arith.constant 0 : i32
    %2101 = vector.broadcast %c0_i32_762 : i32 to vector<1x256xi32>
    %2102 = arith.cmpi sge, %2100, %2101 : vector<1x256xi32>
    %c-2_i32_763 = arith.constant -2 : i32
    %2103 = vector.broadcast %c-2_i32_763 : i32 to vector<1x256xi32>
    %2104 = arith.addi %0, %2103 : vector<1x256xi32>
    %c16_i32_764 = arith.constant 16 : i32
    %2105 = vector.broadcast %c16_i32_764 : i32 to vector<1x256xi32>
    %2106 = arith.cmpi slt, %2104, %2105 : vector<1x256xi32>
    %2107 = arith.andi %2102, %2106 : vector<1x256xi1>
    %c0_i32_765 = arith.constant 0 : i32
    %2108 = vector.broadcast %c0_i32_765 : i32 to vector<1x256xi32>
    %2109 = arith.addi %1, %2108 : vector<1x256xi32>
    %c0_i32_766 = arith.constant 0 : i32
    %2110 = vector.broadcast %c0_i32_766 : i32 to vector<1x256xi32>
    %2111 = arith.cmpi sge, %2109, %2110 : vector<1x256xi32>
    %2112 = arith.andi %2107, %2111 : vector<1x256xi1>
    %c0_i32_767 = arith.constant 0 : i32
    %2113 = vector.broadcast %c0_i32_767 : i32 to vector<1x256xi32>
    %2114 = arith.addi %1, %2113 : vector<1x256xi32>
    %c16_i32_768 = arith.constant 16 : i32
    %2115 = vector.broadcast %c16_i32_768 : i32 to vector<1x256xi32>
    %2116 = arith.cmpi slt, %2114, %2115 : vector<1x256xi32>
    %2117 = arith.andi %2112, %2116 : vector<1x256xi1>
    %2118 = arith.extui %2117 : vector<1x256xi1> to vector<1x256xi32>
    %2119 = arith.sitofp %2118 : vector<1x256xi32> to vector<1x256xf32>
    %2120 = vector.broadcast %2119 : vector<1x256xf32> to vector<32x256xf32>
    %2121 = arith.mulf %2098, %2120 : vector<32x256xf32>
    %c64_769 = arith.constant 64 : index
    %c0_770 = arith.constant 0 : index
    %2122 = vector.load %arg12[%c64_769, %c0_770] : memref<800x256xf32, #tpu.memory_space<vmem>>, vector<32x256xf32>
    tpu.vector_store %arg12[%c64_769, %c0_770], %2121 {strides = array<i32>} : memref<800x256xf32, #tpu.memory_space<vmem>>, vector<32x256xf32>,
    %2123 = vector.extract_strided_slice %2047 {offsets = [0, 97], sizes = [32, 256], strides = [1, 1]} : vector<32x512xf32> to vector<32x256xf32>
    %c-2_i32_771 = arith.constant -2 : i32
    %2124 = vector.broadcast %c-2_i32_771 : i32 to vector<1x256xi32>
    %2125 = arith.addi %0, %2124 : vector<1x256xi32>
    %c0_i32_772 = arith.constant 0 : i32
    %2126 = vector.broadcast %c0_i32_772 : i32 to vector<1x256xi32>
    %2127 = arith.cmpi sge, %2125, %2126 : vector<1x256xi32>
    %c-2_i32_773 = arith.constant -2 : i32
    %2128 = vector.broadcast %c-2_i32_773 : i32 to vector<1x256xi32>
    %2129 = arith.addi %0, %2128 : vector<1x256xi32>
    %c16_i32_774 = arith.constant 16 : i32
    %2130 = vector.broadcast %c16_i32_774 : i32 to vector<1x256xi32>
    %2131 = arith.cmpi slt, %2129, %2130 : vector<1x256xi32>
    %2132 = arith.andi %2127, %2131 : vector<1x256xi1>
    %c1_i32_775 = arith.constant 1 : i32
    %2133 = vector.broadcast %c1_i32_775 : i32 to vector<1x256xi32>
    %2134 = arith.addi %1, %2133 : vector<1x256xi32>
    %c0_i32_776 = arith.constant 0 : i32
    %2135 = vector.broadcast %c0_i32_776 : i32 to vector<1x256xi32>
    %2136 = arith.cmpi sge, %2134, %2135 : vector<1x256xi32>
    %2137 = arith.andi %2132, %2136 : vector<1x256xi1>
    %c1_i32_777 = arith.constant 1 : i32
    %2138 = vector.broadcast %c1_i32_777 : i32 to vector<1x256xi32>
    %2139 = arith.addi %1, %2138 : vector<1x256xi32>
    %c16_i32_778 = arith.constant 16 : i32
    %2140 = vector.broadcast %c16_i32_778 : i32 to vector<1x256xi32>
    %2141 = arith.cmpi slt, %2139, %2140 : vector<1x256xi32>
    %2142 = arith.andi %2137, %2141 : vector<1x256xi1>
    %2143 = arith.extui %2142 : vector<1x256xi1> to vector<1x256xi32>
    %2144 = arith.sitofp %2143 : vector<1x256xi32> to vector<1x256xf32>
    %2145 = vector.broadcast %2144 : vector<1x256xf32> to vector<32x256xf32>
    %2146 = arith.mulf %2123, %2145 : vector<32x256xf32>
    %c96_779 = arith.constant 96 : index
    %c0_780 = arith.constant 0 : index
    %2147 = vector.load %arg12[%c96_779, %c0_780] : memref<800x256xf32, #tpu.memory_space<vmem>>, vector<32x256xf32>
    tpu.vector_store %arg12[%c96_779, %c0_780], %2146 {strides = array<i32>} : memref<800x256xf32, #tpu.memory_space<vmem>>, vector<32x256xf32>,
    %2148 = vector.extract_strided_slice %2047 {offsets = [0, 98], sizes = [32, 256], strides = [1, 1]} : vector<32x512xf32> to vector<32x256xf32>
    %c-2_i32_781 = arith.constant -2 : i32
    %2149 = vector.broadcast %c-2_i32_781 : i32 to vector<1x256xi32>
    %2150 = arith.addi %0, %2149 : vector<1x256xi32>
    %c0_i32_782 = arith.constant 0 : i32
    %2151 = vector.broadcast %c0_i32_782 : i32 to vector<1x256xi32>
    %2152 = arith.cmpi sge, %2150, %2151 : vector<1x256xi32>
    %c-2_i32_783 = arith.constant -2 : i32
    %2153 = vector.broadcast %c-2_i32_783 : i32 to vector<1x256xi32>
    %2154 = arith.addi %0, %2153 : vector<1x256xi32>
    %c16_i32_784 = arith.constant 16 : i32
    %2155 = vector.broadcast %c16_i32_784 : i32 to vector<1x256xi32>
    %2156 = arith.cmpi slt, %2154, %2155 : vector<1x256xi32>
    %2157 = arith.andi %2152, %2156 : vector<1x256xi1>
    %c2_i32_785 = arith.constant 2 : i32
    %2158 = vector.broadcast %c2_i32_785 : i32 to vector<1x256xi32>
    %2159 = arith.addi %1, %2158 : vector<1x256xi32>
    %c0_i32_786 = arith.constant 0 : i32
    %2160 = vector.broadcast %c0_i32_786 : i32 to vector<1x256xi32>
    %2161 = arith.cmpi sge, %2159, %2160 : vector<1x256xi32>
    %2162 = arith.andi %2157, %2161 : vector<1x256xi1>
    %c2_i32_787 = arith.constant 2 : i32
    %2163 = vector.broadcast %c2_i32_787 : i32 to vector<1x256xi32>
    %2164 = arith.addi %1, %2163 : vector<1x256xi32>
    %c16_i32_788 = arith.constant 16 : i32
    %2165 = vector.broadcast %c16_i32_788 : i32 to vector<1x256xi32>
    %2166 = arith.cmpi slt, %2164, %2165 : vector<1x256xi32>
    %2167 = arith.andi %2162, %2166 : vector<1x256xi1>
    %2168 = arith.extui %2167 : vector<1x256xi1> to vector<1x256xi32>
    %2169 = arith.sitofp %2168 : vector<1x256xi32> to vector<1x256xf32>
    %2170 = vector.broadcast %2169 : vector<1x256xf32> to vector<32x256xf32>
    %2171 = arith.mulf %2148, %2170 : vector<32x256xf32>
    %c128_789 = arith.constant 128 : index
    %c0_790 = arith.constant 0 : index
    %2172 = vector.load %arg12[%c128_789, %c0_790] : memref<800x256xf32, #tpu.memory_space<vmem>>, vector<32x256xf32>
    tpu.vector_store %arg12[%c128_789, %c0_790], %2171 {strides = array<i32>} : memref<800x256xf32, #tpu.memory_space<vmem>>, vector<32x256xf32>,
    %2173 = vector.extract_strided_slice %2047 {offsets = [0, 110], sizes = [32, 256], strides = [1, 1]} : vector<32x512xf32> to vector<32x256xf32>
    %c-1_i32_791 = arith.constant -1 : i32
    %2174 = vector.broadcast %c-1_i32_791 : i32 to vector<1x256xi32>
    %2175 = arith.addi %0, %2174 : vector<1x256xi32>
    %c0_i32_792 = arith.constant 0 : i32
    %2176 = vector.broadcast %c0_i32_792 : i32 to vector<1x256xi32>
    %2177 = arith.cmpi sge, %2175, %2176 : vector<1x256xi32>
    %c-1_i32_793 = arith.constant -1 : i32
    %2178 = vector.broadcast %c-1_i32_793 : i32 to vector<1x256xi32>
    %2179 = arith.addi %0, %2178 : vector<1x256xi32>
    %c16_i32_794 = arith.constant 16 : i32
    %2180 = vector.broadcast %c16_i32_794 : i32 to vector<1x256xi32>
    %2181 = arith.cmpi slt, %2179, %2180 : vector<1x256xi32>
    %2182 = arith.andi %2177, %2181 : vector<1x256xi1>
    %c-2_i32_795 = arith.constant -2 : i32
    %2183 = vector.broadcast %c-2_i32_795 : i32 to vector<1x256xi32>
    %2184 = arith.addi %1, %2183 : vector<1x256xi32>
    %c0_i32_796 = arith.constant 0 : i32
    %2185 = vector.broadcast %c0_i32_796 : i32 to vector<1x256xi32>
    %2186 = arith.cmpi sge, %2184, %2185 : vector<1x256xi32>
    %2187 = arith.andi %2182, %2186 : vector<1x256xi1>
    %c-2_i32_797 = arith.constant -2 : i32
    %2188 = vector.broadcast %c-2_i32_797 : i32 to vector<1x256xi32>
    %2189 = arith.addi %1, %2188 : vector<1x256xi32>
    %c16_i32_798 = arith.constant 16 : i32
    %2190 = vector.broadcast %c16_i32_798 : i32 to vector<1x256xi32>
    %2191 = arith.cmpi slt, %2189, %2190 : vector<1x256xi32>
    %2192 = arith.andi %2187, %2191 : vector<1x256xi1>
    %2193 = arith.extui %2192 : vector<1x256xi1> to vector<1x256xi32>
    %2194 = arith.sitofp %2193 : vector<1x256xi32> to vector<1x256xf32>
    %2195 = vector.broadcast %2194 : vector<1x256xf32> to vector<32x256xf32>
    %2196 = arith.mulf %2173, %2195 : vector<32x256xf32>
    %c160_799 = arith.constant 160 : index
    %c0_800 = arith.constant 0 : index
    %2197 = vector.load %arg12[%c160_799, %c0_800] : memref<800x256xf32, #tpu.memory_space<vmem>>, vector<32x256xf32>
    tpu.vector_store %arg12[%c160_799, %c0_800], %2196 {strides = array<i32>} : memref<800x256xf32, #tpu.memory_space<vmem>>, vector<32x256xf32>,
    %2198 = vector.extract_strided_slice %2047 {offsets = [0, 111], sizes = [32, 256], strides = [1, 1]} : vector<32x512xf32> to vector<32x256xf32>
    %c-1_i32_801 = arith.constant -1 : i32
    %2199 = vector.broadcast %c-1_i32_801 : i32 to vector<1x256xi32>
    %2200 = arith.addi %0, %2199 : vector<1x256xi32>
    %c0_i32_802 = arith.constant 0 : i32
    %2201 = vector.broadcast %c0_i32_802 : i32 to vector<1x256xi32>
    %2202 = arith.cmpi sge, %2200, %2201 : vector<1x256xi32>
    %c-1_i32_803 = arith.constant -1 : i32
    %2203 = vector.broadcast %c-1_i32_803 : i32 to vector<1x256xi32>
    %2204 = arith.addi %0, %2203 : vector<1x256xi32>
    %c16_i32_804 = arith.constant 16 : i32
    %2205 = vector.broadcast %c16_i32_804 : i32 to vector<1x256xi32>
    %2206 = arith.cmpi slt, %2204, %2205 : vector<1x256xi32>
    %2207 = arith.andi %2202, %2206 : vector<1x256xi1>
    %c-1_i32_805 = arith.constant -1 : i32
    %2208 = vector.broadcast %c-1_i32_805 : i32 to vector<1x256xi32>
    %2209 = arith.addi %1, %2208 : vector<1x256xi32>
    %c0_i32_806 = arith.constant 0 : i32
    %2210 = vector.broadcast %c0_i32_806 : i32 to vector<1x256xi32>
    %2211 = arith.cmpi sge, %2209, %2210 : vector<1x256xi32>
    %2212 = arith.andi %2207, %2211 : vector<1x256xi1>
    %c-1_i32_807 = arith.constant -1 : i32
    %2213 = vector.broadcast %c-1_i32_807 : i32 to vector<1x256xi32>
    %2214 = arith.addi %1, %2213 : vector<1x256xi32>
    %c16_i32_808 = arith.constant 16 : i32
    %2215 = vector.broadcast %c16_i32_808 : i32 to vector<1x256xi32>
    %2216 = arith.cmpi slt, %2214, %2215 : vector<1x256xi32>
    %2217 = arith.andi %2212, %2216 : vector<1x256xi1>
    %2218 = arith.extui %2217 : vector<1x256xi1> to vector<1x256xi32>
    %2219 = arith.sitofp %2218 : vector<1x256xi32> to vector<1x256xf32>
    %2220 = vector.broadcast %2219 : vector<1x256xf32> to vector<32x256xf32>
    %2221 = arith.mulf %2198, %2220 : vector<32x256xf32>
    %c192 = arith.constant 192 : index
    %c0_809 = arith.constant 0 : index
    %2222 = vector.load %arg12[%c192, %c0_809] : memref<800x256xf32, #tpu.memory_space<vmem>>, vector<32x256xf32>
    tpu.vector_store %arg12[%c192, %c0_809], %2221 {strides = array<i32>} : memref<800x256xf32, #tpu.memory_space<vmem>>, vector<32x256xf32>,
    %2223 = vector.extract_strided_slice %2047 {offsets = [0, 112], sizes = [32, 256], strides = [1, 1]} : vector<32x512xf32> to vector<32x256xf32>
    %c-1_i32_810 = arith.constant -1 : i32
    %2224 = vector.broadcast %c-1_i32_810 : i32 to vector<1x256xi32>
    %2225 = arith.addi %0, %2224 : vector<1x256xi32>
    %c0_i32_811 = arith.constant 0 : i32
    %2226 = vector.broadcast %c0_i32_811 : i32 to vector<1x256xi32>
    %2227 = arith.cmpi sge, %2225, %2226 : vector<1x256xi32>
    %c-1_i32_812 = arith.constant -1 : i32
    %2228 = vector.broadcast %c-1_i32_812 : i32 to vector<1x256xi32>
    %2229 = arith.addi %0, %2228 : vector<1x256xi32>
    %c16_i32_813 = arith.constant 16 : i32
    %2230 = vector.broadcast %c16_i32_813 : i32 to vector<1x256xi32>
    %2231 = arith.cmpi slt, %2229, %2230 : vector<1x256xi32>
    %2232 = arith.andi %2227, %2231 : vector<1x256xi1>
    %c0_i32_814 = arith.constant 0 : i32
    %2233 = vector.broadcast %c0_i32_814 : i32 to vector<1x256xi32>
    %2234 = arith.addi %1, %2233 : vector<1x256xi32>
    %c0_i32_815 = arith.constant 0 : i32
    %2235 = vector.broadcast %c0_i32_815 : i32 to vector<1x256xi32>
    %2236 = arith.cmpi sge, %2234, %2235 : vector<1x256xi32>
    %2237 = arith.andi %2232, %2236 : vector<1x256xi1>
    %c0_i32_816 = arith.constant 0 : i32
    %2238 = vector.broadcast %c0_i32_816 : i32 to vector<1x256xi32>
    %2239 = arith.addi %1, %2238 : vector<1x256xi32>
    %c16_i32_817 = arith.constant 16 : i32
    %2240 = vector.broadcast %c16_i32_817 : i32 to vector<1x256xi32>
    %2241 = arith.cmpi slt, %2239, %2240 : vector<1x256xi32>
    %2242 = arith.andi %2237, %2241 : vector<1x256xi1>
    %2243 = arith.extui %2242 : vector<1x256xi1> to vector<1x256xi32>
    %2244 = arith.sitofp %2243 : vector<1x256xi32> to vector<1x256xf32>
    %2245 = vector.broadcast %2244 : vector<1x256xf32> to vector<32x256xf32>
    %2246 = arith.mulf %2223, %2245 : vector<32x256xf32>
    %c224 = arith.constant 224 : index
    %c0_818 = arith.constant 0 : index
    %2247 = vector.load %arg12[%c224, %c0_818] : memref<800x256xf32, #tpu.memory_space<vmem>>, vector<32x256xf32>
    tpu.vector_store %arg12[%c224, %c0_818], %2246 {strides = array<i32>} : memref<800x256xf32, #tpu.memory_space<vmem>>, vector<32x256xf32>,
    %2248 = vector.extract_strided_slice %2047 {offsets = [0, 113], sizes = [32, 256], strides = [1, 1]} : vector<32x512xf32> to vector<32x256xf32>
    %c-1_i32_819 = arith.constant -1 : i32
    %2249 = vector.broadcast %c-1_i32_819 : i32 to vector<1x256xi32>
    %2250 = arith.addi %0, %2249 : vector<1x256xi32>
    %c0_i32_820 = arith.constant 0 : i32
    %2251 = vector.broadcast %c0_i32_820 : i32 to vector<1x256xi32>
    %2252 = arith.cmpi sge, %2250, %2251 : vector<1x256xi32>
    %c-1_i32_821 = arith.constant -1 : i32
    %2253 = vector.broadcast %c-1_i32_821 : i32 to vector<1x256xi32>
    %2254 = arith.addi %0, %2253 : vector<1x256xi32>
    %c16_i32_822 = arith.constant 16 : i32
    %2255 = vector.broadcast %c16_i32_822 : i32 to vector<1x256xi32>
    %2256 = arith.cmpi slt, %2254, %2255 : vector<1x256xi32>
    %2257 = arith.andi %2252, %2256 : vector<1x256xi1>
    %c1_i32_823 = arith.constant 1 : i32
    %2258 = vector.broadcast %c1_i32_823 : i32 to vector<1x256xi32>
    %2259 = arith.addi %1, %2258 : vector<1x256xi32>
    %c0_i32_824 = arith.constant 0 : i32
    %2260 = vector.broadcast %c0_i32_824 : i32 to vector<1x256xi32>
    %2261 = arith.cmpi sge, %2259, %2260 : vector<1x256xi32>
    %2262 = arith.andi %2257, %2261 : vector<1x256xi1>
    %c1_i32_825 = arith.constant 1 : i32
    %2263 = vector.broadcast %c1_i32_825 : i32 to vector<1x256xi32>
    %2264 = arith.addi %1, %2263 : vector<1x256xi32>
    %c16_i32_826 = arith.constant 16 : i32
    %2265 = vector.broadcast %c16_i32_826 : i32 to vector<1x256xi32>
    %2266 = arith.cmpi slt, %2264, %2265 : vector<1x256xi32>
    %2267 = arith.andi %2262, %2266 : vector<1x256xi1>
    %2268 = arith.extui %2267 : vector<1x256xi1> to vector<1x256xi32>
    %2269 = arith.sitofp %2268 : vector<1x256xi32> to vector<1x256xf32>
    %2270 = vector.broadcast %2269 : vector<1x256xf32> to vector<32x256xf32>
    %2271 = arith.mulf %2248, %2270 : vector<32x256xf32>
    %c256 = arith.constant 256 : index
    %c0_827 = arith.constant 0 : index
    %2272 = vector.load %arg12[%c256, %c0_827] : memref<800x256xf32, #tpu.memory_space<vmem>>, vector<32x256xf32>
    tpu.vector_store %arg12[%c256, %c0_827], %2271 {strides = array<i32>} : memref<800x256xf32, #tpu.memory_space<vmem>>, vector<32x256xf32>,
    %2273 = vector.extract_strided_slice %2047 {offsets = [0, 114], sizes = [32, 256], strides = [1, 1]} : vector<32x512xf32> to vector<32x256xf32>
    %c-1_i32_828 = arith.constant -1 : i32
    %2274 = vector.broadcast %c-1_i32_828 : i32 to vector<1x256xi32>
    %2275 = arith.addi %0, %2274 : vector<1x256xi32>
    %c0_i32_829 = arith.constant 0 : i32
    %2276 = vector.broadcast %c0_i32_829 : i32 to vector<1x256xi32>
    %2277 = arith.cmpi sge, %2275, %2276 : vector<1x256xi32>
    %c-1_i32_830 = arith.constant -1 : i32
    %2278 = vector.broadcast %c-1_i32_830 : i32 to vector<1x256xi32>
    %2279 = arith.addi %0, %2278 : vector<1x256xi32>
    %c16_i32_831 = arith.constant 16 : i32
    %2280 = vector.broadcast %c16_i32_831 : i32 to vector<1x256xi32>
    %2281 = arith.cmpi slt, %2279, %2280 : vector<1x256xi32>
    %2282 = arith.andi %2277, %2281 : vector<1x256xi1>
    %c2_i32_832 = arith.constant 2 : i32
    %2283 = vector.broadcast %c2_i32_832 : i32 to vector<1x256xi32>
    %2284 = arith.addi %1, %2283 : vector<1x256xi32>
    %c0_i32_833 = arith.constant 0 : i32
    %2285 = vector.broadcast %c0_i32_833 : i32 to vector<1x256xi32>
    %2286 = arith.cmpi sge, %2284, %2285 : vector<1x256xi32>
    %2287 = arith.andi %2282, %2286 : vector<1x256xi1>
    %c2_i32_834 = arith.constant 2 : i32
    %2288 = vector.broadcast %c2_i32_834 : i32 to vector<1x256xi32>
    %2289 = arith.addi %1, %2288 : vector<1x256xi32>
    %c16_i32_835 = arith.constant 16 : i32
    %2290 = vector.broadcast %c16_i32_835 : i32 to vector<1x256xi32>
    %2291 = arith.cmpi slt, %2289, %2290 : vector<1x256xi32>
    %2292 = arith.andi %2287, %2291 : vector<1x256xi1>
    %2293 = arith.extui %2292 : vector<1x256xi1> to vector<1x256xi32>
    %2294 = arith.sitofp %2293 : vector<1x256xi32> to vector<1x256xf32>
    %2295 = vector.broadcast %2294 : vector<1x256xf32> to vector<32x256xf32>
    %2296 = arith.mulf %2273, %2295 : vector<32x256xf32>
    %c288 = arith.constant 288 : index
    %c0_836 = arith.constant 0 : index
    %2297 = vector.load %arg12[%c288, %c0_836] : memref<800x256xf32, #tpu.memory_space<vmem>>, vector<32x256xf32>
    tpu.vector_store %arg12[%c288, %c0_836], %2296 {strides = array<i32>} : memref<800x256xf32, #tpu.memory_space<vmem>>, vector<32x256xf32>,
    %2298 = vector.extract_strided_slice %2047 {offsets = [0, 126], sizes = [32, 256], strides = [1, 1]} : vector<32x512xf32> to vector<32x256xf32>
    %c0_i32_837 = arith.constant 0 : i32
    %2299 = vector.broadcast %c0_i32_837 : i32 to vector<1x256xi32>
    %2300 = arith.addi %0, %2299 : vector<1x256xi32>
    %c0_i32_838 = arith.constant 0 : i32
    %2301 = vector.broadcast %c0_i32_838 : i32 to vector<1x256xi32>
    %2302 = arith.cmpi sge, %2300, %2301 : vector<1x256xi32>
    %c0_i32_839 = arith.constant 0 : i32
    %2303 = vector.broadcast %c0_i32_839 : i32 to vector<1x256xi32>
    %2304 = arith.addi %0, %2303 : vector<1x256xi32>
    %c16_i32_840 = arith.constant 16 : i32
    %2305 = vector.broadcast %c16_i32_840 : i32 to vector<1x256xi32>
    %2306 = arith.cmpi slt, %2304, %2305 : vector<1x256xi32>
    %2307 = arith.andi %2302, %2306 : vector<1x256xi1>
    %c-2_i32_841 = arith.constant -2 : i32
    %2308 = vector.broadcast %c-2_i32_841 : i32 to vector<1x256xi32>
    %2309 = arith.addi %1, %2308 : vector<1x256xi32>
    %c0_i32_842 = arith.constant 0 : i32
    %2310 = vector.broadcast %c0_i32_842 : i32 to vector<1x256xi32>
    %2311 = arith.cmpi sge, %2309, %2310 : vector<1x256xi32>
    %2312 = arith.andi %2307, %2311 : vector<1x256xi1>
    %c-2_i32_843 = arith.constant -2 : i32
    %2313 = vector.broadcast %c-2_i32_843 : i32 to vector<1x256xi32>
    %2314 = arith.addi %1, %2313 : vector<1x256xi32>
    %c16_i32_844 = arith.constant 16 : i32
    %2315 = vector.broadcast %c16_i32_844 : i32 to vector<1x256xi32>
    %2316 = arith.cmpi slt, %2314, %2315 : vector<1x256xi32>
    %2317 = arith.andi %2312, %2316 : vector<1x256xi1>
    %2318 = arith.extui %2317 : vector<1x256xi1> to vector<1x256xi32>
    %2319 = arith.sitofp %2318 : vector<1x256xi32> to vector<1x256xf32>
    %2320 = vector.broadcast %2319 : vector<1x256xf32> to vector<32x256xf32>
    %2321 = arith.mulf %2298, %2320 : vector<32x256xf32>
    %c320 = arith.constant 320 : index
    %c0_845 = arith.constant 0 : index
    %2322 = vector.load %arg12[%c320, %c0_845] : memref<800x256xf32, #tpu.memory_space<vmem>>, vector<32x256xf32>
    tpu.vector_store %arg12[%c320, %c0_845], %2321 {strides = array<i32>} : memref<800x256xf32, #tpu.memory_space<vmem>>, vector<32x256xf32>,
    %2323 = vector.extract_strided_slice %2047 {offsets = [0, 127], sizes = [32, 256], strides = [1, 1]} : vector<32x512xf32> to vector<32x256xf32>
    %c0_i32_846 = arith.constant 0 : i32
    %2324 = vector.broadcast %c0_i32_846 : i32 to vector<1x256xi32>
    %2325 = arith.addi %0, %2324 : vector<1x256xi32>
    %c0_i32_847 = arith.constant 0 : i32
    %2326 = vector.broadcast %c0_i32_847 : i32 to vector<1x256xi32>
    %2327 = arith.cmpi sge, %2325, %2326 : vector<1x256xi32>
    %c0_i32_848 = arith.constant 0 : i32
    %2328 = vector.broadcast %c0_i32_848 : i32 to vector<1x256xi32>
    %2329 = arith.addi %0, %2328 : vector<1x256xi32>
    %c16_i32_849 = arith.constant 16 : i32
    %2330 = vector.broadcast %c16_i32_849 : i32 to vector<1x256xi32>
    %2331 = arith.cmpi slt, %2329, %2330 : vector<1x256xi32>
    %2332 = arith.andi %2327, %2331 : vector<1x256xi1>
    %c-1_i32_850 = arith.constant -1 : i32
    %2333 = vector.broadcast %c-1_i32_850 : i32 to vector<1x256xi32>
    %2334 = arith.addi %1, %2333 : vector<1x256xi32>
    %c0_i32_851 = arith.constant 0 : i32
    %2335 = vector.broadcast %c0_i32_851 : i32 to vector<1x256xi32>
    %2336 = arith.cmpi sge, %2334, %2335 : vector<1x256xi32>
    %2337 = arith.andi %2332, %2336 : vector<1x256xi1>
    %c-1_i32_852 = arith.constant -1 : i32
    %2338 = vector.broadcast %c-1_i32_852 : i32 to vector<1x256xi32>
    %2339 = arith.addi %1, %2338 : vector<1x256xi32>
    %c16_i32_853 = arith.constant 16 : i32
    %2340 = vector.broadcast %c16_i32_853 : i32 to vector<1x256xi32>
    %2341 = arith.cmpi slt, %2339, %2340 : vector<1x256xi32>
    %2342 = arith.andi %2337, %2341 : vector<1x256xi1>
    %2343 = arith.extui %2342 : vector<1x256xi1> to vector<1x256xi32>
    %2344 = arith.sitofp %2343 : vector<1x256xi32> to vector<1x256xf32>
    %2345 = vector.broadcast %2344 : vector<1x256xf32> to vector<32x256xf32>
    %2346 = arith.mulf %2323, %2345 : vector<32x256xf32>
    %c352 = arith.constant 352 : index
    %c0_854 = arith.constant 0 : index
    %2347 = vector.load %arg12[%c352, %c0_854] : memref<800x256xf32, #tpu.memory_space<vmem>>, vector<32x256xf32>
    tpu.vector_store %arg12[%c352, %c0_854], %2346 {strides = array<i32>} : memref<800x256xf32, #tpu.memory_space<vmem>>, vector<32x256xf32>,
    %2348 = vector.extract_strided_slice %2047 {offsets = [0, 128], sizes = [32, 256], strides = [1, 1]} : vector<32x512xf32> to vector<32x256xf32>
    %c0_i32_855 = arith.constant 0 : i32
    %2349 = vector.broadcast %c0_i32_855 : i32 to vector<1x256xi32>
    %2350 = arith.addi %0, %2349 : vector<1x256xi32>
    %c0_i32_856 = arith.constant 0 : i32
    %2351 = vector.broadcast %c0_i32_856 : i32 to vector<1x256xi32>
    %2352 = arith.cmpi sge, %2350, %2351 : vector<1x256xi32>
    %c0_i32_857 = arith.constant 0 : i32
    %2353 = vector.broadcast %c0_i32_857 : i32 to vector<1x256xi32>
    %2354 = arith.addi %0, %2353 : vector<1x256xi32>
    %c16_i32_858 = arith.constant 16 : i32
    %2355 = vector.broadcast %c16_i32_858 : i32 to vector<1x256xi32>
    %2356 = arith.cmpi slt, %2354, %2355 : vector<1x256xi32>
    %2357 = arith.andi %2352, %2356 : vector<1x256xi1>
    %c0_i32_859 = arith.constant 0 : i32
    %2358 = vector.broadcast %c0_i32_859 : i32 to vector<1x256xi32>
    %2359 = arith.addi %1, %2358 : vector<1x256xi32>
    %c0_i32_860 = arith.constant 0 : i32
    %2360 = vector.broadcast %c0_i32_860 : i32 to vector<1x256xi32>
    %2361 = arith.cmpi sge, %2359, %2360 : vector<1x256xi32>
    %2362 = arith.andi %2357, %2361 : vector<1x256xi1>
    %c0_i32_861 = arith.constant 0 : i32
    %2363 = vector.broadcast %c0_i32_861 : i32 to vector<1x256xi32>
    %2364 = arith.addi %1, %2363 : vector<1x256xi32>
    %c16_i32_862 = arith.constant 16 : i32
    %2365 = vector.broadcast %c16_i32_862 : i32 to vector<1x256xi32>
    %2366 = arith.cmpi slt, %2364, %2365 : vector<1x256xi32>
    %2367 = arith.andi %2362, %2366 : vector<1x256xi1>
    %2368 = arith.extui %2367 : vector<1x256xi1> to vector<1x256xi32>
    %2369 = arith.sitofp %2368 : vector<1x256xi32> to vector<1x256xf32>
    %2370 = vector.broadcast %2369 : vector<1x256xf32> to vector<32x256xf32>
    %2371 = arith.mulf %2348, %2370 : vector<32x256xf32>
    %c384 = arith.constant 384 : index
    %c0_863 = arith.constant 0 : index
    %2372 = vector.load %arg12[%c384, %c0_863] : memref<800x256xf32, #tpu.memory_space<vmem>>, vector<32x256xf32>
    tpu.vector_store %arg12[%c384, %c0_863], %2371 {strides = array<i32>} : memref<800x256xf32, #tpu.memory_space<vmem>>, vector<32x256xf32>,
    %2373 = vector.extract_strided_slice %2047 {offsets = [0, 129], sizes = [32, 256], strides = [1, 1]} : vector<32x512xf32> to vector<32x256xf32>
    %c0_i32_864 = arith.constant 0 : i32
    %2374 = vector.broadcast %c0_i32_864 : i32 to vector<1x256xi32>
    %2375 = arith.addi %0, %2374 : vector<1x256xi32>
    %c0_i32_865 = arith.constant 0 : i32
    %2376 = vector.broadcast %c0_i32_865 : i32 to vector<1x256xi32>
    %2377 = arith.cmpi sge, %2375, %2376 : vector<1x256xi32>
    %c0_i32_866 = arith.constant 0 : i32
    %2378 = vector.broadcast %c0_i32_866 : i32 to vector<1x256xi32>
    %2379 = arith.addi %0, %2378 : vector<1x256xi32>
    %c16_i32_867 = arith.constant 16 : i32
    %2380 = vector.broadcast %c16_i32_867 : i32 to vector<1x256xi32>
    %2381 = arith.cmpi slt, %2379, %2380 : vector<1x256xi32>
    %2382 = arith.andi %2377, %2381 : vector<1x256xi1>
    %c1_i32_868 = arith.constant 1 : i32
    %2383 = vector.broadcast %c1_i32_868 : i32 to vector<1x256xi32>
    %2384 = arith.addi %1, %2383 : vector<1x256xi32>
    %c0_i32_869 = arith.constant 0 : i32
    %2385 = vector.broadcast %c0_i32_869 : i32 to vector<1x256xi32>
    %2386 = arith.cmpi sge, %2384, %2385 : vector<1x256xi32>
    %2387 = arith.andi %2382, %2386 : vector<1x256xi1>
    %c1_i32_870 = arith.constant 1 : i32
    %2388 = vector.broadcast %c1_i32_870 : i32 to vector<1x256xi32>
    %2389 = arith.addi %1, %2388 : vector<1x256xi32>
    %c16_i32_871 = arith.constant 16 : i32
    %2390 = vector.broadcast %c16_i32_871 : i32 to vector<1x256xi32>
    %2391 = arith.cmpi slt, %2389, %2390 : vector<1x256xi32>
    %2392 = arith.andi %2387, %2391 : vector<1x256xi1>
    %2393 = arith.extui %2392 : vector<1x256xi1> to vector<1x256xi32>
    %2394 = arith.sitofp %2393 : vector<1x256xi32> to vector<1x256xf32>
    %2395 = vector.broadcast %2394 : vector<1x256xf32> to vector<32x256xf32>
    %2396 = arith.mulf %2373, %2395 : vector<32x256xf32>
    %c416 = arith.constant 416 : index
    %c0_872 = arith.constant 0 : index
    %2397 = vector.load %arg12[%c416, %c0_872] : memref<800x256xf32, #tpu.memory_space<vmem>>, vector<32x256xf32>
    tpu.vector_store %arg12[%c416, %c0_872], %2396 {strides = array<i32>} : memref<800x256xf32, #tpu.memory_space<vmem>>, vector<32x256xf32>,
    %2398 = vector.extract_strided_slice %2047 {offsets = [0, 130], sizes = [32, 256], strides = [1, 1]} : vector<32x512xf32> to vector<32x256xf32>
    %c0_i32_873 = arith.constant 0 : i32
    %2399 = vector.broadcast %c0_i32_873 : i32 to vector<1x256xi32>
    %2400 = arith.addi %0, %2399 : vector<1x256xi32>
    %c0_i32_874 = arith.constant 0 : i32
    %2401 = vector.broadcast %c0_i32_874 : i32 to vector<1x256xi32>
    %2402 = arith.cmpi sge, %2400, %2401 : vector<1x256xi32>
    %c0_i32_875 = arith.constant 0 : i32
    %2403 = vector.broadcast %c0_i32_875 : i32 to vector<1x256xi32>
    %2404 = arith.addi %0, %2403 : vector<1x256xi32>
    %c16_i32_876 = arith.constant 16 : i32
    %2405 = vector.broadcast %c16_i32_876 : i32 to vector<1x256xi32>
    %2406 = arith.cmpi slt, %2404, %2405 : vector<1x256xi32>
    %2407 = arith.andi %2402, %2406 : vector<1x256xi1>
    %c2_i32_877 = arith.constant 2 : i32
    %2408 = vector.broadcast %c2_i32_877 : i32 to vector<1x256xi32>
    %2409 = arith.addi %1, %2408 : vector<1x256xi32>
    %c0_i32_878 = arith.constant 0 : i32
    %2410 = vector.broadcast %c0_i32_878 : i32 to vector<1x256xi32>
    %2411 = arith.cmpi sge, %2409, %2410 : vector<1x256xi32>
    %2412 = arith.andi %2407, %2411 : vector<1x256xi1>
    %c2_i32_879 = arith.constant 2 : i32
    %2413 = vector.broadcast %c2_i32_879 : i32 to vector<1x256xi32>
    %2414 = arith.addi %1, %2413 : vector<1x256xi32>
    %c16_i32_880 = arith.constant 16 : i32
    %2415 = vector.broadcast %c16_i32_880 : i32 to vector<1x256xi32>
    %2416 = arith.cmpi slt, %2414, %2415 : vector<1x256xi32>
    %2417 = arith.andi %2412, %2416 : vector<1x256xi1>
    %2418 = arith.extui %2417 : vector<1x256xi1> to vector<1x256xi32>
    %2419 = arith.sitofp %2418 : vector<1x256xi32> to vector<1x256xf32>
    %2420 = vector.broadcast %2419 : vector<1x256xf32> to vector<32x256xf32>
    %2421 = arith.mulf %2398, %2420 : vector<32x256xf32>
    %c448 = arith.constant 448 : index
    %c0_881 = arith.constant 0 : index
    %2422 = vector.load %arg12[%c448, %c0_881] : memref<800x256xf32, #tpu.memory_space<vmem>>, vector<32x256xf32>
    tpu.vector_store %arg12[%c448, %c0_881], %2421 {strides = array<i32>} : memref<800x256xf32, #tpu.memory_space<vmem>>, vector<32x256xf32>,
    %2423 = vector.extract_strided_slice %2047 {offsets = [0, 142], sizes = [32, 256], strides = [1, 1]} : vector<32x512xf32> to vector<32x256xf32>
    %c1_i32_882 = arith.constant 1 : i32
    %2424 = vector.broadcast %c1_i32_882 : i32 to vector<1x256xi32>
    %2425 = arith.addi %0, %2424 : vector<1x256xi32>
    %c0_i32_883 = arith.constant 0 : i32
    %2426 = vector.broadcast %c0_i32_883 : i32 to vector<1x256xi32>
    %2427 = arith.cmpi sge, %2425, %2426 : vector<1x256xi32>
    %c1_i32_884 = arith.constant 1 : i32
    %2428 = vector.broadcast %c1_i32_884 : i32 to vector<1x256xi32>
    %2429 = arith.addi %0, %2428 : vector<1x256xi32>
    %c16_i32_885 = arith.constant 16 : i32
    %2430 = vector.broadcast %c16_i32_885 : i32 to vector<1x256xi32>
    %2431 = arith.cmpi slt, %2429, %2430 : vector<1x256xi32>
    %2432 = arith.andi %2427, %2431 : vector<1x256xi1>
    %c-2_i32_886 = arith.constant -2 : i32
    %2433 = vector.broadcast %c-2_i32_886 : i32 to vector<1x256xi32>
    %2434 = arith.addi %1, %2433 : vector<1x256xi32>
    %c0_i32_887 = arith.constant 0 : i32
    %2435 = vector.broadcast %c0_i32_887 : i32 to vector<1x256xi32>
    %2436 = arith.cmpi sge, %2434, %2435 : vector<1x256xi32>
    %2437 = arith.andi %2432, %2436 : vector<1x256xi1>
    %c-2_i32_888 = arith.constant -2 : i32
    %2438 = vector.broadcast %c-2_i32_888 : i32 to vector<1x256xi32>
    %2439 = arith.addi %1, %2438 : vector<1x256xi32>
    %c16_i32_889 = arith.constant 16 : i32
    %2440 = vector.broadcast %c16_i32_889 : i32 to vector<1x256xi32>
    %2441 = arith.cmpi slt, %2439, %2440 : vector<1x256xi32>
    %2442 = arith.andi %2437, %2441 : vector<1x256xi1>
    %2443 = arith.extui %2442 : vector<1x256xi1> to vector<1x256xi32>
    %2444 = arith.sitofp %2443 : vector<1x256xi32> to vector<1x256xf32>
    %2445 = vector.broadcast %2444 : vector<1x256xf32> to vector<32x256xf32>
    %2446 = arith.mulf %2423, %2445 : vector<32x256xf32>
    %c480 = arith.constant 480 : index
    %c0_890 = arith.constant 0 : index
    %2447 = vector.load %arg12[%c480, %c0_890] : memref<800x256xf32, #tpu.memory_space<vmem>>, vector<32x256xf32>
    tpu.vector_store %arg12[%c480, %c0_890], %2446 {strides = array<i32>} : memref<800x256xf32, #tpu.memory_space<vmem>>, vector<32x256xf32>,
    %2448 = vector.extract_strided_slice %2047 {offsets = [0, 143], sizes = [32, 256], strides = [1, 1]} : vector<32x512xf32> to vector<32x256xf32>
    %c1_i32_891 = arith.constant 1 : i32
    %2449 = vector.broadcast %c1_i32_891 : i32 to vector<1x256xi32>
    %2450 = arith.addi %0, %2449 : vector<1x256xi32>
    %c0_i32_892 = arith.constant 0 : i32
    %2451 = vector.broadcast %c0_i32_892 : i32 to vector<1x256xi32>
    %2452 = arith.cmpi sge, %2450, %2451 : vector<1x256xi32>
    %c1_i32_893 = arith.constant 1 : i32
    %2453 = vector.broadcast %c1_i32_893 : i32 to vector<1x256xi32>
    %2454 = arith.addi %0, %2453 : vector<1x256xi32>
    %c16_i32_894 = arith.constant 16 : i32
    %2455 = vector.broadcast %c16_i32_894 : i32 to vector<1x256xi32>
    %2456 = arith.cmpi slt, %2454, %2455 : vector<1x256xi32>
    %2457 = arith.andi %2452, %2456 : vector<1x256xi1>
    %c-1_i32_895 = arith.constant -1 : i32
    %2458 = vector.broadcast %c-1_i32_895 : i32 to vector<1x256xi32>
    %2459 = arith.addi %1, %2458 : vector<1x256xi32>
    %c0_i32_896 = arith.constant 0 : i32
    %2460 = vector.broadcast %c0_i32_896 : i32 to vector<1x256xi32>
    %2461 = arith.cmpi sge, %2459, %2460 : vector<1x256xi32>
    %2462 = arith.andi %2457, %2461 : vector<1x256xi1>
    %c-1_i32_897 = arith.constant -1 : i32
    %2463 = vector.broadcast %c-1_i32_897 : i32 to vector<1x256xi32>
    %2464 = arith.addi %1, %2463 : vector<1x256xi32>
    %c16_i32_898 = arith.constant 16 : i32
    %2465 = vector.broadcast %c16_i32_898 : i32 to vector<1x256xi32>
    %2466 = arith.cmpi slt, %2464, %2465 : vector<1x256xi32>
    %2467 = arith.andi %2462, %2466 : vector<1x256xi1>
    %2468 = arith.extui %2467 : vector<1x256xi1> to vector<1x256xi32>
    %2469 = arith.sitofp %2468 : vector<1x256xi32> to vector<1x256xf32>
    %2470 = vector.broadcast %2469 : vector<1x256xf32> to vector<32x256xf32>
    %2471 = arith.mulf %2448, %2470 : vector<32x256xf32>
    %c512 = arith.constant 512 : index
    %c0_899 = arith.constant 0 : index
    %2472 = vector.load %arg12[%c512, %c0_899] : memref<800x256xf32, #tpu.memory_space<vmem>>, vector<32x256xf32>
    tpu.vector_store %arg12[%c512, %c0_899], %2471 {strides = array<i32>} : memref<800x256xf32, #tpu.memory_space<vmem>>, vector<32x256xf32>,
    %2473 = vector.extract_strided_slice %2047 {offsets = [0, 144], sizes = [32, 256], strides = [1, 1]} : vector<32x512xf32> to vector<32x256xf32>
    %c1_i32_900 = arith.constant 1 : i32
    %2474 = vector.broadcast %c1_i32_900 : i32 to vector<1x256xi32>
    %2475 = arith.addi %0, %2474 : vector<1x256xi32>
    %c0_i32_901 = arith.constant 0 : i32
    %2476 = vector.broadcast %c0_i32_901 : i32 to vector<1x256xi32>
    %2477 = arith.cmpi sge, %2475, %2476 : vector<1x256xi32>
    %c1_i32_902 = arith.constant 1 : i32
    %2478 = vector.broadcast %c1_i32_902 : i32 to vector<1x256xi32>
    %2479 = arith.addi %0, %2478 : vector<1x256xi32>
    %c16_i32_903 = arith.constant 16 : i32
    %2480 = vector.broadcast %c16_i32_903 : i32 to vector<1x256xi32>
    %2481 = arith.cmpi slt, %2479, %2480 : vector<1x256xi32>
    %2482 = arith.andi %2477, %2481 : vector<1x256xi1>
    %c0_i32_904 = arith.constant 0 : i32
    %2483 = vector.broadcast %c0_i32_904 : i32 to vector<1x256xi32>
    %2484 = arith.addi %1, %2483 : vector<1x256xi32>
    %c0_i32_905 = arith.constant 0 : i32
    %2485 = vector.broadcast %c0_i32_905 : i32 to vector<1x256xi32>
    %2486 = arith.cmpi sge, %2484, %2485 : vector<1x256xi32>
    %2487 = arith.andi %2482, %2486 : vector<1x256xi1>
    %c0_i32_906 = arith.constant 0 : i32
    %2488 = vector.broadcast %c0_i32_906 : i32 to vector<1x256xi32>
    %2489 = arith.addi %1, %2488 : vector<1x256xi32>
    %c16_i32_907 = arith.constant 16 : i32
    %2490 = vector.broadcast %c16_i32_907 : i32 to vector<1x256xi32>
    %2491 = arith.cmpi slt, %2489, %2490 : vector<1x256xi32>
    %2492 = arith.andi %2487, %2491 : vector<1x256xi1>
    %2493 = arith.extui %2492 : vector<1x256xi1> to vector<1x256xi32>
    %2494 = arith.sitofp %2493 : vector<1x256xi32> to vector<1x256xf32>
    %2495 = vector.broadcast %2494 : vector<1x256xf32> to vector<32x256xf32>
    %2496 = arith.mulf %2473, %2495 : vector<32x256xf32>
    %c544 = arith.constant 544 : index
    %c0_908 = arith.constant 0 : index
    %2497 = vector.load %arg12[%c544, %c0_908] : memref<800x256xf32, #tpu.memory_space<vmem>>, vector<32x256xf32>
    tpu.vector_store %arg12[%c544, %c0_908], %2496 {strides = array<i32>} : memref<800x256xf32, #tpu.memory_space<vmem>>, vector<32x256xf32>,
    %2498 = vector.extract_strided_slice %2047 {offsets = [0, 145], sizes = [32, 256], strides = [1, 1]} : vector<32x512xf32> to vector<32x256xf32>
    %c1_i32_909 = arith.constant 1 : i32
    %2499 = vector.broadcast %c1_i32_909 : i32 to vector<1x256xi32>
    %2500 = arith.addi %0, %2499 : vector<1x256xi32>
    %c0_i32_910 = arith.constant 0 : i32
    %2501 = vector.broadcast %c0_i32_910 : i32 to vector<1x256xi32>
    %2502 = arith.cmpi sge, %2500, %2501 : vector<1x256xi32>
    %c1_i32_911 = arith.constant 1 : i32
    %2503 = vector.broadcast %c1_i32_911 : i32 to vector<1x256xi32>
    %2504 = arith.addi %0, %2503 : vector<1x256xi32>
    %c16_i32_912 = arith.constant 16 : i32
    %2505 = vector.broadcast %c16_i32_912 : i32 to vector<1x256xi32>
    %2506 = arith.cmpi slt, %2504, %2505 : vector<1x256xi32>
    %2507 = arith.andi %2502, %2506 : vector<1x256xi1>
    %c1_i32_913 = arith.constant 1 : i32
    %2508 = vector.broadcast %c1_i32_913 : i32 to vector<1x256xi32>
    %2509 = arith.addi %1, %2508 : vector<1x256xi32>
    %c0_i32_914 = arith.constant 0 : i32
    %2510 = vector.broadcast %c0_i32_914 : i32 to vector<1x256xi32>
    %2511 = arith.cmpi sge, %2509, %2510 : vector<1x256xi32>
    %2512 = arith.andi %2507, %2511 : vector<1x256xi1>
    %c1_i32_915 = arith.constant 1 : i32
    %2513 = vector.broadcast %c1_i32_915 : i32 to vector<1x256xi32>
    %2514 = arith.addi %1, %2513 : vector<1x256xi32>
    %c16_i32_916 = arith.constant 16 : i32
    %2515 = vector.broadcast %c16_i32_916 : i32 to vector<1x256xi32>
    %2516 = arith.cmpi slt, %2514, %2515 : vector<1x256xi32>
    %2517 = arith.andi %2512, %2516 : vector<1x256xi1>
    %2518 = arith.extui %2517 : vector<1x256xi1> to vector<1x256xi32>
    %2519 = arith.sitofp %2518 : vector<1x256xi32> to vector<1x256xf32>
    %2520 = vector.broadcast %2519 : vector<1x256xf32> to vector<32x256xf32>
    %2521 = arith.mulf %2498, %2520 : vector<32x256xf32>
    %c576 = arith.constant 576 : index
    %c0_917 = arith.constant 0 : index
    %2522 = vector.load %arg12[%c576, %c0_917] : memref<800x256xf32, #tpu.memory_space<vmem>>, vector<32x256xf32>
    tpu.vector_store %arg12[%c576, %c0_917], %2521 {strides = array<i32>} : memref<800x256xf32, #tpu.memory_space<vmem>>, vector<32x256xf32>,
    %2523 = vector.extract_strided_slice %2047 {offsets = [0, 146], sizes = [32, 256], strides = [1, 1]} : vector<32x512xf32> to vector<32x256xf32>
    %c1_i32_918 = arith.constant 1 : i32
    %2524 = vector.broadcast %c1_i32_918 : i32 to vector<1x256xi32>
    %2525 = arith.addi %0, %2524 : vector<1x256xi32>
    %c0_i32_919 = arith.constant 0 : i32
    %2526 = vector.broadcast %c0_i32_919 : i32 to vector<1x256xi32>
    %2527 = arith.cmpi sge, %2525, %2526 : vector<1x256xi32>
    %c1_i32_920 = arith.constant 1 : i32
    %2528 = vector.broadcast %c1_i32_920 : i32 to vector<1x256xi32>
    %2529 = arith.addi %0, %2528 : vector<1x256xi32>
    %c16_i32_921 = arith.constant 16 : i32
    %2530 = vector.broadcast %c16_i32_921 : i32 to vector<1x256xi32>
    %2531 = arith.cmpi slt, %2529, %2530 : vector<1x256xi32>
    %2532 = arith.andi %2527, %2531 : vector<1x256xi1>
    %c2_i32_922 = arith.constant 2 : i32
    %2533 = vector.broadcast %c2_i32_922 : i32 to vector<1x256xi32>
    %2534 = arith.addi %1, %2533 : vector<1x256xi32>
    %c0_i32_923 = arith.constant 0 : i32
    %2535 = vector.broadcast %c0_i32_923 : i32 to vector<1x256xi32>
    %2536 = arith.cmpi sge, %2534, %2535 : vector<1x256xi32>
    %2537 = arith.andi %2532, %2536 : vector<1x256xi1>
    %c2_i32_924 = arith.constant 2 : i32
    %2538 = vector.broadcast %c2_i32_924 : i32 to vector<1x256xi32>
    %2539 = arith.addi %1, %2538 : vector<1x256xi32>
    %c16_i32_925 = arith.constant 16 : i32
    %2540 = vector.broadcast %c16_i32_925 : i32 to vector<1x256xi32>
    %2541 = arith.cmpi slt, %2539, %2540 : vector<1x256xi32>
    %2542 = arith.andi %2537, %2541 : vector<1x256xi1>
    %2543 = arith.extui %2542 : vector<1x256xi1> to vector<1x256xi32>
    %2544 = arith.sitofp %2543 : vector<1x256xi32> to vector<1x256xf32>
    %2545 = vector.broadcast %2544 : vector<1x256xf32> to vector<32x256xf32>
    %2546 = arith.mulf %2523, %2545 : vector<32x256xf32>
    %c608 = arith.constant 608 : index
    %c0_926 = arith.constant 0 : index
    %2547 = vector.load %arg12[%c608, %c0_926] : memref<800x256xf32, #tpu.memory_space<vmem>>, vector<32x256xf32>
    tpu.vector_store %arg12[%c608, %c0_926], %2546 {strides = array<i32>} : memref<800x256xf32, #tpu.memory_space<vmem>>, vector<32x256xf32>,
    %2548 = vector.extract_strided_slice %2047 {offsets = [0, 158], sizes = [32, 256], strides = [1, 1]} : vector<32x512xf32> to vector<32x256xf32>
    %c2_i32_927 = arith.constant 2 : i32
    %2549 = vector.broadcast %c2_i32_927 : i32 to vector<1x256xi32>
    %2550 = arith.addi %0, %2549 : vector<1x256xi32>
    %c0_i32_928 = arith.constant 0 : i32
    %2551 = vector.broadcast %c0_i32_928 : i32 to vector<1x256xi32>
    %2552 = arith.cmpi sge, %2550, %2551 : vector<1x256xi32>
    %c2_i32_929 = arith.constant 2 : i32
    %2553 = vector.broadcast %c2_i32_929 : i32 to vector<1x256xi32>
    %2554 = arith.addi %0, %2553 : vector<1x256xi32>
    %c16_i32_930 = arith.constant 16 : i32
    %2555 = vector.broadcast %c16_i32_930 : i32 to vector<1x256xi32>
    %2556 = arith.cmpi slt, %2554, %2555 : vector<1x256xi32>
    %2557 = arith.andi %2552, %2556 : vector<1x256xi1>
    %c-2_i32_931 = arith.constant -2 : i32
    %2558 = vector.broadcast %c-2_i32_931 : i32 to vector<1x256xi32>
    %2559 = arith.addi %1, %2558 : vector<1x256xi32>
    %c0_i32_932 = arith.constant 0 : i32
    %2560 = vector.broadcast %c0_i32_932 : i32 to vector<1x256xi32>
    %2561 = arith.cmpi sge, %2559, %2560 : vector<1x256xi32>
    %2562 = arith.andi %2557, %2561 : vector<1x256xi1>
    %c-2_i32_933 = arith.constant -2 : i32
    %2563 = vector.broadcast %c-2_i32_933 : i32 to vector<1x256xi32>
    %2564 = arith.addi %1, %2563 : vector<1x256xi32>
    %c16_i32_934 = arith.constant 16 : i32
    %2565 = vector.broadcast %c16_i32_934 : i32 to vector<1x256xi32>
    %2566 = arith.cmpi slt, %2564, %2565 : vector<1x256xi32>
    %2567 = arith.andi %2562, %2566 : vector<1x256xi1>
    %2568 = arith.extui %2567 : vector<1x256xi1> to vector<1x256xi32>
    %2569 = arith.sitofp %2568 : vector<1x256xi32> to vector<1x256xf32>
    %2570 = vector.broadcast %2569 : vector<1x256xf32> to vector<32x256xf32>
    %2571 = arith.mulf %2548, %2570 : vector<32x256xf32>
    %c640 = arith.constant 640 : index
    %c0_935 = arith.constant 0 : index
    %2572 = vector.load %arg12[%c640, %c0_935] : memref<800x256xf32, #tpu.memory_space<vmem>>, vector<32x256xf32>
    tpu.vector_store %arg12[%c640, %c0_935], %2571 {strides = array<i32>} : memref<800x256xf32, #tpu.memory_space<vmem>>, vector<32x256xf32>,
    %2573 = vector.extract_strided_slice %2047 {offsets = [0, 159], sizes = [32, 256], strides = [1, 1]} : vector<32x512xf32> to vector<32x256xf32>
    %c2_i32_936 = arith.constant 2 : i32
    %2574 = vector.broadcast %c2_i32_936 : i32 to vector<1x256xi32>
    %2575 = arith.addi %0, %2574 : vector<1x256xi32>
    %c0_i32_937 = arith.constant 0 : i32
    %2576 = vector.broadcast %c0_i32_937 : i32 to vector<1x256xi32>
    %2577 = arith.cmpi sge, %2575, %2576 : vector<1x256xi32>
    %c2_i32_938 = arith.constant 2 : i32
    %2578 = vector.broadcast %c2_i32_938 : i32 to vector<1x256xi32>
    %2579 = arith.addi %0, %2578 : vector<1x256xi32>
    %c16_i32_939 = arith.constant 16 : i32
    %2580 = vector.broadcast %c16_i32_939 : i32 to vector<1x256xi32>
    %2581 = arith.cmpi slt, %2579, %2580 : vector<1x256xi32>
    %2582 = arith.andi %2577, %2581 : vector<1x256xi1>
    %c-1_i32_940 = arith.constant -1 : i32
    %2583 = vector.broadcast %c-1_i32_940 : i32 to vector<1x256xi32>
    %2584 = arith.addi %1, %2583 : vector<1x256xi32>
    %c0_i32_941 = arith.constant 0 : i32
    %2585 = vector.broadcast %c0_i32_941 : i32 to vector<1x256xi32>
    %2586 = arith.cmpi sge, %2584, %2585 : vector<1x256xi32>
    %2587 = arith.andi %2582, %2586 : vector<1x256xi1>
    %c-1_i32_942 = arith.constant -1 : i32
    %2588 = vector.broadcast %c-1_i32_942 : i32 to vector<1x256xi32>
    %2589 = arith.addi %1, %2588 : vector<1x256xi32>
    %c16_i32_943 = arith.constant 16 : i32
    %2590 = vector.broadcast %c16_i32_943 : i32 to vector<1x256xi32>
    %2591 = arith.cmpi slt, %2589, %2590 : vector<1x256xi32>
    %2592 = arith.andi %2587, %2591 : vector<1x256xi1>
    %2593 = arith.extui %2592 : vector<1x256xi1> to vector<1x256xi32>
    %2594 = arith.sitofp %2593 : vector<1x256xi32> to vector<1x256xf32>
    %2595 = vector.broadcast %2594 : vector<1x256xf32> to vector<32x256xf32>
    %2596 = arith.mulf %2573, %2595 : vector<32x256xf32>
    %c672 = arith.constant 672 : index
    %c0_944 = arith.constant 0 : index
    %2597 = vector.load %arg12[%c672, %c0_944] : memref<800x256xf32, #tpu.memory_space<vmem>>, vector<32x256xf32>
    tpu.vector_store %arg12[%c672, %c0_944], %2596 {strides = array<i32>} : memref<800x256xf32, #tpu.memory_space<vmem>>, vector<32x256xf32>,
    %2598 = vector.extract_strided_slice %2047 {offsets = [0, 160], sizes = [32, 256], strides = [1, 1]} : vector<32x512xf32> to vector<32x256xf32>
    %c2_i32_945 = arith.constant 2 : i32
    %2599 = vector.broadcast %c2_i32_945 : i32 to vector<1x256xi32>
    %2600 = arith.addi %0, %2599 : vector<1x256xi32>
    %c0_i32_946 = arith.constant 0 : i32
    %2601 = vector.broadcast %c0_i32_946 : i32 to vector<1x256xi32>
    %2602 = arith.cmpi sge, %2600, %2601 : vector<1x256xi32>
    %c2_i32_947 = arith.constant 2 : i32
    %2603 = vector.broadcast %c2_i32_947 : i32 to vector<1x256xi32>
    %2604 = arith.addi %0, %2603 : vector<1x256xi32>
    %c16_i32_948 = arith.constant 16 : i32
    %2605 = vector.broadcast %c16_i32_948 : i32 to vector<1x256xi32>
    %2606 = arith.cmpi slt, %2604, %2605 : vector<1x256xi32>
    %2607 = arith.andi %2602, %2606 : vector<1x256xi1>
    %c0_i32_949 = arith.constant 0 : i32
    %2608 = vector.broadcast %c0_i32_949 : i32 to vector<1x256xi32>
    %2609 = arith.addi %1, %2608 : vector<1x256xi32>
    %c0_i32_950 = arith.constant 0 : i32
    %2610 = vector.broadcast %c0_i32_950 : i32 to vector<1x256xi32>
    %2611 = arith.cmpi sge, %2609, %2610 : vector<1x256xi32>
    %2612 = arith.andi %2607, %2611 : vector<1x256xi1>
    %c0_i32_951 = arith.constant 0 : i32
    %2613 = vector.broadcast %c0_i32_951 : i32 to vector<1x256xi32>
    %2614 = arith.addi %1, %2613 : vector<1x256xi32>
    %c16_i32_952 = arith.constant 16 : i32
    %2615 = vector.broadcast %c16_i32_952 : i32 to vector<1x256xi32>
    %2616 = arith.cmpi slt, %2614, %2615 : vector<1x256xi32>
    %2617 = arith.andi %2612, %2616 : vector<1x256xi1>
    %2618 = arith.extui %2617 : vector<1x256xi1> to vector<1x256xi32>
    %2619 = arith.sitofp %2618 : vector<1x256xi32> to vector<1x256xf32>
    %2620 = vector.broadcast %2619 : vector<1x256xf32> to vector<32x256xf32>
    %2621 = arith.mulf %2598, %2620 : vector<32x256xf32>
    %c704 = arith.constant 704 : index
    %c0_953 = arith.constant 0 : index
    %2622 = vector.load %arg12[%c704, %c0_953] : memref<800x256xf32, #tpu.memory_space<vmem>>, vector<32x256xf32>
    tpu.vector_store %arg12[%c704, %c0_953], %2621 {strides = array<i32>} : memref<800x256xf32, #tpu.memory_space<vmem>>, vector<32x256xf32>,
    %2623 = vector.extract_strided_slice %2047 {offsets = [0, 161], sizes = [32, 256], strides = [1, 1]} : vector<32x512xf32> to vector<32x256xf32>
    %c2_i32_954 = arith.constant 2 : i32
    %2624 = vector.broadcast %c2_i32_954 : i32 to vector<1x256xi32>
    %2625 = arith.addi %0, %2624 : vector<1x256xi32>
    %c0_i32_955 = arith.constant 0 : i32
    %2626 = vector.broadcast %c0_i32_955 : i32 to vector<1x256xi32>
    %2627 = arith.cmpi sge, %2625, %2626 : vector<1x256xi32>
    %c2_i32_956 = arith.constant 2 : i32
    %2628 = vector.broadcast %c2_i32_956 : i32 to vector<1x256xi32>
    %2629 = arith.addi %0, %2628 : vector<1x256xi32>
    %c16_i32_957 = arith.constant 16 : i32
    %2630 = vector.broadcast %c16_i32_957 : i32 to vector<1x256xi32>
    %2631 = arith.cmpi slt, %2629, %2630 : vector<1x256xi32>
    %2632 = arith.andi %2627, %2631 : vector<1x256xi1>
    %c1_i32_958 = arith.constant 1 : i32
    %2633 = vector.broadcast %c1_i32_958 : i32 to vector<1x256xi32>
    %2634 = arith.addi %1, %2633 : vector<1x256xi32>
    %c0_i32_959 = arith.constant 0 : i32
    %2635 = vector.broadcast %c0_i32_959 : i32 to vector<1x256xi32>
    %2636 = arith.cmpi sge, %2634, %2635 : vector<1x256xi32>
    %2637 = arith.andi %2632, %2636 : vector<1x256xi1>
    %c1_i32_960 = arith.constant 1 : i32
    %2638 = vector.broadcast %c1_i32_960 : i32 to vector<1x256xi32>
    %2639 = arith.addi %1, %2638 : vector<1x256xi32>
    %c16_i32_961 = arith.constant 16 : i32
    %2640 = vector.broadcast %c16_i32_961 : i32 to vector<1x256xi32>
    %2641 = arith.cmpi slt, %2639, %2640 : vector<1x256xi32>
    %2642 = arith.andi %2637, %2641 : vector<1x256xi1>
    %2643 = arith.extui %2642 : vector<1x256xi1> to vector<1x256xi32>
    %2644 = arith.sitofp %2643 : vector<1x256xi32> to vector<1x256xf32>
    %2645 = vector.broadcast %2644 : vector<1x256xf32> to vector<32x256xf32>
    %2646 = arith.mulf %2623, %2645 : vector<32x256xf32>
    %c736 = arith.constant 736 : index
    %c0_962 = arith.constant 0 : index
    %2647 = vector.load %arg12[%c736, %c0_962] : memref<800x256xf32, #tpu.memory_space<vmem>>, vector<32x256xf32>
    tpu.vector_store %arg12[%c736, %c0_962], %2646 {strides = array<i32>} : memref<800x256xf32, #tpu.memory_space<vmem>>, vector<32x256xf32>,
    %2648 = vector.extract_strided_slice %2047 {offsets = [0, 162], sizes = [32, 256], strides = [1, 1]} : vector<32x512xf32> to vector<32x256xf32>
    %c2_i32_963 = arith.constant 2 : i32
    %2649 = vector.broadcast %c2_i32_963 : i32 to vector<1x256xi32>
    %2650 = arith.addi %0, %2649 : vector<1x256xi32>
    %c0_i32_964 = arith.constant 0 : i32
    %2651 = vector.broadcast %c0_i32_964 : i32 to vector<1x256xi32>
    %2652 = arith.cmpi sge, %2650, %2651 : vector<1x256xi32>
    %c2_i32_965 = arith.constant 2 : i32
    %2653 = vector.broadcast %c2_i32_965 : i32 to vector<1x256xi32>
    %2654 = arith.addi %0, %2653 : vector<1x256xi32>
    %c16_i32_966 = arith.constant 16 : i32
    %2655 = vector.broadcast %c16_i32_966 : i32 to vector<1x256xi32>
    %2656 = arith.cmpi slt, %2654, %2655 : vector<1x256xi32>
    %2657 = arith.andi %2652, %2656 : vector<1x256xi1>
    %c2_i32_967 = arith.constant 2 : i32
    %2658 = vector.broadcast %c2_i32_967 : i32 to vector<1x256xi32>
    %2659 = arith.addi %1, %2658 : vector<1x256xi32>
    %c0_i32_968 = arith.constant 0 : i32
    %2660 = vector.broadcast %c0_i32_968 : i32 to vector<1x256xi32>
    %2661 = arith.cmpi sge, %2659, %2660 : vector<1x256xi32>
    %2662 = arith.andi %2657, %2661 : vector<1x256xi1>
    %c2_i32_969 = arith.constant 2 : i32
    %2663 = vector.broadcast %c2_i32_969 : i32 to vector<1x256xi32>
    %2664 = arith.addi %1, %2663 : vector<1x256xi32>
    %c16_i32_970 = arith.constant 16 : i32
    %2665 = vector.broadcast %c16_i32_970 : i32 to vector<1x256xi32>
    %2666 = arith.cmpi slt, %2664, %2665 : vector<1x256xi32>
    %2667 = arith.andi %2662, %2666 : vector<1x256xi1>
    %2668 = arith.extui %2667 : vector<1x256xi1> to vector<1x256xi32>
    %2669 = arith.sitofp %2668 : vector<1x256xi32> to vector<1x256xf32>
    %2670 = vector.broadcast %2669 : vector<1x256xf32> to vector<32x256xf32>
    %2671 = arith.mulf %2648, %2670 : vector<32x256xf32>
    %c768 = arith.constant 768 : index
    %c0_971 = arith.constant 0 : index
    %2672 = vector.load %arg12[%c768, %c0_971] : memref<800x256xf32, #tpu.memory_space<vmem>>, vector<32x256xf32>
    tpu.vector_store %arg12[%c768, %c0_971], %2671 {strides = array<i32>} : memref<800x256xf32, #tpu.memory_space<vmem>>, vector<32x256xf32>,
    %c0_972 = arith.constant 0 : index
    %c0_973 = arith.constant 0 : index
    %2673 = vector.load %arg8[%c0_972, %c0_973] : memref<2x800xf32, #tpu.memory_space<vmem>>, vector<2x800xf32>
    %c0_974 = arith.constant 0 : index
    %c0_975 = arith.constant 0 : index
    %2674 = vector.load %arg12[%c0_974, %c0_975] : memref<800x256xf32, #tpu.memory_space<vmem>>, vector<800x256xf32>
    %cst_976 = arith.constant dense<0.000000e+00> : vector<2x256xf32>
    %2675 = tpu.matmul %2673, %2674, %cst_976 {dimension_numbers = #tpu.dot_dimension_numbers<[1], [0], [0], [1], [0, 0, 1, 1], [], []>} : vector<2x800xf32>, vector<800x256xf32>, vector<2x256xf32> -> vector<2x256xf32>
    %c0_977 = arith.constant 0 : index
    %c0_978 = arith.constant 0 : index
    %2676 = vector.load %arg9[%c0_977, %c0_978] : memref<2x1xf32, #tpu.memory_space<vmem>>, vector<2x1xf32>
    %2677 = vector.broadcast %2676 : vector<2x1xf32> to vector<2x256xf32>
    %2678 = arith.addf %2675, %2677 : vector<2x256xf32>
    %c0_979 = arith.constant 0 : index
    %c0_980 = arith.constant 0 : index
    %c0_981 = arith.constant 0 : index
    %2679 = vector.load %arg10[%c0_979, %c0_980, %c0_981] : memref<1x2x256xf32, #tpu.memory_space<vmem>>, vector<1x2x256xf32>
    %2680 = vector.shape_cast %2679 : vector<1x2x256xf32> to vector<2x256xf32>
    %2681 = vector.shape_cast %2678 : vector<2x256xf32> to vector<1x2x256xf32>
    tpu.vector_store %arg10[%c0_979, %c0_980, %c0_981], %2681 {strides = array<i32>} : memref<1x2x256xf32, #tpu.memory_space<vmem>>, vector<1x2x256xf32>,
    return
  }
  func.func @transform_0(%arg0: i32) -> (i32, i32, i32) {
    %c0_i32 = arith.constant 0 : i32
    %c0_i32_0 = arith.constant 0 : i32
    %c0_i32_1 = arith.constant 0 : i32
    return %arg0, %c0_i32, %c0_i32_0 : i32, i32, i32
  }
  func.func @transform_1(%arg0: i32) -> (i32, i32) {
    %c0_i32 = arith.constant 0 : i32
    %c0_i32_0 = arith.constant 0 : i32
    %c0_i32_1 = arith.constant 0 : i32
    return %c0_i32, %c0_i32_0 : i32, i32
  }
  func.func @transform_2(%arg0: i32) -> (i32, i32) {
    %c0_i32 = arith.constant 0 : i32
    %c0_i32_0 = arith.constant 0 : i32
    %c0_i32_1 = arith.constant 0 : i32
    return %c0_i32, %c0_i32_0 : i32, i32
  }
  func.func @transform_3(%arg0: i32) -> (i32, i32) {
    %c0_i32 = arith.constant 0 : i32
    %c0_i32_0 = arith.constant 0 : i32
    %c0_i32_1 = arith.constant 0 : i32
    return %c0_i32, %c0_i32_0 : i32, i32
  }
  func.func @transform_4(%arg0: i32) -> (i32, i32) {
    %c0_i32 = arith.constant 0 : i32
    %c0_i32_0 = arith.constant 0 : i32
    %c0_i32_1 = arith.constant 0 : i32
    return %c0_i32, %c0_i32_0 : i32, i32
  }
  func.func @transform_5(%arg0: i32) -> (i32, i32) {
    %c0_i32 = arith.constant 0 : i32
    %c0_i32_0 = arith.constant 0 : i32
    %c0_i32_1 = arith.constant 0 : i32
    return %c0_i32, %c0_i32_0 : i32, i32
  }
  func.func @transform_6(%arg0: i32) -> (i32, i32) {
    %c0_i32 = arith.constant 0 : i32
    %c0_i32_0 = arith.constant 0 : i32
    %c0_i32_1 = arith.constant 0 : i32
    return %c0_i32, %c0_i32_0 : i32, i32
  }
  func.func @transform_7(%arg0: i32) -> (i32, i32) {
    %c0_i32 = arith.constant 0 : i32
    %c0_i32_0 = arith.constant 0 : i32
    %c0_i32_1 = arith.constant 0 : i32
    return %c0_i32, %c0_i32_0 : i32, i32
  }
  func.func @transform_8(%arg0: i32) -> (i32, i32) {
    %c0_i32 = arith.constant 0 : i32
    %c0_i32_0 = arith.constant 0 : i32
    %c0_i32_1 = arith.constant 0 : i32
    return %c0_i32, %c0_i32_0 : i32, i32
  }
  func.func @transform_9(%arg0: i32) -> (i32, i32, i32) {
    %c0_i32 = arith.constant 0 : i32
    %c0_i32_0 = arith.constant 0 : i32
    %c0_i32_1 = arith.constant 0 : i32
    return %arg0, %c0_i32, %c0_i32_0 : i32, i32, i32
  }
}

</mosaic_0001>

<llo_original>
// kernel: srcnn_forward.1
$region0: #{srcnn_forward.1}
  #allocation0 [shape = 'u32[]', space=smem, size = 0x4, offset = 0x4, fixed_abs, tag = 'smem constant byte address 0x4 - core index']
  #allocation1 [shape = 'u32[144,128]{1,0:T(1,128)}', space=vmem, size = 0x12000, scoped, tag = 'internal scratch']
  #allocation2 [shape = 'f32[162,256]{1,0:T(8,128)}', space=vmem, size = 0x2a000, scoped, tag = 'scratch operand']
  #allocation3 [shape = 'f32[800,256]{1,0:T(8,128)}', space=vmem, size = 0xc8000, scoped, tag = 'scratch operand']
  %s0 = inlined_call_operand.vmem [shape: f32[2,2,256], index: 0, kind: input, shape index: {}]
  %s1 = inlined_call_operand.vmem [shape: s32[1,256], index: 1, kind: input, shape index: {}]
  %s2 = inlined_call_operand.vmem [shape: s32[1,256], index: 2, kind: input, shape index: {}]
  %s3 = inlined_call_operand.vmem [shape: f32[64,162], index: 3, kind: input, shape index: {}]
  %s4 = inlined_call_operand.vmem [shape: f32[64,1], index: 4, kind: input, shape index: {}]
  %s5 = inlined_call_operand.vmem [shape: f32[32,64], index: 5, kind: input, shape index: {}]
  %s6 = inlined_call_operand.vmem [shape: f32[32,1], index: 6, kind: input, shape index: {}]
  %s7 = inlined_call_operand.vmem [shape: f32[2,800], index: 7, kind: input, shape index: {}]
  %s8 = inlined_call_operand.vmem [shape: f32[2,1], index: 8, kind: input, shape index: {}]
  %s9 = inlined_call_operand.vmem [shape: f32[2,2,256], index: 9, kind: output, shape index: {}]
  %s10 = sld [smem:[#allocation0]]
  $region69: #{srcnn_forward.1} parent=0
    _
  %s12 = ssub.s32 1, %s10
  %s13 = scalar_select 0, %s12, %s10
  loop: start=0, step=1, limit=4
  $region2: #{srcnn_forward.1} parent=0 // loop_pre_header
    _
  $region3: #{srcnn_forward.1} parent=0 // loop_header
    %s15 = sphi 0, %s19
    %p16 = scmp.ge.s32.totalorder %s15, 4
    %s25 = sphi 0, %s27
    %s28 = sphi 0, %s25
    %s29 = sphi 0, %s28
    %s45 = sphi 0, %s29
    %s49 = sphi 0, %s49
    %s51 = sphi 0, %s49
    %s52 = sphi 0, %s51
    %s66 = sphi 0, %s52
    %s70 = sphi 0, %s70
    %s72 = sphi 0, %s70
    %s73 = sphi 0, %s72
    %s87 = sphi 0, %s73
    %s91 = sphi 0, %s91
    %s93 = sphi 0, %s91
    %s94 = sphi 0, %s93
    %s108 = sphi 0, %s94
    %s112 = sphi 0, %s112
    %s114 = sphi 0, %s112
    %s115 = sphi 0, %s114
    %s129 = sphi 0, %s115
    %s133 = sphi 0, %s133
    %s135 = sphi 0, %s133
    %s136 = sphi 0, %s135
    %s150 = sphi 0, %s136
    %s154 = sphi 0, %s154
    %s156 = sphi 0, %s154
    %s157 = sphi 0, %s156
    %s171 = sphi 0, %s157
    %s175 = sphi 0, %s175
    %s177 = sphi 0, %s175
    %s178 = sphi 0, %s177
    %s192 = sphi 0, %s178
    %s196 = sphi 0, %s196
    %s198 = sphi 0, %s196
    %s199 = sphi 0, %s198
    %s213 = sphi 0, %s199
    %s219 = sphi 0, %s221
    %s222 = sphi 0, %s219
    %s223 = sphi 0, %s222
    %s239 = sphi 0, %s223
  $region4: #{srcnn_forward.1} parent=0 // loop_header_branch
    %18 = sbr.rel (%p16) target = $region8
  $region5: #{srcnn_forward.1} parent=0 // loop_body
    %s20 = ssub.s32 %s15, 1
    %s21 = ssub.s32 %s15, 2
    %s22 = sadd.s32 %s15, 1
    %s23 = ssub.s32 %s15, %s22
    %p24 = scmp.eq.s32.totalorder %s23, 0
    %s26 = sadd.s32 %s25, 1
    %s27 = scalar_select %p24, %s25, %s26
    %p30 = pneg %p24
    %p31 = scmp.eq.s32.totalorder %s15, 1
    %p32 = por %p30, %p31
    %p33 = scmp.ne.s32.totalorder %s25, %s28
    %p34 = scmp.eq.s32.totalorder %s15, 0
    %p35 = por %p33, %p34
    %p36 = scmp.ne.s32.totalorder %s25, %s28
    %p37 = scmp.eq.s32.totalorder %s20, 1
    %p38 = por %p36, %p37
    %p39 = scmp.ne.s32.totalorder %s28, %s29
    %p40 = scmp.eq.s32.totalorder %s20, 0
    %p41 = por %p39, %p40
    %p42 = scmp.ne.s32.totalorder %s28, %s29
    %p43 = scmp.eq.s32.totalorder %s21, 1
    %p44 = por %p42, %p43
    %p46 = scmp.ne.s32.totalorder %s29, %s45
    %p47 = scmp.eq.s32.totalorder %s21, 0
    %p48 = por %p46, %p47
    %s50 = sadd.s32 %s49, 1
    %p53 = scmp.eq.s32.totalorder %s15, 1
    %p54 = scmp.ne.s32.totalorder %s49, %s51
    %p55 = scmp.eq.s32.totalorder %s15, 0
    %p56 = por %p54, %p55
    %p57 = scmp.ne.s32.totalorder %s49, %s51
    %p58 = scmp.eq.s32.totalorder %s20, 1
    %p59 = por %p57, %p58
    %p60 = scmp.ne.s32.totalorder %s51, %s52
    %p61 = scmp.eq.s32.totalorder %s20, 0
    %p62 = por %p60, %p61
    %p63 = scmp.ne.s32.totalorder %s51, %s52
    %p64 = scmp.eq.s32.totalorder %s21, 1
    %p65 = por %p63, %p64
    %p67 = scmp.ne.s32.totalorder %s52, %s66
    %p68 = scmp.eq.s32.totalorder %s21, 0
    %p69 = por %p67, %p68
    %s71 = sadd.s32 %s70, 1
    %p74 = scmp.eq.s32.totalorder %s15, 1
    %p75 = scmp.ne.s32.totalorder %s70, %s72
    %p76 = scmp.eq.s32.totalorder %s15, 0
    %p77 = por %p75, %p76
    %p78 = scmp.ne.s32.totalorder %s70, %s72
    %p79 = scmp.eq.s32.totalorder %s20, 1
    %p80 = por %p78, %p79
    %p81 = scmp.ne.s32.totalorder %s72, %s73
    %p82 = scmp.eq.s32.totalorder %s20, 0
    %p83 = por %p81, %p82
    %p84 = scmp.ne.s32.totalorder %s72, %s73
    %p85 = scmp.eq.s32.totalorder %s21, 1
    %p86 = por %p84, %p85
    %p88 = scmp.ne.s32.totalorder %s73, %s87
    %p89 = scmp.eq.s32.totalorder %s21, 0
    %p90 = por %p88, %p89
    %s92 = sadd.s32 %s91, 1
    %p95 = scmp.eq.s32.totalorder %s15, 1
    %p96 = scmp.ne.s32.totalorder %s91, %s93
    %p97 = scmp.eq.s32.totalorder %s15, 0
    %p98 = por %p96, %p97
    %p99 = scmp.ne.s32.totalorder %s91, %s93
    %p100 = scmp.eq.s32.totalorder %s20, 1
    %p101 = por %p99, %p100
    %p102 = scmp.ne.s32.totalorder %s93, %s94
    %p103 = scmp.eq.s32.totalorder %s20, 0
    %p104 = por %p102, %p103
    %p105 = scmp.ne.s32.totalorder %s93, %s94
    %p106 = scmp.eq.s32.totalorder %s21, 1
    %p107 = por %p105, %p106
    %p109 = scmp.ne.s32.totalorder %s94, %s108
    %p110 = scmp.eq.s32.totalorder %s21, 0
    %p111 = por %p109, %p110
    %s113 = sadd.s32 %s112, 1
    %p116 = scmp.eq.s32.totalorder %s15, 1
    %p117 = scmp.ne.s32.totalorder %s112, %s114
    %p118 = scmp.eq.s32.totalorder %s15, 0
    %p119 = por %p117, %p118
    %p120 = scmp.ne.s32.totalorder %s112, %s114
    %p121 = scmp.eq.s32.totalorder %s20, 1
    %p122 = por %p120, %p121
    %p123 = scmp.ne.s32.totalorder %s114, %s115
    %p124 = scmp.eq.s32.totalorder %s20, 0
    %p125 = por %p123, %p124
    %p126 = scmp.ne.s32.totalorder %s114, %s115
    %p127 = scmp.eq.s32.totalorder %s21, 1
    %p128 = por %p126, %p127
    %p130 = scmp.ne.s32.totalorder %s115, %s129
    %p131 = scmp.eq.s32.totalorder %s21, 0
    %p132 = por %p130, %p131
    %s134 = sadd.s32 %s133, 1
    %p137 = scmp.eq.s32.totalorder %s15, 1
    %p138 = scmp.ne.s32.totalorder %s133, %s135
    %p139 = scmp.eq.s32.totalorder %s15, 0
    %p140 = por %p138, %p139
    %p141 = scmp.ne.s32.totalorder %s133, %s135
    %p142 = scmp.eq.s32.totalorder %s20, 1
    %p143 = por %p141, %p142
    %p144 = scmp.ne.s32.totalorder %s135, %s136
    %p145 = scmp.eq.s32.totalorder %s20, 0
    %p146 = por %p144, %p145
    %p147 = scmp.ne.s32.totalorder %s135, %s136
    %p148 = scmp.eq.s32.totalorder %s21, 1
    %p149 = por %p147, %p148
    %p151 = scmp.ne.s32.totalorder %s136, %s150
    %p152 = scmp.eq.s32.totalorder %s21, 0
    %p153 = por %p151, %p152
    %s155 = sadd.s32 %s154, 1
    %p158 = scmp.eq.s32.totalorder %s15, 1
    %p159 = scmp.ne.s32.totalorder %s154, %s156
    %p160 = scmp.eq.s32.totalorder %s15, 0
    %p161 = por %p159, %p160
    %p162 = scmp.ne.s32.totalorder %s154, %s156
    %p163 = scmp.eq.s32.totalorder %s20, 1
    %p164 = por %p162, %p163
    %p165 = scmp.ne.s32.totalorder %s156, %s157
    %p166 = scmp.eq.s32.totalorder %s20, 0
    %p167 = por %p165, %p166
    %p168 = scmp.ne.s32.totalorder %s156, %s157
    %p169 = scmp.eq.s32.totalorder %s21, 1
    %p170 = por %p168, %p169
    %p172 = scmp.ne.s32.totalorder %s157, %s171
    %p173 = scmp.eq.s32.totalorder %s21, 0
    %p174 = por %p172, %p173
    %s176 = sadd.s32 %s175, 1
    %p179 = scmp.eq.s32.totalorder %s15, 1
    %p180 = scmp.ne.s32.totalorder %s175, %s177
    %p181 = scmp.eq.s32.totalorder %s15, 0
    %p182 = por %p180, %p181
    %p183 = scmp.ne.s32.totalorder %s175, %s177
    %p184 = scmp.eq.s32.totalorder %s20, 1
    %p185 = por %p183, %p184
    %p186 = scmp.ne.s32.totalorder %s177, %s178
    %p187 = scmp.eq.s32.totalorder %s20, 0
    %p188 = por %p186, %p187
    %p189 = scmp.ne.s32.totalorder %s177, %s178
    %p190 = scmp.eq.s32.totalorder %s21, 1
    %p191 = por %p189, %p190
    %p193 = scmp.ne.s32.totalorder %s178, %s192
    %p194 = scmp.eq.s32.totalorder %s21, 0
    %p195 = por %p193, %p194
    %s197 = sadd.s32 %s196, 1
    %p200 = scmp.eq.s32.totalorder %s15, 1
    %p201 = scmp.ne.s32.totalorder %s196, %s198
    %p202 = scmp.eq.s32.totalorder %s15, 0
    %p203 = por %p201, %p202
    %p204 = scmp.ne.s32.totalorder %s196, %s198
    %p205 = scmp.eq.s32.totalorder %s20, 1
    %p206 = por %p204, %p205
    %p207 = scmp.ne.s32.totalorder %s198, %s199
    %p208 = scmp.eq.s32.totalorder %s20, 0
    %p209 = por %p207, %p208
    %p210 = scmp.ne.s32.totalorder %s198, %s199
    %p211 = scmp.eq.s32.totalorder %s21, 1
    %p212 = por %p210, %p211
    %p214 = scmp.ne.s32.totalorder %s199, %s213
    %p215 = scmp.eq.s32.totalorder %s21, 0
    %p216 = por %p214, %p215
    %s217 = ssub.s32 %s15, %s22
    %p218 = scmp.eq.s32.totalorder %s217, 0
    %s220 = sadd.s32 %s219, 1
    %s221 = scalar_select %p218, %s219, %s220
    %p224 = pneg %p218
    %p225 = scmp.eq.s32.totalorder %s15, 1
    %p226 = por %p224, %p225
    %p227 = scmp.ne.s32.totalorder %s219, %s222
    %p228 = scmp.eq.s32.totalorder %s15, 0
    %p229 = por %p227, %p228
    %p230 = scmp.ne.s32.totalorder %s219, %s222
    %p231 = scmp.eq.s32.totalorder %s20, 1
    %p232 = por %p230, %p231
    %p233 = scmp.ne.s32.totalorder %s222, %s223
    %p234 = scmp.eq.s32.totalorder %s20, 0
    %p235 = por %p233, %p234
    %p236 = scmp.ne.s32.totalorder %s222, %s223
    %p237 = scmp.eq.s32.totalorder %s21, 1
    %p238 = por %p236, %p237
    %p240 = scmp.ne.s32.totalorder %s223, %s239
    %p241 = scmp.eq.s32.totalorder %s21, 0
    %p242 = por %p240, %p241
    %p243 = scmp.le.s32.totalorder 1, %s15
    %p244 = scmp.lt.s32.totalorder %s15, 3
    %p245 = pnand %p243, %p244
    %p246 = pneg %p245
    // Predicated region
    $region9: #{srcnn_forward.1} parent=5 // pred_check
      _
    $region10: #{srcnn_forward.1} parent=5 // pred_check_branch
      %248 = sbr.rel (%p245) target = $region12
    $region11: #{srcnn_forward.1} parent=5 // pred_region
      %s249 = ssub.s32 %s15, 1
      // Predicated region
      $region13: #{srcnn_forward.1} parent=11 // pred_check
        %p250 = pneg %p62
      $region14: #{srcnn_forward.1} parent=11 // pred_check_branch
        %252 = sbr.rel (%p250) target = $region16
      $region15: #{srcnn_forward.1} parent=11 // pred_region
        _
      $region16: #{srcnn_forward.1} parent=11 // pred_fallthru
        _
      // Predicated region
      $region17: #{srcnn_forward.1} parent=11 // pred_check
        %p253 = pneg %p83
      $region18: #{srcnn_forward.1} parent=11 // pred_check_branch
        %255 = sbr.rel (%p253) target = $region20
      $region19: #{srcnn_forward.1} parent=11 // pred_region
        _
      $region20: #{srcnn_forward.1} parent=11 // pred_fallthru
        _
      // Predicated region
      $region21: #{srcnn_forward.1} parent=11 // pred_check
        %p256 = pneg %p104
      $region22: #{srcnn_forward.1} parent=11 // pred_check_branch
        %258 = sbr.rel (%p256) target = $region24
      $region23: #{srcnn_forward.1} parent=11 // pred_region
        _
      $region24: #{srcnn_forward.1} parent=11 // pred_fallthru
        _
      // Predicated region
      $region25: #{srcnn_forward.1} parent=11 // pred_check
        %p259 = pneg %p125
      $region26: #{srcnn_forward.1} parent=11 // pred_check_branch
        %261 = sbr.rel (%p259) target = $region28
      $region27: #{srcnn_forward.1} parent=11 // pred_region
        _
      $region28: #{srcnn_forward.1} parent=11 // pred_fallthru
        _
      // Predicated region
      $region29: #{srcnn_forward.1} parent=11 // pred_check
        %p262 = pneg %p146
      $region30: #{srcnn_forward.1} parent=11 // pred_check_branch
        %264 = sbr.rel (%p262) target = $region32
      $region31: #{srcnn_forward.1} parent=11 // pred_region
        _
      $region32: #{srcnn_forward.1} parent=11 // pred_fallthru
        _
      // Predicated region
      $region33: #{srcnn_forward.1} parent=11 // pred_check
        %p265 = pneg %p167
      $region34: #{srcnn_forward.1} parent=11 // pred_check_branch
        %267 = sbr.rel (%p265) target = $region36
      $region35: #{srcnn_forward.1} parent=11 // pred_region
        _
      $region36: #{srcnn_forward.1} parent=11 // pred_fallthru
        _
      // Predicated region
      $region37: #{srcnn_forward.1} parent=11 // pred_check
        %p268 = pneg %p188
      $region38: #{srcnn_forward.1} parent=11 // pred_check_branch
        %270 = sbr.rel (%p268) target = $region40
      $region39: #{srcnn_forward.1} parent=11 // pred_region
        _
      $region40: #{srcnn_forward.1} parent=11 // pred_fallthru
        _
      // Predicated region
      $region41: #{srcnn_forward.1} parent=11 // pred_check
        %p271 = pneg %p209
      $region42: #{srcnn_forward.1} parent=11 // pred_check_branch
        %273 = sbr.rel (%p271) target = $region44
      $region43: #{srcnn_forward.1} parent=11 // pred_region
        _
      $region44: #{srcnn_forward.1} parent=11 // pred_fallthru
        _
    $region12: #{srcnn_forward.1} parent=5 // pred_fallthru
      _
    %p274 = scmp.lt.s32.totalorder %s15, 2
    // Predicated region
    $region45: #{srcnn_forward.1} parent=5 // pred_check
      %p275 = pneg %p274
    $region46: #{srcnn_forward.1} parent=5 // pred_check_branch
      %277 = sbr.rel (%p275) target = $region48
    $region47: #{srcnn_forward.1} parent=5 // pred_region
      // Predicated region
      $region49: #{srcnn_forward.1} parent=47 // pred_check
        %p278 = pneg %p35
      $region50: #{srcnn_forward.1} parent=47 // pred_check_branch
        %280 = sbr.rel (%p278) target = $region52
      $region51: #{srcnn_forward.1} parent=47 // pred_region
        %p281 = scmp.lt.s32.totalorder %s15, 1
        %s282 = scalar_select %p281, %s15, 1
        %s283 = smul.addr %s282, 2
        %s284 = smul.addr %s283, 2
        %s285 = scalar_lea.vmem %s0, %s284
      $region52: #{srcnn_forward.1} parent=47 // pred_fallthru
        _
    $region48: #{srcnn_forward.1} parent=5 // pred_fallthru
      _
    %p286 = scmp.le.s32.totalorder 1, %s15
    %p287 = scmp.lt.s32.totalorder %s15, 3
    %p288 = pnand %p286, %p287
    %p289 = pneg %p288
    // Predicated region
    $region53: #{srcnn_forward.1} parent=5 // pred_check
      _
    $region54: #{srcnn_forward.1} parent=5 // pred_check_branch
      %291 = sbr.rel (%p288) target = $region56
    $region55: #{srcnn_forward.1} parent=5 // pred_region
      %s292 = ssub.s32 %s15, 1
      %p293 = scmp.lt.s32.totalorder %s20, 1
      %s294 = scalar_select %p293, %s20, 1
      %s295 = smul.addr %s294, 2
      %s296 = smul.addr %s295, 2
      %s297 = scalar_lea.vmem %s0, %s296
      %p298 = pneg %p41
      %p299 = pneg %p38
      %p300 = pneg %p62
      %p301 = pneg %p59
      %p302 = pneg %p83
      %p303 = pneg %p80
      %p304 = pneg %p104
      %p305 = pneg %p101
      %p306 = pneg %p125
      %p307 = pneg %p122
      %p308 = pneg %p146
      %p309 = pneg %p143
      %p310 = pneg %p167
      %p311 = pneg %p164
      %p312 = pneg %p188
      %p313 = pneg %p185
      %p314 = pneg %p209
      %p315 = pneg %p206
      %p316 = pneg %p235
      %p317 = pneg %p232
      %p318 = scmp.lt.s32.totalorder %s20, 1
      %s319 = scalar_select %p318, %s20, 1
      %s320 = smul.addr %s319, 2
      %s321 = smul.addr %s320, 2
      %s322 = scalar_lea.vmem %s9, %s321
      %p323 = scmp.lt.s32.totalorder %s20, 1
      %s324 = scalar_select %p323, %s20, 1
      %s325 = smul.addr %s324, 2
      %s326 = smul.addr %s325, 2
      %s327 = scalar_lea.vmem %s0, %s326
      %p328 = scmp.lt.s32.totalorder %s20, 1
      %s329 = scalar_select %p328, %s20, 1
      %s330 = smul.addr %s329, 2
      %s331 = smul.addr %s330, 2
      %s332 = scalar_lea.vmem %s9, %s331
      %v333 = vld [vmem:[%s1] sm:$0x3]
      %v334 = vld [vmem:[%s2] sm:$0x3]
      %v335 = vld [vmem:[%s327] sm:$0xf]
      %v338 = vunpack.c.l.s4 1983009808
      %v339 = vunpack.c.0.s8 %v338
      %v340 = vlaneseq
      %v341 = vshrl.u32 %v340, 7
      %v342 = vsub.s32 %v339, %v341
      %v343 = vrot.slane %v335, %v342
      %v344 = vcombine.high %v343, %v343
      %v347 = vadd.s32 %v333, 4294967292
      %vm348 = vcmp.ge.s32.totalorder %v347, 0
      %vm349 = vcmp.lt.s32.totalorder %v347, 16
      %vm350 = vmand %vm348, %vm349
      %v351 = vadd.s32 %v334, 4294967292
      %vm352 = vcmp.ge.s32.totalorder %v351, 0
      %vm353 = vmand %vm350, %vm352
      %vm354 = vcmp.lt.s32.totalorder %v351, 16
      %vm355 = vmand %vm353, %vm354
      %v356 = vsel %vm355, 1, 0
      %v357 = vcvt.s32.f32 %v356
      %v359 = vlaneseq
      %v360 = vshrl.u32 %v359, 7
      %v361 = vsub.s32 0, %v360
      %v362 = vrot.slane %v357, %v361
      %v363 = vlaneseq
      %v364 = vshrl.u32 %v363, 7
      %v365 = vsub.s32 1, %v364
      %v366 = vrot.slane %v357, %v365
      %367 = vrot.lane.b32.xlu0 %v362, 60
      %v368 = vpop.permute.xlu0 %367
      %369 = vrot.lane.b32.xlu0 %v366, 60
      %v370 = vpop.permute.xlu0 %369
      %vm371 = vcmask 490496
      %v372 = vsel %vm371, %v368, %v370
      %v376 = vmul.f32 %v368, 0.0
      %v377 = vmul.f32 %v343, %v372
      %v378 = vmul.f32 %v344, %v370
      %382 = vrot.lane.b32.xlu0 %v376, 68
      %v383 = vpop.permute.xlu0 %382
      %384 = vrot.lane.b32.xlu0 %v377, 68
      %v385 = vpop.permute.xlu0 %384
      %386 = vrot.lane.b32.xlu0 %v378, 68
      %v387 = vpop.permute.xlu0 %386
      %vm388 = vcmask 556032
      %v389 = vsel %vm388, %v383, %v385
      %v390 = vsel %vm388, %v385, %v387
      %393 = vst [vmem:[#allocation2] sm:$0x3] %v389
      %394 = vst [vmem:[#allocation2 + $0x8] sm:$0x3] %v390
      %v395 = vadd.s32 %v334, 4294967293
      %vm396 = vcmp.ge.s32.totalorder %v395, 0
      %vm397 = vmand %vm350, %vm396
      %vm398 = vcmp.lt.s32.totalorder %v395, 16
      %vm399 = vmand %vm397, %vm398
      %v400 = vsel %vm399, 1, 0
      %v401 = vcvt.s32.f32 %v400
      %v403 = vlaneseq
      %v404 = vshrl.u32 %v403, 7
      %v405 = vsub.s32 0, %v404
      %v406 = vrot.slane %v401, %v405
      %v407 = vlaneseq
      %v408 = vshrl.u32 %v407, 7
      %v409 = vsub.s32 1, %v408
      %v410 = vrot.slane %v401, %v409
      %411 = vrot.lane.b32.xlu0 %v406, 61
      %v412 = vpop.permute.xlu0 %411
      %413 = vrot.lane.b32.xlu0 %v410, 61
      %v414 = vpop.permute.xlu0 %413
      %vm415 = vcmask 498688
      %v416 = vsel %vm415, %v412, %v414
      %v420 = vmul.f32 %v412, 0.0
      %v421 = vmul.f32 %v343, %v416
      %v422 = vmul.f32 %v344, %v414
      %v426 = vrot.slane %v420, 6
      %v427 = vrot.slane %v421, 6
      %v428 = vrot.slane %v422, 6
      %429 = vrot.lane.b32.xlu0 %v426, 67
      %v430 = vpop.permute.xlu0 %429
      %431 = vrot.lane.b32.xlu0 %v427, 67
      %v432 = vpop.permute.xlu0 %431
      %433 = vrot.lane.b32.xlu0 %v428, 67
      %v434 = vpop.permute.xlu0 %433
      %vm435 = vcmask 547840
      %v436 = vsel %vm435, %v430, %v432
      %v437 = vsel %vm435, %v432, %v434
      %440 = vst [vmem:[#allocation2] sm:$0xc] %v436
      %441 = vst [vmem:[#allocation2 + $0x8] sm:$0xc] %v437
      %v442 = vadd.s32 %v334, 4294967294
      %vm443 = vcmp.ge.s32.totalorder %v442, 0
      %vm444 = vmand %vm350, %vm443
      %vm445 = vcmp.lt.s32.totalorder %v442, 16
      %vm446 = vmand %vm444, %vm445
      %v447 = vsel %vm446, 1, 0
      %v448 = vcvt.s32.f32 %v447
      %v450 = vlaneseq
      %v451 = vshrl.u32 %v450, 7
      %v452 = vsub.s32 0, %v451
      %v453 = vrot.slane %v448, %v452
      %v454 = vlaneseq
      %v455 = vshrl.u32 %v454, 7
      %v456 = vsub.s32 1, %v455
      %v457 = vrot.slane %v448, %v456
      %458 = vrot.lane.b32.xlu0 %v453, 62
      %v459 = vpop.permute.xlu0 %458
      %460 = vrot.lane.b32.xlu0 %v457, 62
      %v461 = vpop.permute.xlu0 %460
      %vm462 = vcmask 506880
      %v463 = vsel %vm462, %v459, %v461
      %v467 = vmul.f32 %v459, 0.0
      %v468 = vmul.f32 %v343, %v463
      %v469 = vmul.f32 %v344, %v461
      %v473 = vrot.slane %v467, 4
      %v474 = vrot.slane %v468, 4
      %v475 = vrot.slane %v469, 4
      %476 = vrot.lane.b32.xlu0 %v473, 66
      %v477 = vpop.permute.xlu0 %476
      %478 = vrot.lane.b32.xlu0 %v474, 66
      %v479 = vpop.permute.xlu0 %478
      %480 = vrot.lane.b32.xlu0 %v475, 66
      %v481 = vpop.permute.xlu0 %480
      %vm482 = vcmask 539648
      %v483 = vsel %vm482, %v477, %v479
      %v484 = vsel %vm482, %v479, %v481
      %487 = vst [vmem:[#allocation2] sm:$0x30] %v483
      %488 = vst [vmem:[#allocation2 + $0x8] sm:$0x30] %v484
      %v489 = vadd.s32 %v334, 4294967295
      %vm490 = vcmp.ge.s32.totalorder %v489, 0
      %vm491 = vmand %vm350, %vm490
      %vm492 = vcmp.lt.s32.totalorder %v489, 16
      %vm493 = vmand %vm491, %vm492
      %v494 = vsel %vm493, 1, 0
      %v495 = vcvt.s32.f32 %v494
      %v497 = vlaneseq
      %v498 = vshrl.u32 %v497, 7
      %v499 = vsub.s32 0, %v498
      %v500 = vrot.slane %v495, %v499
      %v501 = vlaneseq
      %v502 = vshrl.u32 %v501, 7
      %v503 = vsub.s32 1, %v502
      %v504 = vrot.slane %v495, %v503
      %505 = vrot.lane.b32.xlu0 %v500, 63
      %v506 = vpop.permute.xlu0 %505
      %507 = vrot.lane.b32.xlu0 %v504, 63
      %v508 = vpop.permute.xlu0 %507
      %vm509 = vcmask 515072
      %v510 = vsel %vm509, %v506, %v508
      %v514 = vmul.f32 %v506, 0.0
      %v515 = vmul.f32 %v343, %v510
      %v516 = vmul.f32 %v344, %v508
      %v520 = vrot.slane %v514, 2
      %v521 = vrot.slane %v515, 2
      %v522 = vrot.slane %v516, 2
      %523 = vrot.lane.b32.xlu0 %v520, 65
      %v524 = vpop.permute.xlu0 %523
      %525 = vrot.lane.b32.xlu0 %v521, 65
      %v526 = vpop.permute.xlu0 %525
      %527 = vrot.lane.b32.xlu0 %v522, 65
      %v528 = vpop.permute.xlu0 %527
      %vm529 = vcmask 531456
      %v530 = vsel %vm529, %v524, %v526
      %v531 = vsel %vm529, %v526, %v528
      %534 = vst [vmem:[#allocation2] sm:$0xc0] %v530
      %535 = vst [vmem:[#allocation2 + $0x8] sm:$0xc0] %v531
      %vm536 = vcmp.ge.s32.totalorder %v334, 0
      %vm537 = vmand %vm350, %vm536
      %vm538 = vcmp.lt.s32.totalorder %v334, 16
      %vm539 = vmand %vm537, %vm538
      %v540 = vsel %vm539, 1, 0
      %v541 = vcvt.s32.f32 %v540
      %v543 = vlaneseq
      %v544 = vshrl.u32 %v543, 7
      %v545 = vsub.s32 0, %v544
      %v546 = vrot.slane %v541, %v545
      %v547 = vlaneseq
      %v548 = vshrl.u32 %v547, 7
      %v549 = vsub.s32 1, %v548
      %v550 = vrot.slane %v541, %v549
      %551 = vrot.lane.b32.xlu0 %v546, 64
      %v552 = vpop.permute.xlu0 %551
      %553 = vrot.lane.b32.xlu0 %v550, 64
      %v554 = vpop.permute.xlu0 %553
      %vm555 = vcmask 523264
      %v556 = vsel %vm555, %v552, %v554
      %v560 = vmul.f32 %v552, 0.0
      %v561 = vmul.f32 %v343, %v556
      %v562 = vmul.f32 %v344, %v554
      %566 = vrot.lane.b32.xlu0 %v560, 64
      %v567 = vpop.permute.xlu0 %566
      %568 = vrot.lane.b32.xlu0 %v561, 64
      %v569 = vpop.permute.xlu0 %568
      %570 = vrot.lane.b32.xlu0 %v562, 64
      %v571 = vpop.permute.xlu0 %570
      %v572 = vsel %vm555, %v567, %v569
      %v573 = vsel %vm555, %v569, %v571
      %576 = vst [vmem:[#allocation2 + $0x10] sm:$0x3] %v572
      %577 = vst [vmem:[#allocation2 + $0x18] sm:$0x3] %v573
      %v578 = vadd.s32 %v334, 1
      %vm579 = vcmp.ge.s32.totalorder %v578, 0
      %vm580 = vmand %vm350, %vm579
      %vm581 = vcmp.lt.s32.totalorder %v578, 16
      %vm582 = vmand %vm580, %vm581
      %v583 = vsel %vm582, 1, 0
      %v584 = vcvt.s32.f32 %v583
      %v586 = vlaneseq
      %v587 = vshrl.u32 %v586, 7
      %v588 = vsub.s32 0, %v587
      %v589 = vrot.slane %v584, %v588
      %v590 = vlaneseq
      %v591 = vshrl.u32 %v590, 7
      %v592 = vsub.s32 1, %v591
      %v593 = vrot.slane %v584, %v592
      %594 = vrot.lane.b32.xlu0 %v589, 65
      %v595 = vpop.permute.xlu0 %594
      %596 = vrot.lane.b32.xlu0 %v593, 65
      %v597 = vpop.permute.xlu0 %596
      %v598 = vsel %vm529, %v595, %v597
      %v602 = vmul.f32 %v595, 0.0
      %v603 = vmul.f32 %v343, %v598
      %v604 = vmul.f32 %v344, %v597
      %v608 = vrot.slane %v602, 6
      %v609 = vrot.slane %v603, 6
      %v610 = vrot.slane %v604, 6
      %611 = vrot.lane.b32.xlu0 %v608, 63
      %v612 = vpop.permute.xlu0 %611
      %613 = vrot.lane.b32.xlu0 %v609, 63
      %v614 = vpop.permute.xlu0 %613
      %615 = vrot.lane.b32.xlu0 %v610, 63
      %v616 = vpop.permute.xlu0 %615
      %v617 = vsel %vm509, %v612, %v614
      %v618 = vsel %vm509, %v614, %v616
      %621 = vst [vmem:[#allocation2 + $0x10] sm:$0xc] %v617
      %622 = vst [vmem:[#allocation2 + $0x18] sm:$0xc] %v618
      %v623 = vadd.s32 %v334, 2
      %vm624 = vcmp.ge.s32.totalorder %v623, 0
      %vm625 = vmand %vm350, %vm624
      %vm626 = vcmp.lt.s32.totalorder %v623, 16
      %vm627 = vmand %vm625, %vm626
      %v628 = vsel %vm627, 1, 0
      %v629 = vcvt.s32.f32 %v628
      %v631 = vlaneseq
      %v632 = vshrl.u32 %v631, 7
      %v633 = vsub.s32 0, %v632
      %v634 = vrot.slane %v629, %v633
      %v635 = vlaneseq
      %v636 = vshrl.u32 %v635, 7
      %v637 = vsub.s32 1, %v636
      %v638 = vrot.slane %v629, %v637
      %639 = vrot.lane.b32.xlu0 %v634, 66
      %v640 = vpop.permute.xlu0 %639
      %641 = vrot.lane.b32.xlu0 %v638, 66
      %v642 = vpop.permute.xlu0 %641
      %v643 = vsel %vm482, %v640, %v642
      %v647 = vmul.f32 %v640, 0.0
      %v648 = vmul.f32 %v343, %v643
      %v649 = vmul.f32 %v344, %v642
      %v653 = vrot.slane %v647, 4
      %v654 = vrot.slane %v648, 4
      %v655 = vrot.slane %v649, 4
      %656 = vrot.lane.b32.xlu0 %v653, 62
      %v657 = vpop.permute.xlu0 %656
      %658 = vrot.lane.b32.xlu0 %v654, 62
      %v659 = vpop.permute.xlu0 %658
      %660 = vrot.lane.b32.xlu0 %v655, 62
      %v661 = vpop.permute.xlu0 %660
      %v662 = vsel %vm462, %v657, %v659
      %v663 = vsel %vm462, %v659, %v661
      %666 = vst [vmem:[#allocation2 + $0x10] sm:$0x30] %v662
      %667 = vst [vmem:[#allocation2 + $0x18] sm:$0x30] %v663
      %v668 = vadd.s32 %v334, 3
      %vm669 = vcmp.ge.s32.totalorder %v668, 0
      %vm670 = vmand %vm350, %vm669
      %vm671 = vcmp.lt.s32.totalorder %v668, 16
      %vm672 = vmand %vm670, %vm671
      %v673 = vsel %vm672, 1, 0
      %v674 = vcvt.s32.f32 %v673
      %v676 = vlaneseq
      %v677 = vshrl.u32 %v676, 7
      %v678 = vsub.s32 0, %v677
      %v679 = vrot.slane %v674, %v678
      %v680 = vlaneseq
      %v681 = vshrl.u32 %v680, 7
      %v682 = vsub.s32 1, %v681
      %v683 = vrot.slane %v674, %v682
      %684 = vrot.lane.b32.xlu0 %v679, 67
      %v685 = vpop.permute.xlu0 %684
      %686 = vrot.lane.b32.xlu0 %v683, 67
      %v687 = vpop.permute.xlu0 %686
      %v688 = vsel %vm435, %v685, %v687
      %v692 = vmul.f32 %v685, 0.0
      %v693 = vmul.f32 %v343, %v688
      %v694 = vmul.f32 %v344, %v687
      %v698 = vrot.slane %v692, 2
      %v699 = vrot.slane %v693, 2
      %v700 = vrot.slane %v694, 2
      %701 = vrot.lane.b32.xlu0 %v698, 61
      %v702 = vpop.permute.xlu0 %701
      %703 = vrot.lane.b32.xlu0 %v699, 61
      %v704 = vpop.permute.xlu0 %703
      %705 = vrot.lane.b32.xlu0 %v700, 61
      %v706 = vpop.permute.xlu0 %705
      %v707 = vsel %vm415, %v702, %v704
      %v708 = vsel %vm415, %v704, %v706
      %711 = vst [vmem:[#allocation2 + $0x10] sm:$0xc0] %v707
      %712 = vst [vmem:[#allocation2 + $0x18] sm:$0xc0] %v708
      %v713 = vadd.s32 %v334, 4
      %vm714 = vcmp.ge.s32.totalorder %v713, 0
      %vm715 = vmand %vm350, %vm714
      %vm716 = vcmp.lt.s32.totalorder %v713, 16
      %vm717 = vmand %vm715, %vm716
      %v718 = vsel %vm717, 1, 0
      %v719 = vcvt.s32.f32 %v718
      %v721 = vlaneseq
      %v722 = vshrl.u32 %v721, 7
      %v723 = vsub.s32 0, %v722
      %v724 = vrot.slane %v719, %v723
      %v725 = vlaneseq
      %v726 = vshrl.u32 %v725, 7
      %v727 = vsub.s32 1, %v726
      %v728 = vrot.slane %v719, %v727
      %729 = vrot.lane.b32.xlu0 %v724, 68
      %v730 = vpop.permute.xlu0 %729
      %731 = vrot.lane.b32.xlu0 %v728, 68
      %v732 = vpop.permute.xlu0 %731
      %v733 = vsel %vm388, %v730, %v732
      %v737 = vmul.f32 %v730, 0.0
      %v738 = vmul.f32 %v343, %v733
      %v739 = vmul.f32 %v344, %v732
      %743 = vrot.lane.b32.xlu0 %v737, 60
      %v744 = vpop.permute.xlu0 %743
      %745 = vrot.lane.b32.xlu0 %v738, 60
      %v746 = vpop.permute.xlu0 %745
      %747 = vrot.lane.b32.xlu0 %v739, 60
      %v748 = vpop.permute.xlu0 %747
      %v749 = vsel %vm371, %v744, %v746
      %v750 = vsel %vm371, %v746, %v748
      %753 = vst [vmem:[#allocation2 + $0x20] sm:$0x3] %v749
      %754 = vst [vmem:[#allocation2 + $0x28] sm:$0x3] %v750
      %v755 = vadd.s32 %v333, 4294967293
      %vm756 = vcmp.ge.s32.totalorder %v755, 0
      %vm757 = vcmp.lt.s32.totalorder %v755, 16
      %vm758 = vmand %vm756, %vm757
      %vm759 = vmand %vm758, %vm352
      %vm760 = vmand %vm759, %vm354
      %v761 = vsel %vm760, 1, 0
      %v762 = vcvt.s32.f32 %v761
      %v764 = vlaneseq
      %v765 = vshrl.u32 %v764, 7
      %v766 = vsub.s32 0, %v765
      %v767 = vrot.slane %v762, %v766
      %v768 = vlaneseq
      %v769 = vshrl.u32 %v768, 7
      %v770 = vsub.s32 1, %v769
      %v771 = vrot.slane %v762, %v770
      %772 = vrot.lane.b32.xlu0 %v767, 76
      %v773 = vpop.permute.xlu0 %772
      %774 = vrot.lane.b32.xlu0 %v771, 76
      %v775 = vpop.permute.xlu0 %774
      %vm776 = vcmask 621568
      %v777 = vsel %vm776, %v773, %v775
      %v781 = vmul.f32 %v773, 0.0
      %v782 = vmul.f32 %v343, %v777
      %v783 = vmul.f32 %v344, %v775
      %v787 = vrot.slane %v781, 6
      %v788 = vrot.slane %v782, 6
      %v789 = vrot.slane %v783, 6
      %790 = vrot.lane.b32.xlu0 %v787, 52
      %v791 = vpop.permute.xlu0 %790
      %792 = vrot.lane.b32.xlu0 %v788, 52
      %v793 = vpop.permute.xlu0 %792
      %794 = vrot.lane.b32.xlu0 %v789, 52
      %v795 = vpop.permute.xlu0 %794
      %vm796 = vcmask 424960
      %v797 = vsel %vm796, %v791, %v793
      %v798 = vsel %vm796, %v793, %v795
      %801 = vst [vmem:[#allocation2 + $0x20] sm:$0xc] %v797
      %802 = vst [vmem:[#allocation2 + $0x28] sm:$0xc] %v798
      %vm803 = vmand %vm758, %vm396
      %vm804 = vmand %vm803, %vm398
      %v805 = vsel %vm804, 1, 0
      %v806 = vcvt.s32.f32 %v805
      %v808 = vlaneseq
      %v809 = vshrl.u32 %v808, 7
      %v810 = vsub.s32 0, %v809
      %v811 = vrot.slane %v806, %v810
      %v812 = vlaneseq
      %v813 = vshrl.u32 %v812, 7
      %v814 = vsub.s32 1, %v813
      %v815 = vrot.slane %v806, %v814
      %816 = vrot.lane.b32.xlu0 %v811, 77
      %v817 = vpop.permute.xlu0 %816
      %818 = vrot.lane.b32.xlu0 %v815, 77
      %v819 = vpop.permute.xlu0 %818
      %vm820 = vcmask 629760
      %v821 = vsel %vm820, %v817, %v819
      %v825 = vmul.f32 %v817, 0.0
      %v826 = vmul.f32 %v343, %v821
      %v827 = vmul.f32 %v344, %v819
      %v831 = vrot.slane %v825, 4
      %v832 = vrot.slane %v826, 4
      %v833 = vrot.slane %v827, 4
      %834 = vrot.lane.b32.xlu0 %v831, 51
      %v835 = vpop.permute.xlu0 %834
      %836 = vrot.lane.b32.xlu0 %v832, 51
      %v837 = vpop.permute.xlu0 %836
      %838 = vrot.lane.b32.xlu0 %v833, 51
      %v839 = vpop.permute.xlu0 %838
      %vm840 = vcmask 416768
      %v841 = vsel %vm840, %v835, %v837
      %v842 = vsel %vm840, %v837, %v839
      %845 = vst [vmem:[#allocation2 + $0x20] sm:$0x30] %v841
      %846 = vst [vmem:[#allocation2 + $0x28] sm:$0x30] %v842
      %vm847 = vmand %vm758, %vm443
      %vm848 = vmand %vm847, %vm445
      %v849 = vsel %vm848, 1, 0
      %v850 = vcvt.s32.f32 %v849
      %v852 = vlaneseq
      %v853 = vshrl.u32 %v852, 7
      %v854 = vsub.s32 0, %v853
      %v855 = vrot.slane %v850, %v854
      %v856 = vlaneseq
      %v857 = vshrl.u32 %v856, 7
      %v858 = vsub.s32 1, %v857
      %v859 = vrot.slane %v850, %v858
      %860 = vrot.lane.b32.xlu0 %v855, 78
      %v861 = vpop.permute.xlu0 %860
      %862 = vrot.lane.b32.xlu0 %v859, 78
      %v863 = vpop.permute.xlu0 %862
      %vm864 = vcmask 637952
      %v865 = vsel %vm864, %v861, %v863
      %v869 = vmul.f32 %v861, 0.0
      %v870 = vmul.f32 %v343, %v865
      %v871 = vmul.f32 %v344, %v863
      %v875 = vrot.slane %v869, 2
      %v876 = vrot.slane %v870, 2
      %v877 = vrot.slane %v871, 2
      %878 = vrot.lane.b32.xlu0 %v875, 50
      %v879 = vpop.permute.xlu0 %878
      %880 = vrot.lane.b32.xlu0 %v876, 50
      %v881 = vpop.permute.xlu0 %880
      %882 = vrot.lane.b32.xlu0 %v877, 50
      %v883 = vpop.permute.xlu0 %882
      %vm884 = vcmask 408576
      %v885 = vsel %vm884, %v879, %v881
      %v886 = vsel %vm884, %v881, %v883
      %889 = vst [vmem:[#allocation2 + $0x20] sm:$0xc0] %v885
      %890 = vst [vmem:[#allocation2 + $0x28] sm:$0xc0] %v886
      %vm891 = vmand %vm758, %vm490
      %vm892 = vmand %vm891, %vm492
      %v893 = vsel %vm892, 1, 0
      %v894 = vcvt.s32.f32 %v893
      %v896 = vlaneseq
      %v897 = vshrl.u32 %v896, 7
      %v898 = vsub.s32 0, %v897
      %v899 = vrot.slane %v894, %v898
      %v900 = vlaneseq
      %v901 = vshrl.u32 %v900, 7
      %v902 = vsub.s32 1, %v901
      %v903 = vrot.slane %v894, %v902
      %904 = vrot.lane.b32.xlu0 %v899, 79
      %v905 = vpop.permute.xlu0 %904
      %906 = vrot.lane.b32.xlu0 %v903, 79
      %v907 = vpop.permute.xlu0 %906
      %vm908 = vcmask 646144
      %v909 = vsel %vm908, %v905, %v907
      %v913 = vmul.f32 %v905, 0.0
      %v914 = vmul.f32 %v343, %v909
      %v915 = vmul.f32 %v344, %v907
      %919 = vrot.lane.b32.xlu0 %v913, 49
      %v920 = vpop.permute.xlu0 %919
      %921 = vrot.lane.b32.xlu0 %v914, 49
      %v922 = vpop.permute.xlu0 %921
      %923 = vrot.lane.b32.xlu0 %v915, 49
      %v924 = vpop.permute.xlu0 %923
      %vm925 = vcmask 400384
      %v926 = vsel %vm925, %v920, %v922
      %v927 = vsel %vm925, %v922, %v924
      %930 = vst [vmem:[#allocation2 + $0x30] sm:$0x3] %v926
      %931 = vst [vmem:[#allocation2 + $0x38] sm:$0x3] %v927
      %vm932 = vmand %vm758, %vm536
      %vm933 = vmand %vm932, %vm538
      %v934 = vsel %vm933, 1, 0
      %v935 = vcvt.s32.f32 %v934
      %v937 = vlaneseq
      %v938 = vshrl.u32 %v937, 7
      %v939 = vsub.s32 0, %v938
      %v940 = vrot.slane %v935, %v939
      %v941 = vlaneseq
      %v942 = vshrl.u32 %v941, 7
      %v943 = vsub.s32 1, %v942
      %v944 = vrot.slane %v935, %v943
      %945 = vrot.lane.b32.xlu0 %v940, 80
      %v946 = vpop.permute.xlu0 %945
      %947 = vrot.lane.b32.xlu0 %v944, 80
      %v948 = vpop.permute.xlu0 %947
      %vm949 = vcmask 654336
      %v950 = vsel %vm949, %v946, %v948
      %v954 = vmul.f32 %v946, 0.0
      %v955 = vmul.f32 %v343, %v950
      %v956 = vmul.f32 %v344, %v948
      %v960 = vrot.slane %v954, 6
      %v961 = vrot.slane %v955, 6
      %v962 = vrot.slane %v956, 6
      %963 = vrot.lane.b32.xlu0 %v960, 48
      %v964 = vpop.permute.xlu0 %963
      %965 = vrot.lane.b32.xlu0 %v961, 48
      %v966 = vpop.permute.xlu0 %965
      %967 = vrot.lane.b32.xlu0 %v962, 48
      %v968 = vpop.permute.xlu0 %967
      %vm969 = vcmask 392192
      %v970 = vsel %vm969, %v964, %v966
      %v971 = vsel %vm969, %v966, %v968
      %974 = vst [vmem:[#allocation2 + $0x30] sm:$0xc] %v970
      %975 = vst [vmem:[#allocation2 + $0x38] sm:$0xc] %v971
      %vm976 = vmand %vm758, %vm579
      %vm977 = vmand %vm976, %vm581
      %v978 = vsel %vm977, 1, 0
      %v979 = vcvt.s32.f32 %v978
      %v981 = vlaneseq
      %v982 = vshrl.u32 %v981, 7
      %v983 = vsub.s32 0, %v982
      %v984 = vrot.slane %v979, %v983
      %v985 = vlaneseq
      %v986 = vshrl.u32 %v985, 7
      %v987 = vsub.s32 1, %v986
      %v988 = vrot.slane %v979, %v987
      %989 = vrot.lane.b32.xlu0 %v984, 81
      %v990 = vpop.permute.xlu0 %989
      %991 = vrot.lane.b32.xlu0 %v988, 81
      %v992 = vpop.permute.xlu0 %991
      %vm993 = vcmask 662528
      %v994 = vsel %vm993, %v990, %v992
      %v998 = vmul.f32 %v990, 0.0
      %v999 = vmul.f32 %v343, %v994
      %v1000 = vmul.f32 %v344, %v992
      %v1004 = vrot.slane %v998, 4
      %v1005 = vrot.slane %v999, 4
      %v1006 = vrot.slane %v1000, 4
      %1007 = vrot.lane.b32.xlu0 %v1004, 47
      %v1008 = vpop.permute.xlu0 %1007
      %1009 = vrot.lane.b32.xlu0 %v1005, 47
      %v1010 = vpop.permute.xlu0 %1009
      %1011 = vrot.lane.b32.xlu0 %v1006, 47
      %v1012 = vpop.permute.xlu0 %1011
      %vm1013 = vcmask 384000
      %v1014 = vsel %vm1013, %v1008, %v1010
      %v1015 = vsel %vm1013, %v1010, %v1012
      %1018 = vst [vmem:[#allocation2 + $0x30] sm:$0x30] %v1014
      %1019 = vst [vmem:[#allocation2 + $0x38] sm:$0x30] %v1015
      %vm1020 = vmand %vm758, %vm624
      %vm1021 = vmand %vm1020, %vm626
      %v1022 = vsel %vm1021, 1, 0
      %v1023 = vcvt.s32.f32 %v1022
      %v1025 = vlaneseq
      %v1026 = vshrl.u32 %v1025, 7
      %v1027 = vsub.s32 0, %v1026
      %v1028 = vrot.slane %v1023, %v1027
      %v1029 = vlaneseq
      %v1030 = vshrl.u32 %v1029, 7
      %v1031 = vsub.s32 1, %v1030
      %v1032 = vrot.slane %v1023, %v1031
      %1033 = vrot.lane.b32.xlu0 %v1028, 82
      %v1034 = vpop.permute.xlu0 %1033
      %1035 = vrot.lane.b32.xlu0 %v1032, 82
      %v1036 = vpop.permute.xlu0 %1035
      %vm1037 = vcmask 670720
      %v1038 = vsel %vm1037, %v1034, %v1036
      %v1042 = vmul.f32 %v1034, 0.0
      %v1043 = vmul.f32 %v343, %v1038
      %v1044 = vmul.f32 %v344, %v1036
      %v1048 = vrot.slane %v1042, 2
      %v1049 = vrot.slane %v1043, 2
      %v1050 = vrot.slane %v1044, 2
      %1051 = vrot.lane.b32.xlu0 %v1048, 46
      %v1052 = vpop.permute.xlu0 %1051
      %1053 = vrot.lane.b32.xlu0 %v1049, 46
      %v1054 = vpop.permute.xlu0 %1053
      %1055 = vrot.lane.b32.xlu0 %v1050, 46
      %v1056 = vpop.permute.xlu0 %1055
      %vm1057 = vcmask 375808
      %v1058 = vsel %vm1057, %v1052, %v1054
      %v1059 = vsel %vm1057, %v1054, %v1056
      %1062 = vst [vmem:[#allocation2 + $0x30] sm:$0xc0] %v1058
      %1063 = vst [vmem:[#allocation2 + $0x38] sm:$0xc0] %v1059
      %vm1064 = vmand %vm758, %vm669
      %vm1065 = vmand %vm1064, %vm671
      %v1066 = vsel %vm1065, 1, 0
      %v1067 = vcvt.s32.f32 %v1066
      %v1069 = vlaneseq
      %v1070 = vshrl.u32 %v1069, 7
      %v1071 = vsub.s32 0, %v1070
      %v1072 = vrot.slane %v1067, %v1071
      %v1073 = vlaneseq
      %v1074 = vshrl.u32 %v1073, 7
      %v1075 = vsub.s32 1, %v1074
      %v1076 = vrot.slane %v1067, %v1075
      %1077 = vrot.lane.b32.xlu0 %v1072, 83
      %v1078 = vpop.permute.xlu0 %1077
      %1079 = vrot.lane.b32.xlu0 %v1076, 83
      %v1080 = vpop.permute.xlu0 %1079
      %vm1081 = vcmask 678912
      %v1082 = vsel %vm1081, %v1078, %v1080
      %v1086 = vmul.f32 %v1078, 0.0
      %v1087 = vmul.f32 %v343, %v1082
      %v1088 = vmul.f32 %v344, %v1080
      %1092 = vrot.lane.b32.xlu0 %v1086, 45
      %v1093 = vpop.permute.xlu0 %1092
      %1094 = vrot.lane.b32.xlu0 %v1087, 45
      %v1095 = vpop.permute.xlu0 %1094
      %1096 = vrot.lane.b32.xlu0 %v1088, 45
      %v1097 = vpop.permute.xlu0 %1096
      %vm1098 = vcmask 367616
      %v1099 = vsel %vm1098, %v1093, %v1095
      %v1100 = vsel %vm1098, %v1095, %v1097
      %1103 = vst [vmem:[#allocation2 + $0x40] sm:$0x3] %v1099
      %1104 = vst [vmem:[#allocation2 + $0x48] sm:$0x3] %v1100
      %vm1105 = vmand %vm758, %vm714
      %vm1106 = vmand %vm1105, %vm716
      %v1107 = vsel %vm1106, 1, 0
      %v1108 = vcvt.s32.f32 %v1107
      %v1110 = vlaneseq
      %v1111 = vshrl.u32 %v1110, 7
      %v1112 = vsub.s32 0, %v1111
      %v1113 = vrot.slane %v1108, %v1112
      %v1114 = vlaneseq
      %v1115 = vshrl.u32 %v1114, 7
      %v1116 = vsub.s32 1, %v1115
      %v1117 = vrot.slane %v1108, %v1116
      %1118 = vrot.lane.b32.xlu0 %v1113, 84
      %v1119 = vpop.permute.xlu0 %1118
      %1120 = vrot.lane.b32.xlu0 %v1117, 84
      %v1121 = vpop.permute.xlu0 %1120
      %vm1122 = vcmask 687104
      %v1123 = vsel %vm1122, %v1119, %v1121
      %v1127 = vmul.f32 %v1119, 0.0
      %v1128 = vmul.f32 %v343, %v1123
      %v1129 = vmul.f32 %v344, %v1121
      %v1133 = vrot.slane %v1127, 6
      %v1134 = vrot.slane %v1128, 6
      %v1135 = vrot.slane %v1129, 6
      %1136 = vrot.lane.b32.xlu0 %v1133, 44
      %v1137 = vpop.permute.xlu0 %1136
      %1138 = vrot.lane.b32.xlu0 %v1134, 44
      %v1139 = vpop.permute.xlu0 %1138
      %1140 = vrot.lane.b32.xlu0 %v1135, 44
      %v1141 = vpop.permute.xlu0 %1140
      %vm1142 = vcmask 359424
      %v1143 = vsel %vm1142, %v1137, %v1139
      %v1144 = vsel %vm1142, %v1139, %v1141
      %1147 = vst [vmem:[#allocation2 + $0x40] sm:$0xc] %v1143
      %1148 = vst [vmem:[#allocation2 + $0x48] sm:$0xc] %v1144
      %v1149 = vadd.s32 %v333, 4294967294
      %vm1150 = vcmp.ge.s32.totalorder %v1149, 0
      %vm1151 = vcmp.lt.s32.totalorder %v1149, 16
      %vm1152 = vmand %vm1150, %vm1151
      %vm1153 = vmand %vm1152, %vm352
      %vm1154 = vmand %vm1153, %vm354
      %v1155 = vsel %vm1154, 1, 0
      %v1156 = vcvt.s32.f32 %v1155
      %v1158 = vlaneseq
      %v1159 = vshrl.u32 %v1158, 7
      %v1160 = vsub.s32 0, %v1159
      %v1161 = vrot.slane %v1156, %v1160
      %v1162 = vlaneseq
      %v1163 = vshrl.u32 %v1162, 7
      %v1164 = vsub.s32 1, %v1163
      %v1165 = vrot.slane %v1156, %v1164
      %1166 = vrot.lane.b32.xlu0 %v1161, 92
      %v1167 = vpop.permute.xlu0 %1166
      %1168 = vrot.lane.b32.xlu0 %v1165, 92
      %v1169 = vpop.permute.xlu0 %1168
      %vm1170 = vcmask 752640
      %v1171 = vsel %vm1170, %v1167, %v1169
      %v1175 = vmul.f32 %v1167, 0.0
      %v1176 = vmul.f32 %v343, %v1171
      %v1177 = vmul.f32 %v344, %v1169
      %v1181 = vrot.slane %v1175, 4
      %v1182 = vrot.slane %v1176, 4
      %v1183 = vrot.slane %v1177, 4
      %1184 = vrot.lane.b32.xlu0 %v1181, 36
      %v1185 = vpop.permute.xlu0 %1184
      %1186 = vrot.lane.b32.xlu0 %v1182, 36
      %v1187 = vpop.permute.xlu0 %1186
      %1188 = vrot.lane.b32.xlu0 %v1183, 36
      %v1189 = vpop.permute.xlu0 %1188
      %vm1190 = vcmask 293888
      %v1191 = vsel %vm1190, %v1185, %v1187
      %v1192 = vsel %vm1190, %v1187, %v1189
      %1195 = vst [vmem:[#allocation2 + $0x40] sm:$0x30] %v1191
      %1196 = vst [vmem:[#allocation2 + $0x48] sm:$0x30] %v1192
      %vm1197 = vmand %vm1152, %vm396
      %vm1198 = vmand %vm1197, %vm398
      %v1199 = vsel %vm1198, 1, 0
      %v1200 = vcvt.s32.f32 %v1199
      %v1202 = vlaneseq
      %v1203 = vshrl.u32 %v1202, 7
      %v1204 = vsub.s32 0, %v1203
      %v1205 = vrot.slane %v1200, %v1204
      %v1206 = vlaneseq
      %v1207 = vshrl.u32 %v1206, 7
      %v1208 = vsub.s32 1, %v1207
      %v1209 = vrot.slane %v1200, %v1208
      %1210 = vrot.lane.b32.xlu0 %v1205, 93
      %v1211 = vpop.permute.xlu0 %1210
      %1212 = vrot.lane.b32.xlu0 %v1209, 93
      %v1213 = vpop.permute.xlu0 %1212
      %vm1214 = vcmask 760832
      %v1215 = vsel %vm1214, %v1211, %v1213
      %v1219 = vmul.f32 %v1211, 0.0
      %v1220 = vmul.f32 %v343, %v1215
      %v1221 = vmul.f32 %v344, %v1213
      %v1225 = vrot.slane %v1219, 2
      %v1226 = vrot.slane %v1220, 2
      %v1227 = vrot.slane %v1221, 2
      %1228 = vrot.lane.b32.xlu0 %v1225, 35
      %v1229 = vpop.permute.xlu0 %1228
      %1230 = vrot.lane.b32.xlu0 %v1226, 35
      %v1231 = vpop.permute.xlu0 %1230
      %1232 = vrot.lane.b32.xlu0 %v1227, 35
      %v1233 = vpop.permute.xlu0 %1232
      %vm1234 = vcmask 285696
      %v1235 = vsel %vm1234, %v1229, %v1231
      %v1236 = vsel %vm1234, %v1231, %v1233
      %1239 = vst [vmem:[#allocation2 + $0x40] sm:$0xc0] %v1235
      %1240 = vst [vmem:[#allocation2 + $0x48] sm:$0xc0] %v1236
      %vm1241 = vmand %vm1152, %vm443
      %vm1242 = vmand %vm1241, %vm445
      %v1243 = vsel %vm1242, 1, 0
      %v1244 = vcvt.s32.f32 %v1243
      %v1246 = vlaneseq
      %v1247 = vshrl.u32 %v1246, 7
      %v1248 = vsub.s32 0, %v1247
      %v1249 = vrot.slane %v1244, %v1248
      %v1250 = vlaneseq
      %v1251 = vshrl.u32 %v1250, 7
      %v1252 = vsub.s32 1, %v1251
      %v1253 = vrot.slane %v1244, %v1252
      %1254 = vrot.lane.b32.xlu0 %v1249, 94
      %v1255 = vpop.permute.xlu0 %1254
      %1256 = vrot.lane.b32.xlu0 %v1253, 94
      %v1257 = vpop.permute.xlu0 %1256
      %vm1258 = vcmask 769024
      %v1259 = vsel %vm1258, %v1255, %v1257
      %v1263 = vmul.f32 %v1255, 0.0
      %v1264 = vmul.f32 %v343, %v1259
      %v1265 = vmul.f32 %v344, %v1257
      %1269 = vrot.lane.b32.xlu0 %v1263, 34
      %v1270 = vpop.permute.xlu0 %1269
      %1271 = vrot.lane.b32.xlu0 %v1264, 34
      %v1272 = vpop.permute.xlu0 %1271
      %1273 = vrot.lane.b32.xlu0 %v1265, 34
      %v1274 = vpop.permute.xlu0 %1273
      %vm1275 = vcmask 277504
      %v1276 = vsel %vm1275, %v1270, %v1272
      %v1277 = vsel %vm1275, %v1272, %v1274
      %1280 = vst [vmem:[#allocation2 + $0x50] sm:$0x3] %v1276
      %1281 = vst [vmem:[#allocation2 + $0x58] sm:$0x3] %v1277
      %vm1282 = vmand %vm1152, %vm490
      %vm1283 = vmand %vm1282, %vm492
      %v1284 = vsel %vm1283, 1, 0
      %v1285 = vcvt.s32.f32 %v1284
      %v1287 = vlaneseq
      %v1288 = vshrl.u32 %v1287, 7
      %v1289 = vsub.s32 0, %v1288
      %v1290 = vrot.slane %v1285, %v1289
      %v1291 = vlaneseq
      %v1292 = vshrl.u32 %v1291, 7
      %v1293 = vsub.s32 1, %v1292
      %v1294 = vrot.slane %v1285, %v1293
      %1295 = vrot.lane.b32.xlu0 %v1290, 95
      %v1296 = vpop.permute.xlu0 %1295
      %1297 = vrot.lane.b32.xlu0 %v1294, 95
      %v1298 = vpop.permute.xlu0 %1297
      %vm1299 = vcmask 777216
      %v1300 = vsel %vm1299, %v1296, %v1298
      %v1304 = vmul.f32 %v1296, 0.0
      %v1305 = vmul.f32 %v343, %v1300
      %v1306 = vmul.f32 %v344, %v1298
      %v1310 = vrot.slane %v1304, 6
      %v1311 = vrot.slane %v1305, 6
      %v1312 = vrot.slane %v1306, 6
      %1313 = vrot.lane.b32.xlu0 %v1310, 33
      %v1314 = vpop.permute.xlu0 %1313
      %1315 = vrot.lane.b32.xlu0 %v1311, 33
      %v1316 = vpop.permute.xlu0 %1315
      %1317 = vrot.lane.b32.xlu0 %v1312, 33
      %v1318 = vpop.permute.xlu0 %1317
      %vm1319 = vcmask 269312
      %v1320 = vsel %vm1319, %v1314, %v1316
      %v1321 = vsel %vm1319, %v1316, %v1318
      %1324 = vst [vmem:[#allocation2 + $0x50] sm:$0xc] %v1320
      %1325 = vst [vmem:[#allocation2 + $0x58] sm:$0xc] %v1321
      %vm1326 = vmand %vm1152, %vm536
      %vm1327 = vmand %vm1326, %vm538
      %v1328 = vsel %vm1327, 1, 0
      %v1329 = vcvt.s32.f32 %v1328
      %v1331 = vlaneseq
      %v1332 = vshrl.u32 %v1331, 7
      %v1333 = vsub.s32 0, %v1332
      %v1334 = vrot.slane %v1329, %v1333
      %v1335 = vlaneseq
      %v1336 = vshrl.u32 %v1335, 7
      %v1337 = vsub.s32 1, %v1336
      %v1338 = vrot.slane %v1329, %v1337
      %1339 = vrot.lane.b32.xlu0 %v1334, 96
      %v1340 = vpop.permute.xlu0 %1339
      %1341 = vrot.lane.b32.xlu0 %v1338, 96
      %v1342 = vpop.permute.xlu0 %1341
      %vm1343 = vcmask 785408
      %v1344 = vsel %vm1343, %v1340, %v1342
      %v1348 = vmul.f32 %v1340, 0.0
      %v1349 = vmul.f32 %v343, %v1344
      %v1350 = vmul.f32 %v344, %v1342
      %v1354 = vrot.slane %v1348, 4
      %v1355 = vrot.slane %v1349, 4
      %v1356 = vrot.slane %v1350, 4
      %1357 = vrot.lane.b32.xlu0 %v1354, 32
      %v1358 = vpop.permute.xlu0 %1357
      %1359 = vrot.lane.b32.xlu0 %v1355, 32
      %v1360 = vpop.permute.xlu0 %1359
      %1361 = vrot.lane.b32.xlu0 %v1356, 32
      %v1362 = vpop.permute.xlu0 %1361
      %vm1363 = vcmask 261120
      %v1364 = vsel %vm1363, %v1358, %v1360
      %v1365 = vsel %vm1363, %v1360, %v1362
      %1368 = vst [vmem:[#allocation2 + $0x50] sm:$0x30] %v1364
      %1369 = vst [vmem:[#allocation2 + $0x58] sm:$0x30] %v1365
      %vm1370 = vmand %vm1152, %vm579
      %vm1371 = vmand %vm1370, %vm581
      %v1372 = vsel %vm1371, 1, 0
      %v1373 = vcvt.s32.f32 %v1372
      %v1375 = vlaneseq
      %v1376 = vshrl.u32 %v1375, 7
      %v1377 = vsub.s32 0, %v1376
      %v1378 = vrot.slane %v1373, %v1377
      %v1379 = vlaneseq
      %v1380 = vshrl.u32 %v1379, 7
      %v1381 = vsub.s32 1, %v1380
      %v1382 = vrot.slane %v1373, %v1381
      %1383 = vrot.lane.b32.xlu0 %v1378, 97
      %v1384 = vpop.permute.xlu0 %1383
      %1385 = vrot.lane.b32.xlu0 %v1382, 97
      %v1386 = vpop.permute.xlu0 %1385
      %vm1387 = vcmask 793600
      %v1388 = vsel %vm1387, %v1384, %v1386
      %v1392 = vmul.f32 %v1384, 0.0
      %v1393 = vmul.f32 %v343, %v1388
      %v1394 = vmul.f32 %v344, %v1386
      %v1398 = vrot.slane %v1392, 2
      %v1399 = vrot.slane %v1393, 2
      %v1400 = vrot.slane %v1394, 2
      %1401 = vrot.lane.b32.xlu0 %v1398, 31
      %v1402 = vpop.permute.xlu0 %1401
      %1403 = vrot.lane.b32.xlu0 %v1399, 31
      %v1404 = vpop.permute.xlu0 %1403
      %1405 = vrot.lane.b32.xlu0 %v1400, 31
      %v1406 = vpop.permute.xlu0 %1405
      %vm1407 = vcmask 252928
      %v1408 = vsel %vm1407, %v1402, %v1404
      %v1409 = vsel %vm1407, %v1404, %v1406
      %1412 = vst [vmem:[#allocation2 + $0x50] sm:$0xc0] %v1408
      %1413 = vst [vmem:[#allocation2 + $0x58] sm:$0xc0] %v1409
      %vm1414 = vmand %vm1152, %vm624
      %vm1415 = vmand %vm1414, %vm626
      %v1416 = vsel %vm1415, 1, 0
      %v1417 = vcvt.s32.f32 %v1416
      %v1419 = vlaneseq
      %v1420 = vshrl.u32 %v1419, 7
      %v1421 = vsub.s32 0, %v1420
      %v1422 = vrot.slane %v1417, %v1421
      %v1423 = vlaneseq
      %v1424 = vshrl.u32 %v1423, 7
      %v1425 = vsub.s32 1, %v1424
      %v1426 = vrot.slane %v1417, %v1425
      %1427 = vrot.lane.b32.xlu0 %v1422, 98
      %v1428 = vpop.permute.xlu0 %1427
      %1429 = vrot.lane.b32.xlu0 %v1426, 98
      %v1430 = vpop.permute.xlu0 %1429
      %vm1431 = vcmask 801792
      %v1432 = vsel %vm1431, %v1428, %v1430
      %v1436 = vmul.f32 %v1428, 0.0
      %v1437 = vmul.f32 %v343, %v1432
      %v1438 = vmul.f32 %v344, %v1430
      %1442 = vrot.lane.b32.xlu0 %v1436, 30
      %v1443 = vpop.permute.xlu0 %1442
      %1444 = vrot.lane.b32.xlu0 %v1437, 30
      %v1445 = vpop.permute.xlu0 %1444
      %1446 = vrot.lane.b32.xlu0 %v1438, 30
      %v1447 = vpop.permute.xlu0 %1446
      %vm1448 = vcmask 244736
      %v1449 = vsel %vm1448, %v1443, %v1445
      %v1450 = vsel %vm1448, %v1445, %v1447
      %1453 = vst [vmem:[#allocation2 + $0x60] sm:$0x3] %v1449
      %1454 = vst [vmem:[#allocation2 + $0x68] sm:$0x3] %v1450
      %vm1455 = vmand %vm1152, %vm669
      %vm1456 = vmand %vm1455, %vm671
      %v1457 = vsel %vm1456, 1, 0
      %v1458 = vcvt.s32.f32 %v1457
      %v1460 = vlaneseq
      %v1461 = vshrl.u32 %v1460, 7
      %v1462 = vsub.s32 0, %v1461
      %v1463 = vrot.slane %v1458, %v1462
      %v1464 = vlaneseq
      %v1465 = vshrl.u32 %v1464, 7
      %v1466 = vsub.s32 1, %v1465
      %v1467 = vrot.slane %v1458, %v1466
      %1468 = vrot.lane.b32.xlu0 %v1463, 99
      %v1469 = vpop.permute.xlu0 %1468
      %1470 = vrot.lane.b32.xlu0 %v1467, 99
      %v1471 = vpop.permute.xlu0 %1470
      %vm1472 = vcmask 809984
      %v1473 = vsel %vm1472, %v1469, %v1471
      %v1477 = vmul.f32 %v1469, 0.0
      %v1478 = vmul.f32 %v343, %v1473
      %v1479 = vmul.f32 %v344, %v1471
      %v1483 = vrot.slane %v1477, 6
      %v1484 = vrot.slane %v1478, 6
      %v1485 = vrot.slane %v1479, 6
      %1486 = vrot.lane.b32.xlu0 %v1483, 29
      %v1487 = vpop.permute.xlu0 %1486
      %1488 = vrot.lane.b32.xlu0 %v1484, 29
      %v1489 = vpop.permute.xlu0 %1488
      %1490 = vrot.lane.b32.xlu0 %v1485, 29
      %v1491 = vpop.permute.xlu0 %1490
      %vm1492 = vcmask 236544
      %v1493 = vsel %vm1492, %v1487, %v1489
      %v1494 = vsel %vm1492, %v1489, %v1491
      %1497 = vst [vmem:[#allocation2 + $0x60] sm:$0xc] %v1493
      %1498 = vst [vmem:[#allocation2 + $0x68] sm:$0xc] %v1494
      %vm1499 = vmand %vm1152, %vm714
      %vm1500 = vmand %vm1499, %vm716
      %v1501 = vsel %vm1500, 1, 0
      %v1502 = vcvt.s32.f32 %v1501
      %v1504 = vlaneseq
      %v1505 = vshrl.u32 %v1504, 7
      %v1506 = vsub.s32 0, %v1505
      %v1507 = vrot.slane %v1502, %v1506
      %v1508 = vlaneseq
      %v1509 = vshrl.u32 %v1508, 7
      %v1510 = vsub.s32 1, %v1509
      %v1511 = vrot.slane %v1502, %v1510
      %1512 = vrot.lane.b32.xlu0 %v1507, 100
      %v1513 = vpop.permute.xlu0 %1512
      %1514 = vrot.lane.b32.xlu0 %v1511, 100
      %v1515 = vpop.permute.xlu0 %1514
      %vm1516 = vcmask 818176
      %v1517 = vsel %vm1516, %v1513, %v1515
      %v1521 = vmul.f32 %v1513, 0.0
      %v1522 = vmul.f32 %v343, %v1517
      %v1523 = vmul.f32 %v344, %v1515
      %v1527 = vrot.slane %v1521, 4
      %v1528 = vrot.slane %v1522, 4
      %v1529 = vrot.slane %v1523, 4
      %1530 = vrot.lane.b32.xlu0 %v1527, 28
      %v1531 = vpop.permute.xlu0 %1530
      %1532 = vrot.lane.b32.xlu0 %v1528, 28
      %v1533 = vpop.permute.xlu0 %1532
      %1534 = vrot.lane.b32.xlu0 %v1529, 28
      %v1535 = vpop.permute.xlu0 %1534
      %vm1536 = vcmask 228352
      %v1537 = vsel %vm1536, %v1531, %v1533
      %v1538 = vsel %vm1536, %v1533, %v1535
      %1541 = vst [vmem:[#allocation2 + $0x60] sm:$0x30] %v1537
      %1542 = vst [vmem:[#allocation2 + $0x68] sm:$0x30] %v1538
      %v1543 = vadd.s32 %v333, 4294967295
      %vm1544 = vcmp.ge.s32.totalorder %v1543, 0
      %vm1545 = vcmp.lt.s32.totalorder %v1543, 16
      %vm1546 = vmand %vm1544, %vm1545
      %vm1547 = vmand %vm1546, %vm352
      %vm1548 = vmand %vm1547, %vm354
      %v1549 = vsel %vm1548, 1, 0
      %v1550 = vcvt.s32.f32 %v1549
      %v1552 = vlaneseq
      %v1553 = vshrl.u32 %v1552, 7
      %v1554 = vsub.s32 0, %v1553
      %v1555 = vrot.slane %v1550, %v1554
      %v1556 = vlaneseq
      %v1557 = vshrl.u32 %v1556, 7
      %v1558 = vsub.s32 1, %v1557
      %v1559 = vrot.slane %v1550, %v1558
      %1560 = vrot.lane.b32.xlu0 %v1555, 108
      %v1561 = vpop.permute.xlu0 %1560
      %1562 = vrot.lane.b32.xlu0 %v1559, 108
      %v1563 = vpop.permute.xlu0 %1562
      %vm1564 = vcmask 883712
      %v1565 = vsel %vm1564, %v1561, %v1563
      %v1569 = vmul.f32 %v1561, 0.0
      %v1570 = vmul.f32 %v343, %v1565
      %v1571 = vmul.f32 %v344, %v1563
      %v1575 = vrot.slane %v1569, 2
      %v1576 = vrot.slane %v1570, 2
      %v1577 = vrot.slane %v1571, 2
      %1578 = vrot.lane.b32.xlu0 %v1575, 20
      %v1579 = vpop.permute.xlu0 %1578
      %1580 = vrot.lane.b32.xlu0 %v1576, 20
      %v1581 = vpop.permute.xlu0 %1580
      %1582 = vrot.lane.b32.xlu0 %v1577, 20
      %v1583 = vpop.permute.xlu0 %1582
      %vm1584 = vcmask 162816
      %v1585 = vsel %vm1584, %v1579, %v1581
      %v1586 = vsel %vm1584, %v1581, %v1583
      %1589 = vst [vmem:[#allocation2 + $0x60] sm:$0xc0] %v1585
      %1590 = vst [vmem:[#allocation2 + $0x68] sm:$0xc0] %v1586
      %vm1591 = vmand %vm1546, %vm396
      %vm1592 = vmand %vm1591, %vm398
      %v1593 = vsel %vm1592, 1, 0
      %v1594 = vcvt.s32.f32 %v1593
      %v1596 = vlaneseq
      %v1597 = vshrl.u32 %v1596, 7
      %v1598 = vsub.s32 0, %v1597
      %v1599 = vrot.slane %v1594, %v1598
      %v1600 = vlaneseq
      %v1601 = vshrl.u32 %v1600, 7
      %v1602 = vsub.s32 1, %v1601
      %v1603 = vrot.slane %v1594, %v1602
      %1604 = vrot.lane.b32.xlu0 %v1599, 109
      %v1605 = vpop.permute.xlu0 %1604
      %1606 = vrot.lane.b32.xlu0 %v1603, 109
      %v1607 = vpop.permute.xlu0 %1606
      %vm1608 = vcmask 891904
      %v1609 = vsel %vm1608, %v1605, %v1607
      %v1613 = vmul.f32 %v1605, 0.0
      %v1614 = vmul.f32 %v343, %v1609
      %v1615 = vmul.f32 %v344, %v1607
      %1619 = vrot.lane.b32.xlu0 %v1613, 19
      %v1620 = vpop.permute.xlu0 %1619
      %1621 = vrot.lane.b32.xlu0 %v1614, 19
      %v1622 = vpop.permute.xlu0 %1621
      %1623 = vrot.lane.b32.xlu0 %v1615, 19
      %v1624 = vpop.permute.xlu0 %1623
      %vm1625 = vcmask 154624
      %v1626 = vsel %vm1625, %v1620, %v1622
      %v1627 = vsel %vm1625, %v1622, %v1624
      %1630 = vst [vmem:[#allocation2 + $0x70] sm:$0x3] %v1626
      %1631 = vst [vmem:[#allocation2 + $0x78] sm:$0x3] %v1627
      %vm1632 = vmand %vm1546, %vm443
      %vm1633 = vmand %vm1632, %vm445
      %v1634 = vsel %vm1633, 1, 0
      %v1635 = vcvt.s32.f32 %v1634
      %v1637 = vlaneseq
      %v1638 = vshrl.u32 %v1637, 7
      %v1639 = vsub.s32 0, %v1638
      %v1640 = vrot.slane %v1635, %v1639
      %v1641 = vlaneseq
      %v1642 = vshrl.u32 %v1641, 7
      %v1643 = vsub.s32 1, %v1642
      %v1644 = vrot.slane %v1635, %v1643
      %1645 = vrot.lane.b32.xlu0 %v1640, 110
      %v1646 = vpop.permute.xlu0 %1645
      %1647 = vrot.lane.b32.xlu0 %v1644, 110
      %v1648 = vpop.permute.xlu0 %1647
      %vm1649 = vcmask 900096
      %v1650 = vsel %vm1649, %v1646, %v1648
      %v1654 = vmul.f32 %v1646, 0.0
      %v1655 = vmul.f32 %v343, %v1650
      %v1656 = vmul.f32 %v344, %v1648
      %v1660 = vrot.slane %v1654, 6
      %v1661 = vrot.slane %v1655, 6
      %v1662 = vrot.slane %v1656, 6
      %1663 = vrot.lane.b32.xlu0 %v1660, 18
      %v1664 = vpop.permute.xlu0 %1663
      %1665 = vrot.lane.b32.xlu0 %v1661, 18
      %v1666 = vpop.permute.xlu0 %1665
      %1667 = vrot.lane.b32.xlu0 %v1662, 18
      %v1668 = vpop.permute.xlu0 %1667
      %vm1669 = vcmask 146432
      %v1670 = vsel %vm1669, %v1664, %v1666
      %v1671 = vsel %vm1669, %v1666, %v1668
      %1674 = vst [vmem:[#allocation2 + $0x70] sm:$0xc] %v1670
      %1675 = vst [vmem:[#allocation2 + $0x78] sm:$0xc] %v1671
      %vm1676 = vmand %vm1546, %vm490
      %vm1677 = vmand %vm1676, %vm492
      %v1678 = vsel %vm1677, 1, 0
      %v1679 = vcvt.s32.f32 %v1678
      %v1681 = vlaneseq
      %v1682 = vshrl.u32 %v1681, 7
      %v1683 = vsub.s32 0, %v1682
      %v1684 = vrot.slane %v1679, %v1683
      %v1685 = vlaneseq
      %v1686 = vshrl.u32 %v1685, 7
      %v1687 = vsub.s32 1, %v1686
      %v1688 = vrot.slane %v1679, %v1687
      %1689 = vrot.lane.b32.xlu0 %v1684, 111
      %v1690 = vpop.permute.xlu0 %1689
      %1691 = vrot.lane.b32.xlu0 %v1688, 111
      %v1692 = vpop.permute.xlu0 %1691
      %vm1693 = vcmask 908288
      %v1694 = vsel %vm1693, %v1690, %v1692
      %v1698 = vmul.f32 %v1690, 0.0
      %v1699 = vmul.f32 %v343, %v1694
      %v1700 = vmul.f32 %v344, %v1692
      %v1704 = vrot.slane %v1698, 4
      %v1705 = vrot.slane %v1699, 4
      %v1706 = vrot.slane %v1700, 4
      %1707 = vrot.lane.b32.xlu0 %v1704, 17
      %v1708 = vpop.permute.xlu0 %1707
      %1709 = vrot.lane.b32.xlu0 %v1705, 17
      %v1710 = vpop.permute.xlu0 %1709
      %1711 = vrot.lane.b32.xlu0 %v1706, 17
      %v1712 = vpop.permute.xlu0 %1711
      %vm1713 = vcmask 138240
      %v1714 = vsel %vm1713, %v1708, %v1710
      %v1715 = vsel %vm1713, %v1710, %v1712
      %1718 = vst [vmem:[#allocation2 + $0x70] sm:$0x30] %v1714
      %1719 = vst [vmem:[#allocation2 + $0x78] sm:$0x30] %v1715
      %vm1720 = vmand %vm1546, %vm536
      %vm1721 = vmand %vm1720, %vm538
      %v1722 = vsel %vm1721, 1, 0
      %v1723 = vcvt.s32.f32 %v1722
      %v1725 = vlaneseq
      %v1726 = vshrl.u32 %v1725, 7
      %v1727 = vsub.s32 0, %v1726
      %v1728 = vrot.slane %v1723, %v1727
      %v1729 = vlaneseq
      %v1730 = vshrl.u32 %v1729, 7
      %v1731 = vsub.s32 1, %v1730
      %v1732 = vrot.slane %v1723, %v1731
      %1733 = vrot.lane.b32.xlu0 %v1728, 112
      %v1734 = vpop.permute.xlu0 %1733
      %1735 = vrot.lane.b32.xlu0 %v1732, 112
      %v1736 = vpop.permute.xlu0 %1735
      %vm1737 = vcmask 916480
      %v1738 = vsel %vm1737, %v1734, %v1736
      %v1742 = vmul.f32 %v1734, 0.0
      %v1743 = vmul.f32 %v343, %v1738
      %v1744 = vmul.f32 %v344, %v1736
      %v1748 = vrot.slane %v1742, 2
      %v1749 = vrot.slane %v1743, 2
      %v1750 = vrot.slane %v1744, 2
      %1751 = vrot.lane.b32.xlu0 %v1748, 16
      %v1752 = vpop.permute.xlu0 %1751
      %1753 = vrot.lane.b32.xlu0 %v1749, 16
      %v1754 = vpop.permute.xlu0 %1753
      %1755 = vrot.lane.b32.xlu0 %v1750, 16
      %v1756 = vpop.permute.xlu0 %1755
      %vm1757 = vcmask 130048
      %v1758 = vsel %vm1757, %v1752, %v1754
      %v1759 = vsel %vm1757, %v1754, %v1756
      %1762 = vst [vmem:[#allocation2 + $0x70] sm:$0xc0] %v1758
      %1763 = vst [vmem:[#allocation2 + $0x78] sm:$0xc0] %v1759
      %vm1764 = vmand %vm1546, %vm579
      %vm1765 = vmand %vm1764, %vm581
      %v1766 = vsel %vm1765, 1, 0
      %v1767 = vcvt.s32.f32 %v1766
      %v1769 = vlaneseq
      %v1770 = vshrl.u32 %v1769, 7
      %v1771 = vsub.s32 0, %v1770
      %v1772 = vrot.slane %v1767, %v1771
      %v1773 = vlaneseq
      %v1774 = vshrl.u32 %v1773, 7
      %v1775 = vsub.s32 1, %v1774
      %v1776 = vrot.slane %v1767, %v1775
      %1777 = vrot.lane.b32.xlu0 %v1772, 113
      %v1778 = vpop.permute.xlu0 %1777
      %1779 = vrot.lane.b32.xlu0 %v1776, 113
      %v1780 = vpop.permute.xlu0 %1779
      %vm1781 = vcmask 924672
      %v1782 = vsel %vm1781, %v1778, %v1780
      %v1786 = vmul.f32 %v1778, 0.0
      %v1787 = vmul.f32 %v343, %v1782
      %v1788 = vmul.f32 %v344, %v1780
      %1792 = vrot.lane.b32.xlu0 %v1786, 15
      %v1793 = vpop.permute.xlu0 %1792
      %1794 = vrot.lane.b32.xlu0 %v1787, 15
      %v1795 = vpop.permute.xlu0 %1794
      %1796 = vrot.lane.b32.xlu0 %v1788, 15
      %v1797 = vpop.permute.xlu0 %1796
      %vm1798 = vcmask 121856
      %v1799 = vsel %vm1798, %v1793, %v1795
      %v1800 = vsel %vm1798, %v1795, %v1797
      %1803 = vst [vmem:[#allocation2 + $0x80] sm:$0x3] %v1799
      %1804 = vst [vmem:[#allocation2 + $0x88] sm:$0x3] %v1800
      %vm1805 = vmand %vm1546, %vm624
      %vm1806 = vmand %vm1805, %vm626
      %v1807 = vsel %vm1806, 1, 0
      %v1808 = vcvt.s32.f32 %v1807
      %v1810 = vlaneseq
      %v1811 = vshrl.u32 %v1810, 7
      %v1812 = vsub.s32 0, %v1811
      %v1813 = vrot.slane %v1808, %v1812
      %v1814 = vlaneseq
      %v1815 = vshrl.u32 %v1814, 7
      %v1816 = vsub.s32 1, %v1815
      %v1817 = vrot.slane %v1808, %v1816
      %1818 = vrot.lane.b32.xlu0 %v1813, 114
      %v1819 = vpop.permute.xlu0 %1818
      %1820 = vrot.lane.b32.xlu0 %v1817, 114
      %v1821 = vpop.permute.xlu0 %1820
      %vm1822 = vcmask 932864
      %v1823 = vsel %vm1822, %v1819, %v1821
      %v1827 = vmul.f32 %v1819, 0.0
      %v1828 = vmul.f32 %v343, %v1823
      %v1829 = vmul.f32 %v344, %v1821
      %v1833 = vrot.slane %v1827, 6
      %v1834 = vrot.slane %v1828, 6
      %v1835 = vrot.slane %v1829, 6
      %1836 = vrot.lane.b32.xlu0 %v1833, 14
      %v1837 = vpop.permute.xlu0 %1836
      %1838 = vrot.lane.b32.xlu0 %v1834, 14
      %v1839 = vpop.permute.xlu0 %1838
      %1840 = vrot.lane.b32.xlu0 %v1835, 14
      %v1841 = vpop.permute.xlu0 %1840
      %vm1842 = vcmask 113664
      %v1843 = vsel %vm1842, %v1837, %v1839
      %v1844 = vsel %vm1842, %v1839, %v1841
      %1847 = vst [vmem:[#allocation2 + $0x80] sm:$0xc] %v1843
      %1848 = vst [vmem:[#allocation2 + $0x88] sm:$0xc] %v1844
      %vm1849 = vmand %vm1546, %vm669
      %vm1850 = vmand %vm1849, %vm671
      %v1851 = vsel %vm1850, 1, 0
      %v1852 = vcvt.s32.f32 %v1851
      %v1854 = vlaneseq
      %v1855 = vshrl.u32 %v1854, 7
      %v1856 = vsub.s32 0, %v1855
      %v1857 = vrot.slane %v1852, %v1856
      %v1858 = vlaneseq
      %v1859 = vshrl.u32 %v1858, 7
      %v1860 = vsub.s32 1, %v1859
      %v1861 = vrot.slane %v1852, %v1860
      %1862 = vrot.lane.b32.xlu0 %v1857, 115
      %v1863 = vpop.permute.xlu0 %1862
      %1864 = vrot.lane.b32.xlu0 %v1861, 115
      %v1865 = vpop.permute.xlu0 %1864
      %vm1866 = vcmask 941056
      %v1867 = vsel %vm1866, %v1863, %v1865
      %v1871 = vmul.f32 %v1863, 0.0
      %v1872 = vmul.f32 %v343, %v1867
      %v1873 = vmul.f32 %v344, %v1865
      %v1877 = vrot.slane %v1871, 4
      %v1878 = vrot.slane %v1872, 4
      %v1879 = vrot.slane %v1873, 4
      %1880 = vrot.lane.b32.xlu0 %v1877, 13
      %v1881 = vpop.permute.xlu0 %1880
      %1882 = vrot.lane.b32.xlu0 %v1878, 13
      %v1883 = vpop.permute.xlu0 %1882
      %1884 = vrot.lane.b32.xlu0 %v1879, 13
      %v1885 = vpop.permute.xlu0 %1884
      %vm1886 = vcmask 105472
      %v1887 = vsel %vm1886, %v1881, %v1883
      %v1888 = vsel %vm1886, %v1883, %v1885
      %1891 = vst [vmem:[#allocation2 + $0x80] sm:$0x30] %v1887
      %1892 = vst [vmem:[#allocation2 + $0x88] sm:$0x30] %v1888
      %vm1893 = vmand %vm1546, %vm714
      %vm1894 = vmand %vm1893, %vm716
      %v1895 = vsel %vm1894, 1, 0
      %v1896 = vcvt.s32.f32 %v1895
      %v1898 = vlaneseq
      %v1899 = vshrl.u32 %v1898, 7
      %v1900 = vsub.s32 0, %v1899
      %v1901 = vrot.slane %v1896, %v1900
      %v1902 = vlaneseq
      %v1903 = vshrl.u32 %v1902, 7
      %v1904 = vsub.s32 1, %v1903
      %v1905 = vrot.slane %v1896, %v1904
      %1906 = vrot.lane.b32.xlu0 %v1901, 116
      %v1907 = vpop.permute.xlu0 %1906
      %1908 = vrot.lane.b32.xlu0 %v1905, 116
      %v1909 = vpop.permute.xlu0 %1908
      %vm1910 = vcmask 949248
      %v1911 = vsel %vm1910, %v1907, %v1909
      %v1915 = vmul.f32 %v1907, 0.0
      %v1916 = vmul.f32 %v343, %v1911
      %v1917 = vmul.f32 %v344, %v1909
      %v1921 = vrot.slane %v1915, 2
      %v1922 = vrot.slane %v1916, 2
      %v1923 = vrot.slane %v1917, 2
      %1924 = vrot.lane.b32.xlu0 %v1921, 12
      %v1925 = vpop.permute.xlu0 %1924
      %1926 = vrot.lane.b32.xlu0 %v1922, 12
      %v1927 = vpop.permute.xlu0 %1926
      %1928 = vrot.lane.b32.xlu0 %v1923, 12
      %v1929 = vpop.permute.xlu0 %1928
      %vm1930 = vcmask 97280
      %v1931 = vsel %vm1930, %v1925, %v1927
      %v1932 = vsel %vm1930, %v1927, %v1929
      %1935 = vst [vmem:[#allocation2 + $0x80] sm:$0xc0] %v1931
      %1936 = vst [vmem:[#allocation2 + $0x88] sm:$0xc0] %v1932
      %vm1937 = vcmp.ge.s32.totalorder %v333, 0
      %vm1938 = vcmp.lt.s32.totalorder %v333, 16
      %vm1939 = vmand %vm1937, %vm1938
      %vm1940 = vmand %vm1939, %vm352
      %vm1941 = vmand %vm1940, %vm354
      %v1942 = vsel %vm1941, 1, 0
      %v1943 = vcvt.s32.f32 %v1942
      %v1945 = vlaneseq
      %v1946 = vshrl.u32 %v1945, 7
      %v1947 = vsub.s32 0, %v1946
      %v1948 = vrot.slane %v1943, %v1947
      %v1949 = vlaneseq
      %v1950 = vshrl.u32 %v1949, 7
      %v1951 = vsub.s32 1, %v1950
      %v1952 = vrot.slane %v1943, %v1951
      %1953 = vrot.lane.b32.xlu0 %v1948, 124
      %v1954 = vpop.permute.xlu0 %1953
      %1955 = vrot.lane.b32.xlu0 %v1952, 124
      %v1956 = vpop.permute.xlu0 %1955
      %vm1957 = vcmask 1014784
      %v1958 = vsel %vm1957, %v1954, %v1956
      %v1962 = vmul.f32 %v1954, 0.0
      %v1963 = vmul.f32 %v343, %v1958
      %v1964 = vmul.f32 %v344, %v1956
      %1968 = vrot.lane.b32.xlu0 %v1962, 4
      %v1969 = vpop.permute.xlu0 %1968
      %1970 = vrot.lane.b32.xlu0 %v1963, 4
      %v1971 = vpop.permute.xlu0 %1970
      %1972 = vrot.lane.b32.xlu0 %v1964, 4
      %v1973 = vpop.permute.xlu0 %1972
      %vm1974 = vcmask 31744
      %v1975 = vsel %vm1974, %v1969, %v1971
      %v1976 = vsel %vm1974, %v1971, %v1973
      %1979 = vst [vmem:[#allocation2 + $0x90] sm:$0x3] %v1975
      %1980 = vst [vmem:[#allocation2 + $0x98] sm:$0x3] %v1976
      %vm1981 = vmand %vm1939, %vm396
      %vm1982 = vmand %vm1981, %vm398
      %v1983 = vsel %vm1982, 1, 0
      %v1984 = vcvt.s32.f32 %v1983
      %v1986 = vlaneseq
      %v1987 = vshrl.u32 %v1986, 7
      %v1988 = vsub.s32 0, %v1987
      %v1989 = vrot.slane %v1984, %v1988
      %v1990 = vlaneseq
      %v1991 = vshrl.u32 %v1990, 7
      %v1992 = vsub.s32 1, %v1991
      %v1993 = vrot.slane %v1984, %v1992
      %1994 = vrot.lane.b32.xlu0 %v1989, 125
      %v1995 = vpop.permute.xlu0 %1994
      %1996 = vrot.lane.b32.xlu0 %v1993, 125
      %v1997 = vpop.permute.xlu0 %1996
      %vm1998 = vcmask 1022976
      %v1999 = vsel %vm1998, %v1995, %v1997
      %v2003 = vmul.f32 %v1995, 0.0
      %v2004 = vmul.f32 %v343, %v1999
      %v2005 = vmul.f32 %v344, %v1997
      %v2009 = vrot.slane %v2003, 6
      %v2010 = vrot.slane %v2004, 6
      %v2011 = vrot.slane %v2005, 6
      %2012 = vrot.lane.b32.xlu0 %v2009, 3
      %v2013 = vpop.permute.xlu0 %2012
      %2014 = vrot.lane.b32.xlu0 %v2010, 3
      %v2015 = vpop.permute.xlu0 %2014
      %2016 = vrot.lane.b32.xlu0 %v2011, 3
      %v2017 = vpop.permute.xlu0 %2016
      %vm2018 = vcmask 23552
      %v2019 = vsel %vm2018, %v2013, %v2015
      %v2020 = vsel %vm2018, %v2015, %v2017
      %2023 = vst [vmem:[#allocation2 + $0x90] sm:$0xc] %v2019
      %2024 = vst [vmem:[#allocation2 + $0x98] sm:$0xc] %v2020
      %vm2025 = vmand %vm1939, %vm443
      %vm2026 = vmand %vm2025, %vm445
      %v2027 = vsel %vm2026, 1, 0
      %v2028 = vcvt.s32.f32 %v2027
      %v2030 = vlaneseq
      %v2031 = vshrl.u32 %v2030, 7
      %v2032 = vsub.s32 0, %v2031
      %v2033 = vrot.slane %v2028, %v2032
      %v2034 = vlaneseq
      %v2035 = vshrl.u32 %v2034, 7
      %v2036 = vsub.s32 1, %v2035
      %v2037 = vrot.slane %v2028, %v2036
      %2038 = vrot.lane.b32.xlu0 %v2033, 126
      %v2039 = vpop.permute.xlu0 %2038
      %2040 = vrot.lane.b32.xlu0 %v2037, 126
      %v2041 = vpop.permute.xlu0 %2040
      %vm2042 = vcmask 1031168
      %v2043 = vsel %vm2042, %v2039, %v2041
      %v2047 = vmul.f32 %v2039, 0.0
      %v2048 = vmul.f32 %v343, %v2043
      %v2049 = vmul.f32 %v344, %v2041
      %v2053 = vrot.slane %v2047, 4
      %v2054 = vrot.slane %v2048, 4
      %v2055 = vrot.slane %v2049, 4
      %2056 = vrot.lane.b32.xlu0 %v2053, 2
      %v2057 = vpop.permute.xlu0 %2056
      %2058 = vrot.lane.b32.xlu0 %v2054, 2
      %v2059 = vpop.permute.xlu0 %2058
      %2060 = vrot.lane.b32.xlu0 %v2055, 2
      %v2061 = vpop.permute.xlu0 %2060
      %vm2062 = vcmask 15360
      %v2063 = vsel %vm2062, %v2057, %v2059
      %v2064 = vsel %vm2062, %v2059, %v2061
      %2067 = vst [vmem:[#allocation2 + $0x90] sm:$0x30] %v2063
      %2068 = vst [vmem:[#allocation2 + $0x98] sm:$0x30] %v2064
      %vm2069 = vmand %vm1939, %vm490
      %vm2070 = vmand %vm2069, %vm492
      %v2071 = vsel %vm2070, 1, 0
      %v2072 = vcvt.s32.f32 %v2071
      %v2074 = vlaneseq
      %v2075 = vshrl.u32 %v2074, 7
      %v2076 = vsub.s32 0, %v2075
      %v2077 = vrot.slane %v2072, %v2076
      %v2078 = vlaneseq
      %v2079 = vshrl.u32 %v2078, 7
      %v2080 = vsub.s32 1, %v2079
      %v2081 = vrot.slane %v2072, %v2080
      %2082 = vrot.lane.b32.xlu0 %v2077, 127
      %v2083 = vpop.permute.xlu0 %2082
      %2084 = vrot.lane.b32.xlu0 %v2081, 127
      %v2085 = vpop.permute.xlu0 %2084
      %vm2086 = vcmask 1039360
      %v2087 = vsel %vm2086, %v2083, %v2085
      %v2091 = vmul.f32 %v2083, 0.0
      %v2092 = vmul.f32 %v343, %v2087
      %v2093 = vmul.f32 %v344, %v2085
      %v2097 = vrot.slane %v2091, 2
      %v2098 = vrot.slane %v2092, 2
      %v2099 = vrot.slane %v2093, 2
      %2100 = vrot.lane.b32.xlu0 %v2097, 1
      %v2101 = vpop.permute.xlu0 %2100
      %2102 = vrot.lane.b32.xlu0 %v2098, 1
      %v2103 = vpop.permute.xlu0 %2102
      %2104 = vrot.lane.b32.xlu0 %v2099, 1
      %v2105 = vpop.permute.xlu0 %2104
      %vm2106 = vcmask 7168
      %v2107 = vsel %vm2106, %v2101, %v2103
      %v2108 = vsel %vm2106, %v2103, %v2105
      %2111 = vst [vmem:[#allocation2 + $0x90] sm:$0xc0] %v2107
      %2112 = vst [vmem:[#allocation2 + $0x98] sm:$0xc0] %v2108
      %vm2113 = vmand %vm1939, %vm536
      %vm2114 = vmand %vm2113, %vm538
      %v2115 = vsel %vm2114, 1, 0
      %v2116 = vcvt.s32.f32 %v2115
      %v2118 = vlaneseq
      %v2119 = vshrl.u32 %v2118, 7
      %v2120 = vsub.s32 0, %v2119
      %v2121 = vrot.slane %v2116, %v2120
      %v2122 = vlaneseq
      %v2123 = vshrl.u32 %v2122, 7
      %v2124 = vsub.s32 1, %v2123
      %v2125 = vrot.slane %v2116, %v2124
      %v2128 = vmul.f32 %v343, %v2121
      %v2129 = vmul.f32 %v344, %v2125
      %2130 = vst [vmem:[#allocation2 + $0xa0] sm:$0x3] %v2128
      %2131 = vst [vmem:[#allocation2 + $0xa8] sm:$0x3] %v2129
      %vm2132 = vmand %vm1939, %vm579
      %vm2133 = vmand %vm2132, %vm581
      %v2134 = vsel %vm2133, 1, 0
      %v2135 = vcvt.s32.f32 %v2134
      %v2137 = vlaneseq
      %v2138 = vshrl.u32 %v2137, 7
      %v2139 = vsub.s32 0, %v2138
      %v2140 = vrot.slane %v2135, %v2139
      %v2141 = vlaneseq
      %v2142 = vshrl.u32 %v2141, 7
      %v2143 = vsub.s32 1, %v2142
      %v2144 = vrot.slane %v2135, %v2143
      %2145 = vrot.lane.b32.xlu0 %v2140, 1
      %v2146 = vpop.permute.xlu0 %2145
      %2147 = vrot.lane.b32.xlu0 %v2144, 1
      %v2148 = vpop.permute.xlu0 %2147
      %v2149 = vsel %vm2106, %v2146, %v2148
      %v2153 = vmul.f32 %v343, %v2146
      %v2154 = vmul.f32 %v344, %v2149
      %v2155 = vmul.f32 %v2148, 0.0
      %v2159 = vrot.slane %v2153, 6
      %v2160 = vrot.slane %v2154, 6
      %v2161 = vrot.slane %v2155, 6
      %2162 = vrot.lane.b32.xlu0 %v2159, 127
      %v2163 = vpop.permute.xlu0 %2162
      %2164 = vrot.lane.b32.xlu0 %v2160, 127
      %v2165 = vpop.permute.xlu0 %2164
      %2166 = vrot.lane.b32.xlu0 %v2161, 127
      %v2167 = vpop.permute.xlu0 %2166
      %v2168 = vsel %vm2086, %v2163, %v2165
      %v2169 = vsel %vm2086, %v2165, %v2167
      %2172 = vst [vmem:[#allocation2 + $0xa0] sm:$0xc] %v2168
      %2173 = vst [vmem:[#allocation2 + $0xa8] sm:$0xc] %v2169
      %vm2174 = vmand %vm1939, %vm624
      %vm2175 = vmand %vm2174, %vm626
      %v2176 = vsel %vm2175, 1, 0
      %v2177 = vcvt.s32.f32 %v2176
      %v2179 = vlaneseq
      %v2180 = vshrl.u32 %v2179, 7
      %v2181 = vsub.s32 0, %v2180
      %v2182 = vrot.slane %v2177, %v2181
      %v2183 = vlaneseq
      %v2184 = vshrl.u32 %v2183, 7
      %v2185 = vsub.s32 1, %v2184
      %v2186 = vrot.slane %v2177, %v2185
      %2187 = vrot.lane.b32.xlu0 %v2182, 2
      %v2188 = vpop.permute.xlu0 %2187
      %2189 = vrot.lane.b32.xlu0 %v2186, 2
      %v2190 = vpop.permute.xlu0 %2189
      %v2191 = vsel %vm2062, %v2188, %v2190
      %v2195 = vmul.f32 %v343, %v2188
      %v2196 = vmul.f32 %v344, %v2191
      %v2197 = vmul.f32 %v2190, 0.0
      %v2201 = vrot.slane %v2195, 4
      %v2202 = vrot.slane %v2196, 4
      %v2203 = vrot.slane %v2197, 4
      %2204 = vrot.lane.b32.xlu0 %v2201, 126
      %v2205 = vpop.permute.xlu0 %2204
      %2206 = vrot.lane.b32.xlu0 %v2202, 126
      %v2207 = vpop.permute.xlu0 %2206
      %2208 = vrot.lane.b32.xlu0 %v2203, 126
      %v2209 = vpop.permute.xlu0 %2208
      %v2210 = vsel %vm2042, %v2205, %v2207
      %v2211 = vsel %vm2042, %v2207, %v2209
      %2214 = vst [vmem:[#allocation2 + $0xa0] sm:$0x30] %v2210
      %2215 = vst [vmem:[#allocation2 + $0xa8] sm:$0x30] %v2211
      %vm2216 = vmand %vm1939, %vm669
      %vm2217 = vmand %vm2216, %vm671
      %v2218 = vsel %vm2217, 1, 0
      %v2219 = vcvt.s32.f32 %v2218
      %v2221 = vlaneseq
      %v2222 = vshrl.u32 %v2221, 7
      %v2223 = vsub.s32 0, %v2222
      %v2224 = vrot.slane %v2219, %v2223
      %v2225 = vlaneseq
      %v2226 = vshrl.u32 %v2225, 7
      %v2227 = vsub.s32 1, %v2226
      %v2228 = vrot.slane %v2219, %v2227
      %2229 = vrot.lane.b32.xlu0 %v2224, 3
      %v2230 = vpop.permute.xlu0 %2229
      %2231 = vrot.lane.b32.xlu0 %v2228, 3
      %v2232 = vpop.permute.xlu0 %2231
      %v2233 = vsel %vm2018, %v2230, %v2232
      %v2237 = vmul.f32 %v343, %v2230
      %v2238 = vmul.f32 %v344, %v2233
      %v2239 = vmul.f32 %v2232, 0.0
      %v2243 = vrot.slane %v2237, 2
      %v2244 = vrot.slane %v2238, 2
      %v2245 = vrot.slane %v2239, 2
      %2246 = vrot.lane.b32.xlu0 %v2243, 125
      %v2247 = vpop.permute.xlu0 %2246
      %2248 = vrot.lane.b32.xlu0 %v2244, 125
      %v2249 = vpop.permute.xlu0 %2248
      %2250 = vrot.lane.b32.xlu0 %v2245, 125
      %v2251 = vpop.permute.xlu0 %2250
      %v2252 = vsel %vm1998, %v2247, %v2249
      %v2253 = vsel %vm1998, %v2249, %v2251
      %2256 = vst [vmem:[#allocation2 + $0xa0] sm:$0xc0] %v2252
      %2257 = vst [vmem:[#allocation2 + $0xa8] sm:$0xc0] %v2253
      %vm2258 = vmand %vm1939, %vm714
      %vm2259 = vmand %vm2258, %vm716
      %v2260 = vsel %vm2259, 1, 0
      %v2261 = vcvt.s32.f32 %v2260
      %v2263 = vlaneseq
      %v2264 = vshrl.u32 %v2263, 7
      %v2265 = vsub.s32 0, %v2264
      %v2266 = vrot.slane %v2261, %v2265
      %v2267 = vlaneseq
      %v2268 = vshrl.u32 %v2267, 7
      %v2269 = vsub.s32 1, %v2268
      %v2270 = vrot.slane %v2261, %v2269
      %2271 = vrot.lane.b32.xlu0 %v2266, 4
      %v2272 = vpop.permute.xlu0 %2271
      %2273 = vrot.lane.b32.xlu0 %v2270, 4
      %v2274 = vpop.permute.xlu0 %2273
      %v2275 = vsel %vm1974, %v2272, %v2274
      %v2279 = vmul.f32 %v343, %v2272
      %v2280 = vmul.f32 %v344, %v2275
      %v2281 = vmul.f32 %v2274, 0.0
      %2285 = vrot.lane.b32.xlu0 %v2279, 124
      %v2286 = vpop.permute.xlu0 %2285
      %2287 = vrot.lane.b32.xlu0 %v2280, 124
      %v2288 = vpop.permute.xlu0 %2287
      %2289 = vrot.lane.b32.xlu0 %v2281, 124
      %v2290 = vpop.permute.xlu0 %2289
      %v2291 = vsel %vm1957, %v2286, %v2288
      %v2292 = vsel %vm1957, %v2288, %v2290
      %2295 = vst [vmem:[#allocation2 + $0xb0] sm:$0x3] %v2291
      %2296 = vst [vmem:[#allocation2 + $0xb8] sm:$0x3] %v2292
      %v2297 = vadd.s32 %v333, 1
      %vm2298 = vcmp.ge.s32.totalorder %v2297, 0
      %vm2299 = vcmp.lt.s32.totalorder %v2297, 16
      %vm2300 = vmand %vm2298, %vm2299
      %vm2301 = vmand %vm2300, %vm352
      %vm2302 = vmand %vm2301, %vm354
      %v2303 = vsel %vm2302, 1, 0
      %v2304 = vcvt.s32.f32 %v2303
      %v2306 = vlaneseq
      %v2307 = vshrl.u32 %v2306, 7
      %v2308 = vsub.s32 0, %v2307
      %v2309 = vrot.slane %v2304, %v2308
      %v2310 = vlaneseq
      %v2311 = vshrl.u32 %v2310, 7
      %v2312 = vsub.s32 1, %v2311
      %v2313 = vrot.slane %v2304, %v2312
      %2314 = vrot.lane.b32.xlu0 %v2309, 12
      %v2315 = vpop.permute.xlu0 %2314
      %2316 = vrot.lane.b32.xlu0 %v2313, 12
      %v2317 = vpop.permute.xlu0 %2316
      %v2318 = vsel %vm1930, %v2315, %v2317
      %v2322 = vmul.f32 %v343, %v2315
      %v2323 = vmul.f32 %v344, %v2318
      %v2324 = vmul.f32 %v2317, 0.0
      %v2328 = vrot.slane %v2322, 6
      %v2329 = vrot.slane %v2323, 6
      %v2330 = vrot.slane %v2324, 6
      %2331 = vrot.lane.b32.xlu0 %v2328, 116
      %v2332 = vpop.permute.xlu0 %2331
      %2333 = vrot.lane.b32.xlu0 %v2329, 116
      %v2334 = vpop.permute.xlu0 %2333
      %2335 = vrot.lane.b32.xlu0 %v2330, 116
      %v2336 = vpop.permute.xlu0 %2335
      %v2337 = vsel %vm1910, %v2332, %v2334
      %v2338 = vsel %vm1910, %v2334, %v2336
      %2341 = vst [vmem:[#allocation2 + $0xb0] sm:$0xc] %v2337
      %2342 = vst [vmem:[#allocation2 + $0xb8] sm:$0xc] %v2338
      %vm2343 = vmand %vm2300, %vm396
      %vm2344 = vmand %vm2343, %vm398
      %v2345 = vsel %vm2344, 1, 0
      %v2346 = vcvt.s32.f32 %v2345
      %v2348 = vlaneseq
      %v2349 = vshrl.u32 %v2348, 7
      %v2350 = vsub.s32 0, %v2349
      %v2351 = vrot.slane %v2346, %v2350
      %v2352 = vlaneseq
      %v2353 = vshrl.u32 %v2352, 7
      %v2354 = vsub.s32 1, %v2353
      %v2355 = vrot.slane %v2346, %v2354
      %2356 = vrot.lane.b32.xlu0 %v2351, 13
      %v2357 = vpop.permute.xlu0 %2356
      %2358 = vrot.lane.b32.xlu0 %v2355, 13
      %v2359 = vpop.permute.xlu0 %2358
      %v2360 = vsel %vm1886, %v2357, %v2359
      %v2364 = vmul.f32 %v343, %v2357
      %v2365 = vmul.f32 %v344, %v2360
      %v2366 = vmul.f32 %v2359, 0.0
      %v2370 = vrot.slane %v2364, 4
      %v2371 = vrot.slane %v2365, 4
      %v2372 = vrot.slane %v2366, 4
      %2373 = vrot.lane.b32.xlu0 %v2370, 115
      %v2374 = vpop.permute.xlu0 %2373
      %2375 = vrot.lane.b32.xlu0 %v2371, 115
      %v2376 = vpop.permute.xlu0 %2375
      %2377 = vrot.lane.b32.xlu0 %v2372, 115
      %v2378 = vpop.permute.xlu0 %2377
      %v2379 = vsel %vm1866, %v2374, %v2376
      %v2380 = vsel %vm1866, %v2376, %v2378
      %2383 = vst [vmem:[#allocation2 + $0xb0] sm:$0x30] %v2379
      %2384 = vst [vmem:[#allocation2 + $0xb8] sm:$0x30] %v2380
      %vm2385 = vmand %vm2300, %vm443
      %vm2386 = vmand %vm2385, %vm445
      %v2387 = vsel %vm2386, 1, 0
      %v2388 = vcvt.s32.f32 %v2387
      %v2390 = vlaneseq
      %v2391 = vshrl.u32 %v2390, 7
      %v2392 = vsub.s32 0, %v2391
      %v2393 = vrot.slane %v2388, %v2392
      %v2394 = vlaneseq
      %v2395 = vshrl.u32 %v2394, 7
      %v2396 = vsub.s32 1, %v2395
      %v2397 = vrot.slane %v2388, %v2396
      %2398 = vrot.lane.b32.xlu0 %v2393, 14
      %v2399 = vpop.permute.xlu0 %2398
      %2400 = vrot.lane.b32.xlu0 %v2397, 14
      %v2401 = vpop.permute.xlu0 %2400
      %v2402 = vsel %vm1842, %v2399, %v2401
      %v2406 = vmul.f32 %v343, %v2399
      %v2407 = vmul.f32 %v344, %v2402
      %v2408 = vmul.f32 %v2401, 0.0
      %v2412 = vrot.slane %v2406, 2
      %v2413 = vrot.slane %v2407, 2
      %v2414 = vrot.slane %v2408, 2
      %2415 = vrot.lane.b32.xlu0 %v2412, 114
      %v2416 = vpop.permute.xlu0 %2415
      %2417 = vrot.lane.b32.xlu0 %v2413, 114
      %v2418 = vpop.permute.xlu0 %2417
      %2419 = vrot.lane.b32.xlu0 %v2414, 114
      %v2420 = vpop.permute.xlu0 %2419
      %v2421 = vsel %vm1822, %v2416, %v2418
      %v2422 = vsel %vm1822, %v2418, %v2420
      %2425 = vst [vmem:[#allocation2 + $0xb0] sm:$0xc0] %v2421
      %2426 = vst [vmem:[#allocation2 + $0xb8] sm:$0xc0] %v2422
      %vm2427 = vmand %vm2300, %vm490
      %vm2428 = vmand %vm2427, %vm492
      %v2429 = vsel %vm2428, 1, 0
      %v2430 = vcvt.s32.f32 %v2429
      %v2432 = vlaneseq
      %v2433 = vshrl.u32 %v2432, 7
      %v2434 = vsub.s32 0, %v2433
      %v2435 = vrot.slane %v2430, %v2434
      %v2436 = vlaneseq
      %v2437 = vshrl.u32 %v2436, 7
      %v2438 = vsub.s32 1, %v2437
      %v2439 = vrot.slane %v2430, %v2438
      %2440 = vrot.lane.b32.xlu0 %v2435, 15
      %v2441 = vpop.permute.xlu0 %2440
      %2442 = vrot.lane.b32.xlu0 %v2439, 15
      %v2443 = vpop.permute.xlu0 %2442
      %v2444 = vsel %vm1798, %v2441, %v2443
      %v2448 = vmul.f32 %v343, %v2441
      %v2449 = vmul.f32 %v344, %v2444
      %v2450 = vmul.f32 %v2443, 0.0
      %2454 = vrot.lane.b32.xlu0 %v2448, 113
      %v2455 = vpop.permute.xlu0 %2454
      %2456 = vrot.lane.b32.xlu0 %v2449, 113
      %v2457 = vpop.permute.xlu0 %2456
      %2458 = vrot.lane.b32.xlu0 %v2450, 113
      %v2459 = vpop.permute.xlu0 %2458
      %v2460 = vsel %vm1781, %v2455, %v2457
      %v2461 = vsel %vm1781, %v2457, %v2459
      %2464 = vst [vmem:[#allocation2 + $0xc0] sm:$0x3] %v2460
      %2465 = vst [vmem:[#allocation2 + $0xc8] sm:$0x3] %v2461
      %vm2466 = vmand %vm2300, %vm536
      %vm2467 = vmand %vm2466, %vm538
      %v2468 = vsel %vm2467, 1, 0
      %v2469 = vcvt.s32.f32 %v2468
      %v2471 = vlaneseq
      %v2472 = vshrl.u32 %v2471, 7
      %v2473 = vsub.s32 0, %v2472
      %v2474 = vrot.slane %v2469, %v2473
      %v2475 = vlaneseq
      %v2476 = vshrl.u32 %v2475, 7
      %v2477 = vsub.s32 1, %v2476
      %v2478 = vrot.slane %v2469, %v2477
      %2479 = vrot.lane.b32.xlu0 %v2474, 16
      %v2480 = vpop.permute.xlu0 %2479
      %2481 = vrot.lane.b32.xlu0 %v2478, 16
      %v2482 = vpop.permute.xlu0 %2481
      %v2483 = vsel %vm1757, %v2480, %v2482
      %v2487 = vmul.f32 %v343, %v2480
      %v2488 = vmul.f32 %v344, %v2483
      %v2489 = vmul.f32 %v2482, 0.0
      %v2493 = vrot.slane %v2487, 6
      %v2494 = vrot.slane %v2488, 6
      %v2495 = vrot.slane %v2489, 6
      %2496 = vrot.lane.b32.xlu0 %v2493, 112
      %v2497 = vpop.permute.xlu0 %2496
      %2498 = vrot.lane.b32.xlu0 %v2494, 112
      %v2499 = vpop.permute.xlu0 %2498
      %2500 = vrot.lane.b32.xlu0 %v2495, 112
      %v2501 = vpop.permute.xlu0 %2500
      %v2502 = vsel %vm1737, %v2497, %v2499
      %v2503 = vsel %vm1737, %v2499, %v2501
      %2506 = vst [vmem:[#allocation2 + $0xc0] sm:$0xc] %v2502
      %2507 = vst [vmem:[#allocation2 + $0xc8] sm:$0xc] %v2503
      %vm2508 = vmand %vm2300, %vm579
      %vm2509 = vmand %vm2508, %vm581
      %v2510 = vsel %vm2509, 1, 0
      %v2511 = vcvt.s32.f32 %v2510
      %v2513 = vlaneseq
      %v2514 = vshrl.u32 %v2513, 7
      %v2515 = vsub.s32 0, %v2514
      %v2516 = vrot.slane %v2511, %v2515
      %v2517 = vlaneseq
      %v2518 = vshrl.u32 %v2517, 7
      %v2519 = vsub.s32 1, %v2518
      %v2520 = vrot.slane %v2511, %v2519
      %2521 = vrot.lane.b32.xlu0 %v2516, 17
      %v2522 = vpop.permute.xlu0 %2521
      %2523 = vrot.lane.b32.xlu0 %v2520, 17
      %v2524 = vpop.permute.xlu0 %2523
      %v2525 = vsel %vm1713, %v2522, %v2524
      %v2529 = vmul.f32 %v343, %v2522
      %v2530 = vmul.f32 %v344, %v2525
      %v2531 = vmul.f32 %v2524, 0.0
      %v2535 = vrot.slane %v2529, 4
      %v2536 = vrot.slane %v2530, 4
      %v2537 = vrot.slane %v2531, 4
      %2538 = vrot.lane.b32.xlu0 %v2535, 111
      %v2539 = vpop.permute.xlu0 %2538
      %2540 = vrot.lane.b32.xlu0 %v2536, 111
      %v2541 = vpop.permute.xlu0 %2540
      %2542 = vrot.lane.b32.xlu0 %v2537, 111
      %v2543 = vpop.permute.xlu0 %2542
      %v2544 = vsel %vm1693, %v2539, %v2541
      %v2545 = vsel %vm1693, %v2541, %v2543
      %2548 = vst [vmem:[#allocation2 + $0xc0] sm:$0x30] %v2544
      %2549 = vst [vmem:[#allocation2 + $0xc8] sm:$0x30] %v2545
      %vm2550 = vmand %vm2300, %vm624
      %vm2551 = vmand %vm2550, %vm626
      %v2552 = vsel %vm2551, 1, 0
      %v2553 = vcvt.s32.f32 %v2552
      %v2555 = vlaneseq
      %v2556 = vshrl.u32 %v2555, 7
      %v2557 = vsub.s32 0, %v2556
      %v2558 = vrot.slane %v2553, %v2557
      %v2559 = vlaneseq
      %v2560 = vshrl.u32 %v2559, 7
      %v2561 = vsub.s32 1, %v2560
      %v2562 = vrot.slane %v2553, %v2561
      %2563 = vrot.lane.b32.xlu0 %v2558, 18
      %v2564 = vpop.permute.xlu0 %2563
      %2565 = vrot.lane.b32.xlu0 %v2562, 18
      %v2566 = vpop.permute.xlu0 %2565
      %v2567 = vsel %vm1669, %v2564, %v2566
      %v2571 = vmul.f32 %v343, %v2564
      %v2572 = vmul.f32 %v344, %v2567
      %v2573 = vmul.f32 %v2566, 0.0
      %v2577 = vrot.slane %v2571, 2
      %v2578 = vrot.slane %v2572, 2
      %v2579 = vrot.slane %v2573, 2
      %2580 = vrot.lane.b32.xlu0 %v2577, 110
      %v2581 = vpop.permute.xlu0 %2580
      %2582 = vrot.lane.b32.xlu0 %v2578, 110
      %v2583 = vpop.permute.xlu0 %2582
      %2584 = vrot.lane.b32.xlu0 %v2579, 110
      %v2585 = vpop.permute.xlu0 %2584
      %v2586 = vsel %vm1649, %v2581, %v2583
      %v2587 = vsel %vm1649, %v2583, %v2585
      %2590 = vst [vmem:[#allocation2 + $0xc0] sm:$0xc0] %v2586
      %2591 = vst [vmem:[#allocation2 + $0xc8] sm:$0xc0] %v2587
      %vm2592 = vmand %vm2300, %vm669
      %vm2593 = vmand %vm2592, %vm671
      %v2594 = vsel %vm2593, 1, 0
      %v2595 = vcvt.s32.f32 %v2594
      %v2597 = vlaneseq
      %v2598 = vshrl.u32 %v2597, 7
      %v2599 = vsub.s32 0, %v2598
      %v2600 = vrot.slane %v2595, %v2599
      %v2601 = vlaneseq
      %v2602 = vshrl.u32 %v2601, 7
      %v2603 = vsub.s32 1, %v2602
      %v2604 = vrot.slane %v2595, %v2603
      %2605 = vrot.lane.b32.xlu0 %v2600, 19
      %v2606 = vpop.permute.xlu0 %2605
      %2607 = vrot.lane.b32.xlu0 %v2604, 19
      %v2608 = vpop.permute.xlu0 %2607
      %v2609 = vsel %vm1625, %v2606, %v2608
      %v2613 = vmul.f32 %v343, %v2606
      %v2614 = vmul.f32 %v344, %v2609
      %v2615 = vmul.f32 %v2608, 0.0
      %2619 = vrot.lane.b32.xlu0 %v2613, 109
      %v2620 = vpop.permute.xlu0 %2619
      %2621 = vrot.lane.b32.xlu0 %v2614, 109
      %v2622 = vpop.permute.xlu0 %2621
      %2623 = vrot.lane.b32.xlu0 %v2615, 109
      %v2624 = vpop.permute.xlu0 %2623
      %v2625 = vsel %vm1608, %v2620, %v2622
      %v2626 = vsel %vm1608, %v2622, %v2624
      %2629 = vst [vmem:[#allocation2 + $0xd0] sm:$0x3] %v2625
      %2630 = vst [vmem:[#allocation2 + $0xd8] sm:$0x3] %v2626
      %vm2631 = vmand %vm2300, %vm714
      %vm2632 = vmand %vm2631, %vm716
      %v2633 = vsel %vm2632, 1, 0
      %v2634 = vcvt.s32.f32 %v2633
      %v2636 = vlaneseq
      %v2637 = vshrl.u32 %v2636, 7
      %v2638 = vsub.s32 0, %v2637
      %v2639 = vrot.slane %v2634, %v2638
      %v2640 = vlaneseq
      %v2641 = vshrl.u32 %v2640, 7
      %v2642 = vsub.s32 1, %v2641
      %v2643 = vrot.slane %v2634, %v2642
      %2644 = vrot.lane.b32.xlu0 %v2639, 20
      %v2645 = vpop.permute.xlu0 %2644
      %2646 = vrot.lane.b32.xlu0 %v2643, 20
      %v2647 = vpop.permute.xlu0 %2646
      %v2648 = vsel %vm1584, %v2645, %v2647
      %v2652 = vmul.f32 %v343, %v2645
      %v2653 = vmul.f32 %v344, %v2648
      %v2654 = vmul.f32 %v2647, 0.0
      %v2658 = vrot.slane %v2652, 6
      %v2659 = vrot.slane %v2653, 6
      %v2660 = vrot.slane %v2654, 6
      %2661 = vrot.lane.b32.xlu0 %v2658, 108
      %v2662 = vpop.permute.xlu0 %2661
      %2663 = vrot.lane.b32.xlu0 %v2659, 108
      %v2664 = vpop.permute.xlu0 %2663
      %2665 = vrot.lane.b32.xlu0 %v2660, 108
      %v2666 = vpop.permute.xlu0 %2665
      %v2667 = vsel %vm1564, %v2662, %v2664
      %v2668 = vsel %vm1564, %v2664, %v2666
      %2671 = vst [vmem:[#allocation2 + $0xd0] sm:$0xc] %v2667
      %2672 = vst [vmem:[#allocation2 + $0xd8] sm:$0xc] %v2668
      %v2673 = vadd.s32 %v333, 2
      %vm2674 = vcmp.ge.s32.totalorder %v2673, 0
      %vm2675 = vcmp.lt.s32.totalorder %v2673, 16
      %vm2676 = vmand %vm2674, %vm2675
      %vm2677 = vmand %vm2676, %vm352
      %vm2678 = vmand %vm2677, %vm354
      %v2679 = vsel %vm2678, 1, 0
      %v2680 = vcvt.s32.f32 %v2679
      %v2682 = vlaneseq
      %v2683 = vshrl.u32 %v2682, 7
      %v2684 = vsub.s32 0, %v2683
      %v2685 = vrot.slane %v2680, %v2684
      %v2686 = vlaneseq
      %v2687 = vshrl.u32 %v2686, 7
      %v2688 = vsub.s32 1, %v2687
      %v2689 = vrot.slane %v2680, %v2688
      %2690 = vrot.lane.b32.xlu0 %v2685, 28
      %v2691 = vpop.permute.xlu0 %2690
      %2692 = vrot.lane.b32.xlu0 %v2689, 28
      %v2693 = vpop.permute.xlu0 %2692
      %v2694 = vsel %vm1536, %v2691, %v2693
      %v2698 = vmul.f32 %v343, %v2691
      %v2699 = vmul.f32 %v344, %v2694
      %v2700 = vmul.f32 %v2693, 0.0
      %v2704 = vrot.slane %v2698, 4
      %v2705 = vrot.slane %v2699, 4
      %v2706 = vrot.slane %v2700, 4
      %2707 = vrot.lane.b32.xlu0 %v2704, 100
      %v2708 = vpop.permute.xlu0 %2707
      %2709 = vrot.lane.b32.xlu0 %v2705, 100
      %v2710 = vpop.permute.xlu0 %2709
      %2711 = vrot.lane.b32.xlu0 %v2706, 100
      %v2712 = vpop.permute.xlu0 %2711
      %v2713 = vsel %vm1516, %v2708, %v2710
      %v2714 = vsel %vm1516, %v2710, %v2712
      %2717 = vst [vmem:[#allocation2 + $0xd0] sm:$0x30] %v2713
      %2718 = vst [vmem:[#allocation2 + $0xd8] sm:$0x30] %v2714
      %vm2719 = vmand %vm2676, %vm396
      %vm2720 = vmand %vm2719, %vm398
      %v2721 = vsel %vm2720, 1, 0
      %v2722 = vcvt.s32.f32 %v2721
      %v2724 = vlaneseq
      %v2725 = vshrl.u32 %v2724, 7
      %v2726 = vsub.s32 0, %v2725
      %v2727 = vrot.slane %v2722, %v2726
      %v2728 = vlaneseq
      %v2729 = vshrl.u32 %v2728, 7
      %v2730 = vsub.s32 1, %v2729
      %v2731 = vrot.slane %v2722, %v2730
      %2732 = vrot.lane.b32.xlu0 %v2727, 29
      %v2733 = vpop.permute.xlu0 %2732
      %2734 = vrot.lane.b32.xlu0 %v2731, 29
      %v2735 = vpop.permute.xlu0 %2734
      %v2736 = vsel %vm1492, %v2733, %v2735
      %v2740 = vmul.f32 %v343, %v2733
      %v2741 = vmul.f32 %v344, %v2736
      %v2742 = vmul.f32 %v2735, 0.0
      %v2746 = vrot.slane %v2740, 2
      %v2747 = vrot.slane %v2741, 2
      %v2748 = vrot.slane %v2742, 2
      %2749 = vrot.lane.b32.xlu0 %v2746, 99
      %v2750 = vpop.permute.xlu0 %2749
      %2751 = vrot.lane.b32.xlu0 %v2747, 99
      %v2752 = vpop.permute.xlu0 %2751
      %2753 = vrot.lane.b32.xlu0 %v2748, 99
      %v2754 = vpop.permute.xlu0 %2753
      %v2755 = vsel %vm1472, %v2750, %v2752
      %v2756 = vsel %vm1472, %v2752, %v2754
      %2759 = vst [vmem:[#allocation2 + $0xd0] sm:$0xc0] %v2755
      %2760 = vst [vmem:[#allocation2 + $0xd8] sm:$0xc0] %v2756
      %vm2761 = vmand %vm2676, %vm443
      %vm2762 = vmand %vm2761, %vm445
      %v2763 = vsel %vm2762, 1, 0
      %v2764 = vcvt.s32.f32 %v2763
      %v2766 = vlaneseq
      %v2767 = vshrl.u32 %v2766, 7
      %v2768 = vsub.s32 0, %v2767
      %v2769 = vrot.slane %v2764, %v2768
      %v2770 = vlaneseq
      %v2771 = vshrl.u32 %v2770, 7
      %v2772 = vsub.s32 1, %v2771
      %v2773 = vrot.slane %v2764, %v2772
      %2774 = vrot.lane.b32.xlu0 %v2769, 30
      %v2775 = vpop.permute.xlu0 %2774
      %2776 = vrot.lane.b32.xlu0 %v2773, 30
      %v2777 = vpop.permute.xlu0 %2776
      %v2778 = vsel %vm1448, %v2775, %v2777
      %v2782 = vmul.f32 %v343, %v2775
      %v2783 = vmul.f32 %v344, %v2778
      %v2784 = vmul.f32 %v2777, 0.0
      %2788 = vrot.lane.b32.xlu0 %v2782, 98
      %v2789 = vpop.permute.xlu0 %2788
      %2790 = vrot.lane.b32.xlu0 %v2783, 98
      %v2791 = vpop.permute.xlu0 %2790
      %2792 = vrot.lane.b32.xlu0 %v2784, 98
      %v2793 = vpop.permute.xlu0 %2792
      %v2794 = vsel %vm1431, %v2789, %v2791
      %v2795 = vsel %vm1431, %v2791, %v2793
      %2798 = vst [vmem:[#allocation2 + $0xe0] sm:$0x3] %v2794
      %2799 = vst [vmem:[#allocation2 + $0xe8] sm:$0x3] %v2795
      %vm2800 = vmand %vm2676, %vm490
      %vm2801 = vmand %vm2800, %vm492
      %v2802 = vsel %vm2801, 1, 0
      %v2803 = vcvt.s32.f32 %v2802
      %v2805 = vlaneseq
      %v2806 = vshrl.u32 %v2805, 7
      %v2807 = vsub.s32 0, %v2806
      %v2808 = vrot.slane %v2803, %v2807
      %v2809 = vlaneseq
      %v2810 = vshrl.u32 %v2809, 7
      %v2811 = vsub.s32 1, %v2810
      %v2812 = vrot.slane %v2803, %v2811
      %2813 = vrot.lane.b32.xlu0 %v2808, 31
      %v2814 = vpop.permute.xlu0 %2813
      %2815 = vrot.lane.b32.xlu0 %v2812, 31
      %v2816 = vpop.permute.xlu0 %2815
      %v2817 = vsel %vm1407, %v2814, %v2816
      %v2821 = vmul.f32 %v343, %v2814
      %v2822 = vmul.f32 %v344, %v2817
      %v2823 = vmul.f32 %v2816, 0.0
      %v2827 = vrot.slane %v2821, 6
      %v2828 = vrot.slane %v2822, 6
      %v2829 = vrot.slane %v2823, 6
      %2830 = vrot.lane.b32.xlu0 %v2827, 97
      %v2831 = vpop.permute.xlu0 %2830
      %2832 = vrot.lane.b32.xlu0 %v2828, 97
      %v2833 = vpop.permute.xlu0 %2832
      %2834 = vrot.lane.b32.xlu0 %v2829, 97
      %v2835 = vpop.permute.xlu0 %2834
      %v2836 = vsel %vm1387, %v2831, %v2833
      %v2837 = vsel %vm1387, %v2833, %v2835
      %2840 = vst [vmem:[#allocation2 + $0xe0] sm:$0xc] %v2836
      %2841 = vst [vmem:[#allocation2 + $0xe8] sm:$0xc] %v2837
      %vm2842 = vmand %vm2676, %vm536
      %vm2843 = vmand %vm2842, %vm538
      %v2844 = vsel %vm2843, 1, 0
      %v2845 = vcvt.s32.f32 %v2844
      %v2847 = vlaneseq
      %v2848 = vshrl.u32 %v2847, 7
      %v2849 = vsub.s32 0, %v2848
      %v2850 = vrot.slane %v2845, %v2849
      %v2851 = vlaneseq
      %v2852 = vshrl.u32 %v2851, 7
      %v2853 = vsub.s32 1, %v2852
      %v2854 = vrot.slane %v2845, %v2853
      %2855 = vrot.lane.b32.xlu0 %v2850, 32
      %v2856 = vpop.permute.xlu0 %2855
      %2857 = vrot.lane.b32.xlu0 %v2854, 32
      %v2858 = vpop.permute.xlu0 %2857
      %v2859 = vsel %vm1363, %v2856, %v2858
      %v2863 = vmul.f32 %v343, %v2856
      %v2864 = vmul.f32 %v344, %v2859
      %v2865 = vmul.f32 %v2858, 0.0
      %v2869 = vrot.slane %v2863, 4
      %v2870 = vrot.slane %v2864, 4
      %v2871 = vrot.slane %v2865, 4
      %2872 = vrot.lane.b32.xlu0 %v2869, 96
      %v2873 = vpop.permute.xlu0 %2872
      %2874 = vrot.lane.b32.xlu0 %v2870, 96
      %v2875 = vpop.permute.xlu0 %2874
      %2876 = vrot.lane.b32.xlu0 %v2871, 96
      %v2877 = vpop.permute.xlu0 %2876
      %v2878 = vsel %vm1343, %v2873, %v2875
      %v2879 = vsel %vm1343, %v2875, %v2877
      %2882 = vst [vmem:[#allocation2 + $0xe0] sm:$0x30] %v2878
      %2883 = vst [vmem:[#allocation2 + $0xe8] sm:$0x30] %v2879
      %vm2884 = vmand %vm2676, %vm579
      %vm2885 = vmand %vm2884, %vm581
      %v2886 = vsel %vm2885, 1, 0
      %v2887 = vcvt.s32.f32 %v2886
      %v2889 = vlaneseq
      %v2890 = vshrl.u32 %v2889, 7
      %v2891 = vsub.s32 0, %v2890
      %v2892 = vrot.slane %v2887, %v2891
      %v2893 = vlaneseq
      %v2894 = vshrl.u32 %v2893, 7
      %v2895 = vsub.s32 1, %v2894
      %v2896 = vrot.slane %v2887, %v2895
      %2897 = vrot.lane.b32.xlu0 %v2892, 33
      %v2898 = vpop.permute.xlu0 %2897
      %2899 = vrot.lane.b32.xlu0 %v2896, 33
      %v2900 = vpop.permute.xlu0 %2899
      %v2901 = vsel %vm1319, %v2898, %v2900
      %v2905 = vmul.f32 %v343, %v2898
      %v2906 = vmul.f32 %v344, %v2901
      %v2907 = vmul.f32 %v2900, 0.0
      %v2911 = vrot.slane %v2905, 2
      %v2912 = vrot.slane %v2906, 2
      %v2913 = vrot.slane %v2907, 2
      %2914 = vrot.lane.b32.xlu0 %v2911, 95
      %v2915 = vpop.permute.xlu0 %2914
      %2916 = vrot.lane.b32.xlu0 %v2912, 95
      %v2917 = vpop.permute.xlu0 %2916
      %2918 = vrot.lane.b32.xlu0 %v2913, 95
      %v2919 = vpop.permute.xlu0 %2918
      %v2920 = vsel %vm1299, %v2915, %v2917
      %v2921 = vsel %vm1299, %v2917, %v2919
      %2924 = vst [vmem:[#allocation2 + $0xe0] sm:$0xc0] %v2920
      %2925 = vst [vmem:[#allocation2 + $0xe8] sm:$0xc0] %v2921
      %vm2926 = vmand %vm2676, %vm624
      %vm2927 = vmand %vm2926, %vm626
      %v2928 = vsel %vm2927, 1, 0
      %v2929 = vcvt.s32.f32 %v2928
      %v2931 = vlaneseq
      %v2932 = vshrl.u32 %v2931, 7
      %v2933 = vsub.s32 0, %v2932
      %v2934 = vrot.slane %v2929, %v2933
      %v2935 = vlaneseq
      %v2936 = vshrl.u32 %v2935, 7
      %v2937 = vsub.s32 1, %v2936
      %v2938 = vrot.slane %v2929, %v2937
      %2939 = vrot.lane.b32.xlu0 %v2934, 34
      %v2940 = vpop.permute.xlu0 %2939
      %2941 = vrot.lane.b32.xlu0 %v2938, 34
      %v2942 = vpop.permute.xlu0 %2941
      %v2943 = vsel %vm1275, %v2940, %v2942
      %v2947 = vmul.f32 %v343, %v2940
      %v2948 = vmul.f32 %v344, %v2943
      %v2949 = vmul.f32 %v2942, 0.0
      %2953 = vrot.lane.b32.xlu0 %v2947, 94
      %v2954 = vpop.permute.xlu0 %2953
      %2955 = vrot.lane.b32.xlu0 %v2948, 94
      %v2956 = vpop.permute.xlu0 %2955
      %2957 = vrot.lane.b32.xlu0 %v2949, 94
      %v2958 = vpop.permute.xlu0 %2957
      %v2959 = vsel %vm1258, %v2954, %v2956
      %v2960 = vsel %vm1258, %v2956, %v2958
      %2963 = vst [vmem:[#allocation2 + $0xf0] sm:$0x3] %v2959
      %2964 = vst [vmem:[#allocation2 + $0xf8] sm:$0x3] %v2960
      %vm2965 = vmand %vm2676, %vm669
      %vm2966 = vmand %vm2965, %vm671
      %v2967 = vsel %vm2966, 1, 0
      %v2968 = vcvt.s32.f32 %v2967
      %v2970 = vlaneseq
      %v2971 = vshrl.u32 %v2970, 7
      %v2972 = vsub.s32 0, %v2971
      %v2973 = vrot.slane %v2968, %v2972
      %v2974 = vlaneseq
      %v2975 = vshrl.u32 %v2974, 7
      %v2976 = vsub.s32 1, %v2975
      %v2977 = vrot.slane %v2968, %v2976
      %2978 = vrot.lane.b32.xlu0 %v2973, 35
      %v2979 = vpop.permute.xlu0 %2978
      %2980 = vrot.lane.b32.xlu0 %v2977, 35
      %v2981 = vpop.permute.xlu0 %2980
      %v2982 = vsel %vm1234, %v2979, %v2981
      %v2986 = vmul.f32 %v343, %v2979
      %v2987 = vmul.f32 %v344, %v2982
      %v2988 = vmul.f32 %v2981, 0.0
      %v2992 = vrot.slane %v2986, 6
      %v2993 = vrot.slane %v2987, 6
      %v2994 = vrot.slane %v2988, 6
      %2995 = vrot.lane.b32.xlu0 %v2992, 93
      %v2996 = vpop.permute.xlu0 %2995
      %2997 = vrot.lane.b32.xlu0 %v2993, 93
      %v2998 = vpop.permute.xlu0 %2997
      %2999 = vrot.lane.b32.xlu0 %v2994, 93
      %v3000 = vpop.permute.xlu0 %2999
      %v3001 = vsel %vm1214, %v2996, %v2998
      %v3002 = vsel %vm1214, %v2998, %v3000
      %3005 = vst [vmem:[#allocation2 + $0xf0] sm:$0xc] %v3001
      %3006 = vst [vmem:[#allocation2 + $0xf8] sm:$0xc] %v3002
      %vm3007 = vmand %vm2676, %vm714
      %vm3008 = vmand %vm3007, %vm716
      %v3009 = vsel %vm3008, 1, 0
      %v3010 = vcvt.s32.f32 %v3009
      %v3012 = vlaneseq
      %v3013 = vshrl.u32 %v3012, 7
      %v3014 = vsub.s32 0, %v3013
      %v3015 = vrot.slane %v3010, %v3014
      %v3016 = vlaneseq
      %v3017 = vshrl.u32 %v3016, 7
      %v3018 = vsub.s32 1, %v3017
      %v3019 = vrot.slane %v3010, %v3018
      %3020 = vrot.lane.b32.xlu0 %v3015, 36
      %v3021 = vpop.permute.xlu0 %3020
      %3022 = vrot.lane.b32.xlu0 %v3019, 36
      %v3023 = vpop.permute.xlu0 %3022
      %v3024 = vsel %vm1190, %v3021, %v3023
      %v3028 = vmul.f32 %v343, %v3021
      %v3029 = vmul.f32 %v344, %v3024
      %v3030 = vmul.f32 %v3023, 0.0
      %v3034 = vrot.slane %v3028, 4
      %v3035 = vrot.slane %v3029, 4
      %v3036 = vrot.slane %v3030, 4
      %3037 = vrot.lane.b32.xlu0 %v3034, 92
      %v3038 = vpop.permute.xlu0 %3037
      %3039 = vrot.lane.b32.xlu0 %v3035, 92
      %v3040 = vpop.permute.xlu0 %3039
      %3041 = vrot.lane.b32.xlu0 %v3036, 92
      %v3042 = vpop.permute.xlu0 %3041
      %v3043 = vsel %vm1170, %v3038, %v3040
      %v3044 = vsel %vm1170, %v3040, %v3042
      %3047 = vst [vmem:[#allocation2 + $0xf0] sm:$0x30] %v3043
      %3048 = vst [vmem:[#allocation2 + $0xf8] sm:$0x30] %v3044
      %v3049 = vadd.s32 %v333, 3
      %vm3050 = vcmp.ge.s32.totalorder %v3049, 0
      %vm3051 = vcmp.lt.s32.totalorder %v3049, 16
      %vm3052 = vmand %vm3050, %vm3051
      %vm3053 = vmand %vm3052, %vm352
      %vm3054 = vmand %vm3053, %vm354
      %v3055 = vsel %vm3054, 1, 0
      %v3056 = vcvt.s32.f32 %v3055
      %v3058 = vlaneseq
      %v3059 = vshrl.u32 %v3058, 7
      %v3060 = vsub.s32 0, %v3059
      %v3061 = vrot.slane %v3056, %v3060
      %v3062 = vlaneseq
      %v3063 = vshrl.u32 %v3062, 7
      %v3064 = vsub.s32 1, %v3063
      %v3065 = vrot.slane %v3056, %v3064
      %3066 = vrot.lane.b32.xlu0 %v3061, 44
      %v3067 = vpop.permute.xlu0 %3066
      %3068 = vrot.lane.b32.xlu0 %v3065, 44
      %v3069 = vpop.permute.xlu0 %3068
      %v3070 = vsel %vm1142, %v3067, %v3069
      %v3074 = vmul.f32 %v343, %v3067
      %v3075 = vmul.f32 %v344, %v3070
      %v3076 = vmul.f32 %v3069, 0.0
      %v3080 = vrot.slane %v3074, 2
      %v3081 = vrot.slane %v3075, 2
      %v3082 = vrot.slane %v3076, 2
      %3083 = vrot.lane.b32.xlu0 %v3080, 84
      %v3084 = vpop.permute.xlu0 %3083
      %3085 = vrot.lane.b32.xlu0 %v3081, 84
      %v3086 = vpop.permute.xlu0 %3085
      %3087 = vrot.lane.b32.xlu0 %v3082, 84
      %v3088 = vpop.permute.xlu0 %3087
      %v3089 = vsel %vm1122, %v3084, %v3086
      %v3090 = vsel %vm1122, %v3086, %v3088
      %3093 = vst [vmem:[#allocation2 + $0xf0] sm:$0xc0] %v3089
      %3094 = vst [vmem:[#allocation2 + $0xf8] sm:$0xc0] %v3090
      %vm3095 = vmand %vm3052, %vm396
      %vm3096 = vmand %vm3095, %vm398
      %v3097 = vsel %vm3096, 1, 0
      %v3098 = vcvt.s32.f32 %v3097
      %v3100 = vlaneseq
      %v3101 = vshrl.u32 %v3100, 7
      %v3102 = vsub.s32 0, %v3101
      %v3103 = vrot.slane %v3098, %v3102
      %v3104 = vlaneseq
      %v3105 = vshrl.u32 %v3104, 7
      %v3106 = vsub.s32 1, %v3105
      %v3107 = vrot.slane %v3098, %v3106
      %3108 = vrot.lane.b32.xlu0 %v3103, 45
      %v3109 = vpop.permute.xlu0 %3108
      %3110 = vrot.lane.b32.xlu0 %v3107, 45
      %v3111 = vpop.permute.xlu0 %3110
      %v3112 = vsel %vm1098, %v3109, %v3111
      %v3116 = vmul.f32 %v343, %v3109
      %v3117 = vmul.f32 %v344, %v3112
      %v3118 = vmul.f32 %v3111, 0.0
      %3122 = vrot.lane.b32.xlu0 %v3116, 83
      %v3123 = vpop.permute.xlu0 %3122
      %3124 = vrot.lane.b32.xlu0 %v3117, 83
      %v3125 = vpop.permute.xlu0 %3124
      %3126 = vrot.lane.b32.xlu0 %v3118, 83
      %v3127 = vpop.permute.xlu0 %3126
      %v3128 = vsel %vm1081, %v3123, %v3125
      %v3129 = vsel %vm1081, %v3125, %v3127
      %3132 = vst [vmem:[#allocation2 + $0x100] sm:$0x3] %v3128
      %3133 = vst [vmem:[#allocation2 + $0x108] sm:$0x3] %v3129
      %vm3134 = vmand %vm3052, %vm443
      %vm3135 = vmand %vm3134, %vm445
      %v3136 = vsel %vm3135, 1, 0
      %v3137 = vcvt.s32.f32 %v3136
      %v3139 = vlaneseq
      %v3140 = vshrl.u32 %v3139, 7
      %v3141 = vsub.s32 0, %v3140
      %v3142 = vrot.slane %v3137, %v3141
      %v3143 = vlaneseq
      %v3144 = vshrl.u32 %v3143, 7
      %v3145 = vsub.s32 1, %v3144
      %v3146 = vrot.slane %v3137, %v3145
      %3147 = vrot.lane.b32.xlu0 %v3142, 46
      %v3148 = vpop.permute.xlu0 %3147
      %3149 = vrot.lane.b32.xlu0 %v3146, 46
      %v3150 = vpop.permute.xlu0 %3149
      %v3151 = vsel %vm1057, %v3148, %v3150
      %v3155 = vmul.f32 %v343, %v3148
      %v3156 = vmul.f32 %v344, %v3151
      %v3157 = vmul.f32 %v3150, 0.0
      %v3161 = vrot.slane %v3155, 6
      %v3162 = vrot.slane %v3156, 6
      %v3163 = vrot.slane %v3157, 6
      %3164 = vrot.lane.b32.xlu0 %v3161, 82
      %v3165 = vpop.permute.xlu0 %3164
      %3166 = vrot.lane.b32.xlu0 %v3162, 82
      %v3167 = vpop.permute.xlu0 %3166
      %3168 = vrot.lane.b32.xlu0 %v3163, 82
      %v3169 = vpop.permute.xlu0 %3168
      %v3170 = vsel %vm1037, %v3165, %v3167
      %v3171 = vsel %vm1037, %v3167, %v3169
      %3174 = vst [vmem:[#allocation2 + $0x100] sm:$0xc] %v3170
      %3175 = vst [vmem:[#allocation2 + $0x108] sm:$0xc] %v3171
      %vm3176 = vmand %vm3052, %vm490
      %vm3177 = vmand %vm3176, %vm492
      %v3178 = vsel %vm3177, 1, 0
      %v3179 = vcvt.s32.f32 %v3178
      %v3181 = vlaneseq
      %v3182 = vshrl.u32 %v3181, 7
      %v3183 = vsub.s32 0, %v3182
      %v3184 = vrot.slane %v3179, %v3183
      %v3185 = vlaneseq
      %v3186 = vshrl.u32 %v3185, 7
      %v3187 = vsub.s32 1, %v3186
      %v3188 = vrot.slane %v3179, %v3187
      %3189 = vrot.lane.b32.xlu0 %v3184, 47
      %v3190 = vpop.permute.xlu0 %3189
      %3191 = vrot.lane.b32.xlu0 %v3188, 47
      %v3192 = vpop.permute.xlu0 %3191
      %v3193 = vsel %vm1013, %v3190, %v3192
      %v3197 = vmul.f32 %v343, %v3190
      %v3198 = vmul.f32 %v344, %v3193
      %v3199 = vmul.f32 %v3192, 0.0
      %v3203 = vrot.slane %v3197, 4
      %v3204 = vrot.slane %v3198, 4
      %v3205 = vrot.slane %v3199, 4
      %3206 = vrot.lane.b32.xlu0 %v3203, 81
      %v3207 = vpop.permute.xlu0 %3206
      %3208 = vrot.lane.b32.xlu0 %v3204, 81
      %v3209 = vpop.permute.xlu0 %3208
      %3210 = vrot.lane.b32.xlu0 %v3205, 81
      %v3211 = vpop.permute.xlu0 %3210
      %v3212 = vsel %vm993, %v3207, %v3209
      %v3213 = vsel %vm993, %v3209, %v3211
      %3216 = vst [vmem:[#allocation2 + $0x100] sm:$0x30] %v3212
      %3217 = vst [vmem:[#allocation2 + $0x108] sm:$0x30] %v3213
      %vm3218 = vmand %vm3052, %vm536
      %vm3219 = vmand %vm3218, %vm538
      %v3220 = vsel %vm3219, 1, 0
      %v3221 = vcvt.s32.f32 %v3220
      %v3223 = vlaneseq
      %v3224 = vshrl.u32 %v3223, 7
      %v3225 = vsub.s32 0, %v3224
      %v3226 = vrot.slane %v3221, %v3225
      %v3227 = vlaneseq
      %v3228 = vshrl.u32 %v3227, 7
      %v3229 = vsub.s32 1, %v3228
      %v3230 = vrot.slane %v3221, %v3229
      %3231 = vrot.lane.b32.xlu0 %v3226, 48
      %v3232 = vpop.permute.xlu0 %3231
      %3233 = vrot.lane.b32.xlu0 %v3230, 48
      %v3234 = vpop.permute.xlu0 %3233
      %v3235 = vsel %vm969, %v3232, %v3234
      %v3239 = vmul.f32 %v343, %v3232
      %v3240 = vmul.f32 %v344, %v3235
      %v3241 = vmul.f32 %v3234, 0.0
      %v3245 = vrot.slane %v3239, 2
      %v3246 = vrot.slane %v3240, 2
      %v3247 = vrot.slane %v3241, 2
      %3248 = vrot.lane.b32.xlu0 %v3245, 80
      %v3249 = vpop.permute.xlu0 %3248
      %3250 = vrot.lane.b32.xlu0 %v3246, 80
      %v3251 = vpop.permute.xlu0 %3250
      %3252 = vrot.lane.b32.xlu0 %v3247, 80
      %v3253 = vpop.permute.xlu0 %3252
      %v3254 = vsel %vm949, %v3249, %v3251
      %v3255 = vsel %vm949, %v3251, %v3253
      %3258 = vst [vmem:[#allocation2 + $0x100] sm:$0xc0] %v3254
      %3259 = vst [vmem:[#allocation2 + $0x108] sm:$0xc0] %v3255
      %vm3260 = vmand %vm3052, %vm579
      %vm3261 = vmand %vm3260, %vm581
      %v3262 = vsel %vm3261, 1, 0
      %v3263 = vcvt.s32.f32 %v3262
      %v3265 = vlaneseq
      %v3266 = vshrl.u32 %v3265, 7
      %v3267 = vsub.s32 0, %v3266
      %v3268 = vrot.slane %v3263, %v3267
      %v3269 = vlaneseq
      %v3270 = vshrl.u32 %v3269, 7
      %v3271 = vsub.s32 1, %v3270
      %v3272 = vrot.slane %v3263, %v3271
      %3273 = vrot.lane.b32.xlu0 %v3268, 49
      %v3274 = vpop.permute.xlu0 %3273
      %3275 = vrot.lane.b32.xlu0 %v3272, 49
      %v3276 = vpop.permute.xlu0 %3275
      %v3277 = vsel %vm925, %v3274, %v3276
      %v3281 = vmul.f32 %v343, %v3274
      %v3282 = vmul.f32 %v344, %v3277
      %v3283 = vmul.f32 %v3276, 0.0
      %3287 = vrot.lane.b32.xlu0 %v3281, 79
      %v3288 = vpop.permute.xlu0 %3287
      %3289 = vrot.lane.b32.xlu0 %v3282, 79
      %v3290 = vpop.permute.xlu0 %3289
      %3291 = vrot.lane.b32.xlu0 %v3283, 79
      %v3292 = vpop.permute.xlu0 %3291
      %v3293 = vsel %vm908, %v3288, %v3290
      %v3294 = vsel %vm908, %v3290, %v3292
      %3297 = vst [vmem:[#allocation2 + $0x110] sm:$0x3] %v3293
      %3298 = vst [vmem:[#allocation2 + $0x118] sm:$0x3] %v3294
      %vm3299 = vmand %vm3052, %vm624
      %vm3300 = vmand %vm3299, %vm626
      %v3301 = vsel %vm3300, 1, 0
      %v3302 = vcvt.s32.f32 %v3301
      %v3304 = vlaneseq
      %v3305 = vshrl.u32 %v3304, 7
      %v3306 = vsub.s32 0, %v3305
      %v3307 = vrot.slane %v3302, %v3306
      %v3308 = vlaneseq
      %v3309 = vshrl.u32 %v3308, 7
      %v3310 = vsub.s32 1, %v3309
      %v3311 = vrot.slane %v3302, %v3310
      %3312 = vrot.lane.b32.xlu0 %v3307, 50
      %v3313 = vpop.permute.xlu0 %3312
      %3314 = vrot.lane.b32.xlu0 %v3311, 50
      %v3315 = vpop.permute.xlu0 %3314
      %v3316 = vsel %vm884, %v3313, %v3315
      %v3320 = vmul.f32 %v343, %v3313
      %v3321 = vmul.f32 %v344, %v3316
      %v3322 = vmul.f32 %v3315, 0.0
      %v3326 = vrot.slane %v3320, 6
      %v3327 = vrot.slane %v3321, 6
      %v3328 = vrot.slane %v3322, 6
      %3329 = vrot.lane.b32.xlu0 %v3326, 78
      %v3330 = vpop.permute.xlu0 %3329
      %3331 = vrot.lane.b32.xlu0 %v3327, 78
      %v3332 = vpop.permute.xlu0 %3331
      %3333 = vrot.lane.b32.xlu0 %v3328, 78
      %v3334 = vpop.permute.xlu0 %3333
      %v3335 = vsel %vm864, %v3330, %v3332
      %v3336 = vsel %vm864, %v3332, %v3334
      %3339 = vst [vmem:[#allocation2 + $0x110] sm:$0xc] %v3335
      %3340 = vst [vmem:[#allocation2 + $0x118] sm:$0xc] %v3336
      %vm3341 = vmand %vm3052, %vm669
      %vm3342 = vmand %vm3341, %vm671
      %v3343 = vsel %vm3342, 1, 0
      %v3344 = vcvt.s32.f32 %v3343
      %v3346 = vlaneseq
      %v3347 = vshrl.u32 %v3346, 7
      %v3348 = vsub.s32 0, %v3347
      %v3349 = vrot.slane %v3344, %v3348
      %v3350 = vlaneseq
      %v3351 = vshrl.u32 %v3350, 7
      %v3352 = vsub.s32 1, %v3351
      %v3353 = vrot.slane %v3344, %v3352
      %3354 = vrot.lane.b32.xlu0 %v3349, 51
      %v3355 = vpop.permute.xlu0 %3354
      %3356 = vrot.lane.b32.xlu0 %v3353, 51
      %v3357 = vpop.permute.xlu0 %3356
      %v3358 = vsel %vm840, %v3355, %v3357
      %v3362 = vmul.f32 %v343, %v3355
      %v3363 = vmul.f32 %v344, %v3358
      %v3364 = vmul.f32 %v3357, 0.0
      %v3368 = vrot.slane %v3362, 4
      %v3369 = vrot.slane %v3363, 4
      %v3370 = vrot.slane %v3364, 4
      %3371 = vrot.lane.b32.xlu0 %v3368, 77
      %v3372 = vpop.permute.xlu0 %3371
      %3373 = vrot.lane.b32.xlu0 %v3369, 77
      %v3374 = vpop.permute.xlu0 %3373
      %3375 = vrot.lane.b32.xlu0 %v3370, 77
      %v3376 = vpop.permute.xlu0 %3375
      %v3377 = vsel %vm820, %v3372, %v3374
      %v3378 = vsel %vm820, %v3374, %v3376
      %3381 = vst [vmem:[#allocation2 + $0x110] sm:$0x30] %v3377
      %3382 = vst [vmem:[#allocation2 + $0x118] sm:$0x30] %v3378
      %vm3383 = vmand %vm3052, %vm714
      %vm3384 = vmand %vm3383, %vm716
      %v3385 = vsel %vm3384, 1, 0
      %v3386 = vcvt.s32.f32 %v3385
      %v3388 = vlaneseq
      %v3389 = vshrl.u32 %v3388, 7
      %v3390 = vsub.s32 0, %v3389
      %v3391 = vrot.slane %v3386, %v3390
      %v3392 = vlaneseq
      %v3393 = vshrl.u32 %v3392, 7
      %v3394 = vsub.s32 1, %v3393
      %v3395 = vrot.slane %v3386, %v3394
      %3396 = vrot.lane.b32.xlu0 %v3391, 52
      %v3397 = vpop.permute.xlu0 %3396
      %3398 = vrot.lane.b32.xlu0 %v3395, 52
      %v3399 = vpop.permute.xlu0 %3398
      %v3400 = vsel %vm796, %v3397, %v3399
      %v3404 = vmul.f32 %v343, %v3397
      %v3405 = vmul.f32 %v344, %v3400
      %v3406 = vmul.f32 %v3399, 0.0
      %v3410 = vrot.slane %v3404, 2
      %v3411 = vrot.slane %v3405, 2
      %v3412 = vrot.slane %v3406, 2
      %3413 = vrot.lane.b32.xlu0 %v3410, 76
      %v3414 = vpop.permute.xlu0 %3413
      %3415 = vrot.lane.b32.xlu0 %v3411, 76
      %v3416 = vpop.permute.xlu0 %3415
      %3417 = vrot.lane.b32.xlu0 %v3412, 76
      %v3418 = vpop.permute.xlu0 %3417
      %v3419 = vsel %vm776, %v3414, %v3416
      %v3420 = vsel %vm776, %v3416, %v3418
      %3423 = vst [vmem:[#allocation2 + $0x110] sm:$0xc0] %v3419
      %3424 = vst [vmem:[#allocation2 + $0x118] sm:$0xc0] %v3420
      %v3425 = vadd.s32 %v333, 4
      %vm3426 = vcmp.ge.s32.totalorder %v3425, 0
      %vm3427 = vcmp.lt.s32.totalorder %v3425, 16
      %vm3428 = vmand %vm3426, %vm3427
      %vm3429 = vmand %vm3428, %vm352
      %vm3430 = vmand %vm3429, %vm354
      %v3431 = vsel %vm3430, 1, 0
      %v3432 = vcvt.s32.f32 %v3431
      %v3434 = vlaneseq
      %v3435 = vshrl.u32 %v3434, 7
      %v3436 = vsub.s32 0, %v3435
      %v3437 = vrot.slane %v3432, %v3436
      %v3438 = vlaneseq
      %v3439 = vshrl.u32 %v3438, 7
      %v3440 = vsub.s32 1, %v3439
      %v3441 = vrot.slane %v3432, %v3440
      %3442 = vrot.lane.b32.xlu0 %v3437, 60
      %v3443 = vpop.permute.xlu0 %3442
      %3444 = vrot.lane.b32.xlu0 %v3441, 60
      %v3445 = vpop.permute.xlu0 %3444
      %v3446 = vsel %vm371, %v3443, %v3445
      %v3450 = vmul.f32 %v343, %v3443
      %v3451 = vmul.f32 %v344, %v3446
      %v3452 = vmul.f32 %v3445, 0.0
      %3456 = vrot.lane.b32.xlu0 %v3450, 68
      %v3457 = vpop.permute.xlu0 %3456
      %3458 = vrot.lane.b32.xlu0 %v3451, 68
      %v3459 = vpop.permute.xlu0 %3458
      %3460 = vrot.lane.b32.xlu0 %v3452, 68
      %v3461 = vpop.permute.xlu0 %3460
      %v3462 = vsel %vm388, %v3457, %v3459
      %v3463 = vsel %vm388, %v3459, %v3461
      %3466 = vst [vmem:[#allocation2 + $0x120] sm:$0x3] %v3462
      %3467 = vst [vmem:[#allocation2 + $0x128] sm:$0x3] %v3463
      %vm3468 = vmand %vm3428, %vm396
      %vm3469 = vmand %vm3468, %vm398
      %v3470 = vsel %vm3469, 1, 0
      %v3471 = vcvt.s32.f32 %v3470
      %v3473 = vlaneseq
      %v3474 = vshrl.u32 %v3473, 7
      %v3475 = vsub.s32 0, %v3474
      %v3476 = vrot.slane %v3471, %v3475
      %v3477 = vlaneseq
      %v3478 = vshrl.u32 %v3477, 7
      %v3479 = vsub.s32 1, %v3478
      %v3480 = vrot.slane %v3471, %v3479
      %3481 = vrot.lane.b32.xlu0 %v3476, 61
      %v3482 = vpop.permute.xlu0 %3481
      %3483 = vrot.lane.b32.xlu0 %v3480, 61
      %v3484 = vpop.permute.xlu0 %3483
      %v3485 = vsel %vm415, %v3482, %v3484
      %v3489 = vmul.f32 %v343, %v3482
      %v3490 = vmul.f32 %v344, %v3485
      %v3491 = vmul.f32 %v3484, 0.0
      %v3495 = vrot.slane %v3489, 6
      %v3496 = vrot.slane %v3490, 6
      %v3497 = vrot.slane %v3491, 6
      %3498 = vrot.lane.b32.xlu0 %v3495, 67
      %v3499 = vpop.permute.xlu0 %3498
      %3500 = vrot.lane.b32.xlu0 %v3496, 67
      %v3501 = vpop.permute.xlu0 %3500
      %3502 = vrot.lane.b32.xlu0 %v3497, 67
      %v3503 = vpop.permute.xlu0 %3502
      %v3504 = vsel %vm435, %v3499, %v3501
      %v3505 = vsel %vm435, %v3501, %v3503
      %3508 = vst [vmem:[#allocation2 + $0x120] sm:$0xc] %v3504
      %3509 = vst [vmem:[#allocation2 + $0x128] sm:$0xc] %v3505
      %vm3510 = vmand %vm3428, %vm443
      %vm3511 = vmand %vm3510, %vm445
      %v3512 = vsel %vm3511, 1, 0
      %v3513 = vcvt.s32.f32 %v3512
      %v3515 = vlaneseq
      %v3516 = vshrl.u32 %v3515, 7
      %v3517 = vsub.s32 0, %v3516
      %v3518 = vrot.slane %v3513, %v3517
      %v3519 = vlaneseq
      %v3520 = vshrl.u32 %v3519, 7
      %v3521 = vsub.s32 1, %v3520
      %v3522 = vrot.slane %v3513, %v3521
      %3523 = vrot.lane.b32.xlu0 %v3518, 62
      %v3524 = vpop.permute.xlu0 %3523
      %3525 = vrot.lane.b32.xlu0 %v3522, 62
      %v3526 = vpop.permute.xlu0 %3525
      %v3527 = vsel %vm462, %v3524, %v3526
      %v3531 = vmul.f32 %v343, %v3524
      %v3532 = vmul.f32 %v344, %v3527
      %v3533 = vmul.f32 %v3526, 0.0
      %v3537 = vrot.slane %v3531, 4
      %v3538 = vrot.slane %v3532, 4
      %v3539 = vrot.slane %v3533, 4
      %3540 = vrot.lane.b32.xlu0 %v3537, 66
      %v3541 = vpop.permute.xlu0 %3540
      %3542 = vrot.lane.b32.xlu0 %v3538, 66
      %v3543 = vpop.permute.xlu0 %3542
      %3544 = vrot.lane.b32.xlu0 %v3539, 66
      %v3545 = vpop.permute.xlu0 %3544
      %v3546 = vsel %vm482, %v3541, %v3543
      %v3547 = vsel %vm482, %v3543, %v3545
      %3550 = vst [vmem:[#allocation2 + $0x120] sm:$0x30] %v3546
      %3551 = vst [vmem:[#allocation2 + $0x128] sm:$0x30] %v3547
      %vm3552 = vmand %vm3428, %vm490
      %vm3553 = vmand %vm3552, %vm492
      %v3554 = vsel %vm3553, 1, 0
      %v3555 = vcvt.s32.f32 %v3554
      %v3557 = vlaneseq
      %v3558 = vshrl.u32 %v3557, 7
      %v3559 = vsub.s32 0, %v3558
      %v3560 = vrot.slane %v3555, %v3559
      %v3561 = vlaneseq
      %v3562 = vshrl.u32 %v3561, 7
      %v3563 = vsub.s32 1, %v3562
      %v3564 = vrot.slane %v3555, %v3563
      %3565 = vrot.lane.b32.xlu0 %v3560, 63
      %v3566 = vpop.permute.xlu0 %3565
      %3567 = vrot.lane.b32.xlu0 %v3564, 63
      %v3568 = vpop.permute.xlu0 %3567
      %v3569 = vsel %vm509, %v3566, %v3568
      %v3573 = vmul.f32 %v343, %v3566
      %v3574 = vmul.f32 %v344, %v3569
      %v3575 = vmul.f32 %v3568, 0.0
      %v3579 = vrot.slane %v3573, 2
      %v3580 = vrot.slane %v3574, 2
      %v3581 = vrot.slane %v3575, 2
      %3582 = vrot.lane.b32.xlu0 %v3579, 65
      %v3583 = vpop.permute.xlu0 %3582
      %3584 = vrot.lane.b32.xlu0 %v3580, 65
      %v3585 = vpop.permute.xlu0 %3584
      %3586 = vrot.lane.b32.xlu0 %v3581, 65
      %v3587 = vpop.permute.xlu0 %3586
      %v3588 = vsel %vm529, %v3583, %v3585
      %v3589 = vsel %vm529, %v3585, %v3587
      %3592 = vst [vmem:[#allocation2 + $0x120] sm:$0xc0] %v3588
      %3593 = vst [vmem:[#allocation2 + $0x128] sm:$0xc0] %v3589
      %vm3594 = vmand %vm3428, %vm536
      %vm3595 = vmand %vm3594, %vm538
      %v3596 = vsel %vm3595, 1, 0
      %v3597 = vcvt.s32.f32 %v3596
      %v3599 = vlaneseq
      %v3600 = vshrl.u32 %v3599, 7
      %v3601 = vsub.s32 0, %v3600
      %v3602 = vrot.slane %v3597, %v3601
      %v3603 = vlaneseq
      %v3604 = vshrl.u32 %v3603, 7
      %v3605 = vsub.s32 1, %v3604
      %v3606 = vrot.slane %v3597, %v3605
      %3607 = vrot.lane.b32.xlu0 %v3602, 64
      %v3608 = vpop.permute.xlu0 %3607
      %3609 = vrot.lane.b32.xlu0 %v3606, 64
      %v3610 = vpop.permute.xlu0 %3609
      %v3611 = vsel %vm555, %v3608, %v3610
      %v3615 = vmul.f32 %v343, %v3608
      %v3616 = vmul.f32 %v344, %v3611
      %v3617 = vmul.f32 %v3610, 0.0
      %3621 = vrot.lane.b32.xlu0 %v3615, 64
      %v3622 = vpop.permute.xlu0 %3621
      %3623 = vrot.lane.b32.xlu0 %v3616, 64
      %v3624 = vpop.permute.xlu0 %3623
      %3625 = vrot.lane.b32.xlu0 %v3617, 64
      %v3626 = vpop.permute.xlu0 %3625
      %v3627 = vsel %vm555, %v3622, %v3624
      %v3628 = vsel %vm555, %v3624, %v3626
      %3631 = vst [vmem:[#allocation2 + $0x130] sm:$0x3] %v3627
      %3632 = vst [vmem:[#allocation2 + $0x138] sm:$0x3] %v3628
      %vm3633 = vmand %vm3428, %vm579
      %vm3634 = vmand %vm3633, %vm581
      %v3635 = vsel %vm3634, 1, 0
      %v3636 = vcvt.s32.f32 %v3635
      %v3638 = vlaneseq
      %v3639 = vshrl.u32 %v3638, 7
      %v3640 = vsub.s32 0, %v3639
      %v3641 = vrot.slane %v3636, %v3640
      %v3642 = vlaneseq
      %v3643 = vshrl.u32 %v3642, 7
      %v3644 = vsub.s32 1, %v3643
      %v3645 = vrot.slane %v3636, %v3644
      %3646 = vrot.lane.b32.xlu0 %v3641, 65
      %v3647 = vpop.permute.xlu0 %3646
      %3648 = vrot.lane.b32.xlu0 %v3645, 65
      %v3649 = vpop.permute.xlu0 %3648
      %v3650 = vsel %vm529, %v3647, %v3649
      %v3654 = vmul.f32 %v343, %v3647
      %v3655 = vmul.f32 %v344, %v3650
      %v3656 = vmul.f32 %v3649, 0.0
      %v3660 = vrot.slane %v3654, 6
      %v3661 = vrot.slane %v3655, 6
      %v3662 = vrot.slane %v3656, 6
      %3663 = vrot.lane.b32.xlu0 %v3660, 63
      %v3664 = vpop.permute.xlu0 %3663
      %3665 = vrot.lane.b32.xlu0 %v3661, 63
      %v3666 = vpop.permute.xlu0 %3665
      %3667 = vrot.lane.b32.xlu0 %v3662, 63
      %v3668 = vpop.permute.xlu0 %3667
      %v3669 = vsel %vm509, %v3664, %v3666
      %v3670 = vsel %vm509, %v3666, %v3668
      %3673 = vst [vmem:[#allocation2 + $0x130] sm:$0xc] %v3669
      %3674 = vst [vmem:[#allocation2 + $0x138] sm:$0xc] %v3670
      %vm3675 = vmand %vm3428, %vm624
      %vm3676 = vmand %vm3675, %vm626
      %v3677 = vsel %vm3676, 1, 0
      %v3678 = vcvt.s32.f32 %v3677
      %v3680 = vlaneseq
      %v3681 = vshrl.u32 %v3680, 7
      %v3682 = vsub.s32 0, %v3681
      %v3683 = vrot.slane %v3678, %v3682
      %v3684 = vlaneseq
      %v3685 = vshrl.u32 %v3684, 7
      %v3686 = vsub.s32 1, %v3685
      %v3687 = vrot.slane %v3678, %v3686
      %3688 = vrot.lane.b32.xlu0 %v3683, 66
      %v3689 = vpop.permute.xlu0 %3688
      %3690 = vrot.lane.b32.xlu0 %v3687, 66
      %v3691 = vpop.permute.xlu0 %3690
      %v3692 = vsel %vm482, %v3689, %v3691
      %v3696 = vmul.f32 %v343, %v3689
      %v3697 = vmul.f32 %v344, %v3692
      %v3698 = vmul.f32 %v3691, 0.0
      %v3702 = vrot.slane %v3696, 4
      %v3703 = vrot.slane %v3697, 4
      %v3704 = vrot.slane %v3698, 4
      %3705 = vrot.lane.b32.xlu0 %v3702, 62
      %v3706 = vpop.permute.xlu0 %3705
      %3707 = vrot.lane.b32.xlu0 %v3703, 62
      %v3708 = vpop.permute.xlu0 %3707
      %3709 = vrot.lane.b32.xlu0 %v3704, 62
      %v3710 = vpop.permute.xlu0 %3709
      %v3711 = vsel %vm462, %v3706, %v3708
      %v3712 = vsel %vm462, %v3708, %v3710
      %3715 = vst [vmem:[#allocation2 + $0x130] sm:$0x30] %v3711
      %3716 = vst [vmem:[#allocation2 + $0x138] sm:$0x30] %v3712
      %vm3717 = vmand %vm3428, %vm669
      %vm3718 = vmand %vm3717, %vm671
      %v3719 = vsel %vm3718, 1, 0
      %v3720 = vcvt.s32.f32 %v3719
      %v3722 = vlaneseq
      %v3723 = vshrl.u32 %v3722, 7
      %v3724 = vsub.s32 0, %v3723
      %v3725 = vrot.slane %v3720, %v3724
      %v3726 = vlaneseq
      %v3727 = vshrl.u32 %v3726, 7
      %v3728 = vsub.s32 1, %v3727
      %v3729 = vrot.slane %v3720, %v3728
      %3730 = vrot.lane.b32.xlu0 %v3725, 67
      %v3731 = vpop.permute.xlu0 %3730
      %3732 = vrot.lane.b32.xlu0 %v3729, 67
      %v3733 = vpop.permute.xlu0 %3732
      %v3734 = vsel %vm435, %v3731, %v3733
      %v3738 = vmul.f32 %v343, %v3731
      %v3739 = vmul.f32 %v344, %v3734
      %v3740 = vmul.f32 %v3733, 0.0
      %v3744 = vrot.slane %v3738, 2
      %v3745 = vrot.slane %v3739, 2
      %v3746 = vrot.slane %v3740, 2
      %3747 = vrot.lane.b32.xlu0 %v3744, 61
      %v3748 = vpop.permute.xlu0 %3747
      %3749 = vrot.lane.b32.xlu0 %v3745, 61
      %v3750 = vpop.permute.xlu0 %3749
      %3751 = vrot.lane.b32.xlu0 %v3746, 61
      %v3752 = vpop.permute.xlu0 %3751
      %v3753 = vsel %vm415, %v3748, %v3750
      %v3754 = vsel %vm415, %v3750, %v3752
      %3757 = vst [vmem:[#allocation2 + $0x130] sm:$0xc0] %v3753
      %3758 = vst [vmem:[#allocation2 + $0x138] sm:$0xc0] %v3754
      %vm3759 = vmand %vm3428, %vm714
      %vm3760 = vmand %vm3759, %vm716
      %v3761 = vsel %vm3760, 1, 0
      %v3762 = vcvt.s32.f32 %v3761
      %v3764 = vlaneseq
      %v3765 = vshrl.u32 %v3764, 7
      %v3766 = vsub.s32 0, %v3765
      %v3767 = vrot.slane %v3762, %v3766
      %v3768 = vlaneseq
      %v3769 = vshrl.u32 %v3768, 7
      %v3770 = vsub.s32 1, %v3769
      %v3771 = vrot.slane %v3762, %v3770
      %3772 = vrot.lane.b32.xlu0 %v3767, 68
      %v3773 = vpop.permute.xlu0 %3772
      %3774 = vrot.lane.b32.xlu0 %v3771, 68
      %v3775 = vpop.permute.xlu0 %3774
      %v3776 = vsel %vm388, %v3773, %v3775
      %v3780 = vmul.f32 %v343, %v3773
      %v3781 = vmul.f32 %v344, %v3776
      %v3782 = vmul.f32 %v3775, 0.0
      %3786 = vrot.lane.b32.xlu0 %v3780, 60
      %v3787 = vpop.permute.xlu0 %3786
      %3788 = vrot.lane.b32.xlu0 %v3781, 60
      %v3789 = vpop.permute.xlu0 %3788
      %3790 = vrot.lane.b32.xlu0 %v3782, 60
      %v3791 = vpop.permute.xlu0 %3790
      %v3792 = vsel %vm371, %v3787, %v3789
      %v3793 = vsel %vm371, %v3789, %v3791
      %3796 = vst [vmem:[#allocation2 + $0x140] sm:$0x3] %v3792
      %3797 = vst [vmem:[#allocation2 + $0x148] sm:$0x3] %v3793
      %v3798 = vld [vmem:[%s3] sm:$0xff]
      %v3799 = vld [vmem:[%s3 + $0x8] sm:$0xff]
      %v3800 = vld [vmem:[%s3 + $0x10] sm:$0xff]
      %v3801 = vld [vmem:[%s3 + $0x18] sm:$0xff]
      %v3802 = vld [vmem:[%s3 + $0x20] sm:$0xff]
      %v3803 = vld [vmem:[%s3 + $0x28] sm:$0xff]
      %v3804 = vld [vmem:[%s3 + $0x30] sm:$0xff]
      %v3805 = vld [vmem:[%s3 + $0x38] sm:$0xff]
      %v3806 = vld [vmem:[%s3 + $0x40] sm:$0xff]
      %v3807 = vld [vmem:[%s3 + $0x48] sm:$0xff]
      %v3808 = vld [vmem:[%s3 + $0x50] sm:$0xff]
      %v3809 = vld [vmem:[%s3 + $0x58] sm:$0xff]
      %v3810 = vld [vmem:[%s3 + $0x60] sm:$0xff]
      %v3811 = vld [vmem:[%s3 + $0x68] sm:$0xff]
      %v3812 = vld [vmem:[%s3 + $0x70] sm:$0xff]
      %v3813 = vld [vmem:[%s3 + $0x78] sm:$0xff]
      %v3814 = vld [vmem:[#allocation2] sm:$0xff]
      %v3815 = vld [vmem:[#allocation2 + $0x8] sm:$0xff]
      %v3816 = vld [vmem:[#allocation2 + $0x10] sm:$0xff]
      %v3817 = vld [vmem:[#allocation2 + $0x18] sm:$0xff]
      %v3818 = vld [vmem:[#allocation2 + $0x20] sm:$0xff]
      %v3819 = vld [vmem:[#allocation2 + $0x28] sm:$0xff]
      %v3820 = vld [vmem:[#allocation2 + $0x30] sm:$0xff]
      %v3821 = vld [vmem:[#allocation2 + $0x38] sm:$0xff]
      %v3822 = vld [vmem:[#allocation2 + $0x40] sm:$0xff]
      %v3823 = vld [vmem:[#allocation2 + $0x48] sm:$0xff]
      %v3824 = vld [vmem:[#allocation2 + $0x50] sm:$0xff]
      %v3825 = vld [vmem:[#allocation2 + $0x58] sm:$0xff]
      %v3826 = vld [vmem:[#allocation2 + $0x60] sm:$0xff]
      %v3827 = vld [vmem:[#allocation2 + $0x68] sm:$0xff]
      %v3828 = vld [vmem:[#allocation2 + $0x70] sm:$0xff]
      %v3829 = vld [vmem:[#allocation2 + $0x78] sm:$0xff]
      %v3830 = vld [vmem:[#allocation2 + $0x80] sm:$0xff]
      %v3831 = vld [vmem:[#allocation2 + $0x88] sm:$0xff]
      %v3832 = vld [vmem:[#allocation2 + $0x90] sm:$0xff]
      %v3833 = vld [vmem:[#allocation2 + $0x98] sm:$0xff]
      %v3834 = vld [vmem:[#allocation2 + $0xa0] sm:$0xff]
      %v3835 = vld [vmem:[#allocation2 + $0xa8] sm:$0xff]
      %v3836 = vld [vmem:[#allocation2 + $0xb0] sm:$0xff]
      %v3837 = vld [vmem:[#allocation2 + $0xb8] sm:$0xff]
      %v3838 = vld [vmem:[#allocation2 + $0xc0] sm:$0xff]
      %v3839 = vld [vmem:[#allocation2 + $0xc8] sm:$0xff]
      %v3840 = vld [vmem:[#allocation2 + $0xd0] sm:$0xff]
      %v3841 = vld [vmem:[#allocation2 + $0xd8] sm:$0xff]
      %v3842 = vld [vmem:[#allocation2 + $0xe0] sm:$0xff]
      %v3843 = vld [vmem:[#allocation2 + $0xe8] sm:$0xff]
      %v3844 = vld [vmem:[#allocation2 + $0xf0] sm:$0xff]
      %v3845 = vld [vmem:[#allocation2 + $0xf8] sm:$0xff]
      %v3846 = vld [vmem:[#allocation2 + $0x100] sm:$0xff]
      %v3847 = vld [vmem:[#allocation2 + $0x108] sm:$0xff]
      %v3848 = vld [vmem:[#allocation2 + $0x110] sm:$0xff]
      %v3849 = vld [vmem:[#allocation2 + $0x118] sm:$0xff]
      %v3850 = vld [vmem:[#allocation2 + $0x120] sm:$0xff]
      %v3851 = vld [vmem:[#allocation2 + $0x128] sm:$0xff]
      %v3852 = vld [vmem:[#allocation2 + $0x130] sm:$0xff]
      %v3853 = vld [vmem:[#allocation2 + $0x138] sm:$0xff]
      %v3854 = vld [vmem:[#allocation2 + $0x140] sm:$0x3]
      %v3855 = vld [vmem:[#allocation2 + $0x148] sm:$0x3]
      %v3856 = vld [vmem:[%s4] sm:$0xff]
      %v3857 = vld [vmem:[%s4 + $0x8] sm:$0xff]
      %v3858 = vld [vmem:[%s4 + $0x10] sm:$0xff]
      %v3859 = vld [vmem:[%s4 + $0x18] sm:$0xff]
      %v3860 = vld [vmem:[%s4 + $0x20] sm:$0xff]
      %v3861 = vld [vmem:[%s4 + $0x28] sm:$0xff]
      %v3862 = vld [vmem:[%s4 + $0x30] sm:$0xff]
      %v3863 = vld [vmem:[%s4 + $0x38] sm:$0xff]
      %3865 = vset.pattern.permute.xlu0 0
      %3866 = vperm.xlu0 %3865, %v3856
      %v3867 = vpop.permute.xlu0 %3866
      %3870 = vset.pattern.permute.xlu0 0
      %3871 = vperm.xlu0 %3870, %v3857
      %v3872 = vpop.permute.xlu0 %3871
      %3875 = vset.pattern.permute.xlu0 0
      %3876 = vperm.xlu0 %3875, %v3858
      %v3877 = vpop.permute.xlu0 %3876
      %3880 = vset.pattern.permute.xlu0 0
      %3881 = vperm.xlu0 %3880, %v3859
      %v3882 = vpop.permute.xlu0 %3881
      %3885 = vset.pattern.permute.xlu0 0
      %3886 = vperm.xlu0 %3885, %v3860
      %v3887 = vpop.permute.xlu0 %3886
      %3890 = vset.pattern.permute.xlu0 0
      %3891 = vperm.xlu0 %3890, %v3861
      %v3892 = vpop.permute.xlu0 %3891
      %3895 = vset.pattern.permute.xlu0 0
      %3896 = vperm.xlu0 %3895, %v3862
      %v3897 = vpop.permute.xlu0 %3896
      %3900 = vset.pattern.permute.xlu0 0
      %3901 = vperm.xlu0 %3900, %v3863
      %v3902 = vpop.permute.xlu0 %3901
      %v3905 = vsel %vm1275, %v3799, 0
      %v3908 = vsel %vm1275, %v3801, 0
      %v3911 = vsel %vm1275, %v3803, 0
      %v3914 = vsel %vm1275, %v3805, 0
      %v3917 = vsel %vm1275, %v3807, 0
      %v3920 = vsel %vm1275, %v3809, 0
      %v3923 = vsel %vm1275, %v3811, 0
      %v3926 = vsel %vm1275, %v3813, 0
      %vm3928 = vcmask 1041408
      %v3930 = vsel %vm3928, %v3854, 0
      %v3933 = vsel %vm3928, %v3855, 0
      %3935 = vmatprep.subr.mxu0 %v3845
      %3936 = vmatpush1.msra.mxu0 %v3844
      %3937 = vmatprep.subr.mxu0 %v3843
      %3938 = vmatpush1.msra.mxu0 %v3842
      %3939 = vmatprep.subr.mxu0 %v3841
      %3940 = vmatpush1.msra.mxu0 %v3840
      %3941 = vmatprep.subr.mxu0 %v3839
      %3942 = vmatpush1.msra.mxu0 %v3838
      %3943 = vmatprep.subr.mxu0 %v3837
      %3944 = vmatpush1.msra.mxu0 %v3836
      %3945 = vmatprep.subr.mxu0 %v3835
      %3946 = vmatpush1.msra.mxu0 %v3834
      %3947 = vmatprep.subr.mxu0 %v3833
      %3948 = vmatpush1.msra.mxu0 %v3832
      %3949 = vmatprep.subr.mxu0 %v3831
      %3950 = vmatpush1.msra.mxu0 %v3830
      %3951 = vmatprep.subr.mxu0 %v3829
      %3952 = vmatpush1.msra.mxu0 %v3828
      %3953 = vmatprep.subr.mxu0 %v3827
      %3954 = vmatpush1.msra.mxu0 %v3826
      %3955 = vmatprep.subr.mxu0 %v3825
      %3956 = vmatpush1.msra.mxu0 %v3824
      %3957 = vmatprep.subr.mxu0 %v3823
      %3958 = vmatpush1.msra.mxu0 %v3822
      %3959 = vmatprep.subr.mxu0 %v3821
      %3960 = vmatpush1.msra.mxu0 %v3820
      %3961 = vmatprep.subr.mxu0 %v3819
      %3962 = vmatpush1.msra.mxu0 %v3818
      %3963 = vmatprep.subr.mxu0 %v3817
      %3964 = vmatpush1.msra.mxu0 %v3816
      %3965 = vmatprep.subr.mxu0 %v3815
      %3966 = vmatpush1.msra.mxu0 %v3814
      %3967 = vmatprep.subr.mxu0 0.0
      %3968 = vmatpush2.msra.mxu0 0.0
      %3969 = vmatprep.subr.mxu0 0.0
      %3970 = vmatpush2.msra.mxu0 0.0
      %3971 = vmatprep.subr.mxu0 0.0
      %3972 = vmatpush2.msra.mxu0 0.0
      %3973 = vmatprep.subr.mxu0 0.0
      %3974 = vmatpush2.msra.mxu0 0.0
      %3975 = vmatprep.subr.mxu0 0.0
      %3976 = vmatpush2.msra.mxu0 0.0
      %3977 = vmatprep.subr.mxu0 0.0
      %3978 = vmatpush2.msra.mxu0 0.0
      %3979 = vmatprep.subr.mxu0 0.0
      %3980 = vmatpush2.msra.mxu0 0.0
      %3981 = vmatprep.subr.mxu0 0.0
      %3982 = vmatpush2.msra.mxu0 0.0
      %3983 = vmatprep.subr.mxu0 0.0
      %3984 = vmatpush2.msra.mxu0 0.0
      %3985 = vmatprep.subr.mxu0 0.0
      %3986 = vmatpush2.msra.mxu0 0.0
      %3987 = vmatprep.subr.mxu0 0.0
      %3988 = vmatpush2.msra.mxu0 0.0
      %3989 = vmatprep.subr.mxu0 %v3933
      %3990 = vmatpush2.msra.mxu0 %v3930
      %3991 = vmatprep.subr.mxu0 %v3853
      %3992 = vmatpush2.msra.mxu0 %v3852
      %3993 = vmatprep.subr.mxu0 %v3851
      %3994 = vmatpush2.msra.mxu0 %v3850
      %3995 = vmatprep.subr.mxu0 %v3849
      %3996 = vmatpush2.msra.mxu0 %v3848
      %3997 = vmatprep.subr.mxu0 %v3847
      %3998 = vmatpush2.msra.mxu0 %v3846
      %3999 = vmatprep.mubr.f32.mxu0 %v3905
      %4000 = vmatmul.mubr.f32.gmra.mxu0 %v3798
      %v4001 = vpop.f32.mrf.mxu0
      %v4002 = vadd.f32 %v3867, %v4001
      %v4003 = vpop.f32.mrf.mxu0
      %v4004 = vadd.f32 %v3867, %v4003
      %4005 = vmatprep.mubr.f32.mxu0 %v3908
      %4006 = vmatmul.mubr.f32.gmra.mxu0 %v3800
      %v4007 = vpop.f32.mrf.mxu0
      %v4008 = vadd.f32 %v3872, %v4007
      %v4009 = vpop.f32.mrf.mxu0
      %v4010 = vadd.f32 %v3872, %v4009
      %4011 = vmatprep.mubr.f32.mxu0 %v3911
      %4012 = vmatmul.mubr.f32.gmra.mxu0 %v3802
      %v4013 = vpop.f32.mrf.mxu0
      %v4014 = vadd.f32 %v3877, %v4013
      %v4015 = vpop.f32.mrf.mxu0
      %v4016 = vadd.f32 %v3877, %v4015
      %4017 = vmatprep.mubr.f32.mxu0 %v3914
      %4018 = vmatmul.mubr.f32.gmra.mxu0 %v3804
      %v4019 = vpop.f32.mrf.mxu0
      %v4020 = vadd.f32 %v3882, %v4019
      %v4021 = vpop.f32.mrf.mxu0
      %v4022 = vadd.f32 %v3882, %v4021
      %4023 = vmatprep.mubr.f32.mxu0 %v3917
      %4024 = vmatmul.mubr.f32.gmra.mxu0 %v3806
      %v4025 = vpop.f32.mrf.mxu0
      %v4026 = vadd.f32 %v3887, %v4025
      %v4027 = vpop.f32.mrf.mxu0
      %v4028 = vadd.f32 %v3887, %v4027
      %4029 = vmatprep.mubr.f32.mxu0 %v3920
      %4030 = vmatmul.mubr.f32.gmra.mxu0 %v3808
      %v4031 = vpop.f32.mrf.mxu0
      %v4032 = vadd.f32 %v3892, %v4031
      %v4033 = vpop.f32.mrf.mxu0
      %v4034 = vadd.f32 %v3892, %v4033
      %4035 = vmatprep.mubr.f32.mxu0 %v3923
      %4036 = vmatmul.mubr.f32.gmra.mxu0 %v3810
      %v4037 = vpop.f32.mrf.mxu0
      %v4038 = vadd.f32 %v3897, %v4037
      %v4039 = vpop.f32.mrf.mxu0
      %v4040 = vadd.f32 %v3897, %v4039
      %4041 = vmatprep.mubr.f32.mxu0 %v3926
      %4042 = vmatmul.mubr.f32.gmra.mxu0 %v3812
      %v4043 = vpop.f32.mrf.mxu0
      %v4044 = vadd.f32 %v3902, %v4043
      %v4045 = vpop.f32.mrf.mxu0
      %v4046 = vadd.f32 %v3902, %v4045
      %4047 = vdwg.mxu0
      %v4048 = vmax.f32 %v4002, 0.0
      %v4049 = vmax.f32 %v4004, 0.0
      %v4050 = vmax.f32 %v4008, 0.0
      %v4051 = vmax.f32 %v4010, 0.0
      %v4052 = vmax.f32 %v4014, 0.0
      %v4053 = vmax.f32 %v4016, 0.0
      %v4054 = vmax.f32 %v4020, 0.0
      %v4055 = vmax.f32 %v4022, 0.0
      %v4056 = vmax.f32 %v4026, 0.0
      %v4057 = vmax.f32 %v4028, 0.0
      %v4058 = vmax.f32 %v4032, 0.0
      %v4059 = vmax.f32 %v4034, 0.0
      %v4060 = vmax.f32 %v4038, 0.0
      %v4061 = vmax.f32 %v4040, 0.0
      %v4062 = vmax.f32 %v4044, 0.0
      %v4063 = vmax.f32 %v4046, 0.0
      %v4064 = vld [vmem:[%s5] sm:$0xff]
      %v4065 = vld [vmem:[%s5 + $0x8] sm:$0xff]
      %v4066 = vld [vmem:[%s5 + $0x10] sm:$0xff]
      %v4067 = vld [vmem:[%s5 + $0x18] sm:$0xff]
      %v4068 = vld [vmem:[%s6] sm:$0xff]
      %v4069 = vld [vmem:[%s6 + $0x8] sm:$0xff]
      %v4070 = vld [vmem:[%s6 + $0x10] sm:$0xff]
      %v4071 = vld [vmem:[%s6 + $0x18] sm:$0xff]
      %4073 = vset.pattern.permute.xlu0 0
      %4074 = vperm.xlu0 %4073, %v4068
      %v4075 = vpop.permute.xlu0 %4074
      %4078 = vset.pattern.permute.xlu0 0
      %4079 = vperm.xlu0 %4078, %v4069
      %v4080 = vpop.permute.xlu0 %4079
      %4083 = vset.pattern.permute.xlu0 0
      %4084 = vperm.xlu0 %4083, %v4070
      %v4085 = vpop.permute.xlu0 %4084
      %4088 = vset.pattern.permute.xlu0 0
      %4089 = vperm.xlu0 %4088, %v4071
      %v4090 = vpop.permute.xlu0 %4089
      %v4093 = vsel %vm555, %v4064, 0
      %v4096 = vsel %vm555, %v4065, 0
      %v4099 = vsel %vm555, %v4066, 0
      %v4102 = vsel %vm555, %v4067, 0
      %4104 = vmatprep.subr.mxu0 0.0
      %4105 = vmatpush1.msra.mxu0 0.0
      %4106 = vmatprep.subr.mxu0 0.0
      %4107 = vmatpush1.msra.mxu0 0.0
      %4108 = vmatprep.subr.mxu0 0.0
      %4109 = vmatpush1.msra.mxu0 0.0
      %4110 = vmatprep.subr.mxu0 0.0
      %4111 = vmatpush1.msra.mxu0 0.0
      %4112 = vmatprep.subr.mxu0 0.0
      %4113 = vmatpush1.msra.mxu0 0.0
      %4114 = vmatprep.subr.mxu0 0.0
      %4115 = vmatpush1.msra.mxu0 0.0
      %4116 = vmatprep.subr.mxu0 0.0
      %4117 = vmatpush1.msra.mxu0 0.0
      %4118 = vmatprep.subr.mxu0 0.0
      %4119 = vmatpush1.msra.mxu0 0.0
      %4120 = vmatprep.subr.mxu0 %v4063
      %4121 = vmatpush1.msra.mxu0 %v4062
      %4122 = vmatprep.subr.mxu0 %v4061
      %4123 = vmatpush1.msra.mxu0 %v4060
      %4124 = vmatprep.subr.mxu0 %v4059
      %4125 = vmatpush1.msra.mxu0 %v4058
      %4126 = vmatprep.subr.mxu0 %v4057
      %4127 = vmatpush1.msra.mxu0 %v4056
      %4128 = vmatprep.subr.mxu0 %v4055
      %4129 = vmatpush1.msra.mxu0 %v4054
      %4130 = vmatprep.subr.mxu0 %v4053
      %4131 = vmatpush1.msra.mxu0 %v4052
      %4132 = vmatprep.subr.mxu0 %v4051
      %4133 = vmatpush1.msra.mxu0 %v4050
      %4134 = vmatprep.subr.mxu0 %v4049
      %4135 = vmatpush1.msra.mxu0 %v4048
      %4136 = vmatprep.subr.mxu0 0.0
      %4137 = vmatpush2.msra.mxu0 0.0
      %4138 = vmatprep.subr.mxu0 0.0
      %4139 = vmatpush2.msra.mxu0 0.0
      %4140 = vmatprep.subr.mxu0 0.0
      %4141 = vmatpush2.msra.mxu0 0.0
      %4142 = vmatprep.subr.mxu0 0.0
      %4143 = vmatpush2.msra.mxu0 0.0
      %4144 = vmatprep.subr.mxu0 0.0
      %4145 = vmatpush2.msra.mxu0 0.0
      %4146 = vmatprep.subr.mxu0 0.0
      %4147 = vmatpush2.msra.mxu0 0.0
      %4148 = vmatprep.subr.mxu0 0.0
      %4149 = vmatpush2.msra.mxu0 0.0
      %4150 = vmatprep.subr.mxu0 0.0
      %4151 = vmatpush2.msra.mxu0 0.0
      %4152 = vmatprep.subr.mxu0 0.0
      %4153 = vmatpush2.msra.mxu0 0.0
      %4154 = vmatprep.subr.mxu0 0.0
      %4155 = vmatpush2.msra.mxu0 0.0
      %4156 = vmatprep.subr.mxu0 0.0
      %4157 = vmatpush2.msra.mxu0 0.0
      %4158 = vmatprep.subr.mxu0 0.0
      %4159 = vmatpush2.msra.mxu0 0.0
      %4160 = vmatprep.subr.mxu0 0.0
      %4161 = vmatpush2.msra.mxu0 0.0
      %4162 = vmatprep.subr.mxu0 0.0
      %4163 = vmatpush2.msra.mxu0 0.0
      %4164 = vmatprep.subr.mxu0 0.0
      %4165 = vmatpush2.msra.mxu0 0.0
      %4166 = vmatprep.subr.mxu0 0.0
      %4167 = vmatpush2.msra.mxu0 0.0
      %4168 = vmatprep.mubr.f32.mxu0 0.0
      %4169 = vmatmul.mubr.f32.gmra.mxu0 %v4093
      %v4170 = vpop.f32.mrf.mxu0
      %v4171 = vadd.f32 %v4075, %v4170
      %v4172 = vpop.f32.mrf.mxu0
      %v4173 = vadd.f32 %v4075, %v4172
      %4174 = vmatprep.mubr.f32.mxu0 0.0
      %4175 = vmatmul.mubr.f32.gmra.mxu0 %v4096
      %v4176 = vpop.f32.mrf.mxu0
      %v4177 = vadd.f32 %v4080, %v4176
      %v4178 = vpop.f32.mrf.mxu0
      %v4179 = vadd.f32 %v4080, %v4178
      %4180 = vmatprep.mubr.f32.mxu0 0.0
      %4181 = vmatmul.mubr.f32.gmra.mxu0 %v4099
      %v4182 = vpop.f32.mrf.mxu0
      %v4183 = vadd.f32 %v4085, %v4182
      %v4184 = vpop.f32.mrf.mxu0
      %v4185 = vadd.f32 %v4085, %v4184
      %4186 = vmatprep.mubr.f32.mxu0 0.0
      %4187 = vmatmul.mubr.f32.gmra.mxu0 %v4102
      %v4188 = vpop.f32.mrf.mxu0
      %v4189 = vadd.f32 %v4090, %v4188
      %v4190 = vpop.f32.mrf.mxu0
      %v4191 = vadd.f32 %v4090, %v4190
      %4192 = vdwg.mxu0
      %v4193 = vmax.f32 %v4171, 0.0
      %v4194 = vmax.f32 %v4173, 0.0
      %v4195 = vmax.f32 %v4177, 0.0
      %v4196 = vmax.f32 %v4179, 0.0
      %v4197 = vmax.f32 %v4183, 0.0
      %v4198 = vmax.f32 %v4185, 0.0
      %v4199 = vmax.f32 %v4189, 0.0
      %v4200 = vmax.f32 %v4191, 0.0
      %v4201 = vmul.f32 %v4193, %v1259
      %v4202 = vmul.f32 %v4194, %v1257
      %v4203 = vmul.f32 %v4195, %v1259
      %v4204 = vmul.f32 %v4196, %v1257
      %v4205 = vmul.f32 %v4197, %v1259
      %v4206 = vmul.f32 %v4198, %v1257
      %v4207 = vmul.f32 %v4199, %v1259
      %v4208 = vmul.f32 %v4200, %v1257
      %4217 = vrot.lane.b32.xlu0 %v4201, 34
      %v4218 = vpop.permute.xlu0 %4217
      %4219 = vrot.lane.b32.xlu0 %v4202, 34
      %v4220 = vpop.permute.xlu0 %4219
      %4221 = vrot.lane.b32.xlu0 %v4203, 34
      %v4222 = vpop.permute.xlu0 %4221
      %4223 = vrot.lane.b32.xlu0 %v4204, 34
      %v4224 = vpop.permute.xlu0 %4223
      %4225 = vrot.lane.b32.xlu0 %v4205, 34
      %v4226 = vpop.permute.xlu0 %4225
      %4227 = vrot.lane.b32.xlu0 %v4206, 34
      %v4228 = vpop.permute.xlu0 %4227
      %4229 = vrot.lane.b32.xlu0 %v4207, 34
      %v4230 = vpop.permute.xlu0 %4229
      %4231 = vrot.lane.b32.xlu0 %v4208, 34
      %v4232 = vpop.permute.xlu0 %4231
      %v4233 = vsel %vm1275, %v1270, %v4218
      %v4234 = vsel %vm1275, %v4218, %v4220
      %v4235 = vsel %vm1275, %v1270, %v4222
      %v4236 = vsel %vm1275, %v4222, %v4224
      %v4237 = vsel %vm1275, %v1270, %v4226
      %v4238 = vsel %vm1275, %v4226, %v4228
      %v4239 = vsel %vm1275, %v1270, %v4230
      %v4240 = vsel %vm1275, %v4230, %v4232
      %4249 = vst [vmem:[#allocation3] sm:$0xff] %v4233
      %4250 = vst [vmem:[#allocation3 + $0x8] sm:$0xff] %v4234
      %4251 = vst [vmem:[#allocation3 + $0x10] sm:$0xff] %v4235
      %4252 = vst [vmem:[#allocation3 + $0x18] sm:$0xff] %v4236
      %4253 = vst [vmem:[#allocation3 + $0x20] sm:$0xff] %v4237
      %4254 = vst [vmem:[#allocation3 + $0x28] sm:$0xff] %v4238
      %4255 = vst [vmem:[#allocation3 + $0x30] sm:$0xff] %v4239
      %4256 = vst [vmem:[#allocation3 + $0x38] sm:$0xff] %v4240
      %v4257 = vmul.f32 %v4193, %v1300
      %v4258 = vmul.f32 %v4194, %v1298
      %v4259 = vmul.f32 %v4195, %v1300
      %v4260 = vmul.f32 %v4196, %v1298
      %v4261 = vmul.f32 %v4197, %v1300
      %v4262 = vmul.f32 %v4198, %v1298
      %v4263 = vmul.f32 %v4199, %v1300
      %v4264 = vmul.f32 %v4200, %v1298
      %4273 = vrot.lane.b32.xlu0 %v1304, 33
      %v4274 = vpop.permute.xlu0 %4273
      %4275 = vrot.lane.b32.xlu0 %v4257, 33
      %v4276 = vpop.permute.xlu0 %4275
      %4277 = vrot.lane.b32.xlu0 %v4258, 33
      %v4278 = vpop.permute.xlu0 %4277
      %4279 = vrot.lane.b32.xlu0 %v4259, 33
      %v4280 = vpop.permute.xlu0 %4279
      %4281 = vrot.lane.b32.xlu0 %v4260, 33
      %v4282 = vpop.permute.xlu0 %4281
      %4283 = vrot.lane.b32.xlu0 %v4261, 33
      %v4284 = vpop.permute.xlu0 %4283
      %4285 = vrot.lane.b32.xlu0 %v4262, 33
      %v4286 = vpop.permute.xlu0 %4285
      %4287 = vrot.lane.b32.xlu0 %v4263, 33
      %v4288 = vpop.permute.xlu0 %4287
      %4289 = vrot.lane.b32.xlu0 %v4264, 33
      %v4290 = vpop.permute.xlu0 %4289
      %v4291 = vsel %vm1319, %v4274, %v4276
      %v4292 = vsel %vm1319, %v4276, %v4278
      %v4293 = vsel %vm1319, %v4274, %v4280
      %v4294 = vsel %vm1319, %v4280, %v4282
      %v4295 = vsel %vm1319, %v4274, %v4284
      %v4296 = vsel %vm1319, %v4284, %v4286
      %v4297 = vsel %vm1319, %v4274, %v4288
      %v4298 = vsel %vm1319, %v4288, %v4290
      %4307 = vst [vmem:[#allocation3 + $0x40] sm:$0xff] %v4291
      %4308 = vst [vmem:[#allocation3 + $0x48] sm:$0xff] %v4292
      %4309 = vst [vmem:[#allocation3 + $0x50] sm:$0xff] %v4293
      %4310 = vst [vmem:[#allocation3 + $0x58] sm:$0xff] %v4294
      %4311 = vst [vmem:[#allocation3 + $0x60] sm:$0xff] %v4295
      %4312 = vst [vmem:[#allocation3 + $0x68] sm:$0xff] %v4296
      %4313 = vst [vmem:[#allocation3 + $0x70] sm:$0xff] %v4297
      %4314 = vst [vmem:[#allocation3 + $0x78] sm:$0xff] %v4298
      %v4315 = vmul.f32 %v4193, %v1344
      %v4316 = vmul.f32 %v4194, %v1342
      %v4317 = vmul.f32 %v4195, %v1344
      %v4318 = vmul.f32 %v4196, %v1342
      %v4319 = vmul.f32 %v4197, %v1344
      %v4320 = vmul.f32 %v4198, %v1342
      %v4321 = vmul.f32 %v4199, %v1344
      %v4322 = vmul.f32 %v4200, %v1342
      %4331 = vrot.lane.b32.xlu0 %v1348, 32
      %v4332 = vpop.permute.xlu0 %4331
      %4333 = vrot.lane.b32.xlu0 %v4315, 32
      %v4334 = vpop.permute.xlu0 %4333
      %4335 = vrot.lane.b32.xlu0 %v4316, 32
      %v4336 = vpop.permute.xlu0 %4335
      %4337 = vrot.lane.b32.xlu0 %v4317, 32
      %v4338 = vpop.permute.xlu0 %4337
      %4339 = vrot.lane.b32.xlu0 %v4318, 32
      %v4340 = vpop.permute.xlu0 %4339
      %4341 = vrot.lane.b32.xlu0 %v4319, 32
      %v4342 = vpop.permute.xlu0 %4341
      %4343 = vrot.lane.b32.xlu0 %v4320, 32
      %v4344 = vpop.permute.xlu0 %4343
      %4345 = vrot.lane.b32.xlu0 %v4321, 32
      %v4346 = vpop.permute.xlu0 %4345
      %4347 = vrot.lane.b32.xlu0 %v4322, 32
      %v4348 = vpop.permute.xlu0 %4347
      %v4349 = vsel %vm1363, %v4332, %v4334
      %v4350 = vsel %vm1363, %v4334, %v4336
      %v4351 = vsel %vm1363, %v4332, %v4338
      %v4352 = vsel %vm1363, %v4338, %v4340
      %v4353 = vsel %vm1363, %v4332, %v4342
      %v4354 = vsel %vm1363, %v4342, %v4344
      %v4355 = vsel %vm1363, %v4332, %v4346
      %v4356 = vsel %vm1363, %v4346, %v4348
      %4365 = vst [vmem:[#allocation3 + $0x80] sm:$0xff] %v4349
      %4366 = vst [vmem:[#allocation3 + $0x88] sm:$0xff] %v4350
      %4367 = vst [vmem:[#allocation3 + $0x90] sm:$0xff] %v4351
      %4368 = vst [vmem:[#allocation3 + $0x98] sm:$0xff] %v4352
      %4369 = vst [vmem:[#allocation3 + $0xa0] sm:$0xff] %v4353
      %4370 = vst [vmem:[#allocation3 + $0xa8] sm:$0xff] %v4354
      %4371 = vst [vmem:[#allocation3 + $0xb0] sm:$0xff] %v4355
      %4372 = vst [vmem:[#allocation3 + $0xb8] sm:$0xff] %v4356
      %v4373 = vmul.f32 %v4193, %v1388
      %v4374 = vmul.f32 %v4194, %v1386
      %v4375 = vmul.f32 %v4195, %v1388
      %v4376 = vmul.f32 %v4196, %v1386
      %v4377 = vmul.f32 %v4197, %v1388
      %v4378 = vmul.f32 %v4198, %v1386
      %v4379 = vmul.f32 %v4199, %v1388
      %v4380 = vmul.f32 %v4200, %v1386
      %4389 = vrot.lane.b32.xlu0 %v1392, 31
      %v4390 = vpop.permute.xlu0 %4389
      %4391 = vrot.lane.b32.xlu0 %v4373, 31
      %v4392 = vpop.permute.xlu0 %4391
      %4393 = vrot.lane.b32.xlu0 %v4374, 31
      %v4394 = vpop.permute.xlu0 %4393
      %4395 = vrot.lane.b32.xlu0 %v4375, 31
      %v4396 = vpop.permute.xlu0 %4395
      %4397 = vrot.lane.b32.xlu0 %v4376, 31
      %v4398 = vpop.permute.xlu0 %4397
      %4399 = vrot.lane.b32.xlu0 %v4377, 31
      %v4400 = vpop.permute.xlu0 %4399
      %4401 = vrot.lane.b32.xlu0 %v4378, 31
      %v4402 = vpop.permute.xlu0 %4401
      %4403 = vrot.lane.b32.xlu0 %v4379, 31
      %v4404 = vpop.permute.xlu0 %4403
      %4405 = vrot.lane.b32.xlu0 %v4380, 31
      %v4406 = vpop.permute.xlu0 %4405
      %v4407 = vsel %vm1407, %v4390, %v4392
      %v4408 = vsel %vm1407, %v4392, %v4394
      %v4409 = vsel %vm1407, %v4390, %v4396
      %v4410 = vsel %vm1407, %v4396, %v4398
      %v4411 = vsel %vm1407, %v4390, %v4400
      %v4412 = vsel %vm1407, %v4400, %v4402
      %v4413 = vsel %vm1407, %v4390, %v4404
      %v4414 = vsel %vm1407, %v4404, %v4406
      %4423 = vst [vmem:[#allocation3 + $0xc0] sm:$0xff] %v4407
      %4424 = vst [vmem:[#allocation3 + $0xc8] sm:$0xff] %v4408
      %4425 = vst [vmem:[#allocation3 + $0xd0] sm:$0xff] %v4409
      %4426 = vst [vmem:[#allocation3 + $0xd8] sm:$0xff] %v4410
      %4427 = vst [vmem:[#allocation3 + $0xe0] sm:$0xff] %v4411
      %4428 = vst [vmem:[#allocation3 + $0xe8] sm:$0xff] %v4412
      %4429 = vst [vmem:[#allocation3 + $0xf0] sm:$0xff] %v4413
      %4430 = vst [vmem:[#allocation3 + $0xf8] sm:$0xff] %v4414
      %v4431 = vmul.f32 %v4193, %v1432
      %v4432 = vmul.f32 %v4194, %v1430
      %v4433 = vmul.f32 %v4195, %v1432
      %v4434 = vmul.f32 %v4196, %v1430
      %v4435 = vmul.f32 %v4197, %v1432
      %v4436 = vmul.f32 %v4198, %v1430
      %v4437 = vmul.f32 %v4199, %v1432
      %v4438 = vmul.f32 %v4200, %v1430
      %4447 = vrot.lane.b32.xlu0 %v4431, 30
      %v4448 = vpop.permute.xlu0 %4447
      %4449 = vrot.lane.b32.xlu0 %v4432, 30
      %v4450 = vpop.permute.xlu0 %4449
      %4451 = vrot.lane.b32.xlu0 %v4433, 30
      %v4452 = vpop.permute.xlu0 %4451
      %4453 = vrot.lane.b32.xlu0 %v4434, 30
      %v4454 = vpop.permute.xlu0 %4453
      %4455 = vrot.lane.b32.xlu0 %v4435, 30
      %v4456 = vpop.permute.xlu0 %4455
      %4457 = vrot.lane.b32.xlu0 %v4436, 30
      %v4458 = vpop.permute.xlu0 %4457
      %4459 = vrot.lane.b32.xlu0 %v4437, 30
      %v4460 = vpop.permute.xlu0 %4459
      %4461 = vrot.lane.b32.xlu0 %v4438, 30
      %v4462 = vpop.permute.xlu0 %4461
      %v4463 = vsel %vm1448, %v1443, %v4448
      %v4464 = vsel %vm1448, %v4448, %v4450
      %v4465 = vsel %vm1448, %v1443, %v4452
      %v4466 = vsel %vm1448, %v4452, %v4454
      %v4467 = vsel %vm1448, %v1443, %v4456
      %v4468 = vsel %vm1448, %v4456, %v4458
      %v4469 = vsel %vm1448, %v1443, %v4460
      %v4470 = vsel %vm1448, %v4460, %v4462
      %4479 = vst [vmem:[#allocation3 + $0x100] sm:$0xff] %v4463
      %4480 = vst [vmem:[#allocation3 + $0x108] sm:$0xff] %v4464
      %4481 = vst [vmem:[#allocation3 + $0x110] sm:$0xff] %v4465
      %4482 = vst [vmem:[#allocation3 + $0x118] sm:$0xff] %v4466
      %4483 = vst [vmem:[#allocation3 + $0x120] sm:$0xff] %v4467
      %4484 = vst [vmem:[#allocation3 + $0x128] sm:$0xff] %v4468
      %4485 = vst [vmem:[#allocation3 + $0x130] sm:$0xff] %v4469
      %4486 = vst [vmem:[#allocation3 + $0x138] sm:$0xff] %v4470
      %v4487 = vmul.f32 %v4193, %v1650
      %v4488 = vmul.f32 %v4194, %v1648
      %v4489 = vmul.f32 %v4195, %v1650
      %v4490 = vmul.f32 %v4196, %v1648
      %v4491 = vmul.f32 %v4197, %v1650
      %v4492 = vmul.f32 %v4198, %v1648
      %v4493 = vmul.f32 %v4199, %v1650
      %v4494 = vmul.f32 %v4200, %v1648
      %4503 = vrot.lane.b32.xlu0 %v1654, 18
      %v4504 = vpop.permute.xlu0 %4503
      %4505 = vrot.lane.b32.xlu0 %v4487, 18
      %v4506 = vpop.permute.xlu0 %4505
      %4507 = vrot.lane.b32.xlu0 %v4488, 18
      %v4508 = vpop.permute.xlu0 %4507
      %4509 = vrot.lane.b32.xlu0 %v4489, 18
      %v4510 = vpop.permute.xlu0 %4509
      %4511 = vrot.lane.b32.xlu0 %v4490, 18
      %v4512 = vpop.permute.xlu0 %4511
      %4513 = vrot.lane.b32.xlu0 %v4491, 18
      %v4514 = vpop.permute.xlu0 %4513
      %4515 = vrot.lane.b32.xlu0 %v4492, 18
      %v4516 = vpop.permute.xlu0 %4515
      %4517 = vrot.lane.b32.xlu0 %v4493, 18
      %v4518 = vpop.permute.xlu0 %4517
      %4519 = vrot.lane.b32.xlu0 %v4494, 18
      %v4520 = vpop.permute.xlu0 %4519
      %v4521 = vsel %vm1669, %v4504, %v4506
      %v4522 = vsel %vm1669, %v4506, %v4508
      %v4523 = vsel %vm1669, %v4504, %v4510
      %v4524 = vsel %vm1669, %v4510, %v4512
      %v4525 = vsel %vm1669, %v4504, %v4514
      %v4526 = vsel %vm1669, %v4514, %v4516
      %v4527 = vsel %vm1669, %v4504, %v4518
      %v4528 = vsel %vm1669, %v4518, %v4520
      %4537 = vst [vmem:[#allocation3 + $0x140] sm:$0xff] %v4521
      %4538 = vst [vmem:[#allocation3 + $0x148] sm:$0xff] %v4522
      %4539 = vst [vmem:[#allocation3 + $0x150] sm:$0xff] %v4523
      %4540 = vst [vmem:[#allocation3 + $0x158] sm:$0xff] %v4524
      %4541 = vst [vmem:[#allocation3 + $0x160] sm:$0xff] %v4525
      %4542 = vst [vmem:[#allocation3 + $0x168] sm:$0xff] %v4526
      %4543 = vst [vmem:[#allocation3 + $0x170] sm:$0xff] %v4527
      %4544 = vst [vmem:[#allocation3 + $0x178] sm:$0xff] %v4528
      %v4545 = vmul.f32 %v4193, %v1694
      %v4546 = vmul.f32 %v4194, %v1692
      %v4547 = vmul.f32 %v4195, %v1694
      %v4548 = vmul.f32 %v4196, %v1692
      %v4549 = vmul.f32 %v4197, %v1694
      %v4550 = vmul.f32 %v4198, %v1692
      %v4551 = vmul.f32 %v4199, %v1694
      %v4552 = vmul.f32 %v4200, %v1692
      %4561 = vrot.lane.b32.xlu0 %v1698, 17
      %v4562 = vpop.permute.xlu0 %4561
      %4563 = vrot.lane.b32.xlu0 %v4545, 17
      %v4564 = vpop.permute.xlu0 %4563
      %4565 = vrot.lane.b32.xlu0 %v4546, 17
      %v4566 = vpop.permute.xlu0 %4565
      %4567 = vrot.lane.b32.xlu0 %v4547, 17
      %v4568 = vpop.permute.xlu0 %4567
      %4569 = vrot.lane.b32.xlu0 %v4548, 17
      %v4570 = vpop.permute.xlu0 %4569
      %4571 = vrot.lane.b32.xlu0 %v4549, 17
      %v4572 = vpop.permute.xlu0 %4571
      %4573 = vrot.lane.b32.xlu0 %v4550, 17
      %v4574 = vpop.permute.xlu0 %4573
      %4575 = vrot.lane.b32.xlu0 %v4551, 17
      %v4576 = vpop.permute.xlu0 %4575
      %4577 = vrot.lane.b32.xlu0 %v4552, 17
      %v4578 = vpop.permute.xlu0 %4577
      %v4579 = vsel %vm1713, %v4562, %v4564
      %v4580 = vsel %vm1713, %v4564, %v4566
      %v4581 = vsel %vm1713, %v4562, %v4568
      %v4582 = vsel %vm1713, %v4568, %v4570
      %v4583 = vsel %vm1713, %v4562, %v4572
      %v4584 = vsel %vm1713, %v4572, %v4574
      %v4585 = vsel %vm1713, %v4562, %v4576
      %v4586 = vsel %vm1713, %v4576, %v4578
      %4595 = vst [vmem:[#allocation3 + $0x180] sm:$0xff] %v4579
      %4596 = vst [vmem:[#allocation3 + $0x188] sm:$0xff] %v4580
      %4597 = vst [vmem:[#allocation3 + $0x190] sm:$0xff] %v4581
      %4598 = vst [vmem:[#allocation3 + $0x198] sm:$0xff] %v4582
      %4599 = vst [vmem:[#allocation3 + $0x1a0] sm:$0xff] %v4583
      %4600 = vst [vmem:[#allocation3 + $0x1a8] sm:$0xff] %v4584
      %4601 = vst [vmem:[#allocation3 + $0x1b0] sm:$0xff] %v4585
      %4602 = vst [vmem:[#allocation3 + $0x1b8] sm:$0xff] %v4586
      %v4603 = vmul.f32 %v4193, %v1738
      %v4604 = vmul.f32 %v4194, %v1736
      %v4605 = vmul.f32 %v4195, %v1738
      %v4606 = vmul.f32 %v4196, %v1736
      %v4607 = vmul.f32 %v4197, %v1738
      %v4608 = vmul.f32 %v4198, %v1736
      %v4609 = vmul.f32 %v4199, %v1738
      %v4610 = vmul.f32 %v4200, %v1736
      %4619 = vrot.lane.b32.xlu0 %v1742, 16
      %v4620 = vpop.permute.xlu0 %4619
      %4621 = vrot.lane.b32.xlu0 %v4603, 16
      %v4622 = vpop.permute.xlu0 %4621
      %4623 = vrot.lane.b32.xlu0 %v4604, 16
      %v4624 = vpop.permute.xlu0 %4623
      %4625 = vrot.lane.b32.xlu0 %v4605, 16
      %v4626 = vpop.permute.xlu0 %4625
      %4627 = vrot.lane.b32.xlu0 %v4606, 16
      %v4628 = vpop.permute.xlu0 %4627
      %4629 = vrot.lane.b32.xlu0 %v4607, 16
      %v4630 = vpop.permute.xlu0 %4629
      %4631 = vrot.lane.b32.xlu0 %v4608, 16
      %v4632 = vpop.permute.xlu0 %4631
      %4633 = vrot.lane.b32.xlu0 %v4609, 16
      %v4634 = vpop.permute.xlu0 %4633
      %4635 = vrot.lane.b32.xlu0 %v4610, 16
      %v4636 = vpop.permute.xlu0 %4635
      %v4637 = vsel %vm1757, %v4620, %v4622
      %v4638 = vsel %vm1757, %v4622, %v4624
      %v4639 = vsel %vm1757, %v4620, %v4626
      %v4640 = vsel %vm1757, %v4626, %v4628
      %v4641 = vsel %vm1757, %v4620, %v4630
      %v4642 = vsel %vm1757, %v4630, %v4632
      %v4643 = vsel %vm1757, %v4620, %v4634
      %v4644 = vsel %vm1757, %v4634, %v4636
      %4653 = vst [vmem:[#allocation3 + $0x1c0] sm:$0xff] %v4637
      %4654 = vst [vmem:[#allocation3 + $0x1c8] sm:$0xff] %v4638
      %4655 = vst [vmem:[#allocation3 + $0x1d0] sm:$0xff] %v4639
      %4656 = vst [vmem:[#allocation3 + $0x1d8] sm:$0xff] %v4640
      %4657 = vst [vmem:[#allocation3 + $0x1e0] sm:$0xff] %v4641
      %4658 = vst [vmem:[#allocation3 + $0x1e8] sm:$0xff] %v4642
      %4659 = vst [vmem:[#allocation3 + $0x1f0] sm:$0xff] %v4643
      %4660 = vst [vmem:[#allocation3 + $0x1f8] sm:$0xff] %v4644
      %v4661 = vmul.f32 %v4193, %v1782
      %v4662 = vmul.f32 %v4194, %v1780
      %v4663 = vmul.f32 %v4195, %v1782
      %v4664 = vmul.f32 %v4196, %v1780
      %v4665 = vmul.f32 %v4197, %v1782
      %v4666 = vmul.f32 %v4198, %v1780
      %v4667 = vmul.f32 %v4199, %v1782
      %v4668 = vmul.f32 %v4200, %v1780
      %4677 = vrot.lane.b32.xlu0 %v4661, 15
      %v4678 = vpop.permute.xlu0 %4677
      %4679 = vrot.lane.b32.xlu0 %v4662, 15
      %v4680 = vpop.permute.xlu0 %4679
      %4681 = vrot.lane.b32.xlu0 %v4663, 15
      %v4682 = vpop.permute.xlu0 %4681
      %4683 = vrot.lane.b32.xlu0 %v4664, 15
      %v4684 = vpop.permute.xlu0 %4683
      %4685 = vrot.lane.b32.xlu0 %v4665, 15
      %v4686 = vpop.permute.xlu0 %4685
      %4687 = vrot.lane.b32.xlu0 %v4666, 15
      %v4688 = vpop.permute.xlu0 %4687
      %4689 = vrot.lane.b32.xlu0 %v4667, 15
      %v4690 = vpop.permute.xlu0 %4689
      %4691 = vrot.lane.b32.xlu0 %v4668, 15
      %v4692 = vpop.permute.xlu0 %4691
      %v4693 = vsel %vm1798, %v1793, %v4678
      %v4694 = vsel %vm1798, %v4678, %v4680
      %v4695 = vsel %vm1798, %v1793, %v4682
      %v4696 = vsel %vm1798, %v4682, %v4684
      %v4697 = vsel %vm1798, %v1793, %v4686
      %v4698 = vsel %vm1798, %v4686, %v4688
      %v4699 = vsel %vm1798, %v1793, %v4690
      %v4700 = vsel %vm1798, %v4690, %v4692
      %4709 = vst [vmem:[#allocation3 + $0x200] sm:$0xff] %v4693
      %4710 = vst [vmem:[#allocation3 + $0x208] sm:$0xff] %v4694
      %4711 = vst [vmem:[#allocation3 + $0x210] sm:$0xff] %v4695
      %4712 = vst [vmem:[#allocation3 + $0x218] sm:$0xff] %v4696
      %4713 = vst [vmem:[#allocation3 + $0x220] sm:$0xff] %v4697
      %4714 = vst [vmem:[#allocation3 + $0x228] sm:$0xff] %v4698
      %4715 = vst [vmem:[#allocation3 + $0x230] sm:$0xff] %v4699
      %4716 = vst [vmem:[#allocation3 + $0x238] sm:$0xff] %v4700
      %v4717 = vmul.f32 %v4193, %v1823
      %v4718 = vmul.f32 %v4194, %v1821
      %v4719 = vmul.f32 %v4195, %v1823
      %v4720 = vmul.f32 %v4196, %v1821
      %v4721 = vmul.f32 %v4197, %v1823
      %v4722 = vmul.f32 %v4198, %v1821
      %v4723 = vmul.f32 %v4199, %v1823
      %v4724 = vmul.f32 %v4200, %v1821
      %4733 = vrot.lane.b32.xlu0 %v1827, 14
      %v4734 = vpop.permute.xlu0 %4733
      %4735 = vrot.lane.b32.xlu0 %v4717, 14
      %v4736 = vpop.permute.xlu0 %4735
      %4737 = vrot.lane.b32.xlu0 %v4718, 14
      %v4738 = vpop.permute.xlu0 %4737
      %4739 = vrot.lane.b32.xlu0 %v4719, 14
      %v4740 = vpop.permute.xlu0 %4739
      %4741 = vrot.lane.b32.xlu0 %v4720, 14
      %v4742 = vpop.permute.xlu0 %4741
      %4743 = vrot.lane.b32.xlu0 %v4721, 14
      %v4744 = vpop.permute.xlu0 %4743
      %4745 = vrot.lane.b32.xlu0 %v4722, 14
      %v4746 = vpop.permute.xlu0 %4745
      %4747 = vrot.lane.b32.xlu0 %v4723, 14
      %v4748 = vpop.permute.xlu0 %4747
      %4749 = vrot.lane.b32.xlu0 %v4724, 14
      %v4750 = vpop.permute.xlu0 %4749
      %v4751 = vsel %vm1842, %v4734, %v4736
      %v4752 = vsel %vm1842, %v4736, %v4738
      %v4753 = vsel %vm1842, %v4734, %v4740
      %v4754 = vsel %vm1842, %v4740, %v4742
      %v4755 = vsel %vm1842, %v4734, %v4744
      %v4756 = vsel %vm1842, %v4744, %v4746
      %v4757 = vsel %vm1842, %v4734, %v4748
      %v4758 = vsel %vm1842, %v4748, %v4750
      %4767 = vst [vmem:[#allocation3 + $0x240] sm:$0xff] %v4751
      %4768 = vst [vmem:[#allocation3 + $0x248] sm:$0xff] %v4752
      %4769 = vst [vmem:[#allocation3 + $0x250] sm:$0xff] %v4753
      %4770 = vst [vmem:[#allocation3 + $0x258] sm:$0xff] %v4754
      %4771 = vst [vmem:[#allocation3 + $0x260] sm:$0xff] %v4755
      %4772 = vst [vmem:[#allocation3 + $0x268] sm:$0xff] %v4756
      %4773 = vst [vmem:[#allocation3 + $0x270] sm:$0xff] %v4757
      %4774 = vst [vmem:[#allocation3 + $0x278] sm:$0xff] %v4758
      %v4775 = vmul.f32 %v4193, %v2043
      %v4776 = vmul.f32 %v4194, %v2041
      %v4777 = vmul.f32 %v4195, %v2043
      %v4778 = vmul.f32 %v4196, %v2041
      %v4779 = vmul.f32 %v4197, %v2043
      %v4780 = vmul.f32 %v4198, %v2041
      %v4781 = vmul.f32 %v4199, %v2043
      %v4782 = vmul.f32 %v4200, %v2041
      %4791 = vrot.lane.b32.xlu0 %v2047, 2
      %v4792 = vpop.permute.xlu0 %4791
      %4793 = vrot.lane.b32.xlu0 %v4775, 2
      %v4794 = vpop.permute.xlu0 %4793
      %4795 = vrot.lane.b32.xlu0 %v4776, 2
      %v4796 = vpop.permute.xlu0 %4795
      %4797 = vrot.lane.b32.xlu0 %v4777, 2
      %v4798 = vpop.permute.xlu0 %4797
      %4799 = vrot.lane.b32.xlu0 %v4778, 2
      %v4800 = vpop.permute.xlu0 %4799
      %4801 = vrot.lane.b32.xlu0 %v4779, 2
      %v4802 = vpop.permute.xlu0 %4801
      %4803 = vrot.lane.b32.xlu0 %v4780, 2
      %v4804 = vpop.permute.xlu0 %4803
      %4805 = vrot.lane.b32.xlu0 %v4781, 2
      %v4806 = vpop.permute.xlu0 %4805
      %4807 = vrot.lane.b32.xlu0 %v4782, 2
      %v4808 = vpop.permute.xlu0 %4807
      %v4809 = vsel %vm2062, %v4792, %v4794
      %v4810 = vsel %vm2062, %v4794, %v4796
      %v4811 = vsel %vm2062, %v4792, %v4798
      %v4812 = vsel %vm2062, %v4798, %v4800
      %v4813 = vsel %vm2062, %v4792, %v4802
      %v4814 = vsel %vm2062, %v4802, %v4804
      %v4815 = vsel %vm2062, %v4792, %v4806
      %v4816 = vsel %vm2062, %v4806, %v4808
      %4825 = vst [vmem:[#allocation3 + $0x280] sm:$0xff] %v4809
      %4826 = vst [vmem:[#allocation3 + $0x288] sm:$0xff] %v4810
      %4827 = vst [vmem:[#allocation3 + $0x290] sm:$0xff] %v4811
      %4828 = vst [vmem:[#allocation3 + $0x298] sm:$0xff] %v4812
      %4829 = vst [vmem:[#allocation3 + $0x2a0] sm:$0xff] %v4813
      %4830 = vst [vmem:[#allocation3 + $0x2a8] sm:$0xff] %v4814
      %4831 = vst [vmem:[#allocation3 + $0x2b0] sm:$0xff] %v4815
      %4832 = vst [vmem:[#allocation3 + $0x2b8] sm:$0xff] %v4816
      %v4833 = vmul.f32 %v4193, %v2087
      %v4834 = vmul.f32 %v4194, %v2085
      %v4835 = vmul.f32 %v4195, %v2087
      %v4836 = vmul.f32 %v4196, %v2085
      %v4837 = vmul.f32 %v4197, %v2087
      %v4838 = vmul.f32 %v4198, %v2085
      %v4839 = vmul.f32 %v4199, %v2087
      %v4840 = vmul.f32 %v4200, %v2085
      %4849 = vrot.lane.b32.xlu0 %v2091, 1
      %v4850 = vpop.permute.xlu0 %4849
      %4851 = vrot.lane.b32.xlu0 %v4833, 1
      %v4852 = vpop.permute.xlu0 %4851
      %4853 = vrot.lane.b32.xlu0 %v4834, 1
      %v4854 = vpop.permute.xlu0 %4853
      %4855 = vrot.lane.b32.xlu0 %v4835, 1
      %v4856 = vpop.permute.xlu0 %4855
      %4857 = vrot.lane.b32.xlu0 %v4836, 1
      %v4858 = vpop.permute.xlu0 %4857
      %4859 = vrot.lane.b32.xlu0 %v4837, 1
      %v4860 = vpop.permute.xlu0 %4859
      %4861 = vrot.lane.b32.xlu0 %v4838, 1
      %v4862 = vpop.permute.xlu0 %4861
      %4863 = vrot.lane.b32.xlu0 %v4839, 1
      %v4864 = vpop.permute.xlu0 %4863
      %4865 = vrot.lane.b32.xlu0 %v4840, 1
      %v4866 = vpop.permute.xlu0 %4865
      %v4867 = vsel %vm2106, %v4850, %v4852
      %v4868 = vsel %vm2106, %v4852, %v4854
      %v4869 = vsel %vm2106, %v4850, %v4856
      %v4870 = vsel %vm2106, %v4856, %v4858
      %v4871 = vsel %vm2106, %v4850, %v4860
      %v4872 = vsel %vm2106, %v4860, %v4862
      %v4873 = vsel %vm2106, %v4850, %v4864
      %v4874 = vsel %vm2106, %v4864, %v4866
      %4883 = vst [vmem:[#allocation3 + $0x2c0] sm:$0xff] %v4867
      %4884 = vst [vmem:[#allocation3 + $0x2c8] sm:$0xff] %v4868
      %4885 = vst [vmem:[#allocation3 + $0x2d0] sm:$0xff] %v4869
      %4886 = vst [vmem:[#allocation3 + $0x2d8] sm:$0xff] %v4870
      %4887 = vst [vmem:[#allocation3 + $0x2e0] sm:$0xff] %v4871
      %4888 = vst [vmem:[#allocation3 + $0x2e8] sm:$0xff] %v4872
      %4889 = vst [vmem:[#allocation3 + $0x2f0] sm:$0xff] %v4873
      %4890 = vst [vmem:[#allocation3 + $0x2f8] sm:$0xff] %v4874
      %v4891 = vmul.f32 %v4193, %v2121
      %v4892 = vmul.f32 %v4194, %v2125
      %v4893 = vmul.f32 %v4195, %v2121
      %v4894 = vmul.f32 %v4196, %v2125
      %v4895 = vmul.f32 %v4197, %v2121
      %v4896 = vmul.f32 %v4198, %v2125
      %v4897 = vmul.f32 %v4199, %v2121
      %v4898 = vmul.f32 %v4200, %v2125
      %4899 = vst [vmem:[#allocation3 + $0x300] sm:$0xff] %v4891
      %4900 = vst [vmem:[#allocation3 + $0x308] sm:$0xff] %v4892
      %4901 = vst [vmem:[#allocation3 + $0x310] sm:$0xff] %v4893
      %4902 = vst [vmem:[#allocation3 + $0x318] sm:$0xff] %v4894
      %4903 = vst [vmem:[#allocation3 + $0x320] sm:$0xff] %v4895
      %4904 = vst [vmem:[#allocation3 + $0x328] sm:$0xff] %v4896
      %4905 = vst [vmem:[#allocation3 + $0x330] sm:$0xff] %v4897
      %4906 = vst [vmem:[#allocation3 + $0x338] sm:$0xff] %v4898
      %v4907 = vmul.f32 %v4193, %v2146
      %v4908 = vmul.f32 %v4194, %v2149
      %v4909 = vmul.f32 %v4195, %v2146
      %v4910 = vmul.f32 %v4196, %v2149
      %v4911 = vmul.f32 %v4197, %v2146
      %v4912 = vmul.f32 %v4198, %v2149
      %v4913 = vmul.f32 %v4199, %v2146
      %v4914 = vmul.f32 %v4200, %v2149
      %4923 = vrot.lane.b32.xlu0 %v4907, 127
      %v4924 = vpop.permute.xlu0 %4923
      %4925 = vrot.lane.b32.xlu0 %v4908, 127
      %v4926 = vpop.permute.xlu0 %4925
      %4927 = vrot.lane.b32.xlu0 %v2155, 127
      %v4928 = vpop.permute.xlu0 %4927
      %4929 = vrot.lane.b32.xlu0 %v4909, 127
      %v4930 = vpop.permute.xlu0 %4929
      %4931 = vrot.lane.b32.xlu0 %v4910, 127
      %v4932 = vpop.permute.xlu0 %4931
      %4933 = vrot.lane.b32.xlu0 %v4911, 127
      %v4934 = vpop.permute.xlu0 %4933
      %4935 = vrot.lane.b32.xlu0 %v4912, 127
      %v4936 = vpop.permute.xlu0 %4935
      %4937 = vrot.lane.b32.xlu0 %v4913, 127
      %v4938 = vpop.permute.xlu0 %4937
      %4939 = vrot.lane.b32.xlu0 %v4914, 127
      %v4940 = vpop.permute.xlu0 %4939
      %v4941 = vsel %vm2086, %v4924, %v4926
      %v4942 = vsel %vm2086, %v4926, %v4928
      %v4943 = vsel %vm2086, %v4930, %v4932
      %v4944 = vsel %vm2086, %v4932, %v4928
      %v4945 = vsel %vm2086, %v4934, %v4936
      %v4946 = vsel %vm2086, %v4936, %v4928
      %v4947 = vsel %vm2086, %v4938, %v4940
      %v4948 = vsel %vm2086, %v4940, %v4928
      %4957 = vst [vmem:[#allocation3 + $0x340] sm:$0xff] %v4941
      %4958 = vst [vmem:[#allocation3 + $0x348] sm:$0xff] %v4942
      %4959 = vst [vmem:[#allocation3 + $0x350] sm:$0xff] %v4943
      %4960 = vst [vmem:[#allocation3 + $0x358] sm:$0xff] %v4944
      %4961 = vst [vmem:[#allocation3 + $0x360] sm:$0xff] %v4945
      %4962 = vst [vmem:[#allocation3 + $0x368] sm:$0xff] %v4946
      %4963 = vst [vmem:[#allocation3 + $0x370] sm:$0xff] %v4947
      %4964 = vst [vmem:[#allocation3 + $0x378] sm:$0xff] %v4948
      %v4965 = vmul.f32 %v4193, %v2188
      %v4966 = vmul.f32 %v4194, %v2191
      %v4967 = vmul.f32 %v4195, %v2188
      %v4968 = vmul.f32 %v4196, %v2191
      %v4969 = vmul.f32 %v4197, %v2188
      %v4970 = vmul.f32 %v4198, %v2191
      %v4971 = vmul.f32 %v4199, %v2188
      %v4972 = vmul.f32 %v4200, %v2191
      %4981 = vrot.lane.b32.xlu0 %v4965, 126
      %v4982 = vpop.permute.xlu0 %4981
      %4983 = vrot.lane.b32.xlu0 %v4966, 126
      %v4984 = vpop.permute.xlu0 %4983
      %4985 = vrot.lane.b32.xlu0 %v2197, 126
      %v4986 = vpop.permute.xlu0 %4985
      %4987 = vrot.lane.b32.xlu0 %v4967, 126
      %v4988 = vpop.permute.xlu0 %4987
      %4989 = vrot.lane.b32.xlu0 %v4968, 126
      %v4990 = vpop.permute.xlu0 %4989
      %4991 = vrot.lane.b32.xlu0 %v4969, 126
      %v4992 = vpop.permute.xlu0 %4991
      %4993 = vrot.lane.b32.xlu0 %v4970, 126
      %v4994 = vpop.permute.xlu0 %4993
      %4995 = vrot.lane.b32.xlu0 %v4971, 126
      %v4996 = vpop.permute.xlu0 %4995
      %4997 = vrot.lane.b32.xlu0 %v4972, 126
      %v4998 = vpop.permute.xlu0 %4997
      %v4999 = vsel %vm2042, %v4982, %v4984
      %v5000 = vsel %vm2042, %v4984, %v4986
      %v5001 = vsel %vm2042, %v4988, %v4990
      %v5002 = vsel %vm2042, %v4990, %v4986
      %v5003 = vsel %vm2042, %v4992, %v4994
      %v5004 = vsel %vm2042, %v4994, %v4986
      %v5005 = vsel %vm2042, %v4996, %v4998
      %v5006 = vsel %vm2042, %v4998, %v4986
      %5015 = vst [vmem:[#allocation3 + $0x380] sm:$0xff] %v4999
      %5016 = vst [vmem:[#allocation3 + $0x388] sm:$0xff] %v5000
      %5017 = vst [vmem:[#allocation3 + $0x390] sm:$0xff] %v5001
      %5018 = vst [vmem:[#allocation3 + $0x398] sm:$0xff] %v5002
      %5019 = vst [vmem:[#allocation3 + $0x3a0] sm:$0xff] %v5003
      %5020 = vst [vmem:[#allocation3 + $0x3a8] sm:$0xff] %v5004
      %5021 = vst [vmem:[#allocation3 + $0x3b0] sm:$0xff] %v5005
      %5022 = vst [vmem:[#allocation3 + $0x3b8] sm:$0xff] %v5006
      %v5023 = vmul.f32 %v4193, %v2399
      %v5024 = vmul.f32 %v4194, %v2402
      %v5025 = vmul.f32 %v4195, %v2399
      %v5026 = vmul.f32 %v4196, %v2402
      %v5027 = vmul.f32 %v4197, %v2399
      %v5028 = vmul.f32 %v4198, %v2402
      %v5029 = vmul.f32 %v4199, %v2399
      %v5030 = vmul.f32 %v4200, %v2402
      %5039 = vrot.lane.b32.xlu0 %v5023, 114
      %v5040 = vpop.permute.xlu0 %5039
      %5041 = vrot.lane.b32.xlu0 %v5024, 114
      %v5042 = vpop.permute.xlu0 %5041
      %5043 = vrot.lane.b32.xlu0 %v2408, 114
      %v5044 = vpop.permute.xlu0 %5043
      %5045 = vrot.lane.b32.xlu0 %v5025, 114
      %v5046 = vpop.permute.xlu0 %5045
      %5047 = vrot.lane.b32.xlu0 %v5026, 114
      %v5048 = vpop.permute.xlu0 %5047
      %5049 = vrot.lane.b32.xlu0 %v5027, 114
      %v5050 = vpop.permute.xlu0 %5049
      %5051 = vrot.lane.b32.xlu0 %v5028, 114
      %v5052 = vpop.permute.xlu0 %5051
      %5053 = vrot.lane.b32.xlu0 %v5029, 114
      %v5054 = vpop.permute.xlu0 %5053
      %5055 = vrot.lane.b32.xlu0 %v5030, 114
      %v5056 = vpop.permute.xlu0 %5055
      %v5057 = vsel %vm1822, %v5040, %v5042
      %v5058 = vsel %vm1822, %v5042, %v5044
      %v5059 = vsel %vm1822, %v5046, %v5048
      %v5060 = vsel %vm1822, %v5048, %v5044
      %v5061 = vsel %vm1822, %v5050, %v5052
      %v5062 = vsel %vm1822, %v5052, %v5044
      %v5063 = vsel %vm1822, %v5054, %v5056
      %v5064 = vsel %vm1822, %v5056, %v5044
      %5073 = vst [vmem:[#allocation3 + $0x3c0] sm:$0xff] %v5057
      %5074 = vst [vmem:[#allocation3 + $0x3c8] sm:$0xff] %v5058
      %5075 = vst [vmem:[#allocation3 + $0x3d0] sm:$0xff] %v5059
      %5076 = vst [vmem:[#allocation3 + $0x3d8] sm:$0xff] %v5060
      %5077 = vst [vmem:[#allocation3 + $0x3e0] sm:$0xff] %v5061
      %5078 = vst [vmem:[#allocation3 + $0x3e8] sm:$0xff] %v5062
      %5079 = vst [vmem:[#allocation3 + $0x3f0] sm:$0xff] %v5063
      %5080 = vst [vmem:[#allocation3 + $0x3f8] sm:$0xff] %v5064
      %v5081 = vmul.f32 %v4193, %v2441
      %v5082 = vmul.f32 %v4194, %v2444
      %v5083 = vmul.f32 %v4195, %v2441
      %v5084 = vmul.f32 %v4196, %v2444
      %v5085 = vmul.f32 %v4197, %v2441
      %v5086 = vmul.f32 %v4198, %v2444
      %v5087 = vmul.f32 %v4199, %v2441
      %v5088 = vmul.f32 %v4200, %v2444
      %5097 = vrot.lane.b32.xlu0 %v5081, 113
      %v5098 = vpop.permute.xlu0 %5097
      %5099 = vrot.lane.b32.xlu0 %v5082, 113
      %v5100 = vpop.permute.xlu0 %5099
      %5101 = vrot.lane.b32.xlu0 %v5083, 113
      %v5102 = vpop.permute.xlu0 %5101
      %5103 = vrot.lane.b32.xlu0 %v5084, 113
      %v5104 = vpop.permute.xlu0 %5103
      %5105 = vrot.lane.b32.xlu0 %v5085, 113
      %v5106 = vpop.permute.xlu0 %5105
      %5107 = vrot.lane.b32.xlu0 %v5086, 113
      %v5108 = vpop.permute.xlu0 %5107
      %5109 = vrot.lane.b32.xlu0 %v5087, 113
      %v5110 = vpop.permute.xlu0 %5109
      %5111 = vrot.lane.b32.xlu0 %v5088, 113
      %v5112 = vpop.permute.xlu0 %5111
      %v5113 = vsel %vm1781, %v5098, %v5100
      %v5114 = vsel %vm1781, %v5100, %v2459
      %v5115 = vsel %vm1781, %v5102, %v5104
      %v5116 = vsel %vm1781, %v5104, %v2459
      %v5117 = vsel %vm1781, %v5106, %v5108
      %v5118 = vsel %vm1781, %v5108, %v2459
      %v5119 = vsel %vm1781, %v5110, %v5112
      %v5120 = vsel %vm1781, %v5112, %v2459
      %5129 = vst [vmem:[#allocation3 + $0x400] sm:$0xff] %v5113
      %5130 = vst [vmem:[#allocation3 + $0x408] sm:$0xff] %v5114
      %5131 = vst [vmem:[#allocation3 + $0x410] sm:$0xff] %v5115
      %5132 = vst [vmem:[#allocation3 + $0x418] sm:$0xff] %v5116
      %5133 = vst [vmem:[#allocation3 + $0x420] sm:$0xff] %v5117
      %5134 = vst [vmem:[#allocation3 + $0x428] sm:$0xff] %v5118
      %5135 = vst [vmem:[#allocation3 + $0x430] sm:$0xff] %v5119
      %5136 = vst [vmem:[#allocation3 + $0x438] sm:$0xff] %v5120
      %v5137 = vmul.f32 %v4193, %v2480
      %v5138 = vmul.f32 %v4194, %v2483
      %v5139 = vmul.f32 %v4195, %v2480
      %v5140 = vmul.f32 %v4196, %v2483
      %v5141 = vmul.f32 %v4197, %v2480
      %v5142 = vmul.f32 %v4198, %v2483
      %v5143 = vmul.f32 %v4199, %v2480
      %v5144 = vmul.f32 %v4200, %v2483
      %5153 = vrot.lane.b32.xlu0 %v5137, 112
      %v5154 = vpop.permute.xlu0 %5153
      %5155 = vrot.lane.b32.xlu0 %v5138, 112
      %v5156 = vpop.permute.xlu0 %5155
      %5157 = vrot.lane.b32.xlu0 %v2489, 112
      %v5158 = vpop.permute.xlu0 %5157
      %5159 = vrot.lane.b32.xlu0 %v5139, 112
      %v5160 = vpop.permute.xlu0 %5159
      %5161 = vrot.lane.b32.xlu0 %v5140, 112
      %v5162 = vpop.permute.xlu0 %5161
      %5163 = vrot.lane.b32.xlu0 %v5141, 112
      %v5164 = vpop.permute.xlu0 %5163
      %5165 = vrot.lane.b32.xlu0 %v5142, 112
      %v5166 = vpop.permute.xlu0 %5165
      %5167 = vrot.lane.b32.xlu0 %v5143, 112
      %v5168 = vpop.permute.xlu0 %5167
      %5169 = vrot.lane.b32.xlu0 %v5144, 112
      %v5170 = vpop.permute.xlu0 %5169
      %v5171 = vsel %vm1737, %v5154, %v5156
      %v5172 = vsel %vm1737, %v5156, %v5158
      %v5173 = vsel %vm1737, %v5160, %v5162
      %v5174 = vsel %vm1737, %v5162, %v5158
      %v5175 = vsel %vm1737, %v5164, %v5166
      %v5176 = vsel %vm1737, %v5166, %v5158
      %v5177 = vsel %vm1737, %v5168, %v5170
      %v5178 = vsel %vm1737, %v5170, %v5158
      %5187 = vst [vmem:[#allocation3 + $0x440] sm:$0xff] %v5171
      %5188 = vst [vmem:[#allocation3 + $0x448] sm:$0xff] %v5172
      %5189 = vst [vmem:[#allocation3 + $0x450] sm:$0xff] %v5173
      %5190 = vst [vmem:[#allocation3 + $0x458] sm:$0xff] %v5174
      %5191 = vst [vmem:[#allocation3 + $0x460] sm:$0xff] %v5175
      %5192 = vst [vmem:[#allocation3 + $0x468] sm:$0xff] %v5176
      %5193 = vst [vmem:[#allocation3 + $0x470] sm:$0xff] %v5177
      %5194 = vst [vmem:[#allocation3 + $0x478] sm:$0xff] %v5178
      %v5195 = vmul.f32 %v4193, %v2522
      %v5196 = vmul.f32 %v4194, %v2525
      %v5197 = vmul.f32 %v4195, %v2522
      %v5198 = vmul.f32 %v4196, %v2525
      %v5199 = vmul.f32 %v4197, %v2522
      %v5200 = vmul.f32 %v4198, %v2525
      %v5201 = vmul.f32 %v4199, %v2522
      %v5202 = vmul.f32 %v4200, %v2525
      %5211 = vrot.lane.b32.xlu0 %v5195, 111
      %v5212 = vpop.permute.xlu0 %5211
      %5213 = vrot.lane.b32.xlu0 %v5196, 111
      %v5214 = vpop.permute.xlu0 %5213
      %5215 = vrot.lane.b32.xlu0 %v2531, 111
      %v5216 = vpop.permute.xlu0 %5215
      %5217 = vrot.lane.b32.xlu0 %v5197, 111
      %v5218 = vpop.permute.xlu0 %5217
      %5219 = vrot.lane.b32.xlu0 %v5198, 111
      %v5220 = vpop.permute.xlu0 %5219
      %5221 = vrot.lane.b32.xlu0 %v5199, 111
      %v5222 = vpop.permute.xlu0 %5221
      %5223 = vrot.lane.b32.xlu0 %v5200, 111
      %v5224 = vpop.permute.xlu0 %5223
      %5225 = vrot.lane.b32.xlu0 %v5201, 111
      %v5226 = vpop.permute.xlu0 %5225
      %5227 = vrot.lane.b32.xlu0 %v5202, 111
      %v5228 = vpop.permute.xlu0 %5227
      %v5229 = vsel %vm1693, %v5212, %v5214
      %v5230 = vsel %vm1693, %v5214, %v5216
      %v5231 = vsel %vm1693, %v5218, %v5220
      %v5232 = vsel %vm1693, %v5220, %v5216
      %v5233 = vsel %vm1693, %v5222, %v5224
      %v5234 = vsel %vm1693, %v5224, %v5216
      %v5235 = vsel %vm1693, %v5226, %v5228
      %v5236 = vsel %vm1693, %v5228, %v5216
      %5245 = vst [vmem:[#allocation3 + $0x480] sm:$0xff] %v5229
      %5246 = vst [vmem:[#allocation3 + $0x488] sm:$0xff] %v5230
      %5247 = vst [vmem:[#allocation3 + $0x490] sm:$0xff] %v5231
      %5248 = vst [vmem:[#allocation3 + $0x498] sm:$0xff] %v5232
      %5249 = vst [vmem:[#allocation3 + $0x4a0] sm:$0xff] %v5233
      %5250 = vst [vmem:[#allocation3 + $0x4a8] sm:$0xff] %v5234
      %5251 = vst [vmem:[#allocation3 + $0x4b0] sm:$0xff] %v5235
      %5252 = vst [vmem:[#allocation3 + $0x4b8] sm:$0xff] %v5236
      %v5253 = vmul.f32 %v4193, %v2564
      %v5254 = vmul.f32 %v4194, %v2567
      %v5255 = vmul.f32 %v4195, %v2564
      %v5256 = vmul.f32 %v4196, %v2567
      %v5257 = vmul.f32 %v4197, %v2564
      %v5258 = vmul.f32 %v4198, %v2567
      %v5259 = vmul.f32 %v4199, %v2564
      %v5260 = vmul.f32 %v4200, %v2567
      %5269 = vrot.lane.b32.xlu0 %v5253, 110
      %v5270 = vpop.permute.xlu0 %5269
      %5271 = vrot.lane.b32.xlu0 %v5254, 110
      %v5272 = vpop.permute.xlu0 %5271
      %5273 = vrot.lane.b32.xlu0 %v2573, 110
      %v5274 = vpop.permute.xlu0 %5273
      %5275 = vrot.lane.b32.xlu0 %v5255, 110
      %v5276 = vpop.permute.xlu0 %5275
      %5277 = vrot.lane.b32.xlu0 %v5256, 110
      %v5278 = vpop.permute.xlu0 %5277
      %5279 = vrot.lane.b32.xlu0 %v5257, 110
      %v5280 = vpop.permute.xlu0 %5279
      %5281 = vrot.lane.b32.xlu0 %v5258, 110
      %v5282 = vpop.permute.xlu0 %5281
      %5283 = vrot.lane.b32.xlu0 %v5259, 110
      %v5284 = vpop.permute.xlu0 %5283
      %5285 = vrot.lane.b32.xlu0 %v5260, 110
      %v5286 = vpop.permute.xlu0 %5285
      %v5287 = vsel %vm1649, %v5270, %v5272
      %v5288 = vsel %vm1649, %v5272, %v5274
      %v5289 = vsel %vm1649, %v5276, %v5278
      %v5290 = vsel %vm1649, %v5278, %v5274
      %v5291 = vsel %vm1649, %v5280, %v5282
      %v5292 = vsel %vm1649, %v5282, %v5274
      %v5293 = vsel %vm1649, %v5284, %v5286
      %v5294 = vsel %vm1649, %v5286, %v5274
      %5303 = vst [vmem:[#allocation3 + $0x4c0] sm:$0xff] %v5287
      %5304 = vst [vmem:[#allocation3 + $0x4c8] sm:$0xff] %v5288
      %5305 = vst [vmem:[#allocation3 + $0x4d0] sm:$0xff] %v5289
      %5306 = vst [vmem:[#allocation3 + $0x4d8] sm:$0xff] %v5290
      %5307 = vst [vmem:[#allocation3 + $0x4e0] sm:$0xff] %v5291
      %5308 = vst [vmem:[#allocation3 + $0x4e8] sm:$0xff] %v5292
      %5309 = vst [vmem:[#allocation3 + $0x4f0] sm:$0xff] %v5293
      %5310 = vst [vmem:[#allocation3 + $0x4f8] sm:$0xff] %v5294
      %v5311 = vmul.f32 %v4193, %v2775
      %v5312 = vmul.f32 %v4194, %v2778
      %v5313 = vmul.f32 %v4195, %v2775
      %v5314 = vmul.f32 %v4196, %v2778
      %v5315 = vmul.f32 %v4197, %v2775
      %v5316 = vmul.f32 %v4198, %v2778
      %v5317 = vmul.f32 %v4199, %v2775
      %v5318 = vmul.f32 %v4200, %v2778
      %5327 = vrot.lane.b32.xlu0 %v5311, 98
      %v5328 = vpop.permute.xlu0 %5327
      %5329 = vrot.lane.b32.xlu0 %v5312, 98
      %v5330 = vpop.permute.xlu0 %5329
      %5331 = vrot.lane.b32.xlu0 %v5313, 98
      %v5332 = vpop.permute.xlu0 %5331
      %5333 = vrot.lane.b32.xlu0 %v5314, 98
      %v5334 = vpop.permute.xlu0 %5333
      %5335 = vrot.lane.b32.xlu0 %v5315, 98
      %v5336 = vpop.permute.xlu0 %5335
      %5337 = vrot.lane.b32.xlu0 %v5316, 98
      %v5338 = vpop.permute.xlu0 %5337
      %5339 = vrot.lane.b32.xlu0 %v5317, 98
      %v5340 = vpop.permute.xlu0 %5339
      %5341 = vrot.lane.b32.xlu0 %v5318, 98
      %v5342 = vpop.permute.xlu0 %5341
      %v5343 = vsel %vm1431, %v5328, %v5330
      %v5344 = vsel %vm1431, %v5330, %v2793
      %v5345 = vsel %vm1431, %v5332, %v5334
      %v5346 = vsel %vm1431, %v5334, %v2793
      %v5347 = vsel %vm1431, %v5336, %v5338
      %v5348 = vsel %vm1431, %v5338, %v2793
      %v5349 = vsel %vm1431, %v5340, %v5342
      %v5350 = vsel %vm1431, %v5342, %v2793
      %5359 = vst [vmem:[#allocation3 + $0x500] sm:$0xff] %v5343
      %5360 = vst [vmem:[#allocation3 + $0x508] sm:$0xff] %v5344
      %5361 = vst [vmem:[#allocation3 + $0x510] sm:$0xff] %v5345
      %5362 = vst [vmem:[#allocation3 + $0x518] sm:$0xff] %v5346
      %5363 = vst [vmem:[#allocation3 + $0x520] sm:$0xff] %v5347
      %5364 = vst [vmem:[#allocation3 + $0x528] sm:$0xff] %v5348
      %5365 = vst [vmem:[#allocation3 + $0x530] sm:$0xff] %v5349
      %5366 = vst [vmem:[#allocation3 + $0x538] sm:$0xff] %v5350
      %v5367 = vmul.f32 %v4193, %v2814
      %v5368 = vmul.f32 %v4194, %v2817
      %v5369 = vmul.f32 %v4195, %v2814
      %v5370 = vmul.f32 %v4196, %v2817
      %v5371 = vmul.f32 %v4197, %v2814
      %v5372 = vmul.f32 %v4198, %v2817
      %v5373 = vmul.f32 %v4199, %v2814
      %v5374 = vmul.f32 %v4200, %v2817
      %5383 = vrot.lane.b32.xlu0 %v5367, 97
      %v5384 = vpop.permute.xlu0 %5383
      %5385 = vrot.lane.b32.xlu0 %v5368, 97
      %v5386 = vpop.permute.xlu0 %5385
      %5387 = vrot.lane.b32.xlu0 %v2823, 97
      %v5388 = vpop.permute.xlu0 %5387
      %5389 = vrot.lane.b32.xlu0 %v5369, 97
      %v5390 = vpop.permute.xlu0 %5389
      %5391 = vrot.lane.b32.xlu0 %v5370, 97
      %v5392 = vpop.permute.xlu0 %5391
      %5393 = vrot.lane.b32.xlu0 %v5371, 97
      %v5394 = vpop.permute.xlu0 %5393
      %5395 = vrot.lane.b32.xlu0 %v5372, 97
      %v5396 = vpop.permute.xlu0 %5395
      %5397 = vrot.lane.b32.xlu0 %v5373, 97
      %v5398 = vpop.permute.xlu0 %5397
      %5399 = vrot.lane.b32.xlu0 %v5374, 97
      %v5400 = vpop.permute.xlu0 %5399
      %v5401 = vsel %vm1387, %v5384, %v5386
      %v5402 = vsel %vm1387, %v5386, %v5388
      %v5403 = vsel %vm1387, %v5390, %v5392
      %v5404 = vsel %vm1387, %v5392, %v5388
      %v5405 = vsel %vm1387, %v5394, %v5396
      %v5406 = vsel %vm1387, %v5396, %v5388
      %v5407 = vsel %vm1387, %v5398, %v5400
      %v5408 = vsel %vm1387, %v5400, %v5388
      %5417 = vst [vmem:[#allocation3 + $0x540] sm:$0xff] %v5401
      %5418 = vst [vmem:[#allocation3 + $0x548] sm:$0xff] %v5402
      %5419 = vst [vmem:[#allocation3 + $0x550] sm:$0xff] %v5403
      %5420 = vst [vmem:[#allocation3 + $0x558] sm:$0xff] %v5404
      %5421 = vst [vmem:[#allocation3 + $0x560] sm:$0xff] %v5405
      %5422 = vst [vmem:[#allocation3 + $0x568] sm:$0xff] %v5406
      %5423 = vst [vmem:[#allocation3 + $0x570] sm:$0xff] %v5407
      %5424 = vst [vmem:[#allocation3 + $0x578] sm:$0xff] %v5408
      %v5425 = vmul.f32 %v4193, %v2856
      %v5426 = vmul.f32 %v4194, %v2859
      %v5427 = vmul.f32 %v4195, %v2856
      %v5428 = vmul.f32 %v4196, %v2859
      %v5429 = vmul.f32 %v4197, %v2856
      %v5430 = vmul.f32 %v4198, %v2859
      %v5431 = vmul.f32 %v4199, %v2856
      %v5432 = vmul.f32 %v4200, %v2859
      %5441 = vrot.lane.b32.xlu0 %v5425, 96
      %v5442 = vpop.permute.xlu0 %5441
      %5443 = vrot.lane.b32.xlu0 %v5426, 96
      %v5444 = vpop.permute.xlu0 %5443
      %5445 = vrot.lane.b32.xlu0 %v2865, 96
      %v5446 = vpop.permute.xlu0 %5445
      %5447 = vrot.lane.b32.xlu0 %v5427, 96
      %v5448 = vpop.permute.xlu0 %5447
      %5449 = vrot.lane.b32.xlu0 %v5428, 96
      %v5450 = vpop.permute.xlu0 %5449
      %5451 = vrot.lane.b32.xlu0 %v5429, 96
      %v5452 = vpop.permute.xlu0 %5451
      %5453 = vrot.lane.b32.xlu0 %v5430, 96
      %v5454 = vpop.permute.xlu0 %5453
      %5455 = vrot.lane.b32.xlu0 %v5431, 96
      %v5456 = vpop.permute.xlu0 %5455
      %5457 = vrot.lane.b32.xlu0 %v5432, 96
      %v5458 = vpop.permute.xlu0 %5457
      %v5459 = vsel %vm1343, %v5442, %v5444
      %v5460 = vsel %vm1343, %v5444, %v5446
      %v5461 = vsel %vm1343, %v5448, %v5450
      %v5462 = vsel %vm1343, %v5450, %v5446
      %v5463 = vsel %vm1343, %v5452, %v5454
      %v5464 = vsel %vm1343, %v5454, %v5446
      %v5465 = vsel %vm1343, %v5456, %v5458
      %v5466 = vsel %vm1343, %v5458, %v5446
      %5475 = vst [vmem:[#allocation3 + $0x580] sm:$0xff] %v5459
      %5476 = vst [vmem:[#allocation3 + $0x588] sm:$0xff] %v5460
      %5477 = vst [vmem:[#allocation3 + $0x590] sm:$0xff] %v5461
      %5478 = vst [vmem:[#allocation3 + $0x598] sm:$0xff] %v5462
      %5479 = vst [vmem:[#allocation3 + $0x5a0] sm:$0xff] %v5463
      %5480 = vst [vmem:[#allocation3 + $0x5a8] sm:$0xff] %v5464
      %5481 = vst [vmem:[#allocation3 + $0x5b0] sm:$0xff] %v5465
      %5482 = vst [vmem:[#allocation3 + $0x5b8] sm:$0xff] %v5466
      %v5483 = vmul.f32 %v4193, %v2898
      %v5484 = vmul.f32 %v4194, %v2901
      %v5485 = vmul.f32 %v4195, %v2898
      %v5486 = vmul.f32 %v4196, %v2901
      %v5487 = vmul.f32 %v4197, %v2898
      %v5488 = vmul.f32 %v4198, %v2901
      %v5489 = vmul.f32 %v4199, %v2898
      %v5490 = vmul.f32 %v4200, %v2901
      %5499 = vrot.lane.b32.xlu0 %v5483, 95
      %v5500 = vpop.permute.xlu0 %5499
      %5501 = vrot.lane.b32.xlu0 %v5484, 95
      %v5502 = vpop.permute.xlu0 %5501
      %5503 = vrot.lane.b32.xlu0 %v2907, 95
      %v5504 = vpop.permute.xlu0 %5503
      %5505 = vrot.lane.b32.xlu0 %v5485, 95
      %v5506 = vpop.permute.xlu0 %5505
      %5507 = vrot.lane.b32.xlu0 %v5486, 95
      %v5508 = vpop.permute.xlu0 %5507
      %5509 = vrot.lane.b32.xlu0 %v5487, 95
      %v5510 = vpop.permute.xlu0 %5509
      %5511 = vrot.lane.b32.xlu0 %v5488, 95
      %v5512 = vpop.permute.xlu0 %5511
      %5513 = vrot.lane.b32.xlu0 %v5489, 95
      %v5514 = vpop.permute.xlu0 %5513
      %5515 = vrot.lane.b32.xlu0 %v5490, 95
      %v5516 = vpop.permute.xlu0 %5515
      %v5517 = vsel %vm1299, %v5500, %v5502
      %v5518 = vsel %vm1299, %v5502, %v5504
      %v5519 = vsel %vm1299, %v5506, %v5508
      %v5520 = vsel %vm1299, %v5508, %v5504
      %v5521 = vsel %vm1299, %v5510, %v5512
      %v5522 = vsel %vm1299, %v5512, %v5504
      %v5523 = vsel %vm1299, %v5514, %v5516
      %v5524 = vsel %vm1299, %v5516, %v5504
      %5533 = vst [vmem:[#allocation3 + $0x5c0] sm:$0xff] %v5517
      %5534 = vst [vmem:[#allocation3 + $0x5c8] sm:$0xff] %v5518
      %5535 = vst [vmem:[#allocation3 + $0x5d0] sm:$0xff] %v5519
      %5536 = vst [vmem:[#allocation3 + $0x5d8] sm:$0xff] %v5520
      %5537 = vst [vmem:[#allocation3 + $0x5e0] sm:$0xff] %v5521
      %5538 = vst [vmem:[#allocation3 + $0x5e8] sm:$0xff] %v5522
      %5539 = vst [vmem:[#allocation3 + $0x5f0] sm:$0xff] %v5523
      %5540 = vst [vmem:[#allocation3 + $0x5f8] sm:$0xff] %v5524
      %v5541 = vmul.f32 %v4193, %v2940
      %v5542 = vmul.f32 %v4194, %v2943
      %v5543 = vmul.f32 %v4195, %v2940
      %v5544 = vmul.f32 %v4196, %v2943
      %v5545 = vmul.f32 %v4197, %v2940
      %v5546 = vmul.f32 %v4198, %v2943
      %v5547 = vmul.f32 %v4199, %v2940
      %v5548 = vmul.f32 %v4200, %v2943
      %5557 = vrot.lane.b32.xlu0 %v5541, 94
      %v5558 = vpop.permute.xlu0 %5557
      %5559 = vrot.lane.b32.xlu0 %v5542, 94
      %v5560 = vpop.permute.xlu0 %5559
      %5561 = vrot.lane.b32.xlu0 %v5543, 94
      %v5562 = vpop.permute.xlu0 %5561
      %5563 = vrot.lane.b32.xlu0 %v5544, 94
      %v5564 = vpop.permute.xlu0 %5563
      %5565 = vrot.lane.b32.xlu0 %v5545, 94
      %v5566 = vpop.permute.xlu0 %5565
      %5567 = vrot.lane.b32.xlu0 %v5546, 94
      %v5568 = vpop.permute.xlu0 %5567
      %5569 = vrot.lane.b32.xlu0 %v5547, 94
      %v5570 = vpop.permute.xlu0 %5569
      %5571 = vrot.lane.b32.xlu0 %v5548, 94
      %v5572 = vpop.permute.xlu0 %5571
      %v5573 = vsel %vm1258, %v5558, %v5560
      %v5574 = vsel %vm1258, %v5560, %v2958
      %v5575 = vsel %vm1258, %v5562, %v5564
      %v5576 = vsel %vm1258, %v5564, %v2958
      %v5577 = vsel %vm1258, %v5566, %v5568
      %v5578 = vsel %vm1258, %v5568, %v2958
      %v5579 = vsel %vm1258, %v5570, %v5572
      %v5580 = vsel %vm1258, %v5572, %v2958
      %5589 = vst [vmem:[#allocation3 + $0x600] sm:$0xff] %v5573
      %5590 = vst [vmem:[#allocation3 + $0x608] sm:$0xff] %v5574
      %5591 = vst [vmem:[#allocation3 + $0x610] sm:$0xff] %v5575
      %5592 = vst [vmem:[#allocation3 + $0x618] sm:$0xff] %v5576
      %5593 = vst [vmem:[#allocation3 + $0x620] sm:$0xff] %v5577
      %5594 = vst [vmem:[#allocation3 + $0x628] sm:$0xff] %v5578
      %5595 = vst [vmem:[#allocation3 + $0x630] sm:$0xff] %v5579
      %5596 = vst [vmem:[#allocation3 + $0x638] sm:$0xff] %v5580
      %v5597 = vld [vmem:[%s7] sm:$0xff]
      %v5598 = vld [vmem:[%s7 + $0x8] sm:$0x3f]
      %v5599 = vld [vmem:[#allocation3] sm:$0xff]
      %v5600 = vld [vmem:[#allocation3 + $0x8] sm:$0xff]
      %v5601 = vld [vmem:[#allocation3 + $0x10] sm:$0xff]
      %v5602 = vld [vmem:[#allocation3 + $0x18] sm:$0xff]
      %v5603 = vld [vmem:[#allocation3 + $0x20] sm:$0xff]
      %v5604 = vld [vmem:[#allocation3 + $0x28] sm:$0xff]
      %v5605 = vld [vmem:[#allocation3 + $0x30] sm:$0xff]
      %v5606 = vld [vmem:[#allocation3 + $0x38] sm:$0xff]
      %v5607 = vld [vmem:[#allocation3 + $0x40] sm:$0xff]
      %v5608 = vld [vmem:[#allocation3 + $0x48] sm:$0xff]
      %v5609 = vld [vmem:[#allocation3 + $0x50] sm:$0xff]
      %v5610 = vld [vmem:[#allocation3 + $0x58] sm:$0xff]
      %v5611 = vld [vmem:[#allocation3 + $0x60] sm:$0xff]
      %v5612 = vld [vmem:[#allocation3 + $0x68] sm:$0xff]
      %v5613 = vld [vmem:[#allocation3 + $0x70] sm:$0xff]
      %v5614 = vld [vmem:[#allocation3 + $0x78] sm:$0xff]
      %v5615 = vld [vmem:[#allocation3 + $0x80] sm:$0xff]
      %v5616 = vld [vmem:[#allocation3 + $0x88] sm:$0xff]
      %v5617 = vld [vmem:[#allocation3 + $0x90] sm:$0xff]
      %v5618 = vld [vmem:[#allocation3 + $0x98] sm:$0xff]
      %v5619 = vld [vmem:[#allocation3 + $0xa0] sm:$0xff]
      %v5620 = vld [vmem:[#allocation3 + $0xa8] sm:$0xff]
      %v5621 = vld [vmem:[#allocation3 + $0xb0] sm:$0xff]
      %v5622 = vld [vmem:[#allocation3 + $0xb8] sm:$0xff]
      %v5623 = vld [vmem:[#allocation3 + $0xc0] sm:$0xff]
      %v5624 = vld [vmem:[#allocation3 + $0xc8] sm:$0xff]
      %v5625 = vld [vmem:[#allocation3 + $0xd0] sm:$0xff]
      %v5626 = vld [vmem:[#allocation3 + $0xd8] sm:$0xff]
      %v5627 = vld [vmem:[#allocation3 + $0xe0] sm:$0xff]
      %v5628 = vld [vmem:[#allocation3 + $0xe8] sm:$0xff]
      %v5629 = vld [vmem:[#allocation3 + $0xf0] sm:$0xff]
      %v5630 = vld [vmem:[#allocation3 + $0xf8] sm:$0xff]
      %v5631 = vld [vmem:[#allocation3 + $0x100] sm:$0xff]
      %v5632 = vld [vmem:[#allocation3 + $0x108] sm:$0xff]
      %v5633 = vld [vmem:[#allocation3 + $0x110] sm:$0xff]
      %v5634 = vld [vmem:[#allocation3 + $0x118] sm:$0xff]
      %v5635 = vld [vmem:[#allocation3 + $0x120] sm:$0xff]
      %v5636 = vld [vmem:[#allocation3 + $0x128] sm:$0xff]
      %v5637 = vld [vmem:[#allocation3 + $0x130] sm:$0xff]
      %v5638 = vld [vmem:[#allocation3 + $0x138] sm:$0xff]
      %v5639 = vld [vmem:[#allocation3 + $0x140] sm:$0xff]
      %v5640 = vld [vmem:[#allocation3 + $0x148] sm:$0xff]
      %v5641 = vld [vmem:[#allocation3 + $0x150] sm:$0xff]
      %v5642 = vld [vmem:[#allocation3 + $0x158] sm:$0xff]
      %v5643 = vld [vmem:[#allocation3 + $0x160] sm:$0xff]
      %v5644 = vld [vmem:[#allocation3 + $0x168] sm:$0xff]
      %v5645 = vld [vmem:[#allocation3 + $0x170] sm:$0xff]
      %v5646 = vld [vmem:[#allocation3 + $0x178] sm:$0xff]
      %v5647 = vld [vmem:[#allocation3 + $0x180] sm:$0xff]
      %v5648 = vld [vmem:[#allocation3 + $0x188] sm:$0xff]
      %v5649 = vld [vmem:[#allocation3 + $0x190] sm:$0xff]
      %v5650 = vld [vmem:[#allocation3 + $0x198] sm:$0xff]
      %v5651 = vld [vmem:[#allocation3 + $0x1a0] sm:$0xff]
      %v5652 = vld [vmem:[#allocation3 + $0x1a8] sm:$0xff]
      %v5653 = vld [vmem:[#allocation3 + $0x1b0] sm:$0xff]
      %v5654 = vld [vmem:[#allocation3 + $0x1b8] sm:$0xff]
      %v5655 = vld [vmem:[#allocation3 + $0x1c0] sm:$0xff]
      %v5656 = vld [vmem:[#allocation3 + $0x1c8] sm:$0xff]
      %v5657 = vld [vmem:[#allocation3 + $0x1d0] sm:$0xff]
      %v5658 = vld [vmem:[#allocation3 + $0x1d8] sm:$0xff]
      %v5659 = vld [vmem:[#allocation3 + $0x1e0] sm:$0xff]
      %v5660 = vld [vmem:[#allocation3 + $0x1e8] sm:$0xff]
      %v5661 = vld [vmem:[#allocation3 + $0x1f0] sm:$0xff]
      %v5662 = vld [vmem:[#allocation3 + $0x1f8] sm:$0xff]
      %v5663 = vld [vmem:[#allocation3 + $0x200] sm:$0xff]
      %v5664 = vld [vmem:[#allocation3 + $0x208] sm:$0xff]
      %v5665 = vld [vmem:[#allocation3 + $0x210] sm:$0xff]
      %v5666 = vld [vmem:[#allocation3 + $0x218] sm:$0xff]
      %v5667 = vld [vmem:[#allocation3 + $0x220] sm:$0xff]
      %v5668 = vld [vmem:[#allocation3 + $0x228] sm:$0xff]
      %v5669 = vld [vmem:[#allocation3 + $0x230] sm:$0xff]
      %v5670 = vld [vmem:[#allocation3 + $0x238] sm:$0xff]
      %v5671 = vld [vmem:[#allocation3 + $0x240] sm:$0xff]
      %v5672 = vld [vmem:[#allocation3 + $0x248] sm:$0xff]
      %v5673 = vld [vmem:[#allocation3 + $0x250] sm:$0xff]
      %v5674 = vld [vmem:[#allocation3 + $0x258] sm:$0xff]
      %v5675 = vld [vmem:[#allocation3 + $0x260] sm:$0xff]
      %v5676 = vld [vmem:[#allocation3 + $0x268] sm:$0xff]
      %v5677 = vld [vmem:[#allocation3 + $0x270] sm:$0xff]
      %v5678 = vld [vmem:[#allocation3 + $0x278] sm:$0xff]
      %v5679 = vld [vmem:[#allocation3 + $0x280] sm:$0xff]
      %v5680 = vld [vmem:[#allocation3 + $0x288] sm:$0xff]
      %v5681 = vld [vmem:[#allocation3 + $0x290] sm:$0xff]
      %v5682 = vld [vmem:[#allocation3 + $0x298] sm:$0xff]
      %v5683 = vld [vmem:[#allocation3 + $0x2a0] sm:$0xff]
      %v5684 = vld [vmem:[#allocation3 + $0x2a8] sm:$0xff]
      %v5685 = vld [vmem:[#allocation3 + $0x2b0] sm:$0xff]
      %v5686 = vld [vmem:[#allocation3 + $0x2b8] sm:$0xff]
      %v5687 = vld [vmem:[#allocation3 + $0x2c0] sm:$0xff]
      %v5688 = vld [vmem:[#allocation3 + $0x2c8] sm:$0xff]
      %v5689 = vld [vmem:[#allocation3 + $0x2d0] sm:$0xff]
      %v5690 = vld [vmem:[#allocation3 + $0x2d8] sm:$0xff]
      %v5691 = vld [vmem:[#allocation3 + $0x2e0] sm:$0xff]
      %v5692 = vld [vmem:[#allocation3 + $0x2e8] sm:$0xff]
      %v5693 = vld [vmem:[#allocation3 + $0x2f0] sm:$0xff]
      %v5694 = vld [vmem:[#allocation3 + $0x2f8] sm:$0xff]
      %v5695 = vld [vmem:[#allocation3 + $0x300] sm:$0xff]
      %v5696 = vld [vmem:[#allocation3 + $0x308] sm:$0xff]
      %v5697 = vld [vmem:[#allocation3 + $0x310] sm:$0xff]
      %v5698 = vld [vmem:[#allocation3 + $0x318] sm:$0xff]
      %v5699 = vld [vmem:[#allocation3 + $0x320] sm:$0xff]
      %v5700 = vld [vmem:[#allocation3 + $0x328] sm:$0xff]
      %v5701 = vld [vmem:[#allocation3 + $0x330] sm:$0xff]
      %v5702 = vld [vmem:[#allocation3 + $0x338] sm:$0xff]
      %v5703 = vld [vmem:[#allocation3 + $0x340] sm:$0xff]
      %v5704 = vld [vmem:[#allocation3 + $0x348] sm:$0xff]
      %v5705 = vld [vmem:[#allocation3 + $0x350] sm:$0xff]
      %v5706 = vld [vmem:[#allocation3 + $0x358] sm:$0xff]
      %v5707 = vld [vmem:[#allocation3 + $0x360] sm:$0xff]
      %v5708 = vld [vmem:[#allocation3 + $0x368] sm:$0xff]
      %v5709 = vld [vmem:[#allocation3 + $0x370] sm:$0xff]
      %v5710 = vld [vmem:[#allocation3 + $0x378] sm:$0xff]
      %v5711 = vld [vmem:[#allocation3 + $0x380] sm:$0xff]
      %v5712 = vld [vmem:[#allocation3 + $0x388] sm:$0xff]
      %v5713 = vld [vmem:[#allocation3 + $0x390] sm:$0xff]
      %v5714 = vld [vmem:[#allocation3 + $0x398] sm:$0xff]
      %v5715 = vld [vmem:[#allocation3 + $0x3a0] sm:$0xff]
      %v5716 = vld [vmem:[#allocation3 + $0x3a8] sm:$0xff]
      %v5717 = vld [vmem:[#allocation3 + $0x3b0] sm:$0xff]
      %v5718 = vld [vmem:[#allocation3 + $0x3b8] sm:$0xff]
      %v5719 = vld [vmem:[#allocation3 + $0x3c0] sm:$0xff]
      %v5720 = vld [vmem:[#allocation3 + $0x3c8] sm:$0xff]
      %v5721 = vld [vmem:[#allocation3 + $0x3d0] sm:$0xff]
      %v5722 = vld [vmem:[#allocation3 + $0x3d8] sm:$0xff]
      %v5723 = vld [vmem:[#allocation3 + $0x3e0] sm:$0xff]
      %v5724 = vld [vmem:[#allocation3 + $0x3e8] sm:$0xff]
      %v5725 = vld [vmem:[#allocation3 + $0x3f0] sm:$0xff]
      %v5726 = vld [vmem:[#allocation3 + $0x3f8] sm:$0xff]
      %v5727 = vld [vmem:[#allocation3 + $0x400] sm:$0xff]
      %v5728 = vld [vmem:[#allocation3 + $0x408] sm:$0xff]
      %v5729 = vld [vmem:[#allocation3 + $0x410] sm:$0xff]
      %v5730 = vld [vmem:[#allocation3 + $0x418] sm:$0xff]
      %v5731 = vld [vmem:[#allocation3 + $0x420] sm:$0xff]
      %v5732 = vld [vmem:[#allocation3 + $0x428] sm:$0xff]
      %v5733 = vld [vmem:[#allocation3 + $0x430] sm:$0xff]
      %v5734 = vld [vmem:[#allocation3 + $0x438] sm:$0xff]
      %v5735 = vld [vmem:[#allocation3 + $0x440] sm:$0xff]
      %v5736 = vld [vmem:[#allocation3 + $0x448] sm:$0xff]
      %v5737 = vld [vmem:[#allocation3 + $0x450] sm:$0xff]
      %v5738 = vld [vmem:[#allocation3 + $0x458] sm:$0xff]
      %v5739 = vld [vmem:[#allocation3 + $0x460] sm:$0xff]
      %v5740 = vld [vmem:[#allocation3 + $0x468] sm:$0xff]
      %v5741 = vld [vmem:[#allocation3 + $0x470] sm:$0xff]
      %v5742 = vld [vmem:[#allocation3 + $0x478] sm:$0xff]
      %v5743 = vld [vmem:[#allocation3 + $0x480] sm:$0xff]
      %v5744 = vld [vmem:[#allocation3 + $0x488] sm:$0xff]
      %v5745 = vld [vmem:[#allocation3 + $0x490] sm:$0xff]
      %v5746 = vld [vmem:[#allocation3 + $0x498] sm:$0xff]
      %v5747 = vld [vmem:[#allocation3 + $0x4a0] sm:$0xff]
      %v5748 = vld [vmem:[#allocation3 + $0x4a8] sm:$0xff]
      %v5749 = vld [vmem:[#allocation3 + $0x4b0] sm:$0xff]
      %v5750 = vld [vmem:[#allocation3 + $0x4b8] sm:$0xff]
      %v5751 = vld [vmem:[#allocation3 + $0x4c0] sm:$0xff]
      %v5752 = vld [vmem:[#allocation3 + $0x4c8] sm:$0xff]
      %v5753 = vld [vmem:[#allocation3 + $0x4d0] sm:$0xff]
      %v5754 = vld [vmem:[#allocation3 + $0x4d8] sm:$0xff]
      %v5755 = vld [vmem:[#allocation3 + $0x4e0] sm:$0xff]
      %v5756 = vld [vmem:[#allocation3 + $0x4e8] sm:$0xff]
      %v5757 = vld [vmem:[#allocation3 + $0x4f0] sm:$0xff]
      %v5758 = vld [vmem:[#allocation3 + $0x4f8] sm:$0xff]
      %v5759 = vld [vmem:[#allocation3 + $0x500] sm:$0xff]
      %v5760 = vld [vmem:[#allocation3 + $0x508] sm:$0xff]
      %v5761 = vld [vmem:[#allocation3 + $0x510] sm:$0xff]
      %v5762 = vld [vmem:[#allocation3 + $0x518] sm:$0xff]
      %v5763 = vld [vmem:[#allocation3 + $0x520] sm:$0xff]
      %v5764 = vld [vmem:[#allocation3 + $0x528] sm:$0xff]
      %v5765 = vld [vmem:[#allocation3 + $0x530] sm:$0xff]
      %v5766 = vld [vmem:[#allocation3 + $0x538] sm:$0xff]
      %v5767 = vld [vmem:[#allocation3 + $0x540] sm:$0xff]
      %v5768 = vld [vmem:[#allocation3 + $0x548] sm:$0xff]
      %v5769 = vld [vmem:[#allocation3 + $0x550] sm:$0xff]
      %v5770 = vld [vmem:[#allocation3 + $0x558] sm:$0xff]
      %v5771 = vld [vmem:[#allocation3 + $0x560] sm:$0xff]
      %v5772 = vld [vmem:[#allocation3 + $0x568] sm:$0xff]
      %v5773 = vld [vmem:[#allocation3 + $0x570] sm:$0xff]
      %v5774 = vld [vmem:[#allocation3 + $0x578] sm:$0xff]
      %v5775 = vld [vmem:[#allocation3 + $0x580] sm:$0xff]
      %v5776 = vld [vmem:[#allocation3 + $0x588] sm:$0xff]
      %v5777 = vld [vmem:[#allocation3 + $0x590] sm:$0xff]
      %v5778 = vld [vmem:[#allocation3 + $0x598] sm:$0xff]
      %v5779 = vld [vmem:[#allocation3 + $0x5a0] sm:$0xff]
      %v5780 = vld [vmem:[#allocation3 + $0x5a8] sm:$0xff]
      %v5781 = vld [vmem:[#allocation3 + $0x5b0] sm:$0xff]
      %v5782 = vld [vmem:[#allocation3 + $0x5b8] sm:$0xff]
      %v5783 = vld [vmem:[#allocation3 + $0x5c0] sm:$0xff]
      %v5784 = vld [vmem:[#allocation3 + $0x5c8] sm:$0xff]
      %v5785 = vld [vmem:[#allocation3 + $0x5d0] sm:$0xff]
      %v5786 = vld [vmem:[#allocation3 + $0x5d8] sm:$0xff]
      %v5787 = vld [vmem:[#allocation3 + $0x5e0] sm:$0xff]
      %v5788 = vld [vmem:[#allocation3 + $0x5e8] sm:$0xff]
      %v5789 = vld [vmem:[#allocation3 + $0x5f0] sm:$0xff]
      %v5790 = vld [vmem:[#allocation3 + $0x5f8] sm:$0xff]
      %v5791 = vld [vmem:[#allocation3 + $0x600] sm:$0xff]
      %v5792 = vld [vmem:[#allocation3 + $0x608] sm:$0xff]
      %v5793 = vld [vmem:[#allocation3 + $0x610] sm:$0xff]
      %v5794 = vld [vmem:[#allocation3 + $0x618] sm:$0xff]
      %v5795 = vld [vmem:[#allocation3 + $0x620] sm:$0xff]
      %v5796 = vld [vmem:[#allocation3 + $0x628] sm:$0xff]
      %v5797 = vld [vmem:[#allocation3 + $0x630] sm:$0xff]
      %v5798 = vld [vmem:[#allocation3 + $0x638] sm:$0xff]
      %v5799 = vld [vmem:[%s8] sm:$0x3]
      %5801 = vset.pattern.permute.xlu0 0
      %5802 = vperm.xlu0 %5801, %v5799
      %v5803 = vpop.permute.xlu0 %5802
      %v5807 = vcombine.high %v5597, %v5597
      %v5809 = vunpack.c.l.s4 1983009808
      %v5810 = vunpack.c.0.s8 %v5809
      %v5811 = vlaneseq
      %v5812 = vshrl.u32 %v5811, 7
      %v5813 = vsub.s32 %v5810, %v5812
      %v5814 = vrot.slane %v5597, %v5813
      %v5816 = vunpack.c.l.s4 1983009808
      %v5817 = vunpack.c.0.s8 %v5816
      %v5818 = vlaneseq
      %v5819 = vshrl.u32 %v5818, 7
      %v5820 = vsub.s32 %v5817, %v5819
      %v5821 = vrot.slane %v5807, %v5820
      %v5822 = vcombine.high %v5814, %v5814
      %v5823 = vcombine.high %v5821, %v5821
      %v5824 = vcombine.high %v5598, %v5598
      %v5826 = vunpack.c.l.s4 1983009808
      %v5827 = vunpack.c.0.s8 %v5826
      %v5828 = vlaneseq
      %v5829 = vshrl.u32 %v5828, 7
      %v5830 = vsub.s32 %v5827, %v5829
      %v5831 = vrot.slane %v5598, %v5830
      %v5833 = vunpack.c.l.s4 1983009808
      %v5834 = vunpack.c.0.s8 %v5833
      %v5835 = vlaneseq
      %v5836 = vshrl.u32 %v5835, 7
      %v5837 = vsub.s32 %v5834, %v5836
      %v5838 = vrot.slane %v5824, %v5837
      %v5839 = vcombine.high %v5831, %v5831
      %v5846 = vsel %vm1363, %v5838, 0
      %5848 = vmatprep.subr.mxu0 %v5630
      %5849 = vmatpush1.msra.mxu0 %v5629
      %5850 = vmatprep.subr.mxu0 %v5628
      %5851 = vmatpush1.msra.mxu0 %v5627
      %5852 = vmatprep.subr.mxu0 %v5626
      %5853 = vmatpush1.msra.mxu0 %v5625
      %5854 = vmatprep.subr.mxu0 %v5624
      %5855 = vmatpush1.msra.mxu0 %v5623
      %5856 = vmatprep.subr.mxu0 %v5622
      %5857 = vmatpush1.msra.mxu0 %v5621
      %5858 = vmatprep.subr.mxu0 %v5620
      %5859 = vmatpush1.msra.mxu0 %v5619
      %5860 = vmatprep.subr.mxu0 %v5618
      %5861 = vmatpush1.msra.mxu0 %v5617
      %5862 = vmatprep.subr.mxu0 %v5616
      %5863 = vmatpush1.msra.mxu0 %v5615
      %5864 = vmatprep.subr.mxu0 %v5614
      %5865 = vmatpush1.msra.mxu0 %v5613
      %5866 = vmatprep.subr.mxu0 %v5612
      %5867 = vmatpush1.msra.mxu0 %v5611
      %5868 = vmatprep.subr.mxu0 %v5610
      %5869 = vmatpush1.msra.mxu0 %v5609
      %5870 = vmatprep.subr.mxu0 %v5608
      %5871 = vmatpush1.msra.mxu0 %v5607
      %5872 = vmatprep.subr.mxu0 %v5606
      %5873 = vmatpush1.msra.mxu0 %v5605
      %5874 = vmatprep.subr.mxu0 %v5604
      %5875 = vmatpush1.msra.mxu0 %v5603
      %5876 = vmatprep.subr.mxu0 %v5602
      %5877 = vmatpush1.msra.mxu0 %v5601
      %5878 = vmatprep.subr.mxu0 %v5600
      %5879 = vmatpush1.msra.mxu0 %v5599
      %5880 = vmatprep.subr.mxu0 %v5662
      %5881 = vmatpush2.msra.mxu0 %v5661
      %5882 = vmatprep.subr.mxu0 %v5660
      %5883 = vmatpush2.msra.mxu0 %v5659
      %5884 = vmatprep.subr.mxu0 %v5658
      %5885 = vmatpush2.msra.mxu0 %v5657
      %5886 = vmatprep.subr.mxu0 %v5656
      %5887 = vmatpush2.msra.mxu0 %v5655
      %5888 = vmatprep.subr.mxu0 %v5654
      %5889 = vmatpush2.msra.mxu0 %v5653
      %5890 = vmatprep.subr.mxu0 %v5652
      %5891 = vmatpush2.msra.mxu0 %v5651
      %5892 = vmatprep.subr.mxu0 %v5650
      %5893 = vmatpush2.msra.mxu0 %v5649
      %5894 = vmatprep.subr.mxu0 %v5648
      %5895 = vmatpush2.msra.mxu0 %v5647
      %5896 = vmatprep.subr.mxu0 %v5646
      %5897 = vmatpush2.msra.mxu0 %v5645
      %5898 = vmatprep.subr.mxu0 %v5644
      %5899 = vmatpush2.msra.mxu0 %v5643
      %5900 = vmatprep.subr.mxu0 %v5642
      %5901 = vmatpush2.msra.mxu0 %v5641
      %5902 = vmatprep.subr.mxu0 %v5640
      %5903 = vmatpush2.msra.mxu0 %v5639
      %5904 = vmatprep.subr.mxu0 %v5638
      %5905 = vmatpush2.msra.mxu0 %v5637
      %5906 = vmatprep.subr.mxu0 %v5636
      %5907 = vmatpush2.msra.mxu0 %v5635
      %5908 = vmatprep.subr.mxu0 %v5634
      %5909 = vmatpush2.msra.mxu0 %v5633
      %5910 = vmatprep.subr.mxu0 %v5632
      %5911 = vmatpush2.msra.mxu0 %v5631
      %5912 = vmatprep.mubr.f32.mxu0 %v5822
      %5913 = vmatmul.mubr.f32.gmra.mxu0 %v5814
      %v5914 = vpop.f32.mrf.mxu0
      %v5915 = vadd.f32 %v5803, %v5914
      %v5916 = vpop.f32.mrf.mxu0
      %v5917 = vadd.f32 %v5803, %v5916
      %5918 = vdwg.mxu0
      %5919 = vmatprep.subr.mxu0 %v5694
      %5920 = vmatpush1.msra.mxu0 %v5693
      %5921 = vmatprep.subr.mxu0 %v5692
      %5922 = vmatpush1.msra.mxu0 %v5691
      %5923 = vmatprep.subr.mxu0 %v5690
      %5924 = vmatpush1.msra.mxu0 %v5689
      %5925 = vmatprep.subr.mxu0 %v5688
      %5926 = vmatpush1.msra.mxu0 %v5687
      %5927 = vmatprep.subr.mxu0 %v5686
      %5928 = vmatpush1.msra.mxu0 %v5685
      %5929 = vmatprep.subr.mxu0 %v5684
      %5930 = vmatpush1.msra.mxu0 %v5683
      %5931 = vmatprep.subr.mxu0 %v5682
      %5932 = vmatpush1.msra.mxu0 %v5681
      %5933 = vmatprep.subr.mxu0 %v5680
      %5934 = vmatpush1.msra.mxu0 %v5679
      %5935 = vmatprep.subr.mxu0 %v5678
      %5936 = vmatpush1.msra.mxu0 %v5677
      %5937 = vmatprep.subr.mxu0 %v5676
      %5938 = vmatpush1.msra.mxu0 %v5675
      %5939 = vmatprep.subr.mxu0 %v5674
      %5940 = vmatpush1.msra.mxu0 %v5673
      %5941 = vmatprep.subr.mxu0 %v5672
      %5942 = vmatpush1.msra.mxu0 %v5671
      %5943 = vmatprep.subr.mxu0 %v5670
      %5944 = vmatpush1.msra.mxu0 %v5669
      %5945 = vmatprep.subr.mxu0 %v5668
      %5946 = vmatpush1.msra.mxu0 %v5667
      %5947 = vmatprep.subr.mxu0 %v5666
      %5948 = vmatpush1.msra.mxu0 %v5665
      %5949 = vmatprep.subr.mxu0 %v5664
      %5950 = vmatpush1.msra.mxu0 %v5663
      %5951 = vmatprep.subr.mxu0 %v5726
      %5952 = vmatpush2.msra.mxu0 %v5725
      %5953 = vmatprep.subr.mxu0 %v5724
      %5954 = vmatpush2.msra.mxu0 %v5723
      %5955 = vmatprep.subr.mxu0 %v5722
      %5956 = vmatpush2.msra.mxu0 %v5721
      %5957 = vmatprep.subr.mxu0 %v5720
      %5958 = vmatpush2.msra.mxu0 %v5719
      %5959 = vmatprep.subr.mxu0 %v5718
      %5960 = vmatpush2.msra.mxu0 %v5717
      %5961 = vmatprep.subr.mxu0 %v5716
      %5962 = vmatpush2.msra.mxu0 %v5715
      %5963 = vmatprep.subr.mxu0 %v5714
      %5964 = vmatpush2.msra.mxu0 %v5713
      %5965 = vmatprep.subr.mxu0 %v5712
      %5966 = vmatpush2.msra.mxu0 %v5711
      %5967 = vmatprep.subr.mxu0 %v5710
      %5968 = vmatpush2.msra.mxu0 %v5709
      %5969 = vmatprep.subr.mxu0 %v5708
      %5970 = vmatpush2.msra.mxu0 %v5707
      %5971 = vmatprep.subr.mxu0 %v5706
      %5972 = vmatpush2.msra.mxu0 %v5705
      %5973 = vmatprep.subr.mxu0 %v5704
      %5974 = vmatpush2.msra.mxu0 %v5703
      %5975 = vmatprep.subr.mxu0 %v5702
      %5976 = vmatpush2.msra.mxu0 %v5701
      %5977 = vmatprep.subr.mxu0 %v5700
      %5978 = vmatpush2.msra.mxu0 %v5699
      %5979 = vmatprep.subr.mxu0 %v5698
      %5980 = vmatpush2.msra.mxu0 %v5697
      %5981 = vmatprep.subr.mxu0 %v5696
      %5982 = vmatpush2.msra.mxu0 %v5695
      %5983 = vmatprep.mubr.f32.mxu0 %v5823
      %5984 = vmatmul.mubr.f32.gmra.mxu0 %v5821
      %v5985 = vpop.f32.mrf.mxu0
      %v5986 = vadd.f32 %v5915, %v5985
      %v5987 = vpop.f32.mrf.mxu0
      %v5988 = vadd.f32 %v5917, %v5987
      %5989 = vdwg.mxu0
      %5990 = vmatprep.subr.mxu0 %v5758
      %5991 = vmatpush1.msra.mxu0 %v5757
      %5992 = vmatprep.subr.mxu0 %v5756
      %5993 = vmatpush1.msra.mxu0 %v5755
      %5994 = vmatprep.subr.mxu0 %v5754
      %5995 = vmatpush1.msra.mxu0 %v5753
      %5996 = vmatprep.subr.mxu0 %v5752
      %5997 = vmatpush1.msra.mxu0 %v5751
      %5998 = vmatprep.subr.mxu0 %v5750
      %5999 = vmatpush1.msra.mxu0 %v5749
      %6000 = vmatprep.subr.mxu0 %v5748
      %6001 = vmatpush1.msra.mxu0 %v5747
      %6002 = vmatprep.subr.mxu0 %v5746
      %6003 = vmatpush1.msra.mxu0 %v5745
      %6004 = vmatprep.subr.mxu0 %v5744
      %6005 = vmatpush1.msra.mxu0 %v5743
      %6006 = vmatprep.subr.mxu0 %v5742
      %6007 = vmatpush1.msra.mxu0 %v5741
      %6008 = vmatprep.subr.mxu0 %v5740
      %6009 = vmatpush1.msra.mxu0 %v5739
      %6010 = vmatprep.subr.mxu0 %v5738
      %6011 = vmatpush1.msra.mxu0 %v5737
      %6012 = vmatprep.subr.mxu0 %v5736
      %6013 = vmatpush1.msra.mxu0 %v5735
      %6014 = vmatprep.subr.mxu0 %v5734
      %6015 = vmatpush1.msra.mxu0 %v5733
      %6016 = vmatprep.subr.mxu0 %v5732
      %6017 = vmatpush1.msra.mxu0 %v5731
      %6018 = vmatprep.subr.mxu0 %v5730
      %6019 = vmatpush1.msra.mxu0 %v5729
      %6020 = vmatprep.subr.mxu0 %v5728
      %6021 = vmatpush1.msra.mxu0 %v5727
      %6022 = vmatprep.subr.mxu0 %v5790
      %6023 = vmatpush2.msra.mxu0 %v5789
      %6024 = vmatprep.subr.mxu0 %v5788
      %6025 = vmatpush2.msra.mxu0 %v5787
      %6026 = vmatprep.subr.mxu0 %v5786
      %6027 = vmatpush2.msra.mxu0 %v5785
      %6028 = vmatprep.subr.mxu0 %v5784
      %6029 = vmatpush2.msra.mxu0 %v5783
      %6030 = vmatprep.subr.mxu0 %v5782
      %6031 = vmatpush2.msra.mxu0 %v5781
      %6032 = vmatprep.subr.mxu0 %v5780
      %6033 = vmatpush2.msra.mxu0 %v5779
      %6034 = vmatprep.subr.mxu0 %v5778
      %6035 = vmatpush2.msra.mxu0 %v5777
      %6036 = vmatprep.subr.mxu0 %v5776
      %6037 = vmatpush2.msra.mxu0 %v5775
      %6038 = vmatprep.subr.mxu0 %v5774
      %6039 = vmatpush2.msra.mxu0 %v5773
      %6040 = vmatprep.subr.mxu0 %v5772
      %6041 = vmatpush2.msra.mxu0 %v5771
      %6042 = vmatprep.subr.mxu0 %v5770
      %6043 = vmatpush2.msra.mxu0 %v5769
      %6044 = vmatprep.subr.mxu0 %v5768
      %6045 = vmatpush2.msra.mxu0 %v5767
      %6046 = vmatprep.subr.mxu0 %v5766
      %6047 = vmatpush2.msra.mxu0 %v5765
      %6048 = vmatprep.subr.mxu0 %v5764
      %6049 = vmatpush2.msra.mxu0 %v5763
      %6050 = vmatprep.subr.mxu0 %v5762
      %6051 = vmatpush2.msra.mxu0 %v5761
      %6052 = vmatprep.subr.mxu0 %v5760
      %6053 = vmatpush2.msra.mxu0 %v5759
      %6054 = vmatprep.mubr.f32.mxu0 %v5839
      %6055 = vmatmul.mubr.f32.gmra.mxu0 %v5831
      %v6056 = vpop.f32.mrf.mxu0
      %v6057 = vadd.f32 %v5986, %v6056
      %v6058 = vpop.f32.mrf.mxu0
      %v6059 = vadd.f32 %v5988, %v6058
      %6060 = vdwg.mxu0
      %6061 = vmatprep.subr.mxu0 0.0
      %6062 = vmatpush1.msra.mxu0 0.0
      %6063 = vmatprep.subr.mxu0 0.0
      %6064 = vmatpush1.msra.mxu0 0.0
      %6065 = vmatprep.subr.mxu0 0.0
      %6066 = vmatpush1.msra.mxu0 0.0
      %6067 = vmatprep.subr.mxu0 0.0
      %6068 = vmatpush1.msra.mxu0 0.0
      %6069 = vmatprep.subr.mxu0 0.0
      %6070 = vmatpush1.msra.mxu0 0.0
      %6071 = vmatprep.subr.mxu0 0.0
      %6072 = vmatpush1.msra.mxu0 0.0
      %6073 = vmatprep.subr.mxu0 0.0
      %6074 = vmatpush1.msra.mxu0 0.0
      %6075 = vmatprep.subr.mxu0 0.0
      %6076 = vmatpush1.msra.mxu0 0.0
      %6077 = vmatprep.subr.mxu0 0.0
      %6078 = vmatpush1.msra.mxu0 0.0
      %6079 = vmatprep.subr.mxu0 0.0
      %6080 = vmatpush1.msra.mxu0 0.0
      %6081 = vmatprep.subr.mxu0 0.0
      %6082 = vmatpush1.msra.mxu0 0.0
      %6083 = vmatprep.subr.mxu0 0.0
      %6084 = vmatpush1.msra.mxu0 0.0
      %6085 = vmatprep.subr.mxu0 %v5798
      %6086 = vmatpush1.msra.mxu0 %v5797
      %6087 = vmatprep.subr.mxu0 %v5796
      %6088 = vmatpush1.msra.mxu0 %v5795
      %6089 = vmatprep.subr.mxu0 %v5794
      %6090 = vmatpush1.msra.mxu0 %v5793
      %6091 = vmatprep.subr.mxu0 %v5792
      %6092 = vmatpush1.msra.mxu0 %v5791
      %6093 = vmatprep.subr.mxu0 0.0
      %6094 = vmatpush2.msra.mxu0 0.0
      %6095 = vmatprep.subr.mxu0 0.0
      %6096 = vmatpush2.msra.mxu0 0.0
      %6097 = vmatprep.subr.mxu0 0.0
      %6098 = vmatpush2.msra.mxu0 0.0
      %6099 = vmatprep.subr.mxu0 0.0
      %6100 = vmatpush2.msra.mxu0 0.0
      %6101 = vmatprep.subr.mxu0 0.0
      %6102 = vmatpush2.msra.mxu0 0.0
      %6103 = vmatprep.subr.mxu0 0.0
      %6104 = vmatpush2.msra.mxu0 0.0
      %6105 = vmatprep.subr.mxu0 0.0
      %6106 = vmatpush2.msra.mxu0 0.0
      %6107 = vmatprep.subr.mxu0 0.0
      %6108 = vmatpush2.msra.mxu0 0.0
      %6109 = vmatprep.subr.mxu0 0.0
      %6110 = vmatpush2.msra.mxu0 0.0
      %6111 = vmatprep.subr.mxu0 0.0
      %6112 = vmatpush2.msra.mxu0 0.0
      %6113 = vmatprep.subr.mxu0 0.0
      %6114 = vmatpush2.msra.mxu0 0.0
      %6115 = vmatprep.subr.mxu0 0.0
      %6116 = vmatpush2.msra.mxu0 0.0
      %6117 = vmatprep.subr.mxu0 0.0
      %6118 = vmatpush2.msra.mxu0 0.0
      %6119 = vmatprep.subr.mxu0 0.0
      %6120 = vmatpush2.msra.mxu0 0.0
      %6121 = vmatprep.subr.mxu0 0.0
      %6122 = vmatpush2.msra.mxu0 0.0
      %6123 = vmatprep.subr.mxu0 0.0
      %6124 = vmatpush2.msra.mxu0 0.0
      %6125 = vmatprep.mubr.f32.mxu0 0.0
      %6126 = vmatmul.mubr.f32.gmra.mxu0 %v5846
      %v6127 = vpop.f32.mrf.mxu0
      %v6128 = vadd.f32 %v6057, %v6127
      %v6129 = vpop.f32.mrf.mxu0
      %v6130 = vadd.f32 %v6059, %v6129
      %6131 = vdwg.mxu0
      %v6134 = vcombine.low %v6128, %v6130
      %v6136 = vunpack.c.l.s4 1983009808
      %v6137 = vunpack.c.0.s8 %v6136
      %v6138 = vlaneseq
      %v6139 = vshrl.u32 %v6138, 7
      %v6140 = vsub.s32 %v6137, %v6139
      %v6141 = vrot.slane %v6134, %v6140
      %6143 = vst [vmem:[%s332] sm:$0xf] %v6141
      %p6144 = scmp.lt.s32.totalorder %s20, 1
      %s6145 = scalar_select %p6144, %s20, 1
      %s6146 = smul.addr %s6145, 2
      %s6147 = smul.addr %s6146, 2
      %s6148 = scalar_lea.vmem %s9, %s6147
      // Predicated region
      $region57: #{srcnn_forward.1} parent=55 // pred_check
        %p6149 = pneg %p232
      $region58: #{srcnn_forward.1} parent=55 // pred_check_branch
        %6151 = sbr.rel (%p6149) target = $region60
      $region59: #{srcnn_forward.1} parent=55 // pred_region
        _
      $region60: #{srcnn_forward.1} parent=55 // pred_fallthru
        _
    $region56: #{srcnn_forward.1} parent=5 // pred_fallthru
      _
    %p6152 = scmp.le.s32.totalorder 2, %s15
    // Predicated region
    $region61: #{srcnn_forward.1} parent=5 // pred_check
      %p6153 = pneg %p6152
    $region62: #{srcnn_forward.1} parent=5 // pred_check_branch
      %6155 = sbr.rel (%p6153) target = $region64
    $region63: #{srcnn_forward.1} parent=5 // pred_region
      %s6156 = ssub.s32 %s15, 2
      // Predicated region
      $region65: #{srcnn_forward.1} parent=63 // pred_check
        %p6157 = pneg %p238
      $region66: #{srcnn_forward.1} parent=63 // pred_check_branch
        %6159 = sbr.rel (%p6157) target = $region68
      $region67: #{srcnn_forward.1} parent=63 // pred_region
        %p6160 = scmp.lt.s32.totalorder %s21, 1
        %s6161 = scalar_select %p6160, %s21, 1
        %s6162 = smul.addr %s6161, 2
        %s6163 = smul.addr %s6162, 2
        %s6164 = scalar_lea.vmem %s9, %s6163
      $region68: #{srcnn_forward.1} parent=63 // pred_fallthru
        _
    $region64: #{srcnn_forward.1} parent=5 // pred_fallthru
      _
  $region6: #{srcnn_forward.1} parent=0 // loop_footer
    %s19 = sadd.s32 1, %s15
  $region7: #{srcnn_forward.1} parent=0 // loop_footer_branch
    %14 = sbr.rel target = $region3
  $region8: #{srcnn_forward.1} parent=0 // loop_exit
    _

</llo_original>
